<compile_context>
chip_gen: v5e
topology: v5e:2x2
jax: 0.10.0
libtpu: 0.0.40
codegen_flags: <defaults>
</compile_context>

<pallas_src>
import numpy as np
import jax
import jax.numpy as jnp
from jax.experimental import pallas as pl
from jax.experimental.pallas import tpu as pltpu

# ----- hyper-parameters (consistent with the reference module) -----
d_model = 32
d_ff = 64
d_k = 8
d_v = 8
n_heads = 4
n_layers = 2
tgt_len = 5
src_len = 5
tgt_vocab_size = 16

LN_EPS = 1e-5
NEG_INF = -1e9                        # same fill value as reference masked_fill_
SCALE = float(1.0 / np.sqrt(d_k))     # python float -> literal in the kernel

B = 2             # batch (static for this config)
LP = 8            # padded sequence length (5 -> 8): tile-aligned blocks
R = B * LP        # 16 activation rows
D = d_model
H = n_heads
DK = d_k
NL = n_layers

# ----------------- packed weight-slab layout: one (W_ROWS, 32) f32 array --------
# per-head block : Wq(8) Wk(8) Wv(8) bq(8) bk(8) bv(8)          -> 48 rows
HEAD_ROWS = 6 * DK                        # 48
ATTN_HEAD_ROWS = H * HEAD_ROWS            # 192
# attention tail : Wo^T(32) bo(16) gamma(16) beta(16)           -> 80 rows
ATTN_ROWS = ATTN_HEAD_ROWS + 80           # 272
# FFN block      : W1a(32) W1b(32) b1a(16) b1b(16) W2a(32) W2b(32) b2(16) g(16) b(16)
FFN_ROWS = 208
LAYER_ROWS = 2 * ATTN_ROWS + FFN_ROWS     # 752
W_ROWS = NL * LAYER_ROWS                  # 1504

_DN_T = (((1,), (1,)), ((), ()))   # x @ W.T  (torch nn.Linear layout)
_DN_N = (((1,), (0,)), ((), ()))   # x @ W


def _attn_base(layer, kind):       # kind: 0 = self-attn, 1 = cross-attn
    return layer * LAYER_ROWS + kind * ATTN_ROWS


def _ffn_base(layer):
    return layer * LAYER_ROWS + 2 * ATTN_ROWS


def get_sinusoid_encoding_table(n_position, d_model_):
    def cal_angle(position, hid_idx):
        return position / np.power(10000, 2 * (hid_idx // 2) / d_model_)

    def get_posi_angle_vec(position):
        return [cal_angle(position, hid_j) for hid_j in range(d_model_)]

    table = np.array([get_posi_angle_vec(p) for p in range(n_position)])
    table[:, 0::2] = np.sin(table[:, 0::2])
    table[:, 1::2] = np.cos(table[:, 1::2])
    return jnp.asarray(table, dtype=jnp.float32)


# ------------------------------ fused decoder kernel ----------------------------

def _decoder_kernel(data_ref, w_ref, dec_out_ref, attn_ref):
    f32 = jnp.float32

    x = data_ref[0:R, :]                        # (16, 32) decoder activations
    enc_x = data_ref[R:2 * R, :]                # (16, 32) encoder outputs
    self_mask = data_ref[2 * R:3 * R, 0:LP]     # (16, 8) additive self-attn mask
    enc_mask = data_ref[3 * R:4 * R, 0:LP]      # (16, 8) additive cross-attn mask

    def layer_norm(v, g, b):
        mu = jnp.mean(v, axis=-1, keepdims=True)
        var = jnp.mean((v - mu) ** 2, axis=-1, keepdims=True)
        return g * (v - mu) * jax.lax.rsqrt(var + LN_EPS) + b

    def attention(x_q, x_kv, mask, layer, kind):
        base = _attn_base(layer, kind)
        tail = base + ATTN_HEAD_ROWS
        out = w_ref[tail + 32:tail + 48, :]          # bo (replicated to 16 rows)
        for h in range(H):                           # static unroll over heads
            o = base + h * HEAD_ROWS
            wq = w_ref[o:o + DK, :]                  # (8, 32) torch-layout slice
            wk = w_ref[o + DK:o + 2 * DK, :]
            wv = w_ref[o + 2 * DK:o + 3 * DK, :]
            bq = w_ref[o + 3 * DK:o + 4 * DK, 0:DK]  # (8, 8) replicated bias
            bk = w_ref[o + 4 * DK:o + 5 * DK, 0:DK]
            bv = w_ref[o + 5 * DK:o + 6 * DK, 0:DK]
            q_h = jax.lax.dot_general(x_q, wq, _DN_T, preferred_element_type=f32)
            k_h = jax.lax.dot_general(x_kv, wk, _DN_T, preferred_element_type=f32)
            v_h = jax.lax.dot_general(x_kv, wv, _DN_T, preferred_element_type=f32)
            ctx_blocks = []
            for b in range(B):                       # static unroll over batch
                r0 = b * LP                          # sublane-aligned slices
                qb = q_h[r0:r0 + LP, :] + bq
                kb = k_h[r0:r0 + LP, :] + bk
                vb = v_h[r0:r0 + LP, :] + bv
                s = jax.lax.dot_general(qb, kb, _DN_T, preferred_element_type=f32)
                s = s * SCALE + mask[r0:r0 + LP, :]
                s = s - jnp.max(s, axis=-1, keepdims=True)
                e = jnp.exp(s)
                p = e / jnp.sum(e, axis=-1, keepdims=True)   # exact softmax
                attn_ref[layer, kind, b * H + h, :, :] = p
                ctx_blocks.append(
                    jax.lax.dot_general(p, vb, _DN_N, preferred_element_type=f32))
            ctx_h = jnp.concatenate(ctx_blocks, axis=0)            # (16, 8)
            wo_h = w_ref[tail + h * DK:tail + (h + 1) * DK, :]     # (8, 32) Wo^T rows
            out = out + jax.lax.dot_general(ctx_h, wo_h, _DN_N,
                                            preferred_element_type=f32)
        g = w_ref[tail + 48:tail + 64, :]
        beta = w_ref[tail + 64:tail + 80, :]
        return layer_norm(out + x_q, g, beta)

    def ffn(x_in, layer):
        fb = _ffn_base(layer)
        w1a = w_ref[fb:fb + 32, :]
        w1b = w_ref[fb + 32:fb + 64, :]
        b1a = w_ref[fb + 64:fb + 80, :]
        b1b = w_ref[fb + 80:fb + 96, :]
        w2a = w_ref[fb + 96:fb + 128, :]
        w2b = w_ref[fb + 128:fb + 160, :]
        b2 = w_ref[fb + 160:fb + 176, :]
        g = w_ref[fb + 176:fb + 192, :]
        beta = w_ref[fb + 192:fb + 208, :]
        h1a = jnp.maximum(
            jax.lax.dot_general(x_in, w1a, _DN_T, preferred_element_type=jnp.float32) + b1a, 0.0)
        h1b = jnp.maximum(
            jax.lax.dot_general(x_in, w1b, _DN_T, preferred_element_type=jnp.float32) + b1b, 0.0)
        y = (jax.lax.dot_general(h1a, w2a, _DN_T, preferred_element_type=jnp.float32)
             + jax.lax.dot_general(h1b, w2b, _DN_T, preferred_element_type=jnp.float32)
             + b2)
        return layer_norm(y + x_in, g, beta)

    for layer in range(NL):                     # whole decoder in one kernel body
        x = attention(x, x, self_mask, layer, 0)
        x = attention(x, enc_x, enc_mask, layer, 1)
        x = ffn(x, layer)

    dec_out_ref[...] = x


# ------------------------------ decoder forward (wrapper) -----------------------

def _decoder_forward(params, dec_inputs, enc_inputs, enc_outputs):
    bsz, lq = dec_inputs.shape
    assert bsz == B and lq == tgt_len and enc_inputs.shape[1] == src_len

    # Embeddings (glue: gathers).  pos ids keep the reference's quirk.
    pos_ids = jnp.array([[5, 1, 2, 3, 4]], dtype=jnp.int32)
    dec_emb = params['tgt_emb'][dec_inputs] + params['pos_emb'][pos_ids]   # (B,5,32)
    dec_x = jnp.pad(dec_emb, ((0, 0), (0, LP - tgt_len), (0, 0)))
    enc_x = jnp.pad(enc_outputs, ((0, 0), (0, LP - src_len), (0, 0)))

    # Additive masks on the padded (8, 8) grid.  Padded key columns carry pad
    # token 0 -> masked; padded query rows always keep >= 1 unmasked key.
    dec_tok = jnp.pad(dec_inputs, ((0, 0), (0, LP - tgt_len)))
    enc_tok = jnp.pad(enc_inputs, ((0, 0), (0, LP - src_len)))
    causal = jnp.arange(LP)[None, :] > jnp.arange(LP)[:, None]
    self_bool = (dec_tok == 0)[:, None, :] | causal[None, :, :]
    enc_bool = jnp.broadcast_to((enc_tok == 0)[:, None, :], (B, LP, LP))
    self_mask = jnp.where(self_bool, NEG_INF, 0.0).astype(jnp.float32).reshape(R, LP)
    enc_mask = jnp.where(enc_bool, NEG_INF, 0.0).astype(jnp.float32).reshape(R, LP)
    mask_pad = jnp.zeros((R, D - LP), jnp.float32)

    data = jnp.concatenate([
        dec_x.reshape(R, D).astype(jnp.float32),
        enc_x.reshape(R, D).astype(jnp.float32),
        jnp.concatenate([self_mask, mask_pad], axis=1),
        jnp.concatenate([enc_mask, mask_pad], axis=1),
    ], axis=0)                                                   # (64, 32)

    vmem = pl.BlockSpec(memory_space=pltpu.MemorySpace.VMEM)     # whole-array VMEM
    dec_out_flat, attn_packed = pl.pallas_call(
        _decoder_kernel,
        out_shape=(
            jax.ShapeDtypeStruct((R, D), jnp.float32),
            jax.ShapeDtypeStruct((NL, 2, B * H, LP, LP), jnp.float32),
        ),
        in_specs=[vmem, vmem],
        out_specs=(vmem, vmem),
    )(data, params['w_slab'])

    dec_out = dec_out_flat.reshape(B, LP, D)[:, :tgt_len, :]
    attn = attn_packed.reshape(NL, 2, B, H, LP, LP)
    self_attns = [attn[l, 0, :, :, :tgt_len, :tgt_len] for l in range(NL)]
    enc_attns = [attn[l, 1, :, :, :tgt_len, :src_len] for l in range(NL)]
    return dec_out, self_attns, enc_attns


decoder_forward = jax.jit(_decoder_forward)


# ------------------------------ parameter init & packing ------------------------

def _init_linear(key, out_dim, in_dim):
    k1, k2 = jax.random.split(key)
    w = jax.random.normal(k1, (out_dim, in_dim), jnp.float32) * 0.05
    b = jax.random.normal(k2, (out_dim,), jnp.float32) * 0.05
    return w, b


def _rep_rows(vec, rows, width):
    v = jnp.asarray(vec, jnp.float32).reshape(1, -1)
    v = jnp.broadcast_to(v, (rows, v.shape[1]))
    if v.shape[1] < width:
        v = jnp.pad(v, ((0, 0), (0, width - v.shape[1])))
    return v


def pack_weight_slab(raw_layers):
    """Pack every weight/bias/LN param into one (W_ROWS, 32) f32 slab whose
    in-kernel slices are all sublane-aligned and lane-prefix."""
    blocks = []
    for lp in raw_layers:
        for prefix in ('sa', 'ea'):
            wq, bq = lp[prefix + '_wq'], lp[prefix + '_bq']
            wk, bk = lp[prefix + '_wk'], lp[prefix + '_bk']
            wv, bv = lp[prefix + '_wv'], lp[prefix + '_bv']
            wo, bo = lp[prefix + '_wo'], lp[prefix + '_bo']
            g, be = lp[prefix + '_g'], lp[prefix + '_b']
            for h in range(H):
                sl = slice(h * DK, (h + 1) * DK)
                blocks += [wq[sl, :], wk[sl, :], wv[sl, :],
                           _rep_rows(bq[sl], LP, D),
                           _rep_rows(bk[sl], LP, D),
                           _rep_rows(bv[sl], LP, D)]
            blocks += [wo.T, _rep_rows(bo, R, D), _rep_rows(g, R, D), _rep_rows(be, R, D)]
        w1, b1 = lp['ff_w1'], lp['ff_b1']      # (64, 32), (64,)
        w2, b2 = lp['ff_w2'], lp['ff_b2']      # (32, 64), (32,)
        g, be = lp['ff_g'], lp['ff_b']
        blocks += [w1[:D, :], w1[D:, :],
                   _rep_rows(b1[:D], R, D), _rep_rows(b1[D:], R, D),
                   w2[:, :D], w2[:, D:],
                   _rep_rows(b2, R, D), _rep_rows(g, R, D), _rep_rows(be, R, D)]
    slab = jnp.concatenate(blocks, axis=0)
    assert slab.shape == (W_ROWS, D), slab.shape
    return slab


def init_params(key):
    k_emb, k_layers = jax.random.split(key)
    tgt_emb = jax.random.normal(k_emb, (tgt_vocab_size, d_model), jnp.float32) * 0.05
    pos_emb = get_sinusoid_encoding_table(tgt_len + 1, d_model)

    raw_layers = []
    for lk in jax.random.split(k_layers, n_layers):
        k_sa, k_ea, k_ff = jax.random.split(lk, 3)
        lp = {}
        for prefix, kk in (('sa', k_sa), ('ea', k_ea)):
            ks = jax.random.split(kk, 4)
            lp[prefix + '_wq'], lp[prefix + '_bq'] = _init_linear(ks[0], d_k * n_heads, d_model)
            lp[prefix + '_wk'], lp[prefix + '_bk'] = _init_linear(ks[1], d_k * n_heads, d_model)
            lp[prefix + '_wv'], lp[prefix + '_bv'] = _init_linear(ks[2], d_v * n_heads, d_model)
            lp[prefix + '_wo'], lp[prefix + '_bo'] = _init_linear(ks[3], d_model, n_heads * d_v)
            lp[prefix + '_g'] = jnp.ones((d_model,), jnp.float32)
            lp[prefix + '_b'] = jnp.zeros((d_model,), jnp.float32)
        ks = jax.random.split(k_ff, 2)
        lp['ff_w1'], lp['ff_b1'] = _init_linear(ks[0], d_ff, d_model)   # Conv1d k=1
        lp['ff_w2'], lp['ff_b2'] = _init_linear(ks[1], d_model, d_ff)   # Conv1d k=1
        lp['ff_g'] = jnp.ones((d_model,), jnp.float32)
        lp['ff_b'] = jnp.zeros((d_model,), jnp.float32)
        raw_layers.append(lp)

    params = dict(tgt_emb=tgt_emb, pos_emb=pos_emb, w_slab=pack_weight_slab(raw_layers))
    return params, raw_layers


# ------------------------------ pure-JAX reference (for self-check) -------------

def _ref_layer_norm(v, g, b):
    mu = jnp.mean(v, axis=-1, keepdims=True)
    var = jnp.mean((v - mu) ** 2, axis=-1, keepdims=True)
    return g * (v - mu) * jax.lax.rsqrt(var + LN_EPS) + b


def _ref_mha(xq, xkv, mask, p, prefix):
    bsz, lq, _ = xq.shape
    lk = xkv.shape[1]
    q = (xq @ p[prefix + '_wq'].T + p[prefix + '_bq']).reshape(bsz, lq, H, d_k).transpose(0, 2, 1, 3)
    k = (xkv @ p[prefix + '_wk'].T + p[prefix + '_bk']).reshape(bsz, lk, H, d_k).transpose(0, 2, 1, 3)
    v = (xkv @ p[prefix + '_wv'].T + p[prefix + '_bv']).reshape(bsz, lk, H, d_v).transpose(0, 2, 1, 3)
    s = jnp.einsum('bhqd,bhkd->bhqk', q, k) / np.sqrt(d_k)
    s = jnp.where(mask[:, None, :, :], NEG_INF, s)
    attn = jax.nn.softmax(s, axis=-1)
    ctx = jnp.einsum('bhqk,bhkd->bhqd', attn, v).transpose(0, 2, 1, 3).reshape(bsz, lq, H * d_v)
    out = ctx @ p[prefix + '_wo'].T + p[prefix + '_bo']
    return _ref_layer_norm(out + xq, p[prefix + '_g'], p[prefix + '_b']), attn


def reference_forward(params, raw_layers, dec_inputs, enc_inputs, enc_outputs):
    bsz, lq = dec_inputs.shape
    pos_ids = jnp.array([[5, 1, 2, 3, 4]], dtype=jnp.int32)
    x = params['tgt_emb'][dec_inputs] + params['pos_emb'][pos_ids]
    causal = jnp.arange(lq)[None, :] > jnp.arange(lq)[:, None]
    self_mask = (dec_inputs == 0)[:, None, :] | causal[None, :, :]
    enc_mask = jnp.broadcast_to((enc_inputs == 0)[:, None, :], (bsz, lq, enc_inputs.shape[1]))
    self_attns, enc_attns = [], []
    for lp in raw_layers:
        x, a_self = _ref_mha(x, x, self_mask, lp, 'sa')
        x, a_enc = _ref_mha(x, enc_outputs, enc_mask, lp, 'ea')
        h1 = jnp.maximum(x @ lp['ff_w1'].T + lp['ff_b1'], 0.0)
        y = h1 @ lp['ff_w2'].T + lp['ff_b2']
        x = _ref_layer_norm(y + x, lp['ff_g'], lp['ff_b'])
        self_attns.append(a_self)
        enc_attns.append(a_enc)
    return x, self_attns, enc_attns


# ------------------------------ main ---------------------------------------------

if __name__ == "__main__":
    key = jax.random.PRNGKey(0)
    k_params, k_enc = jax.random.split(key)
    params, raw_layers = init_params(k_params)

    dec_inputs = jnp.array([[1, 2, 3, 4, 0],
                            [5, 6, 7, 0, 0]], dtype=jnp.int32)   # 0 = pad
    enc_inputs = jnp.array([[1, 2, 3, 0, 0],
                            [4, 5, 6, 7, 0]], dtype=jnp.int32)   # 0 = pad
    enc_outputs = jax.random.normal(k_enc, (B, src_len, d_model), jnp.float32)

    dec_out, self_attns, enc_attns = decoder_forward(params, dec_inputs,
                                                     enc_inputs, enc_outputs)
    jax.block_until_ready(dec_out)
    jax.block_until_ready(self_attns)
    jax.block_until_ready(enc_attns)

    assert dec_out.shape == (B, tgt_len, d_model)
    assert self_attns[0].shape == (B, n_heads, tgt_len, tgt_len)
    assert enc_attns[0].shape == (B, n_heads, tgt_len, src_len)
    assert bool(jnp.all(jnp.isfinite(dec_out)))

    # Pure-JAX reference check (same parameters, unpadded shapes).
    ref_out, ref_self, ref_enc = reference_forward(params, raw_layers, dec_inputs,
                                                   enc_inputs, enc_outputs)
    assert bool(jnp.allclose(dec_out, ref_out, atol=2e-3, rtol=2e-3))
    for l in range(n_layers):
        assert bool(jnp.allclose(self_attns[l], ref_self[l], atol=2e-3))
        assert bool(jnp.allclose(enc_attns[l], ref_enc[l], atol=2e-3))

    print("KERNEL_OK")
</pallas_src>

<mosaic_0001>
module attributes {stable_mosaic.version = 11 : i64} {
  func.func @_decoder_kernel(%arg0: memref<64x32xf32, #tpu.memory_space<vmem>>, %arg1: memref<1504x32xf32, #tpu.memory_space<vmem>>, %arg2: memref<16x32xf32, #tpu.memory_space<vmem>>, %arg3: memref<2x2x8x8x8xf32, #tpu.memory_space<vmem>>) attributes {dimension_semantics = [], scalar_prefetch = 0 : i64, scratch_operands = 0 : i64, tpu.core_type = #tpu.core_type<tc>} {
    %c0 = arith.constant 0 : index
    %c0_0 = arith.constant 0 : index
    %0 = vector.load %arg0[%c0, %c0_0] : memref<64x32xf32, #tpu.memory_space<vmem>>, vector<16x32xf32>
    %c16 = arith.constant 16 : index
    %c0_1 = arith.constant 0 : index
    %1 = vector.load %arg0[%c16, %c0_1] : memref<64x32xf32, #tpu.memory_space<vmem>>, vector<16x32xf32>
    %c32 = arith.constant 32 : index
    %c0_2 = arith.constant 0 : index
    %2 = vector.load %arg0[%c32, %c0_2] : memref<64x32xf32, #tpu.memory_space<vmem>>, vector<16x8xf32>
    %c48 = arith.constant 48 : index
    %c0_3 = arith.constant 0 : index
    %3 = vector.load %arg0[%c48, %c0_3] : memref<64x32xf32, #tpu.memory_space<vmem>>, vector<16x8xf32>
    %c224 = arith.constant 224 : index
    %c0_4 = arith.constant 0 : index
    %4 = vector.load %arg1[%c224, %c0_4] : memref<1504x32xf32, #tpu.memory_space<vmem>>, vector<16x32xf32>
    %c0_5 = arith.constant 0 : index
    %c0_6 = arith.constant 0 : index
    %5 = vector.load %arg1[%c0_5, %c0_6] : memref<1504x32xf32, #tpu.memory_space<vmem>>, vector<8x32xf32>
    %c8 = arith.constant 8 : index
    %c0_7 = arith.constant 0 : index
    %6 = vector.load %arg1[%c8, %c0_7] : memref<1504x32xf32, #tpu.memory_space<vmem>>, vector<8x32xf32>
    %c16_8 = arith.constant 16 : index
    %c0_9 = arith.constant 0 : index
    %7 = vector.load %arg1[%c16_8, %c0_9] : memref<1504x32xf32, #tpu.memory_space<vmem>>, vector<8x32xf32>
    %c24 = arith.constant 24 : index
    %c0_10 = arith.constant 0 : index
    %8 = vector.load %arg1[%c24, %c0_10] : memref<1504x32xf32, #tpu.memory_space<vmem>>, vector<8x8xf32>
    %c32_11 = arith.constant 32 : index
    %c0_12 = arith.constant 0 : index
    %9 = vector.load %arg1[%c32_11, %c0_12] : memref<1504x32xf32, #tpu.memory_space<vmem>>, vector<8x8xf32>
    %c40 = arith.constant 40 : index
    %c0_13 = arith.constant 0 : index
    %10 = vector.load %arg1[%c40, %c0_13] : memref<1504x32xf32, #tpu.memory_space<vmem>>, vector<8x8xf32>
    %cst = arith.constant dense<0.000000e+00> : vector<16x8xf32>
    %11 = tpu.matmul %0, %5, %cst {dimension_numbers = #tpu.dot_dimension_numbers<[1], [1], [0], [0], [0, 0, 1, 0], [], []>} : vector<16x32xf32>, vector<8x32xf32>, vector<16x8xf32> -> vector<16x8xf32>
    %cst_14 = arith.constant dense<0.000000e+00> : vector<16x8xf32>
    %12 = tpu.matmul %0, %6, %cst_14 {dimension_numbers = #tpu.dot_dimension_numbers<[1], [1], [0], [0], [0, 0, 1, 0], [], []>} : vector<16x32xf32>, vector<8x32xf32>, vector<16x8xf32> -> vector<16x8xf32>
    %cst_15 = arith.constant dense<0.000000e+00> : vector<16x8xf32>
    %13 = tpu.matmul %0, %7, %cst_15 {dimension_numbers = #tpu.dot_dimension_numbers<[1], [1], [0], [0], [0, 0, 1, 0], [], []>} : vector<16x32xf32>, vector<8x32xf32>, vector<16x8xf32> -> vector<16x8xf32>
    %14 = vector.extract_strided_slice %11 {offsets = [0, 0], sizes = [8, 8], strides = [1, 1]} : vector<16x8xf32> to vector<8x8xf32>
    %15 = arith.addf %14, %8 : vector<8x8xf32>
    %16 = vector.extract_strided_slice %12 {offsets = [0, 0], sizes = [8, 8], strides = [1, 1]} : vector<16x8xf32> to vector<8x8xf32>
    %17 = arith.addf %16, %9 : vector<8x8xf32>
    %18 = vector.extract_strided_slice %13 {offsets = [0, 0], sizes = [8, 8], strides = [1, 1]} : vector<16x8xf32> to vector<8x8xf32>
    %19 = arith.addf %18, %10 : vector<8x8xf32>
    %cst_16 = arith.constant dense<0.000000e+00> : vector<8x8xf32>
    %20 = tpu.matmul %15, %17, %cst_16 {dimension_numbers = #tpu.dot_dimension_numbers<[1], [1], [0], [0], [0, 0, 1, 0], [], []>} : vector<8x8xf32>, vector<8x8xf32>, vector<8x8xf32> -> vector<8x8xf32>
    %cst_17 = arith.constant 0.353553385 : f32
    %21 = vector.broadcast %cst_17 : f32 to vector<8x8xf32>
    %22 = arith.mulf %20, %21 : vector<8x8xf32>
    %23 = vector.extract_strided_slice %2 {offsets = [0, 0], sizes = [8, 8], strides = [1, 1]} : vector<16x8xf32> to vector<8x8xf32>
    %24 = arith.addf %22, %23 : vector<8x8xf32>
    %cst_18 = arith.constant dense<0xFF800000> : vector<8xf32>
    %25 = vector.multi_reduction <maximumf>, %24, %cst_18 [1] : vector<8x8xf32> to vector<8xf32>
    %26 = vector.shape_cast %25 : vector<8xf32> to vector<8x1xf32>
    %27 = vector.broadcast %26 : vector<8x1xf32> to vector<8x8xf32>
    %28 = arith.subf %24, %27 : vector<8x8xf32>
    %29 = math.exp %28 : vector<8x8xf32>
    %cst_19 = arith.constant dense<0.000000e+00> : vector<8xf32>
    %30 = vector.multi_reduction <add>, %29, %cst_19 [1] : vector<8x8xf32> to vector<8xf32>
    %31 = vector.shape_cast %30 : vector<8xf32> to vector<8x1xf32>
    %32 = vector.broadcast %31 : vector<8x1xf32> to vector<8x8xf32>
    %33 = arith.divf %29, %32 : vector<8x8xf32>
    %c0_20 = arith.constant 0 : index
    %c0_21 = arith.constant 0 : index
    %c0_22 = arith.constant 0 : index
    %c0_23 = arith.constant 0 : index
    %c0_24 = arith.constant 0 : index
    %34 = vector.load %arg3[%c0_20, %c0_21, %c0_22, %c0_23, %c0_24] : memref<2x2x8x8x8xf32, #tpu.memory_space<vmem>>, vector<1x1x1x8x8xf32>
    %35 = vector.shape_cast %34 : vector<1x1x1x8x8xf32> to vector<8x8xf32>
    %36 = vector.shape_cast %33 : vector<8x8xf32> to vector<1x1x1x8x8xf32>
    tpu.vector_store %arg3[%c0_20, %c0_21, %c0_22, %c0_23, %c0_24], %36 {strides = array<i32>} : memref<2x2x8x8x8xf32, #tpu.memory_space<vmem>>, vector<1x1x1x8x8xf32>,
    %cst_25 = arith.constant dense<0.000000e+00> : vector<8x8xf32>
    %37 = tpu.matmul %33, %19, %cst_25 {dimension_numbers = #tpu.dot_dimension_numbers<[1], [0], [0], [1], [0, 0, 1, 1], [], []>} : vector<8x8xf32>, vector<8x8xf32>, vector<8x8xf32> -> vector<8x8xf32>
    %38 = vector.extract_strided_slice %11 {offsets = [8, 0], sizes = [8, 8], strides = [1, 1]} : vector<16x8xf32> to vector<8x8xf32>
    %39 = arith.addf %38, %8 : vector<8x8xf32>
    %40 = vector.extract_strided_slice %12 {offsets = [8, 0], sizes = [8, 8], strides = [1, 1]} : vector<16x8xf32> to vector<8x8xf32>
    %41 = arith.addf %40, %9 : vector<8x8xf32>
    %42 = vector.extract_strided_slice %13 {offsets = [8, 0], sizes = [8, 8], strides = [1, 1]} : vector<16x8xf32> to vector<8x8xf32>
    %43 = arith.addf %42, %10 : vector<8x8xf32>
    %cst_26 = arith.constant dense<0.000000e+00> : vector<8x8xf32>
    %44 = tpu.matmul %39, %41, %cst_26 {dimension_numbers = #tpu.dot_dimension_numbers<[1], [1], [0], [0], [0, 0, 1, 0], [], []>} : vector<8x8xf32>, vector<8x8xf32>, vector<8x8xf32> -> vector<8x8xf32>
    %cst_27 = arith.constant 0.353553385 : f32
    %45 = vector.broadcast %cst_27 : f32 to vector<8x8xf32>
    %46 = arith.mulf %44, %45 : vector<8x8xf32>
    %47 = vector.extract_strided_slice %2 {offsets = [8, 0], sizes = [8, 8], strides = [1, 1]} : vector<16x8xf32> to vector<8x8xf32>
    %48 = arith.addf %46, %47 : vector<8x8xf32>
    %cst_28 = arith.constant dense<0xFF800000> : vector<8xf32>
    %49 = vector.multi_reduction <maximumf>, %48, %cst_28 [1] : vector<8x8xf32> to vector<8xf32>
    %50 = vector.shape_cast %49 : vector<8xf32> to vector<8x1xf32>
    %51 = vector.broadcast %50 : vector<8x1xf32> to vector<8x8xf32>
    %52 = arith.subf %48, %51 : vector<8x8xf32>
    %53 = math.exp %52 : vector<8x8xf32>
    %cst_29 = arith.constant dense<0.000000e+00> : vector<8xf32>
    %54 = vector.multi_reduction <add>, %53, %cst_29 [1] : vector<8x8xf32> to vector<8xf32>
    %55 = vector.shape_cast %54 : vector<8xf32> to vector<8x1xf32>
    %56 = vector.broadcast %55 : vector<8x1xf32> to vector<8x8xf32>
    %57 = arith.divf %53, %56 : vector<8x8xf32>
    %c0_30 = arith.constant 0 : index
    %c0_31 = arith.constant 0 : index
    %c4 = arith.constant 4 : index
    %c0_32 = arith.constant 0 : index
    %c0_33 = arith.constant 0 : index
    %58 = vector.load %arg3[%c0_30, %c0_31, %c4, %c0_32, %c0_33] : memref<2x2x8x8x8xf32, #tpu.memory_space<vmem>>, vector<1x1x1x8x8xf32>
    %59 = vector.shape_cast %58 : vector<1x1x1x8x8xf32> to vector<8x8xf32>
    %60 = vector.shape_cast %57 : vector<8x8xf32> to vector<1x1x1x8x8xf32>
    tpu.vector_store %arg3[%c0_30, %c0_31, %c4, %c0_32, %c0_33], %60 {strides = array<i32>} : memref<2x2x8x8x8xf32, #tpu.memory_space<vmem>>, vector<1x1x1x8x8xf32>,
    %cst_34 = arith.constant dense<0.000000e+00> : vector<8x8xf32>
    %61 = tpu.matmul %57, %43, %cst_34 {dimension_numbers = #tpu.dot_dimension_numbers<[1], [0], [0], [1], [0, 0, 1, 1], [], []>} : vector<8x8xf32>, vector<8x8xf32>, vector<8x8xf32> -> vector<8x8xf32>
    %62 = tpu.concatenate %37, %61 in 0 : vector<8x8xf32>, vector<8x8xf32> -> vector<16x8xf32>
    %c192 = arith.constant 192 : index
    %c0_35 = arith.constant 0 : index
    %63 = vector.load %arg1[%c192, %c0_35] : memref<1504x32xf32, #tpu.memory_space<vmem>>, vector<8x32xf32>
    %cst_36 = arith.constant dense<0.000000e+00> : vector<16x32xf32>
    %64 = tpu.matmul %62, %63, %cst_36 {dimension_numbers = #tpu.dot_dimension_numbers<[1], [0], [0], [1], [0, 0, 1, 1], [], []>} : vector<16x8xf32>, vector<8x32xf32>, vector<16x32xf32> -> vector<16x32xf32>
    %65 = arith.addf %4, %64 : vector<16x32xf32>
    %c48_37 = arith.constant 48 : index
    %c0_38 = arith.constant 0 : index
    %66 = vector.load %arg1[%c48_37, %c0_38] : memref<1504x32xf32, #tpu.memory_space<vmem>>, vector<8x32xf32>
    %c56 = arith.constant 56 : index
    %c0_39 = arith.constant 0 : index
    %67 = vector.load %arg1[%c56, %c0_39] : memref<1504x32xf32, #tpu.memory_space<vmem>>, vector<8x32xf32>
    %c64 = arith.constant 64 : index
    %c0_40 = arith.constant 0 : index
    %68 = vector.load %arg1[%c64, %c0_40] : memref<1504x32xf32, #tpu.memory_space<vmem>>, vector<8x32xf32>
    %c72 = arith.constant 72 : index
    %c0_41 = arith.constant 0 : index
    %69 = vector.load %arg1[%c72, %c0_41] : memref<1504x32xf32, #tpu.memory_space<vmem>>, vector<8x8xf32>
    %c80 = arith.constant 80 : index
    %c0_42 = arith.constant 0 : index
    %70 = vector.load %arg1[%c80, %c0_42] : memref<1504x32xf32, #tpu.memory_space<vmem>>, vector<8x8xf32>
    %c88 = arith.constant 88 : index
    %c0_43 = arith.constant 0 : index
    %71 = vector.load %arg1[%c88, %c0_43] : memref<1504x32xf32, #tpu.memory_space<vmem>>, vector<8x8xf32>
    %cst_44 = arith.constant dense<0.000000e+00> : vector<16x8xf32>
    %72 = tpu.matmul %0, %66, %cst_44 {dimension_numbers = #tpu.dot_dimension_numbers<[1], [1], [0], [0], [0, 0, 1, 0], [], []>} : vector<16x32xf32>, vector<8x32xf32>, vector<16x8xf32> -> vector<16x8xf32>
    %cst_45 = arith.constant dense<0.000000e+00> : vector<16x8xf32>
    %73 = tpu.matmul %0, %67, %cst_45 {dimension_numbers = #tpu.dot_dimension_numbers<[1], [1], [0], [0], [0, 0, 1, 0], [], []>} : vector<16x32xf32>, vector<8x32xf32>, vector<16x8xf32> -> vector<16x8xf32>
    %cst_46 = arith.constant dense<0.000000e+00> : vector<16x8xf32>
    %74 = tpu.matmul %0, %68, %cst_46 {dimension_numbers = #tpu.dot_dimension_numbers<[1], [1], [0], [0], [0, 0, 1, 0], [], []>} : vector<16x32xf32>, vector<8x32xf32>, vector<16x8xf32> -> vector<16x8xf32>
    %75 = vector.extract_strided_slice %72 {offsets = [0, 0], sizes = [8, 8], strides = [1, 1]} : vector<16x8xf32> to vector<8x8xf32>
    %76 = arith.addf %75, %69 : vector<8x8xf32>
    %77 = vector.extract_strided_slice %73 {offsets = [0, 0], sizes = [8, 8], strides = [1, 1]} : vector<16x8xf32> to vector<8x8xf32>
    %78 = arith.addf %77, %70 : vector<8x8xf32>
    %79 = vector.extract_strided_slice %74 {offsets = [0, 0], sizes = [8, 8], strides = [1, 1]} : vector<16x8xf32> to vector<8x8xf32>
    %80 = arith.addf %79, %71 : vector<8x8xf32>
    %cst_47 = arith.constant dense<0.000000e+00> : vector<8x8xf32>
    %81 = tpu.matmul %76, %78, %cst_47 {dimension_numbers = #tpu.dot_dimension_numbers<[1], [1], [0], [0], [0, 0, 1, 0], [], []>} : vector<8x8xf32>, vector<8x8xf32>, vector<8x8xf32> -> vector<8x8xf32>
    %cst_48 = arith.constant 0.353553385 : f32
    %82 = vector.broadcast %cst_48 : f32 to vector<8x8xf32>
    %83 = arith.mulf %81, %82 : vector<8x8xf32>
    %84 = vector.extract_strided_slice %2 {offsets = [0, 0], sizes = [8, 8], strides = [1, 1]} : vector<16x8xf32> to vector<8x8xf32>
    %85 = arith.addf %83, %84 : vector<8x8xf32>
    %cst_49 = arith.constant dense<0xFF800000> : vector<8xf32>
    %86 = vector.multi_reduction <maximumf>, %85, %cst_49 [1] : vector<8x8xf32> to vector<8xf32>
    %87 = vector.shape_cast %86 : vector<8xf32> to vector<8x1xf32>
    %88 = vector.broadcast %87 : vector<8x1xf32> to vector<8x8xf32>
    %89 = arith.subf %85, %88 : vector<8x8xf32>
    %90 = math.exp %89 : vector<8x8xf32>
    %cst_50 = arith.constant dense<0.000000e+00> : vector<8xf32>
    %91 = vector.multi_reduction <add>, %90, %cst_50 [1] : vector<8x8xf32> to vector<8xf32>
    %92 = vector.shape_cast %91 : vector<8xf32> to vector<8x1xf32>
    %93 = vector.broadcast %92 : vector<8x1xf32> to vector<8x8xf32>
    %94 = arith.divf %90, %93 : vector<8x8xf32>
    %c0_51 = arith.constant 0 : index
    %c0_52 = arith.constant 0 : index
    %c1 = arith.constant 1 : index
    %c0_53 = arith.constant 0 : index
    %c0_54 = arith.constant 0 : index
    %95 = vector.load %arg3[%c0_51, %c0_52, %c1, %c0_53, %c0_54] : memref<2x2x8x8x8xf32, #tpu.memory_space<vmem>>, vector<1x1x1x8x8xf32>
    %96 = vector.shape_cast %95 : vector<1x1x1x8x8xf32> to vector<8x8xf32>
    %97 = vector.shape_cast %94 : vector<8x8xf32> to vector<1x1x1x8x8xf32>
    tpu.vector_store %arg3[%c0_51, %c0_52, %c1, %c0_53, %c0_54], %97 {strides = array<i32>} : memref<2x2x8x8x8xf32, #tpu.memory_space<vmem>>, vector<1x1x1x8x8xf32>,
    %cst_55 = arith.constant dense<0.000000e+00> : vector<8x8xf32>
    %98 = tpu.matmul %94, %80, %cst_55 {dimension_numbers = #tpu.dot_dimension_numbers<[1], [0], [0], [1], [0, 0, 1, 1], [], []>} : vector<8x8xf32>, vector<8x8xf32>, vector<8x8xf32> -> vector<8x8xf32>
    %99 = vector.extract_strided_slice %72 {offsets = [8, 0], sizes = [8, 8], strides = [1, 1]} : vector<16x8xf32> to vector<8x8xf32>
    %100 = arith.addf %99, %69 : vector<8x8xf32>
    %101 = vector.extract_strided_slice %73 {offsets = [8, 0], sizes = [8, 8], strides = [1, 1]} : vector<16x8xf32> to vector<8x8xf32>
    %102 = arith.addf %101, %70 : vector<8x8xf32>
    %103 = vector.extract_strided_slice %74 {offsets = [8, 0], sizes = [8, 8], strides = [1, 1]} : vector<16x8xf32> to vector<8x8xf32>
    %104 = arith.addf %103, %71 : vector<8x8xf32>
    %cst_56 = arith.constant dense<0.000000e+00> : vector<8x8xf32>
    %105 = tpu.matmul %100, %102, %cst_56 {dimension_numbers = #tpu.dot_dimension_numbers<[1], [1], [0], [0], [0, 0, 1, 0], [], []>} : vector<8x8xf32>, vector<8x8xf32>, vector<8x8xf32> -> vector<8x8xf32>
    %cst_57 = arith.constant 0.353553385 : f32
    %106 = vector.broadcast %cst_57 : f32 to vector<8x8xf32>
    %107 = arith.mulf %105, %106 : vector<8x8xf32>
    %108 = vector.extract_strided_slice %2 {offsets = [8, 0], sizes = [8, 8], strides = [1, 1]} : vector<16x8xf32> to vector<8x8xf32>
    %109 = arith.addf %107, %108 : vector<8x8xf32>
    %cst_58 = arith.constant dense<0xFF800000> : vector<8xf32>
    %110 = vector.multi_reduction <maximumf>, %109, %cst_58 [1] : vector<8x8xf32> to vector<8xf32>
    %111 = vector.shape_cast %110 : vector<8xf32> to vector<8x1xf32>
    %112 = vector.broadcast %111 : vector<8x1xf32> to vector<8x8xf32>
    %113 = arith.subf %109, %112 : vector<8x8xf32>
    %114 = math.exp %113 : vector<8x8xf32>
    %cst_59 = arith.constant dense<0.000000e+00> : vector<8xf32>
    %115 = vector.multi_reduction <add>, %114, %cst_59 [1] : vector<8x8xf32> to vector<8xf32>
    %116 = vector.shape_cast %115 : vector<8xf32> to vector<8x1xf32>
    %117 = vector.broadcast %116 : vector<8x1xf32> to vector<8x8xf32>
    %118 = arith.divf %114, %117 : vector<8x8xf32>
    %c0_60 = arith.constant 0 : index
    %c0_61 = arith.constant 0 : index
    %c5 = arith.constant 5 : index
    %c0_62 = arith.constant 0 : index
    %c0_63 = arith.constant 0 : index
    %119 = vector.load %arg3[%c0_60, %c0_61, %c5, %c0_62, %c0_63] : memref<2x2x8x8x8xf32, #tpu.memory_space<vmem>>, vector<1x1x1x8x8xf32>
    %120 = vector.shape_cast %119 : vector<1x1x1x8x8xf32> to vector<8x8xf32>
    %121 = vector.shape_cast %118 : vector<8x8xf32> to vector<1x1x1x8x8xf32>
    tpu.vector_store %arg3[%c0_60, %c0_61, %c5, %c0_62, %c0_63], %121 {strides = array<i32>} : memref<2x2x8x8x8xf32, #tpu.memory_space<vmem>>, vector<1x1x1x8x8xf32>,
    %cst_64 = arith.constant dense<0.000000e+00> : vector<8x8xf32>
    %122 = tpu.matmul %118, %104, %cst_64 {dimension_numbers = #tpu.dot_dimension_numbers<[1], [0], [0], [1], [0, 0, 1, 1], [], []>} : vector<8x8xf32>, vector<8x8xf32>, vector<8x8xf32> -> vector<8x8xf32>
    %123 = tpu.concatenate %98, %122 in 0 : vector<8x8xf32>, vector<8x8xf32> -> vector<16x8xf32>
    %c200 = arith.constant 200 : index
    %c0_65 = arith.constant 0 : index
    %124 = vector.load %arg1[%c200, %c0_65] : memref<1504x32xf32, #tpu.memory_space<vmem>>, vector<8x32xf32>
    %cst_66 = arith.constant dense<0.000000e+00> : vector<16x32xf32>
    %125 = tpu.matmul %123, %124, %cst_66 {dimension_numbers = #tpu.dot_dimension_numbers<[1], [0], [0], [1], [0, 0, 1, 1], [], []>} : vector<16x8xf32>, vector<8x32xf32>, vector<16x32xf32> -> vector<16x32xf32>
    %126 = arith.addf %65, %125 : vector<16x32xf32>
    %c96 = arith.constant 96 : index
    %c0_67 = arith.constant 0 : index
    %127 = vector.load %arg1[%c96, %c0_67] : memref<1504x32xf32, #tpu.memory_space<vmem>>, vector<8x32xf32>
    %c104 = arith.constant 104 : index
    %c0_68 = arith.constant 0 : index
    %128 = vector.load %arg1[%c104, %c0_68] : memref<1504x32xf32, #tpu.memory_space<vmem>>, vector<8x32xf32>
    %c112 = arith.constant 112 : index
    %c0_69 = arith.constant 0 : index
    %129 = vector.load %arg1[%c112, %c0_69] : memref<1504x32xf32, #tpu.memory_space<vmem>>, vector<8x32xf32>
    %c120 = arith.constant 120 : index
    %c0_70 = arith.constant 0 : index
    %130 = vector.load %arg1[%c120, %c0_70] : memref<1504x32xf32, #tpu.memory_space<vmem>>, vector<8x8xf32>
    %c128 = arith.constant 128 : index
    %c0_71 = arith.constant 0 : index
    %131 = vector.load %arg1[%c128, %c0_71] : memref<1504x32xf32, #tpu.memory_space<vmem>>, vector<8x8xf32>
    %c136 = arith.constant 136 : index
    %c0_72 = arith.constant 0 : index
    %132 = vector.load %arg1[%c136, %c0_72] : memref<1504x32xf32, #tpu.memory_space<vmem>>, vector<8x8xf32>
    %cst_73 = arith.constant dense<0.000000e+00> : vector<16x8xf32>
    %133 = tpu.matmul %0, %127, %cst_73 {dimension_numbers = #tpu.dot_dimension_numbers<[1], [1], [0], [0], [0, 0, 1, 0], [], []>} : vector<16x32xf32>, vector<8x32xf32>, vector<16x8xf32> -> vector<16x8xf32>
    %cst_74 = arith.constant dense<0.000000e+00> : vector<16x8xf32>
    %134 = tpu.matmul %0, %128, %cst_74 {dimension_numbers = #tpu.dot_dimension_numbers<[1], [1], [0], [0], [0, 0, 1, 0], [], []>} : vector<16x32xf32>, vector<8x32xf32>, vector<16x8xf32> -> vector<16x8xf32>
    %cst_75 = arith.constant dense<0.000000e+00> : vector<16x8xf32>
    %135 = tpu.matmul %0, %129, %cst_75 {dimension_numbers = #tpu.dot_dimension_numbers<[1], [1], [0], [0], [0, 0, 1, 0], [], []>} : vector<16x32xf32>, vector<8x32xf32>, vector<16x8xf32> -> vector<16x8xf32>
    %136 = vector.extract_strided_slice %133 {offsets = [0, 0], sizes = [8, 8], strides = [1, 1]} : vector<16x8xf32> to vector<8x8xf32>
    %137 = arith.addf %136, %130 : vector<8x8xf32>
    %138 = vector.extract_strided_slice %134 {offsets = [0, 0], sizes = [8, 8], strides = [1, 1]} : vector<16x8xf32> to vector<8x8xf32>
    %139 = arith.addf %138, %131 : vector<8x8xf32>
    %140 = vector.extract_strided_slice %135 {offsets = [0, 0], sizes = [8, 8], strides = [1, 1]} : vector<16x8xf32> to vector<8x8xf32>
    %141 = arith.addf %140, %132 : vector<8x8xf32>
    %cst_76 = arith.constant dense<0.000000e+00> : vector<8x8xf32>
    %142 = tpu.matmul %137, %139, %cst_76 {dimension_numbers = #tpu.dot_dimension_numbers<[1], [1], [0], [0], [0, 0, 1, 0], [], []>} : vector<8x8xf32>, vector<8x8xf32>, vector<8x8xf32> -> vector<8x8xf32>
    %cst_77 = arith.constant 0.353553385 : f32
    %143 = vector.broadcast %cst_77 : f32 to vector<8x8xf32>
    %144 = arith.mulf %142, %143 : vector<8x8xf32>
    %145 = vector.extract_strided_slice %2 {offsets = [0, 0], sizes = [8, 8], strides = [1, 1]} : vector<16x8xf32> to vector<8x8xf32>
    %146 = arith.addf %144, %145 : vector<8x8xf32>
    %cst_78 = arith.constant dense<0xFF800000> : vector<8xf32>
    %147 = vector.multi_reduction <maximumf>, %146, %cst_78 [1] : vector<8x8xf32> to vector<8xf32>
    %148 = vector.shape_cast %147 : vector<8xf32> to vector<8x1xf32>
    %149 = vector.broadcast %148 : vector<8x1xf32> to vector<8x8xf32>
    %150 = arith.subf %146, %149 : vector<8x8xf32>
    %151 = math.exp %150 : vector<8x8xf32>
    %cst_79 = arith.constant dense<0.000000e+00> : vector<8xf32>
    %152 = vector.multi_reduction <add>, %151, %cst_79 [1] : vector<8x8xf32> to vector<8xf32>
    %153 = vector.shape_cast %152 : vector<8xf32> to vector<8x1xf32>
    %154 = vector.broadcast %153 : vector<8x1xf32> to vector<8x8xf32>
    %155 = arith.divf %151, %154 : vector<8x8xf32>
    %c0_80 = arith.constant 0 : index
    %c0_81 = arith.constant 0 : index
    %c2 = arith.constant 2 : index
    %c0_82 = arith.constant 0 : index
    %c0_83 = arith.constant 0 : index
    %156 = vector.load %arg3[%c0_80, %c0_81, %c2, %c0_82, %c0_83] : memref<2x2x8x8x8xf32, #tpu.memory_space<vmem>>, vector<1x1x1x8x8xf32>
    %157 = vector.shape_cast %156 : vector<1x1x1x8x8xf32> to vector<8x8xf32>
    %158 = vector.shape_cast %155 : vector<8x8xf32> to vector<1x1x1x8x8xf32>
    tpu.vector_store %arg3[%c0_80, %c0_81, %c2, %c0_82, %c0_83], %158 {strides = array<i32>} : memref<2x2x8x8x8xf32, #tpu.memory_space<vmem>>, vector<1x1x1x8x8xf32>,
    %cst_84 = arith.constant dense<0.000000e+00> : vector<8x8xf32>
    %159 = tpu.matmul %155, %141, %cst_84 {dimension_numbers = #tpu.dot_dimension_numbers<[1], [0], [0], [1], [0, 0, 1, 1], [], []>} : vector<8x8xf32>, vector<8x8xf32>, vector<8x8xf32> -> vector<8x8xf32>
    %160 = vector.extract_strided_slice %133 {offsets = [8, 0], sizes = [8, 8], strides = [1, 1]} : vector<16x8xf32> to vector<8x8xf32>
    %161 = arith.addf %160, %130 : vector<8x8xf32>
    %162 = vector.extract_strided_slice %134 {offsets = [8, 0], sizes = [8, 8], strides = [1, 1]} : vector<16x8xf32> to vector<8x8xf32>
    %163 = arith.addf %162, %131 : vector<8x8xf32>
    %164 = vector.extract_strided_slice %135 {offsets = [8, 0], sizes = [8, 8], strides = [1, 1]} : vector<16x8xf32> to vector<8x8xf32>
    %165 = arith.addf %164, %132 : vector<8x8xf32>
    %cst_85 = arith.constant dense<0.000000e+00> : vector<8x8xf32>
    %166 = tpu.matmul %161, %163, %cst_85 {dimension_numbers = #tpu.dot_dimension_numbers<[1], [1], [0], [0], [0, 0, 1, 0], [], []>} : vector<8x8xf32>, vector<8x8xf32>, vector<8x8xf32> -> vector<8x8xf32>
    %cst_86 = arith.constant 0.353553385 : f32
    %167 = vector.broadcast %cst_86 : f32 to vector<8x8xf32>
    %168 = arith.mulf %166, %167 : vector<8x8xf32>
    %169 = vector.extract_strided_slice %2 {offsets = [8, 0], sizes = [8, 8], strides = [1, 1]} : vector<16x8xf32> to vector<8x8xf32>
    %170 = arith.addf %168, %169 : vector<8x8xf32>
    %cst_87 = arith.constant dense<0xFF800000> : vector<8xf32>
    %171 = vector.multi_reduction <maximumf>, %170, %cst_87 [1] : vector<8x8xf32> to vector<8xf32>
    %172 = vector.shape_cast %171 : vector<8xf32> to vector<8x1xf32>
    %173 = vector.broadcast %172 : vector<8x1xf32> to vector<8x8xf32>
    %174 = arith.subf %170, %173 : vector<8x8xf32>
    %175 = math.exp %174 : vector<8x8xf32>
    %cst_88 = arith.constant dense<0.000000e+00> : vector<8xf32>
    %176 = vector.multi_reduction <add>, %175, %cst_88 [1] : vector<8x8xf32> to vector<8xf32>
    %177 = vector.shape_cast %176 : vector<8xf32> to vector<8x1xf32>
    %178 = vector.broadcast %177 : vector<8x1xf32> to vector<8x8xf32>
    %179 = arith.divf %175, %178 : vector<8x8xf32>
    %c0_89 = arith.constant 0 : index
    %c0_90 = arith.constant 0 : index
    %c6 = arith.constant 6 : index
    %c0_91 = arith.constant 0 : index
    %c0_92 = arith.constant 0 : index
    %180 = vector.load %arg3[%c0_89, %c0_90, %c6, %c0_91, %c0_92] : memref<2x2x8x8x8xf32, #tpu.memory_space<vmem>>, vector<1x1x1x8x8xf32>
    %181 = vector.shape_cast %180 : vector<1x1x1x8x8xf32> to vector<8x8xf32>
    %182 = vector.shape_cast %179 : vector<8x8xf32> to vector<1x1x1x8x8xf32>
    tpu.vector_store %arg3[%c0_89, %c0_90, %c6, %c0_91, %c0_92], %182 {strides = array<i32>} : memref<2x2x8x8x8xf32, #tpu.memory_space<vmem>>, vector<1x1x1x8x8xf32>,
    %cst_93 = arith.constant dense<0.000000e+00> : vector<8x8xf32>
    %183 = tpu.matmul %179, %165, %cst_93 {dimension_numbers = #tpu.dot_dimension_numbers<[1], [0], [0], [1], [0, 0, 1, 1], [], []>} : vector<8x8xf32>, vector<8x8xf32>, vector<8x8xf32> -> vector<8x8xf32>
    %184 = tpu.concatenate %159, %183 in 0 : vector<8x8xf32>, vector<8x8xf32> -> vector<16x8xf32>
    %c208 = arith.constant 208 : index
    %c0_94 = arith.constant 0 : index
    %185 = vector.load %arg1[%c208, %c0_94] : memref<1504x32xf32, #tpu.memory_space<vmem>>, vector<8x32xf32>
    %cst_95 = arith.constant dense<0.000000e+00> : vector<16x32xf32>
    %186 = tpu.matmul %184, %185, %cst_95 {dimension_numbers = #tpu.dot_dimension_numbers<[1], [0], [0], [1], [0, 0, 1, 1], [], []>} : vector<16x8xf32>, vector<8x32xf32>, vector<16x32xf32> -> vector<16x32xf32>
    %187 = arith.addf %126, %186 : vector<16x32xf32>
    %c144 = arith.constant 144 : index
    %c0_96 = arith.constant 0 : index
    %188 = vector.load %arg1[%c144, %c0_96] : memref<1504x32xf32, #tpu.memory_space<vmem>>, vector<8x32xf32>
    %c152 = arith.constant 152 : index
    %c0_97 = arith.constant 0 : index
    %189 = vector.load %arg1[%c152, %c0_97] : memref<1504x32xf32, #tpu.memory_space<vmem>>, vector<8x32xf32>
    %c160 = arith.constant 160 : index
    %c0_98 = arith.constant 0 : index
    %190 = vector.load %arg1[%c160, %c0_98] : memref<1504x32xf32, #tpu.memory_space<vmem>>, vector<8x32xf32>
    %c168 = arith.constant 168 : index
    %c0_99 = arith.constant 0 : index
    %191 = vector.load %arg1[%c168, %c0_99] : memref<1504x32xf32, #tpu.memory_space<vmem>>, vector<8x8xf32>
    %c176 = arith.constant 176 : index
    %c0_100 = arith.constant 0 : index
    %192 = vector.load %arg1[%c176, %c0_100] : memref<1504x32xf32, #tpu.memory_space<vmem>>, vector<8x8xf32>
    %c184 = arith.constant 184 : index
    %c0_101 = arith.constant 0 : index
    %193 = vector.load %arg1[%c184, %c0_101] : memref<1504x32xf32, #tpu.memory_space<vmem>>, vector<8x8xf32>
    %cst_102 = arith.constant dense<0.000000e+00> : vector<16x8xf32>
    %194 = tpu.matmul %0, %188, %cst_102 {dimension_numbers = #tpu.dot_dimension_numbers<[1], [1], [0], [0], [0, 0, 1, 0], [], []>} : vector<16x32xf32>, vector<8x32xf32>, vector<16x8xf32> -> vector<16x8xf32>
    %cst_103 = arith.constant dense<0.000000e+00> : vector<16x8xf32>
    %195 = tpu.matmul %0, %189, %cst_103 {dimension_numbers = #tpu.dot_dimension_numbers<[1], [1], [0], [0], [0, 0, 1, 0], [], []>} : vector<16x32xf32>, vector<8x32xf32>, vector<16x8xf32> -> vector<16x8xf32>
    %cst_104 = arith.constant dense<0.000000e+00> : vector<16x8xf32>
    %196 = tpu.matmul %0, %190, %cst_104 {dimension_numbers = #tpu.dot_dimension_numbers<[1], [1], [0], [0], [0, 0, 1, 0], [], []>} : vector<16x32xf32>, vector<8x32xf32>, vector<16x8xf32> -> vector<16x8xf32>
    %197 = vector.extract_strided_slice %194 {offsets = [0, 0], sizes = [8, 8], strides = [1, 1]} : vector<16x8xf32> to vector<8x8xf32>
    %198 = arith.addf %197, %191 : vector<8x8xf32>
    %199 = vector.extract_strided_slice %195 {offsets = [0, 0], sizes = [8, 8], strides = [1, 1]} : vector<16x8xf32> to vector<8x8xf32>
    %200 = arith.addf %199, %192 : vector<8x8xf32>
    %201 = vector.extract_strided_slice %196 {offsets = [0, 0], sizes = [8, 8], strides = [1, 1]} : vector<16x8xf32> to vector<8x8xf32>
    %202 = arith.addf %201, %193 : vector<8x8xf32>
    %cst_105 = arith.constant dense<0.000000e+00> : vector<8x8xf32>
    %203 = tpu.matmul %198, %200, %cst_105 {dimension_numbers = #tpu.dot_dimension_numbers<[1], [1], [0], [0], [0, 0, 1, 0], [], []>} : vector<8x8xf32>, vector<8x8xf32>, vector<8x8xf32> -> vector<8x8xf32>
    %cst_106 = arith.constant 0.353553385 : f32
    %204 = vector.broadcast %cst_106 : f32 to vector<8x8xf32>
    %205 = arith.mulf %203, %204 : vector<8x8xf32>
    %206 = vector.extract_strided_slice %2 {offsets = [0, 0], sizes = [8, 8], strides = [1, 1]} : vector<16x8xf32> to vector<8x8xf32>
    %207 = arith.addf %205, %206 : vector<8x8xf32>
    %cst_107 = arith.constant dense<0xFF800000> : vector<8xf32>
    %208 = vector.multi_reduction <maximumf>, %207, %cst_107 [1] : vector<8x8xf32> to vector<8xf32>
    %209 = vector.shape_cast %208 : vector<8xf32> to vector<8x1xf32>
    %210 = vector.broadcast %209 : vector<8x1xf32> to vector<8x8xf32>
    %211 = arith.subf %207, %210 : vector<8x8xf32>
    %212 = math.exp %211 : vector<8x8xf32>
    %cst_108 = arith.constant dense<0.000000e+00> : vector<8xf32>
    %213 = vector.multi_reduction <add>, %212, %cst_108 [1] : vector<8x8xf32> to vector<8xf32>
    %214 = vector.shape_cast %213 : vector<8xf32> to vector<8x1xf32>
    %215 = vector.broadcast %214 : vector<8x1xf32> to vector<8x8xf32>
    %216 = arith.divf %212, %215 : vector<8x8xf32>
    %c0_109 = arith.constant 0 : index
    %c0_110 = arith.constant 0 : index
    %c3 = arith.constant 3 : index
    %c0_111 = arith.constant 0 : index
    %c0_112 = arith.constant 0 : index
    %217 = vector.load %arg3[%c0_109, %c0_110, %c3, %c0_111, %c0_112] : memref<2x2x8x8x8xf32, #tpu.memory_space<vmem>>, vector<1x1x1x8x8xf32>
    %218 = vector.shape_cast %217 : vector<1x1x1x8x8xf32> to vector<8x8xf32>
    %219 = vector.shape_cast %216 : vector<8x8xf32> to vector<1x1x1x8x8xf32>
    tpu.vector_store %arg3[%c0_109, %c0_110, %c3, %c0_111, %c0_112], %219 {strides = array<i32>} : memref<2x2x8x8x8xf32, #tpu.memory_space<vmem>>, vector<1x1x1x8x8xf32>,
    %cst_113 = arith.constant dense<0.000000e+00> : vector<8x8xf32>
    %220 = tpu.matmul %216, %202, %cst_113 {dimension_numbers = #tpu.dot_dimension_numbers<[1], [0], [0], [1], [0, 0, 1, 1], [], []>} : vector<8x8xf32>, vector<8x8xf32>, vector<8x8xf32> -> vector<8x8xf32>
    %221 = vector.extract_strided_slice %194 {offsets = [8, 0], sizes = [8, 8], strides = [1, 1]} : vector<16x8xf32> to vector<8x8xf32>
    %222 = arith.addf %221, %191 : vector<8x8xf32>
    %223 = vector.extract_strided_slice %195 {offsets = [8, 0], sizes = [8, 8], strides = [1, 1]} : vector<16x8xf32> to vector<8x8xf32>
    %224 = arith.addf %223, %192 : vector<8x8xf32>
    %225 = vector.extract_strided_slice %196 {offsets = [8, 0], sizes = [8, 8], strides = [1, 1]} : vector<16x8xf32> to vector<8x8xf32>
    %226 = arith.addf %225, %193 : vector<8x8xf32>
    %cst_114 = arith.constant dense<0.000000e+00> : vector<8x8xf32>
    %227 = tpu.matmul %222, %224, %cst_114 {dimension_numbers = #tpu.dot_dimension_numbers<[1], [1], [0], [0], [0, 0, 1, 0], [], []>} : vector<8x8xf32>, vector<8x8xf32>, vector<8x8xf32> -> vector<8x8xf32>
    %cst_115 = arith.constant 0.353553385 : f32
    %228 = vector.broadcast %cst_115 : f32 to vector<8x8xf32>
    %229 = arith.mulf %227, %228 : vector<8x8xf32>
    %230 = vector.extract_strided_slice %2 {offsets = [8, 0], sizes = [8, 8], strides = [1, 1]} : vector<16x8xf32> to vector<8x8xf32>
    %231 = arith.addf %229, %230 : vector<8x8xf32>
    %cst_116 = arith.constant dense<0xFF800000> : vector<8xf32>
    %232 = vector.multi_reduction <maximumf>, %231, %cst_116 [1] : vector<8x8xf32> to vector<8xf32>
    %233 = vector.shape_cast %232 : vector<8xf32> to vector<8x1xf32>
    %234 = vector.broadcast %233 : vector<8x1xf32> to vector<8x8xf32>
    %235 = arith.subf %231, %234 : vector<8x8xf32>
    %236 = math.exp %235 : vector<8x8xf32>
    %cst_117 = arith.constant dense<0.000000e+00> : vector<8xf32>
    %237 = vector.multi_reduction <add>, %236, %cst_117 [1] : vector<8x8xf32> to vector<8xf32>
    %238 = vector.shape_cast %237 : vector<8xf32> to vector<8x1xf32>
    %239 = vector.broadcast %238 : vector<8x1xf32> to vector<8x8xf32>
    %240 = arith.divf %236, %239 : vector<8x8xf32>
    %c0_118 = arith.constant 0 : index
    %c0_119 = arith.constant 0 : index
    %c7 = arith.constant 7 : index
    %c0_120 = arith.constant 0 : index
    %c0_121 = arith.constant 0 : index
    %241 = vector.load %arg3[%c0_118, %c0_119, %c7, %c0_120, %c0_121] : memref<2x2x8x8x8xf32, #tpu.memory_space<vmem>>, vector<1x1x1x8x8xf32>
    %242 = vector.shape_cast %241 : vector<1x1x1x8x8xf32> to vector<8x8xf32>
    %243 = vector.shape_cast %240 : vector<8x8xf32> to vector<1x1x1x8x8xf32>
    tpu.vector_store %arg3[%c0_118, %c0_119, %c7, %c0_120, %c0_121], %243 {strides = array<i32>} : memref<2x2x8x8x8xf32, #tpu.memory_space<vmem>>, vector<1x1x1x8x8xf32>,
    %cst_122 = arith.constant dense<0.000000e+00> : vector<8x8xf32>
    %244 = tpu.matmul %240, %226, %cst_122 {dimension_numbers = #tpu.dot_dimension_numbers<[1], [0], [0], [1], [0, 0, 1, 1], [], []>} : vector<8x8xf32>, vector<8x8xf32>, vector<8x8xf32> -> vector<8x8xf32>
    %245 = tpu.concatenate %220, %244 in 0 : vector<8x8xf32>, vector<8x8xf32> -> vector<16x8xf32>
    %c216 = arith.constant 216 : index
    %c0_123 = arith.constant 0 : index
    %246 = vector.load %arg1[%c216, %c0_123] : memref<1504x32xf32, #tpu.memory_space<vmem>>, vector<8x32xf32>
    %cst_124 = arith.constant dense<0.000000e+00> : vector<16x32xf32>
    %247 = tpu.matmul %245, %246, %cst_124 {dimension_numbers = #tpu.dot_dimension_numbers<[1], [0], [0], [1], [0, 0, 1, 1], [], []>} : vector<16x8xf32>, vector<8x32xf32>, vector<16x32xf32> -> vector<16x32xf32>
    %248 = arith.addf %187, %247 : vector<16x32xf32>
    %c240 = arith.constant 240 : index
    %c0_125 = arith.constant 0 : index
    %249 = vector.load %arg1[%c240, %c0_125] : memref<1504x32xf32, #tpu.memory_space<vmem>>, vector<16x32xf32>
    %c256 = arith.constant 256 : index
    %c0_126 = arith.constant 0 : index
    %250 = vector.load %arg1[%c256, %c0_126] : memref<1504x32xf32, #tpu.memory_space<vmem>>, vector<16x32xf32>
    %251 = arith.addf %248, %0 : vector<16x32xf32>
    %cst_127 = arith.constant dense<0.000000e+00> : vector<16xf32>
    %252 = vector.multi_reduction <add>, %251, %cst_127 [1] : vector<16x32xf32> to vector<16xf32>
    %253 = vector.shape_cast %252 : vector<16xf32> to vector<16x1xf32>
    %cst_128 = arith.constant 3.200000e+01 : f32
    %254 = vector.broadcast %cst_128 : f32 to vector<16x1xf32>
    %255 = arith.divf %253, %254 : vector<16x1xf32>
    %256 = vector.broadcast %255 : vector<16x1xf32> to vector<16x32xf32>
    %257 = arith.subf %251, %256 : vector<16x32xf32>
    %258 = arith.mulf %257, %257 : vector<16x32xf32>
    %cst_129 = arith.constant dense<0.000000e+00> : vector<16xf32>
    %259 = vector.multi_reduction <add>, %258, %cst_129 [1] : vector<16x32xf32> to vector<16xf32>
    %260 = vector.shape_cast %259 : vector<16xf32> to vector<16x1xf32>
    %cst_130 = arith.constant 3.200000e+01 : f32
    %261 = vector.broadcast %cst_130 : f32 to vector<16x1xf32>
    %262 = arith.divf %260, %261 : vector<16x1xf32>
    %263 = vector.broadcast %255 : vector<16x1xf32> to vector<16x32xf32>
    %264 = arith.subf %251, %263 : vector<16x32xf32>
    %265 = arith.mulf %249, %264 : vector<16x32xf32>
    %cst_131 = arith.constant 9.99999974E-6 : f32
    %266 = vector.broadcast %cst_131 : f32 to vector<16x1xf32>
    %267 = arith.addf %262, %266 : vector<16x1xf32>
    %268 = math.rsqrt %267 : vector<16x1xf32>
    %269 = vector.broadcast %268 : vector<16x1xf32> to vector<16x32xf32>
    %270 = arith.mulf %265, %269 : vector<16x32xf32>
    %271 = arith.addf %270, %250 : vector<16x32xf32>
    %c496 = arith.constant 496 : index
    %c0_132 = arith.constant 0 : index
    %272 = vector.load %arg1[%c496, %c0_132] : memref<1504x32xf32, #tpu.memory_space<vmem>>, vector<16x32xf32>
    %c272 = arith.constant 272 : index
    %c0_133 = arith.constant 0 : index
    %273 = vector.load %arg1[%c272, %c0_133] : memref<1504x32xf32, #tpu.memory_space<vmem>>, vector<8x32xf32>
    %c280 = arith.constant 280 : index
    %c0_134 = arith.constant 0 : index
    %274 = vector.load %arg1[%c280, %c0_134] : memref<1504x32xf32, #tpu.memory_space<vmem>>, vector<8x32xf32>
    %c288 = arith.constant 288 : index
    %c0_135 = arith.constant 0 : index
    %275 = vector.load %arg1[%c288, %c0_135] : memref<1504x32xf32, #tpu.memory_space<vmem>>, vector<8x32xf32>
    %c296 = arith.constant 296 : index
    %c0_136 = arith.constant 0 : index
    %276 = vector.load %arg1[%c296, %c0_136] : memref<1504x32xf32, #tpu.memory_space<vmem>>, vector<8x8xf32>
    %c304 = arith.constant 304 : index
    %c0_137 = arith.constant 0 : index
    %277 = vector.load %arg1[%c304, %c0_137] : memref<1504x32xf32, #tpu.memory_space<vmem>>, vector<8x8xf32>
    %c312 = arith.constant 312 : index
    %c0_138 = arith.constant 0 : index
    %278 = vector.load %arg1[%c312, %c0_138] : memref<1504x32xf32, #tpu.memory_space<vmem>>, vector<8x8xf32>
    %cst_139 = arith.constant dense<0.000000e+00> : vector<16x8xf32>
    %279 = tpu.matmul %271, %273, %cst_139 {dimension_numbers = #tpu.dot_dimension_numbers<[1], [1], [0], [0], [0, 0, 1, 0], [], []>} : vector<16x32xf32>, vector<8x32xf32>, vector<16x8xf32> -> vector<16x8xf32>
    %cst_140 = arith.constant dense<0.000000e+00> : vector<16x8xf32>
    %280 = tpu.matmul %1, %274, %cst_140 {dimension_numbers = #tpu.dot_dimension_numbers<[1], [1], [0], [0], [0, 0, 1, 0], [], []>} : vector<16x32xf32>, vector<8x32xf32>, vector<16x8xf32> -> vector<16x8xf32>
    %cst_141 = arith.constant dense<0.000000e+00> : vector<16x8xf32>
    %281 = tpu.matmul %1, %275, %cst_141 {dimension_numbers = #tpu.dot_dimension_numbers<[1], [1], [0], [0], [0, 0, 1, 0], [], []>} : vector<16x32xf32>, vector<8x32xf32>, vector<16x8xf32> -> vector<16x8xf32>
    %282 = vector.extract_strided_slice %279 {offsets = [0, 0], sizes = [8, 8], strides = [1, 1]} : vector<16x8xf32> to vector<8x8xf32>
    %283 = arith.addf %282, %276 : vector<8x8xf32>
    %284 = vector.extract_strided_slice %280 {offsets = [0, 0], sizes = [8, 8], strides = [1, 1]} : vector<16x8xf32> to vector<8x8xf32>
    %285 = arith.addf %284, %277 : vector<8x8xf32>
    %286 = vector.extract_strided_slice %281 {offsets = [0, 0], sizes = [8, 8], strides = [1, 1]} : vector<16x8xf32> to vector<8x8xf32>
    %287 = arith.addf %286, %278 : vector<8x8xf32>
    %cst_142 = arith.constant dense<0.000000e+00> : vector<8x8xf32>
    %288 = tpu.matmul %283, %285, %cst_142 {dimension_numbers = #tpu.dot_dimension_numbers<[1], [1], [0], [0], [0, 0, 1, 0], [], []>} : vector<8x8xf32>, vector<8x8xf32>, vector<8x8xf32> -> vector<8x8xf32>
    %cst_143 = arith.constant 0.353553385 : f32
    %289 = vector.broadcast %cst_143 : f32 to vector<8x8xf32>
    %290 = arith.mulf %288, %289 : vector<8x8xf32>
    %291 = vector.extract_strided_slice %3 {offsets = [0, 0], sizes = [8, 8], strides = [1, 1]} : vector<16x8xf32> to vector<8x8xf32>
    %292 = arith.addf %290, %291 : vector<8x8xf32>
    %cst_144 = arith.constant dense<0xFF800000> : vector<8xf32>
    %293 = vector.multi_reduction <maximumf>, %292, %cst_144 [1] : vector<8x8xf32> to vector<8xf32>
    %294 = vector.shape_cast %293 : vector<8xf32> to vector<8x1xf32>
    %295 = vector.broadcast %294 : vector<8x1xf32> to vector<8x8xf32>
    %296 = arith.subf %292, %295 : vector<8x8xf32>
    %297 = math.exp %296 : vector<8x8xf32>
    %cst_145 = arith.constant dense<0.000000e+00> : vector<8xf32>
    %298 = vector.multi_reduction <add>, %297, %cst_145 [1] : vector<8x8xf32> to vector<8xf32>
    %299 = vector.shape_cast %298 : vector<8xf32> to vector<8x1xf32>
    %300 = vector.broadcast %299 : vector<8x1xf32> to vector<8x8xf32>
    %301 = arith.divf %297, %300 : vector<8x8xf32>
    %c0_146 = arith.constant 0 : index
    %c1_147 = arith.constant 1 : index
    %c0_148 = arith.constant 0 : index
    %c0_149 = arith.constant 0 : index
    %c0_150 = arith.constant 0 : index
    %302 = vector.load %arg3[%c0_146, %c1_147, %c0_148, %c0_149, %c0_150] : memref<2x2x8x8x8xf32, #tpu.memory_space<vmem>>, vector<1x1x1x8x8xf32>
    %303 = vector.shape_cast %302 : vector<1x1x1x8x8xf32> to vector<8x8xf32>
    %304 = vector.shape_cast %301 : vector<8x8xf32> to vector<1x1x1x8x8xf32>
    tpu.vector_store %arg3[%c0_146, %c1_147, %c0_148, %c0_149, %c0_150], %304 {strides = array<i32>} : memref<2x2x8x8x8xf32, #tpu.memory_space<vmem>>, vector<1x1x1x8x8xf32>,
    %cst_151 = arith.constant dense<0.000000e+00> : vector<8x8xf32>
    %305 = tpu.matmul %301, %287, %cst_151 {dimension_numbers = #tpu.dot_dimension_numbers<[1], [0], [0], [1], [0, 0, 1, 1], [], []>} : vector<8x8xf32>, vector<8x8xf32>, vector<8x8xf32> -> vector<8x8xf32>
    %306 = vector.extract_strided_slice %279 {offsets = [8, 0], sizes = [8, 8], strides = [1, 1]} : vector<16x8xf32> to vector<8x8xf32>
    %307 = arith.addf %306, %276 : vector<8x8xf32>
    %308 = vector.extract_strided_slice %280 {offsets = [8, 0], sizes = [8, 8], strides = [1, 1]} : vector<16x8xf32> to vector<8x8xf32>
    %309 = arith.addf %308, %277 : vector<8x8xf32>
    %310 = vector.extract_strided_slice %281 {offsets = [8, 0], sizes = [8, 8], strides = [1, 1]} : vector<16x8xf32> to vector<8x8xf32>
    %311 = arith.addf %310, %278 : vector<8x8xf32>
    %cst_152 = arith.constant dense<0.000000e+00> : vector<8x8xf32>
    %312 = tpu.matmul %307, %309, %cst_152 {dimension_numbers = #tpu.dot_dimension_numbers<[1], [1], [0], [0], [0, 0, 1, 0], [], []>} : vector<8x8xf32>, vector<8x8xf32>, vector<8x8xf32> -> vector<8x8xf32>
    %cst_153 = arith.constant 0.353553385 : f32
    %313 = vector.broadcast %cst_153 : f32 to vector<8x8xf32>
    %314 = arith.mulf %312, %313 : vector<8x8xf32>
    %315 = vector.extract_strided_slice %3 {offsets = [8, 0], sizes = [8, 8], strides = [1, 1]} : vector<16x8xf32> to vector<8x8xf32>
    %316 = arith.addf %314, %315 : vector<8x8xf32>
    %cst_154 = arith.constant dense<0xFF800000> : vector<8xf32>
    %317 = vector.multi_reduction <maximumf>, %316, %cst_154 [1] : vector<8x8xf32> to vector<8xf32>
    %318 = vector.shape_cast %317 : vector<8xf32> to vector<8x1xf32>
    %319 = vector.broadcast %318 : vector<8x1xf32> to vector<8x8xf32>
    %320 = arith.subf %316, %319 : vector<8x8xf32>
    %321 = math.exp %320 : vector<8x8xf32>
    %cst_155 = arith.constant dense<0.000000e+00> : vector<8xf32>
    %322 = vector.multi_reduction <add>, %321, %cst_155 [1] : vector<8x8xf32> to vector<8xf32>
    %323 = vector.shape_cast %322 : vector<8xf32> to vector<8x1xf32>
    %324 = vector.broadcast %323 : vector<8x1xf32> to vector<8x8xf32>
    %325 = arith.divf %321, %324 : vector<8x8xf32>
    %c0_156 = arith.constant 0 : index
    %c1_157 = arith.constant 1 : index
    %c4_158 = arith.constant 4 : index
    %c0_159 = arith.constant 0 : index
    %c0_160 = arith.constant 0 : index
    %326 = vector.load %arg3[%c0_156, %c1_157, %c4_158, %c0_159, %c0_160] : memref<2x2x8x8x8xf32, #tpu.memory_space<vmem>>, vector<1x1x1x8x8xf32>
    %327 = vector.shape_cast %326 : vector<1x1x1x8x8xf32> to vector<8x8xf32>
    %328 = vector.shape_cast %325 : vector<8x8xf32> to vector<1x1x1x8x8xf32>
    tpu.vector_store %arg3[%c0_156, %c1_157, %c4_158, %c0_159, %c0_160], %328 {strides = array<i32>} : memref<2x2x8x8x8xf32, #tpu.memory_space<vmem>>, vector<1x1x1x8x8xf32>,
    %cst_161 = arith.constant dense<0.000000e+00> : vector<8x8xf32>
    %329 = tpu.matmul %325, %311, %cst_161 {dimension_numbers = #tpu.dot_dimension_numbers<[1], [0], [0], [1], [0, 0, 1, 1], [], []>} : vector<8x8xf32>, vector<8x8xf32>, vector<8x8xf32> -> vector<8x8xf32>
    %330 = tpu.concatenate %305, %329 in 0 : vector<8x8xf32>, vector<8x8xf32> -> vector<16x8xf32>
    %c464 = arith.constant 464 : index
    %c0_162 = arith.constant 0 : index
    %331 = vector.load %arg1[%c464, %c0_162] : memref<1504x32xf32, #tpu.memory_space<vmem>>, vector<8x32xf32>
    %cst_163 = arith.constant dense<0.000000e+00> : vector<16x32xf32>
    %332 = tpu.matmul %330, %331, %cst_163 {dimension_numbers = #tpu.dot_dimension_numbers<[1], [0], [0], [1], [0, 0, 1, 1], [], []>} : vector<16x8xf32>, vector<8x32xf32>, vector<16x32xf32> -> vector<16x32xf32>
    %333 = arith.addf %272, %332 : vector<16x32xf32>
    %c320 = arith.constant 320 : index
    %c0_164 = arith.constant 0 : index
    %334 = vector.load %arg1[%c320, %c0_164] : memref<1504x32xf32, #tpu.memory_space<vmem>>, vector<8x32xf32>
    %c328 = arith.constant 328 : index
    %c0_165 = arith.constant 0 : index
    %335 = vector.load %arg1[%c328, %c0_165] : memref<1504x32xf32, #tpu.memory_space<vmem>>, vector<8x32xf32>
    %c336 = arith.constant 336 : index
    %c0_166 = arith.constant 0 : index
    %336 = vector.load %arg1[%c336, %c0_166] : memref<1504x32xf32, #tpu.memory_space<vmem>>, vector<8x32xf32>
    %c344 = arith.constant 344 : index
    %c0_167 = arith.constant 0 : index
    %337 = vector.load %arg1[%c344, %c0_167] : memref<1504x32xf32, #tpu.memory_space<vmem>>, vector<8x8xf32>
    %c352 = arith.constant 352 : index
    %c0_168 = arith.constant 0 : index
    %338 = vector.load %arg1[%c352, %c0_168] : memref<1504x32xf32, #tpu.memory_space<vmem>>, vector<8x8xf32>
    %c360 = arith.constant 360 : index
    %c0_169 = arith.constant 0 : index
    %339 = vector.load %arg1[%c360, %c0_169] : memref<1504x32xf32, #tpu.memory_space<vmem>>, vector<8x8xf32>
    %cst_170 = arith.constant dense<0.000000e+00> : vector<16x8xf32>
    %340 = tpu.matmul %271, %334, %cst_170 {dimension_numbers = #tpu.dot_dimension_numbers<[1], [1], [0], [0], [0, 0, 1, 0], [], []>} : vector<16x32xf32>, vector<8x32xf32>, vector<16x8xf32> -> vector<16x8xf32>
    %cst_171 = arith.constant dense<0.000000e+00> : vector<16x8xf32>
    %341 = tpu.matmul %1, %335, %cst_171 {dimension_numbers = #tpu.dot_dimension_numbers<[1], [1], [0], [0], [0, 0, 1, 0], [], []>} : vector<16x32xf32>, vector<8x32xf32>, vector<16x8xf32> -> vector<16x8xf32>
    %cst_172 = arith.constant dense<0.000000e+00> : vector<16x8xf32>
    %342 = tpu.matmul %1, %336, %cst_172 {dimension_numbers = #tpu.dot_dimension_numbers<[1], [1], [0], [0], [0, 0, 1, 0], [], []>} : vector<16x32xf32>, vector<8x32xf32>, vector<16x8xf32> -> vector<16x8xf32>
    %343 = vector.extract_strided_slice %340 {offsets = [0, 0], sizes = [8, 8], strides = [1, 1]} : vector<16x8xf32> to vector<8x8xf32>
    %344 = arith.addf %343, %337 : vector<8x8xf32>
    %345 = vector.extract_strided_slice %341 {offsets = [0, 0], sizes = [8, 8], strides = [1, 1]} : vector<16x8xf32> to vector<8x8xf32>
    %346 = arith.addf %345, %338 : vector<8x8xf32>
    %347 = vector.extract_strided_slice %342 {offsets = [0, 0], sizes = [8, 8], strides = [1, 1]} : vector<16x8xf32> to vector<8x8xf32>
    %348 = arith.addf %347, %339 : vector<8x8xf32>
    %cst_173 = arith.constant dense<0.000000e+00> : vector<8x8xf32>
    %349 = tpu.matmul %344, %346, %cst_173 {dimension_numbers = #tpu.dot_dimension_numbers<[1], [1], [0], [0], [0, 0, 1, 0], [], []>} : vector<8x8xf32>, vector<8x8xf32>, vector<8x8xf32> -> vector<8x8xf32>
    %cst_174 = arith.constant 0.353553385 : f32
    %350 = vector.broadcast %cst_174 : f32 to vector<8x8xf32>
    %351 = arith.mulf %349, %350 : vector<8x8xf32>
    %352 = vector.extract_strided_slice %3 {offsets = [0, 0], sizes = [8, 8], strides = [1, 1]} : vector<16x8xf32> to vector<8x8xf32>
    %353 = arith.addf %351, %352 : vector<8x8xf32>
    %cst_175 = arith.constant dense<0xFF800000> : vector<8xf32>
    %354 = vector.multi_reduction <maximumf>, %353, %cst_175 [1] : vector<8x8xf32> to vector<8xf32>
    %355 = vector.shape_cast %354 : vector<8xf32> to vector<8x1xf32>
    %356 = vector.broadcast %355 : vector<8x1xf32> to vector<8x8xf32>
    %357 = arith.subf %353, %356 : vector<8x8xf32>
    %358 = math.exp %357 : vector<8x8xf32>
    %cst_176 = arith.constant dense<0.000000e+00> : vector<8xf32>
    %359 = vector.multi_reduction <add>, %358, %cst_176 [1] : vector<8x8xf32> to vector<8xf32>
    %360 = vector.shape_cast %359 : vector<8xf32> to vector<8x1xf32>
    %361 = vector.broadcast %360 : vector<8x1xf32> to vector<8x8xf32>
    %362 = arith.divf %358, %361 : vector<8x8xf32>
    %c0_177 = arith.constant 0 : index
    %c1_178 = arith.constant 1 : index
    %c1_179 = arith.constant 1 : index
    %c0_180 = arith.constant 0 : index
    %c0_181 = arith.constant 0 : index
    %363 = vector.load %arg3[%c0_177, %c1_178, %c1_179, %c0_180, %c0_181] : memref<2x2x8x8x8xf32, #tpu.memory_space<vmem>>, vector<1x1x1x8x8xf32>
    %364 = vector.shape_cast %363 : vector<1x1x1x8x8xf32> to vector<8x8xf32>
    %365 = vector.shape_cast %362 : vector<8x8xf32> to vector<1x1x1x8x8xf32>
    tpu.vector_store %arg3[%c0_177, %c1_178, %c1_179, %c0_180, %c0_181], %365 {strides = array<i32>} : memref<2x2x8x8x8xf32, #tpu.memory_space<vmem>>, vector<1x1x1x8x8xf32>,
    %cst_182 = arith.constant dense<0.000000e+00> : vector<8x8xf32>
    %366 = tpu.matmul %362, %348, %cst_182 {dimension_numbers = #tpu.dot_dimension_numbers<[1], [0], [0], [1], [0, 0, 1, 1], [], []>} : vector<8x8xf32>, vector<8x8xf32>, vector<8x8xf32> -> vector<8x8xf32>
    %367 = vector.extract_strided_slice %340 {offsets = [8, 0], sizes = [8, 8], strides = [1, 1]} : vector<16x8xf32> to vector<8x8xf32>
    %368 = arith.addf %367, %337 : vector<8x8xf32>
    %369 = vector.extract_strided_slice %341 {offsets = [8, 0], sizes = [8, 8], strides = [1, 1]} : vector<16x8xf32> to vector<8x8xf32>
    %370 = arith.addf %369, %338 : vector<8x8xf32>
    %371 = vector.extract_strided_slice %342 {offsets = [8, 0], sizes = [8, 8], strides = [1, 1]} : vector<16x8xf32> to vector<8x8xf32>
    %372 = arith.addf %371, %339 : vector<8x8xf32>
    %cst_183 = arith.constant dense<0.000000e+00> : vector<8x8xf32>
    %373 = tpu.matmul %368, %370, %cst_183 {dimension_numbers = #tpu.dot_dimension_numbers<[1], [1], [0], [0], [0, 0, 1, 0], [], []>} : vector<8x8xf32>, vector<8x8xf32>, vector<8x8xf32> -> vector<8x8xf32>
    %cst_184 = arith.constant 0.353553385 : f32
    %374 = vector.broadcast %cst_184 : f32 to vector<8x8xf32>
    %375 = arith.mulf %373, %374 : vector<8x8xf32>
    %376 = vector.extract_strided_slice %3 {offsets = [8, 0], sizes = [8, 8], strides = [1, 1]} : vector<16x8xf32> to vector<8x8xf32>
    %377 = arith.addf %375, %376 : vector<8x8xf32>
    %cst_185 = arith.constant dense<0xFF800000> : vector<8xf32>
    %378 = vector.multi_reduction <maximumf>, %377, %cst_185 [1] : vector<8x8xf32> to vector<8xf32>
    %379 = vector.shape_cast %378 : vector<8xf32> to vector<8x1xf32>
    %380 = vector.broadcast %379 : vector<8x1xf32> to vector<8x8xf32>
    %381 = arith.subf %377, %380 : vector<8x8xf32>
    %382 = math.exp %381 : vector<8x8xf32>
    %cst_186 = arith.constant dense<0.000000e+00> : vector<8xf32>
    %383 = vector.multi_reduction <add>, %382, %cst_186 [1] : vector<8x8xf32> to vector<8xf32>
    %384 = vector.shape_cast %383 : vector<8xf32> to vector<8x1xf32>
    %385 = vector.broadcast %384 : vector<8x1xf32> to vector<8x8xf32>
    %386 = arith.divf %382, %385 : vector<8x8xf32>
    %c0_187 = arith.constant 0 : index
    %c1_188 = arith.constant 1 : index
    %c5_189 = arith.constant 5 : index
    %c0_190 = arith.constant 0 : index
    %c0_191 = arith.constant 0 : index
    %387 = vector.load %arg3[%c0_187, %c1_188, %c5_189, %c0_190, %c0_191] : memref<2x2x8x8x8xf32, #tpu.memory_space<vmem>>, vector<1x1x1x8x8xf32>
    %388 = vector.shape_cast %387 : vector<1x1x1x8x8xf32> to vector<8x8xf32>
    %389 = vector.shape_cast %386 : vector<8x8xf32> to vector<1x1x1x8x8xf32>
    tpu.vector_store %arg3[%c0_187, %c1_188, %c5_189, %c0_190, %c0_191], %389 {strides = array<i32>} : memref<2x2x8x8x8xf32, #tpu.memory_space<vmem>>, vector<1x1x1x8x8xf32>,
    %cst_192 = arith.constant dense<0.000000e+00> : vector<8x8xf32>
    %390 = tpu.matmul %386, %372, %cst_192 {dimension_numbers = #tpu.dot_dimension_numbers<[1], [0], [0], [1], [0, 0, 1, 1], [], []>} : vector<8x8xf32>, vector<8x8xf32>, vector<8x8xf32> -> vector<8x8xf32>
    %391 = tpu.concatenate %366, %390 in 0 : vector<8x8xf32>, vector<8x8xf32> -> vector<16x8xf32>
    %c472 = arith.constant 472 : index
    %c0_193 = arith.constant 0 : index
    %392 = vector.load %arg1[%c472, %c0_193] : memref<1504x32xf32, #tpu.memory_space<vmem>>, vector<8x32xf32>
    %cst_194 = arith.constant dense<0.000000e+00> : vector<16x32xf32>
    %393 = tpu.matmul %391, %392, %cst_194 {dimension_numbers = #tpu.dot_dimension_numbers<[1], [0], [0], [1], [0, 0, 1, 1], [], []>} : vector<16x8xf32>, vector<8x32xf32>, vector<16x32xf32> -> vector<16x32xf32>
    %394 = arith.addf %333, %393 : vector<16x32xf32>
    %c368 = arith.constant 368 : index
    %c0_195 = arith.constant 0 : index
    %395 = vector.load %arg1[%c368, %c0_195] : memref<1504x32xf32, #tpu.memory_space<vmem>>, vector<8x32xf32>
    %c376 = arith.constant 376 : index
    %c0_196 = arith.constant 0 : index
    %396 = vector.load %arg1[%c376, %c0_196] : memref<1504x32xf32, #tpu.memory_space<vmem>>, vector<8x32xf32>
    %c384 = arith.constant 384 : index
    %c0_197 = arith.constant 0 : index
    %397 = vector.load %arg1[%c384, %c0_197] : memref<1504x32xf32, #tpu.memory_space<vmem>>, vector<8x32xf32>
    %c392 = arith.constant 392 : index
    %c0_198 = arith.constant 0 : index
    %398 = vector.load %arg1[%c392, %c0_198] : memref<1504x32xf32, #tpu.memory_space<vmem>>, vector<8x8xf32>
    %c400 = arith.constant 400 : index
    %c0_199 = arith.constant 0 : index
    %399 = vector.load %arg1[%c400, %c0_199] : memref<1504x32xf32, #tpu.memory_space<vmem>>, vector<8x8xf32>
    %c408 = arith.constant 408 : index
    %c0_200 = arith.constant 0 : index
    %400 = vector.load %arg1[%c408, %c0_200] : memref<1504x32xf32, #tpu.memory_space<vmem>>, vector<8x8xf32>
    %cst_201 = arith.constant dense<0.000000e+00> : vector<16x8xf32>
    %401 = tpu.matmul %271, %395, %cst_201 {dimension_numbers = #tpu.dot_dimension_numbers<[1], [1], [0], [0], [0, 0, 1, 0], [], []>} : vector<16x32xf32>, vector<8x32xf32>, vector<16x8xf32> -> vector<16x8xf32>
    %cst_202 = arith.constant dense<0.000000e+00> : vector<16x8xf32>
    %402 = tpu.matmul %1, %396, %cst_202 {dimension_numbers = #tpu.dot_dimension_numbers<[1], [1], [0], [0], [0, 0, 1, 0], [], []>} : vector<16x32xf32>, vector<8x32xf32>, vector<16x8xf32> -> vector<16x8xf32>
    %cst_203 = arith.constant dense<0.000000e+00> : vector<16x8xf32>
    %403 = tpu.matmul %1, %397, %cst_203 {dimension_numbers = #tpu.dot_dimension_numbers<[1], [1], [0], [0], [0, 0, 1, 0], [], []>} : vector<16x32xf32>, vector<8x32xf32>, vector<16x8xf32> -> vector<16x8xf32>
    %404 = vector.extract_strided_slice %401 {offsets = [0, 0], sizes = [8, 8], strides = [1, 1]} : vector<16x8xf32> to vector<8x8xf32>
    %405 = arith.addf %404, %398 : vector<8x8xf32>
    %406 = vector.extract_strided_slice %402 {offsets = [0, 0], sizes = [8, 8], strides = [1, 1]} : vector<16x8xf32> to vector<8x8xf32>
    %407 = arith.addf %406, %399 : vector<8x8xf32>
    %408 = vector.extract_strided_slice %403 {offsets = [0, 0], sizes = [8, 8], strides = [1, 1]} : vector<16x8xf32> to vector<8x8xf32>
    %409 = arith.addf %408, %400 : vector<8x8xf32>
    %cst_204 = arith.constant dense<0.000000e+00> : vector<8x8xf32>
    %410 = tpu.matmul %405, %407, %cst_204 {dimension_numbers = #tpu.dot_dimension_numbers<[1], [1], [0], [0], [0, 0, 1, 0], [], []>} : vector<8x8xf32>, vector<8x8xf32>, vector<8x8xf32> -> vector<8x8xf32>
    %cst_205 = arith.constant 0.353553385 : f32
    %411 = vector.broadcast %cst_205 : f32 to vector<8x8xf32>
    %412 = arith.mulf %410, %411 : vector<8x8xf32>
    %413 = vector.extract_strided_slice %3 {offsets = [0, 0], sizes = [8, 8], strides = [1, 1]} : vector<16x8xf32> to vector<8x8xf32>
    %414 = arith.addf %412, %413 : vector<8x8xf32>
    %cst_206 = arith.constant dense<0xFF800000> : vector<8xf32>
    %415 = vector.multi_reduction <maximumf>, %414, %cst_206 [1] : vector<8x8xf32> to vector<8xf32>
    %416 = vector.shape_cast %415 : vector<8xf32> to vector<8x1xf32>
    %417 = vector.broadcast %416 : vector<8x1xf32> to vector<8x8xf32>
    %418 = arith.subf %414, %417 : vector<8x8xf32>
    %419 = math.exp %418 : vector<8x8xf32>
    %cst_207 = arith.constant dense<0.000000e+00> : vector<8xf32>
    %420 = vector.multi_reduction <add>, %419, %cst_207 [1] : vector<8x8xf32> to vector<8xf32>
    %421 = vector.shape_cast %420 : vector<8xf32> to vector<8x1xf32>
    %422 = vector.broadcast %421 : vector<8x1xf32> to vector<8x8xf32>
    %423 = arith.divf %419, %422 : vector<8x8xf32>
    %c0_208 = arith.constant 0 : index
    %c1_209 = arith.constant 1 : index
    %c2_210 = arith.constant 2 : index
    %c0_211 = arith.constant 0 : index
    %c0_212 = arith.constant 0 : index
    %424 = vector.load %arg3[%c0_208, %c1_209, %c2_210, %c0_211, %c0_212] : memref<2x2x8x8x8xf32, #tpu.memory_space<vmem>>, vector<1x1x1x8x8xf32>
    %425 = vector.shape_cast %424 : vector<1x1x1x8x8xf32> to vector<8x8xf32>
    %426 = vector.shape_cast %423 : vector<8x8xf32> to vector<1x1x1x8x8xf32>
    tpu.vector_store %arg3[%c0_208, %c1_209, %c2_210, %c0_211, %c0_212], %426 {strides = array<i32>} : memref<2x2x8x8x8xf32, #tpu.memory_space<vmem>>, vector<1x1x1x8x8xf32>,
    %cst_213 = arith.constant dense<0.000000e+00> : vector<8x8xf32>
    %427 = tpu.matmul %423, %409, %cst_213 {dimension_numbers = #tpu.dot_dimension_numbers<[1], [0], [0], [1], [0, 0, 1, 1], [], []>} : vector<8x8xf32>, vector<8x8xf32>, vector<8x8xf32> -> vector<8x8xf32>
    %428 = vector.extract_strided_slice %401 {offsets = [8, 0], sizes = [8, 8], strides = [1, 1]} : vector<16x8xf32> to vector<8x8xf32>
    %429 = arith.addf %428, %398 : vector<8x8xf32>
    %430 = vector.extract_strided_slice %402 {offsets = [8, 0], sizes = [8, 8], strides = [1, 1]} : vector<16x8xf32> to vector<8x8xf32>
    %431 = arith.addf %430, %399 : vector<8x8xf32>
    %432 = vector.extract_strided_slice %403 {offsets = [8, 0], sizes = [8, 8], strides = [1, 1]} : vector<16x8xf32> to vector<8x8xf32>
    %433 = arith.addf %432, %400 : vector<8x8xf32>
    %cst_214 = arith.constant dense<0.000000e+00> : vector<8x8xf32>
    %434 = tpu.matmul %429, %431, %cst_214 {dimension_numbers = #tpu.dot_dimension_numbers<[1], [1], [0], [0], [0, 0, 1, 0], [], []>} : vector<8x8xf32>, vector<8x8xf32>, vector<8x8xf32> -> vector<8x8xf32>
    %cst_215 = arith.constant 0.353553385 : f32
    %435 = vector.broadcast %cst_215 : f32 to vector<8x8xf32>
    %436 = arith.mulf %434, %435 : vector<8x8xf32>
    %437 = vector.extract_strided_slice %3 {offsets = [8, 0], sizes = [8, 8], strides = [1, 1]} : vector<16x8xf32> to vector<8x8xf32>
    %438 = arith.addf %436, %437 : vector<8x8xf32>
    %cst_216 = arith.constant dense<0xFF800000> : vector<8xf32>
    %439 = vector.multi_reduction <maximumf>, %438, %cst_216 [1] : vector<8x8xf32> to vector<8xf32>
    %440 = vector.shape_cast %439 : vector<8xf32> to vector<8x1xf32>
    %441 = vector.broadcast %440 : vector<8x1xf32> to vector<8x8xf32>
    %442 = arith.subf %438, %441 : vector<8x8xf32>
    %443 = math.exp %442 : vector<8x8xf32>
    %cst_217 = arith.constant dense<0.000000e+00> : vector<8xf32>
    %444 = vector.multi_reduction <add>, %443, %cst_217 [1] : vector<8x8xf32> to vector<8xf32>
    %445 = vector.shape_cast %444 : vector<8xf32> to vector<8x1xf32>
    %446 = vector.broadcast %445 : vector<8x1xf32> to vector<8x8xf32>
    %447 = arith.divf %443, %446 : vector<8x8xf32>
    %c0_218 = arith.constant 0 : index
    %c1_219 = arith.constant 1 : index
    %c6_220 = arith.constant 6 : index
    %c0_221 = arith.constant 0 : index
    %c0_222 = arith.constant 0 : index
    %448 = vector.load %arg3[%c0_218, %c1_219, %c6_220, %c0_221, %c0_222] : memref<2x2x8x8x8xf32, #tpu.memory_space<vmem>>, vector<1x1x1x8x8xf32>
    %449 = vector.shape_cast %448 : vector<1x1x1x8x8xf32> to vector<8x8xf32>
    %450 = vector.shape_cast %447 : vector<8x8xf32> to vector<1x1x1x8x8xf32>
    tpu.vector_store %arg3[%c0_218, %c1_219, %c6_220, %c0_221, %c0_222], %450 {strides = array<i32>} : memref<2x2x8x8x8xf32, #tpu.memory_space<vmem>>, vector<1x1x1x8x8xf32>,
    %cst_223 = arith.constant dense<0.000000e+00> : vector<8x8xf32>
    %451 = tpu.matmul %447, %433, %cst_223 {dimension_numbers = #tpu.dot_dimension_numbers<[1], [0], [0], [1], [0, 0, 1, 1], [], []>} : vector<8x8xf32>, vector<8x8xf32>, vector<8x8xf32> -> vector<8x8xf32>
    %452 = tpu.concatenate %427, %451 in 0 : vector<8x8xf32>, vector<8x8xf32> -> vector<16x8xf32>
    %c480 = arith.constant 480 : index
    %c0_224 = arith.constant 0 : index
    %453 = vector.load %arg1[%c480, %c0_224] : memref<1504x32xf32, #tpu.memory_space<vmem>>, vector<8x32xf32>
    %cst_225 = arith.constant dense<0.000000e+00> : vector<16x32xf32>
    %454 = tpu.matmul %452, %453, %cst_225 {dimension_numbers = #tpu.dot_dimension_numbers<[1], [0], [0], [1], [0, 0, 1, 1], [], []>} : vector<16x8xf32>, vector<8x32xf32>, vector<16x32xf32> -> vector<16x32xf32>
    %455 = arith.addf %394, %454 : vector<16x32xf32>
    %c416 = arith.constant 416 : index
    %c0_226 = arith.constant 0 : index
    %456 = vector.load %arg1[%c416, %c0_226] : memref<1504x32xf32, #tpu.memory_space<vmem>>, vector<8x32xf32>
    %c424 = arith.constant 424 : index
    %c0_227 = arith.constant 0 : index
    %457 = vector.load %arg1[%c424, %c0_227] : memref<1504x32xf32, #tpu.memory_space<vmem>>, vector<8x32xf32>
    %c432 = arith.constant 432 : index
    %c0_228 = arith.constant 0 : index
    %458 = vector.load %arg1[%c432, %c0_228] : memref<1504x32xf32, #tpu.memory_space<vmem>>, vector<8x32xf32>
    %c440 = arith.constant 440 : index
    %c0_229 = arith.constant 0 : index
    %459 = vector.load %arg1[%c440, %c0_229] : memref<1504x32xf32, #tpu.memory_space<vmem>>, vector<8x8xf32>
    %c448 = arith.constant 448 : index
    %c0_230 = arith.constant 0 : index
    %460 = vector.load %arg1[%c448, %c0_230] : memref<1504x32xf32, #tpu.memory_space<vmem>>, vector<8x8xf32>
    %c456 = arith.constant 456 : index
    %c0_231 = arith.constant 0 : index
    %461 = vector.load %arg1[%c456, %c0_231] : memref<1504x32xf32, #tpu.memory_space<vmem>>, vector<8x8xf32>
    %cst_232 = arith.constant dense<0.000000e+00> : vector<16x8xf32>
    %462 = tpu.matmul %271, %456, %cst_232 {dimension_numbers = #tpu.dot_dimension_numbers<[1], [1], [0], [0], [0, 0, 1, 0], [], []>} : vector<16x32xf32>, vector<8x32xf32>, vector<16x8xf32> -> vector<16x8xf32>
    %cst_233 = arith.constant dense<0.000000e+00> : vector<16x8xf32>
    %463 = tpu.matmul %1, %457, %cst_233 {dimension_numbers = #tpu.dot_dimension_numbers<[1], [1], [0], [0], [0, 0, 1, 0], [], []>} : vector<16x32xf32>, vector<8x32xf32>, vector<16x8xf32> -> vector<16x8xf32>
    %cst_234 = arith.constant dense<0.000000e+00> : vector<16x8xf32>
    %464 = tpu.matmul %1, %458, %cst_234 {dimension_numbers = #tpu.dot_dimension_numbers<[1], [1], [0], [0], [0, 0, 1, 0], [], []>} : vector<16x32xf32>, vector<8x32xf32>, vector<16x8xf32> -> vector<16x8xf32>
    %465 = vector.extract_strided_slice %462 {offsets = [0, 0], sizes = [8, 8], strides = [1, 1]} : vector<16x8xf32> to vector<8x8xf32>
    %466 = arith.addf %465, %459 : vector<8x8xf32>
    %467 = vector.extract_strided_slice %463 {offsets = [0, 0], sizes = [8, 8], strides = [1, 1]} : vector<16x8xf32> to vector<8x8xf32>
    %468 = arith.addf %467, %460 : vector<8x8xf32>
    %469 = vector.extract_strided_slice %464 {offsets = [0, 0], sizes = [8, 8], strides = [1, 1]} : vector<16x8xf32> to vector<8x8xf32>
    %470 = arith.addf %469, %461 : vector<8x8xf32>
    %cst_235 = arith.constant dense<0.000000e+00> : vector<8x8xf32>
    %471 = tpu.matmul %466, %468, %cst_235 {dimension_numbers = #tpu.dot_dimension_numbers<[1], [1], [0], [0], [0, 0, 1, 0], [], []>} : vector<8x8xf32>, vector<8x8xf32>, vector<8x8xf32> -> vector<8x8xf32>
    %cst_236 = arith.constant 0.353553385 : f32
    %472 = vector.broadcast %cst_236 : f32 to vector<8x8xf32>
    %473 = arith.mulf %471, %472 : vector<8x8xf32>
    %474 = vector.extract_strided_slice %3 {offsets = [0, 0], sizes = [8, 8], strides = [1, 1]} : vector<16x8xf32> to vector<8x8xf32>
    %475 = arith.addf %473, %474 : vector<8x8xf32>
    %cst_237 = arith.constant dense<0xFF800000> : vector<8xf32>
    %476 = vector.multi_reduction <maximumf>, %475, %cst_237 [1] : vector<8x8xf32> to vector<8xf32>
    %477 = vector.shape_cast %476 : vector<8xf32> to vector<8x1xf32>
    %478 = vector.broadcast %477 : vector<8x1xf32> to vector<8x8xf32>
    %479 = arith.subf %475, %478 : vector<8x8xf32>
    %480 = math.exp %479 : vector<8x8xf32>
    %cst_238 = arith.constant dense<0.000000e+00> : vector<8xf32>
    %481 = vector.multi_reduction <add>, %480, %cst_238 [1] : vector<8x8xf32> to vector<8xf32>
    %482 = vector.shape_cast %481 : vector<8xf32> to vector<8x1xf32>
    %483 = vector.broadcast %482 : vector<8x1xf32> to vector<8x8xf32>
    %484 = arith.divf %480, %483 : vector<8x8xf32>
    %c0_239 = arith.constant 0 : index
    %c1_240 = arith.constant 1 : index
    %c3_241 = arith.constant 3 : index
    %c0_242 = arith.constant 0 : index
    %c0_243 = arith.constant 0 : index
    %485 = vector.load %arg3[%c0_239, %c1_240, %c3_241, %c0_242, %c0_243] : memref<2x2x8x8x8xf32, #tpu.memory_space<vmem>>, vector<1x1x1x8x8xf32>
    %486 = vector.shape_cast %485 : vector<1x1x1x8x8xf32> to vector<8x8xf32>
    %487 = vector.shape_cast %484 : vector<8x8xf32> to vector<1x1x1x8x8xf32>
    tpu.vector_store %arg3[%c0_239, %c1_240, %c3_241, %c0_242, %c0_243], %487 {strides = array<i32>} : memref<2x2x8x8x8xf32, #tpu.memory_space<vmem>>, vector<1x1x1x8x8xf32>,
    %cst_244 = arith.constant dense<0.000000e+00> : vector<8x8xf32>
    %488 = tpu.matmul %484, %470, %cst_244 {dimension_numbers = #tpu.dot_dimension_numbers<[1], [0], [0], [1], [0, 0, 1, 1], [], []>} : vector<8x8xf32>, vector<8x8xf32>, vector<8x8xf32> -> vector<8x8xf32>
    %489 = vector.extract_strided_slice %462 {offsets = [8, 0], sizes = [8, 8], strides = [1, 1]} : vector<16x8xf32> to vector<8x8xf32>
    %490 = arith.addf %489, %459 : vector<8x8xf32>
    %491 = vector.extract_strided_slice %463 {offsets = [8, 0], sizes = [8, 8], strides = [1, 1]} : vector<16x8xf32> to vector<8x8xf32>
    %492 = arith.addf %491, %460 : vector<8x8xf32>
    %493 = vector.extract_strided_slice %464 {offsets = [8, 0], sizes = [8, 8], strides = [1, 1]} : vector<16x8xf32> to vector<8x8xf32>
    %494 = arith.addf %493, %461 : vector<8x8xf32>
    %cst_245 = arith.constant dense<0.000000e+00> : vector<8x8xf32>
    %495 = tpu.matmul %490, %492, %cst_245 {dimension_numbers = #tpu.dot_dimension_numbers<[1], [1], [0], [0], [0, 0, 1, 0], [], []>} : vector<8x8xf32>, vector<8x8xf32>, vector<8x8xf32> -> vector<8x8xf32>
    %cst_246 = arith.constant 0.353553385 : f32
    %496 = vector.broadcast %cst_246 : f32 to vector<8x8xf32>
    %497 = arith.mulf %495, %496 : vector<8x8xf32>
    %498 = vector.extract_strided_slice %3 {offsets = [8, 0], sizes = [8, 8], strides = [1, 1]} : vector<16x8xf32> to vector<8x8xf32>
    %499 = arith.addf %497, %498 : vector<8x8xf32>
    %cst_247 = arith.constant dense<0xFF800000> : vector<8xf32>
    %500 = vector.multi_reduction <maximumf>, %499, %cst_247 [1] : vector<8x8xf32> to vector<8xf32>
    %501 = vector.shape_cast %500 : vector<8xf32> to vector<8x1xf32>
    %502 = vector.broadcast %501 : vector<8x1xf32> to vector<8x8xf32>
    %503 = arith.subf %499, %502 : vector<8x8xf32>
    %504 = math.exp %503 : vector<8x8xf32>
    %cst_248 = arith.constant dense<0.000000e+00> : vector<8xf32>
    %505 = vector.multi_reduction <add>, %504, %cst_248 [1] : vector<8x8xf32> to vector<8xf32>
    %506 = vector.shape_cast %505 : vector<8xf32> to vector<8x1xf32>
    %507 = vector.broadcast %506 : vector<8x1xf32> to vector<8x8xf32>
    %508 = arith.divf %504, %507 : vector<8x8xf32>
    %c0_249 = arith.constant 0 : index
    %c1_250 = arith.constant 1 : index
    %c7_251 = arith.constant 7 : index
    %c0_252 = arith.constant 0 : index
    %c0_253 = arith.constant 0 : index
    %509 = vector.load %arg3[%c0_249, %c1_250, %c7_251, %c0_252, %c0_253] : memref<2x2x8x8x8xf32, #tpu.memory_space<vmem>>, vector<1x1x1x8x8xf32>
    %510 = vector.shape_cast %509 : vector<1x1x1x8x8xf32> to vector<8x8xf32>
    %511 = vector.shape_cast %508 : vector<8x8xf32> to vector<1x1x1x8x8xf32>
    tpu.vector_store %arg3[%c0_249, %c1_250, %c7_251, %c0_252, %c0_253], %511 {strides = array<i32>} : memref<2x2x8x8x8xf32, #tpu.memory_space<vmem>>, vector<1x1x1x8x8xf32>,
    %cst_254 = arith.constant dense<0.000000e+00> : vector<8x8xf32>
    %512 = tpu.matmul %508, %494, %cst_254 {dimension_numbers = #tpu.dot_dimension_numbers<[1], [0], [0], [1], [0, 0, 1, 1], [], []>} : vector<8x8xf32>, vector<8x8xf32>, vector<8x8xf32> -> vector<8x8xf32>
    %513 = tpu.concatenate %488, %512 in 0 : vector<8x8xf32>, vector<8x8xf32> -> vector<16x8xf32>
    %c488 = arith.constant 488 : index
    %c0_255 = arith.constant 0 : index
    %514 = vector.load %arg1[%c488, %c0_255] : memref<1504x32xf32, #tpu.memory_space<vmem>>, vector<8x32xf32>
    %cst_256 = arith.constant dense<0.000000e+00> : vector<16x32xf32>
    %515 = tpu.matmul %513, %514, %cst_256 {dimension_numbers = #tpu.dot_dimension_numbers<[1], [0], [0], [1], [0, 0, 1, 1], [], []>} : vector<16x8xf32>, vector<8x32xf32>, vector<16x32xf32> -> vector<16x32xf32>
    %516 = arith.addf %455, %515 : vector<16x32xf32>
    %c512 = arith.constant 512 : index
    %c0_257 = arith.constant 0 : index
    %517 = vector.load %arg1[%c512, %c0_257] : memref<1504x32xf32, #tpu.memory_space<vmem>>, vector<16x32xf32>
    %c528 = arith.constant 528 : index
    %c0_258 = arith.constant 0 : index
    %518 = vector.load %arg1[%c528, %c0_258] : memref<1504x32xf32, #tpu.memory_space<vmem>>, vector<16x32xf32>
    %519 = arith.addf %516, %271 : vector<16x32xf32>
    %cst_259 = arith.constant dense<0.000000e+00> : vector<16xf32>
    %520 = vector.multi_reduction <add>, %519, %cst_259 [1] : vector<16x32xf32> to vector<16xf32>
    %521 = vector.shape_cast %520 : vector<16xf32> to vector<16x1xf32>
    %cst_260 = arith.constant 3.200000e+01 : f32
    %522 = vector.broadcast %cst_260 : f32 to vector<16x1xf32>
    %523 = arith.divf %521, %522 : vector<16x1xf32>
    %524 = vector.broadcast %523 : vector<16x1xf32> to vector<16x32xf32>
    %525 = arith.subf %519, %524 : vector<16x32xf32>
    %526 = arith.mulf %525, %525 : vector<16x32xf32>
    %cst_261 = arith.constant dense<0.000000e+00> : vector<16xf32>
    %527 = vector.multi_reduction <add>, %526, %cst_261 [1] : vector<16x32xf32> to vector<16xf32>
    %528 = vector.shape_cast %527 : vector<16xf32> to vector<16x1xf32>
    %cst_262 = arith.constant 3.200000e+01 : f32
    %529 = vector.broadcast %cst_262 : f32 to vector<16x1xf32>
    %530 = arith.divf %528, %529 : vector<16x1xf32>
    %531 = vector.broadcast %523 : vector<16x1xf32> to vector<16x32xf32>
    %532 = arith.subf %519, %531 : vector<16x32xf32>
    %533 = arith.mulf %517, %532 : vector<16x32xf32>
    %cst_263 = arith.constant 9.99999974E-6 : f32
    %534 = vector.broadcast %cst_263 : f32 to vector<16x1xf32>
    %535 = arith.addf %530, %534 : vector<16x1xf32>
    %536 = math.rsqrt %535 : vector<16x1xf32>
    %537 = vector.broadcast %536 : vector<16x1xf32> to vector<16x32xf32>
    %538 = arith.mulf %533, %537 : vector<16x32xf32>
    %539 = arith.addf %538, %518 : vector<16x32xf32>
    %c544 = arith.constant 544 : index
    %c0_264 = arith.constant 0 : index
    %540 = vector.load %arg1[%c544, %c0_264] : memref<1504x32xf32, #tpu.memory_space<vmem>>, vector<32x32xf32>
    %c576 = arith.constant 576 : index
    %c0_265 = arith.constant 0 : index
    %541 = vector.load %arg1[%c576, %c0_265] : memref<1504x32xf32, #tpu.memory_space<vmem>>, vector<32x32xf32>
    %c608 = arith.constant 608 : index
    %c0_266 = arith.constant 0 : index
    %542 = vector.load %arg1[%c608, %c0_266] : memref<1504x32xf32, #tpu.memory_space<vmem>>, vector<16x32xf32>
    %c624 = arith.constant 624 : index
    %c0_267 = arith.constant 0 : index
    %543 = vector.load %arg1[%c624, %c0_267] : memref<1504x32xf32, #tpu.memory_space<vmem>>, vector<16x32xf32>
    %c640 = arith.constant 640 : index
    %c0_268 = arith.constant 0 : index
    %544 = vector.load %arg1[%c640, %c0_268] : memref<1504x32xf32, #tpu.memory_space<vmem>>, vector<32x32xf32>
    %c672 = arith.constant 672 : index
    %c0_269 = arith.constant 0 : index
    %545 = vector.load %arg1[%c672, %c0_269] : memref<1504x32xf32, #tpu.memory_space<vmem>>, vector<32x32xf32>
    %c704 = arith.constant 704 : index
    %c0_270 = arith.constant 0 : index
    %546 = vector.load %arg1[%c704, %c0_270] : memref<1504x32xf32, #tpu.memory_space<vmem>>, vector<16x32xf32>
    %c720 = arith.constant 720 : index
    %c0_271 = arith.constant 0 : index
    %547 = vector.load %arg1[%c720, %c0_271] : memref<1504x32xf32, #tpu.memory_space<vmem>>, vector<16x32xf32>
    %c736 = arith.constant 736 : index
    %c0_272 = arith.constant 0 : index
    %548 = vector.load %arg1[%c736, %c0_272] : memref<1504x32xf32, #tpu.memory_space<vmem>>, vector<16x32xf32>
    %cst_273 = arith.constant dense<0.000000e+00> : vector<16x32xf32>
    %549 = tpu.matmul %539, %540, %cst_273 {dimension_numbers = #tpu.dot_dimension_numbers<[1], [1], [0], [0], [0, 0, 1, 0], [], []>} : vector<16x32xf32>, vector<32x32xf32>, vector<16x32xf32> -> vector<16x32xf32>
    %550 = arith.addf %549, %542 : vector<16x32xf32>
    %cst_274 = arith.constant 0.000000e+00 : f32
    %551 = vector.broadcast %cst_274 : f32 to vector<16x32xf32>
    %552 = arith.maximumf %550, %551 : vector<16x32xf32>
    %cst_275 = arith.constant dense<0.000000e+00> : vector<16x32xf32>
    %553 = tpu.matmul %539, %541, %cst_275 {dimension_numbers = #tpu.dot_dimension_numbers<[1], [1], [0], [0], [0, 0, 1, 0], [], []>} : vector<16x32xf32>, vector<32x32xf32>, vector<16x32xf32> -> vector<16x32xf32>
    %554 = arith.addf %553, %543 : vector<16x32xf32>
    %cst_276 = arith.constant 0.000000e+00 : f32
    %555 = vector.broadcast %cst_276 : f32 to vector<16x32xf32>
    %556 = arith.maximumf %554, %555 : vector<16x32xf32>
    %cst_277 = arith.constant dense<0.000000e+00> : vector<16x32xf32>
    %557 = tpu.matmul %552, %544, %cst_277 {dimension_numbers = #tpu.dot_dimension_numbers<[1], [1], [0], [0], [0, 0, 1, 0], [], []>} : vector<16x32xf32>, vector<32x32xf32>, vector<16x32xf32> -> vector<16x32xf32>
    %cst_278 = arith.constant dense<0.000000e+00> : vector<16x32xf32>
    %558 = tpu.matmul %556, %545, %cst_278 {dimension_numbers = #tpu.dot_dimension_numbers<[1], [1], [0], [0], [0, 0, 1, 0], [], []>} : vector<16x32xf32>, vector<32x32xf32>, vector<16x32xf32> -> vector<16x32xf32>
    %559 = arith.addf %557, %558 : vector<16x32xf32>
    %560 = arith.addf %559, %546 : vector<16x32xf32>
    %561 = arith.addf %560, %539 : vector<16x32xf32>
    %cst_279 = arith.constant dense<0.000000e+00> : vector<16xf32>
    %562 = vector.multi_reduction <add>, %561, %cst_279 [1] : vector<16x32xf32> to vector<16xf32>
    %563 = vector.shape_cast %562 : vector<16xf32> to vector<16x1xf32>
    %cst_280 = arith.constant 3.200000e+01 : f32
    %564 = vector.broadcast %cst_280 : f32 to vector<16x1xf32>
    %565 = arith.divf %563, %564 : vector<16x1xf32>
    %566 = vector.broadcast %565 : vector<16x1xf32> to vector<16x32xf32>
    %567 = arith.subf %561, %566 : vector<16x32xf32>
    %568 = arith.mulf %567, %567 : vector<16x32xf32>
    %cst_281 = arith.constant dense<0.000000e+00> : vector<16xf32>
    %569 = vector.multi_reduction <add>, %568, %cst_281 [1] : vector<16x32xf32> to vector<16xf32>
    %570 = vector.shape_cast %569 : vector<16xf32> to vector<16x1xf32>
    %cst_282 = arith.constant 3.200000e+01 : f32
    %571 = vector.broadcast %cst_282 : f32 to vector<16x1xf32>
    %572 = arith.divf %570, %571 : vector<16x1xf32>
    %573 = vector.broadcast %565 : vector<16x1xf32> to vector<16x32xf32>
    %574 = arith.subf %561, %573 : vector<16x32xf32>
    %575 = arith.mulf %547, %574 : vector<16x32xf32>
    %cst_283 = arith.constant 9.99999974E-6 : f32
    %576 = vector.broadcast %cst_283 : f32 to vector<16x1xf32>
    %577 = arith.addf %572, %576 : vector<16x1xf32>
    %578 = math.rsqrt %577 : vector<16x1xf32>
    %579 = vector.broadcast %578 : vector<16x1xf32> to vector<16x32xf32>
    %580 = arith.mulf %575, %579 : vector<16x32xf32>
    %581 = arith.addf %580, %548 : vector<16x32xf32>
    %c976 = arith.constant 976 : index
    %c0_284 = arith.constant 0 : index
    %582 = vector.load %arg1[%c976, %c0_284] : memref<1504x32xf32, #tpu.memory_space<vmem>>, vector<16x32xf32>
    %c752 = arith.constant 752 : index
    %c0_285 = arith.constant 0 : index
    %583 = vector.load %arg1[%c752, %c0_285] : memref<1504x32xf32, #tpu.memory_space<vmem>>, vector<8x32xf32>
    %c760 = arith.constant 760 : index
    %c0_286 = arith.constant 0 : index
    %584 = vector.load %arg1[%c760, %c0_286] : memref<1504x32xf32, #tpu.memory_space<vmem>>, vector<8x32xf32>
    %c768 = arith.constant 768 : index
    %c0_287 = arith.constant 0 : index
    %585 = vector.load %arg1[%c768, %c0_287] : memref<1504x32xf32, #tpu.memory_space<vmem>>, vector<8x32xf32>
    %c776 = arith.constant 776 : index
    %c0_288 = arith.constant 0 : index
    %586 = vector.load %arg1[%c776, %c0_288] : memref<1504x32xf32, #tpu.memory_space<vmem>>, vector<8x8xf32>
    %c784 = arith.constant 784 : index
    %c0_289 = arith.constant 0 : index
    %587 = vector.load %arg1[%c784, %c0_289] : memref<1504x32xf32, #tpu.memory_space<vmem>>, vector<8x8xf32>
    %c792 = arith.constant 792 : index
    %c0_290 = arith.constant 0 : index
    %588 = vector.load %arg1[%c792, %c0_290] : memref<1504x32xf32, #tpu.memory_space<vmem>>, vector<8x8xf32>
    %cst_291 = arith.constant dense<0.000000e+00> : vector<16x8xf32>
    %589 = tpu.matmul %581, %583, %cst_291 {dimension_numbers = #tpu.dot_dimension_numbers<[1], [1], [0], [0], [0, 0, 1, 0], [], []>} : vector<16x32xf32>, vector<8x32xf32>, vector<16x8xf32> -> vector<16x8xf32>
    %cst_292 = arith.constant dense<0.000000e+00> : vector<16x8xf32>
    %590 = tpu.matmul %581, %584, %cst_292 {dimension_numbers = #tpu.dot_dimension_numbers<[1], [1], [0], [0], [0, 0, 1, 0], [], []>} : vector<16x32xf32>, vector<8x32xf32>, vector<16x8xf32> -> vector<16x8xf32>
    %cst_293 = arith.constant dense<0.000000e+00> : vector<16x8xf32>
    %591 = tpu.matmul %581, %585, %cst_293 {dimension_numbers = #tpu.dot_dimension_numbers<[1], [1], [0], [0], [0, 0, 1, 0], [], []>} : vector<16x32xf32>, vector<8x32xf32>, vector<16x8xf32> -> vector<16x8xf32>
    %592 = vector.extract_strided_slice %589 {offsets = [0, 0], sizes = [8, 8], strides = [1, 1]} : vector<16x8xf32> to vector<8x8xf32>
    %593 = arith.addf %592, %586 : vector<8x8xf32>
    %594 = vector.extract_strided_slice %590 {offsets = [0, 0], sizes = [8, 8], strides = [1, 1]} : vector<16x8xf32> to vector<8x8xf32>
    %595 = arith.addf %594, %587 : vector<8x8xf32>
    %596 = vector.extract_strided_slice %591 {offsets = [0, 0], sizes = [8, 8], strides = [1, 1]} : vector<16x8xf32> to vector<8x8xf32>
    %597 = arith.addf %596, %588 : vector<8x8xf32>
    %cst_294 = arith.constant dense<0.000000e+00> : vector<8x8xf32>
    %598 = tpu.matmul %593, %595, %cst_294 {dimension_numbers = #tpu.dot_dimension_numbers<[1], [1], [0], [0], [0, 0, 1, 0], [], []>} : vector<8x8xf32>, vector<8x8xf32>, vector<8x8xf32> -> vector<8x8xf32>
    %cst_295 = arith.constant 0.353553385 : f32
    %599 = vector.broadcast %cst_295 : f32 to vector<8x8xf32>
    %600 = arith.mulf %598, %599 : vector<8x8xf32>
    %601 = vector.extract_strided_slice %2 {offsets = [0, 0], sizes = [8, 8], strides = [1, 1]} : vector<16x8xf32> to vector<8x8xf32>
    %602 = arith.addf %600, %601 : vector<8x8xf32>
    %cst_296 = arith.constant dense<0xFF800000> : vector<8xf32>
    %603 = vector.multi_reduction <maximumf>, %602, %cst_296 [1] : vector<8x8xf32> to vector<8xf32>
    %604 = vector.shape_cast %603 : vector<8xf32> to vector<8x1xf32>
    %605 = vector.broadcast %604 : vector<8x1xf32> to vector<8x8xf32>
    %606 = arith.subf %602, %605 : vector<8x8xf32>
    %607 = math.exp %606 : vector<8x8xf32>
    %cst_297 = arith.constant dense<0.000000e+00> : vector<8xf32>
    %608 = vector.multi_reduction <add>, %607, %cst_297 [1] : vector<8x8xf32> to vector<8xf32>
    %609 = vector.shape_cast %608 : vector<8xf32> to vector<8x1xf32>
    %610 = vector.broadcast %609 : vector<8x1xf32> to vector<8x8xf32>
    %611 = arith.divf %607, %610 : vector<8x8xf32>
    %c1_298 = arith.constant 1 : index
    %c0_299 = arith.constant 0 : index
    %c0_300 = arith.constant 0 : index
    %c0_301 = arith.constant 0 : index
    %c0_302 = arith.constant 0 : index
    %612 = vector.load %arg3[%c1_298, %c0_299, %c0_300, %c0_301, %c0_302] : memref<2x2x8x8x8xf32, #tpu.memory_space<vmem>>, vector<1x1x1x8x8xf32>
    %613 = vector.shape_cast %612 : vector<1x1x1x8x8xf32> to vector<8x8xf32>
    %614 = vector.shape_cast %611 : vector<8x8xf32> to vector<1x1x1x8x8xf32>
    tpu.vector_store %arg3[%c1_298, %c0_299, %c0_300, %c0_301, %c0_302], %614 {strides = array<i32>} : memref<2x2x8x8x8xf32, #tpu.memory_space<vmem>>, vector<1x1x1x8x8xf32>,
    %cst_303 = arith.constant dense<0.000000e+00> : vector<8x8xf32>
    %615 = tpu.matmul %611, %597, %cst_303 {dimension_numbers = #tpu.dot_dimension_numbers<[1], [0], [0], [1], [0, 0, 1, 1], [], []>} : vector<8x8xf32>, vector<8x8xf32>, vector<8x8xf32> -> vector<8x8xf32>
    %616 = vector.extract_strided_slice %589 {offsets = [8, 0], sizes = [8, 8], strides = [1, 1]} : vector<16x8xf32> to vector<8x8xf32>
    %617 = arith.addf %616, %586 : vector<8x8xf32>
    %618 = vector.extract_strided_slice %590 {offsets = [8, 0], sizes = [8, 8], strides = [1, 1]} : vector<16x8xf32> to vector<8x8xf32>
    %619 = arith.addf %618, %587 : vector<8x8xf32>
    %620 = vector.extract_strided_slice %591 {offsets = [8, 0], sizes = [8, 8], strides = [1, 1]} : vector<16x8xf32> to vector<8x8xf32>
    %621 = arith.addf %620, %588 : vector<8x8xf32>
    %cst_304 = arith.constant dense<0.000000e+00> : vector<8x8xf32>
    %622 = tpu.matmul %617, %619, %cst_304 {dimension_numbers = #tpu.dot_dimension_numbers<[1], [1], [0], [0], [0, 0, 1, 0], [], []>} : vector<8x8xf32>, vector<8x8xf32>, vector<8x8xf32> -> vector<8x8xf32>
    %cst_305 = arith.constant 0.353553385 : f32
    %623 = vector.broadcast %cst_305 : f32 to vector<8x8xf32>
    %624 = arith.mulf %622, %623 : vector<8x8xf32>
    %625 = vector.extract_strided_slice %2 {offsets = [8, 0], sizes = [8, 8], strides = [1, 1]} : vector<16x8xf32> to vector<8x8xf32>
    %626 = arith.addf %624, %625 : vector<8x8xf32>
    %cst_306 = arith.constant dense<0xFF800000> : vector<8xf32>
    %627 = vector.multi_reduction <maximumf>, %626, %cst_306 [1] : vector<8x8xf32> to vector<8xf32>
    %628 = vector.shape_cast %627 : vector<8xf32> to vector<8x1xf32>
    %629 = vector.broadcast %628 : vector<8x1xf32> to vector<8x8xf32>
    %630 = arith.subf %626, %629 : vector<8x8xf32>
    %631 = math.exp %630 : vector<8x8xf32>
    %cst_307 = arith.constant dense<0.000000e+00> : vector<8xf32>
    %632 = vector.multi_reduction <add>, %631, %cst_307 [1] : vector<8x8xf32> to vector<8xf32>
    %633 = vector.shape_cast %632 : vector<8xf32> to vector<8x1xf32>
    %634 = vector.broadcast %633 : vector<8x1xf32> to vector<8x8xf32>
    %635 = arith.divf %631, %634 : vector<8x8xf32>
    %c1_308 = arith.constant 1 : index
    %c0_309 = arith.constant 0 : index
    %c4_310 = arith.constant 4 : index
    %c0_311 = arith.constant 0 : index
    %c0_312 = arith.constant 0 : index
    %636 = vector.load %arg3[%c1_308, %c0_309, %c4_310, %c0_311, %c0_312] : memref<2x2x8x8x8xf32, #tpu.memory_space<vmem>>, vector<1x1x1x8x8xf32>
    %637 = vector.shape_cast %636 : vector<1x1x1x8x8xf32> to vector<8x8xf32>
    %638 = vector.shape_cast %635 : vector<8x8xf32> to vector<1x1x1x8x8xf32>
    tpu.vector_store %arg3[%c1_308, %c0_309, %c4_310, %c0_311, %c0_312], %638 {strides = array<i32>} : memref<2x2x8x8x8xf32, #tpu.memory_space<vmem>>, vector<1x1x1x8x8xf32>,
    %cst_313 = arith.constant dense<0.000000e+00> : vector<8x8xf32>
    %639 = tpu.matmul %635, %621, %cst_313 {dimension_numbers = #tpu.dot_dimension_numbers<[1], [0], [0], [1], [0, 0, 1, 1], [], []>} : vector<8x8xf32>, vector<8x8xf32>, vector<8x8xf32> -> vector<8x8xf32>
    %640 = tpu.concatenate %615, %639 in 0 : vector<8x8xf32>, vector<8x8xf32> -> vector<16x8xf32>
    %c944 = arith.constant 944 : index
    %c0_314 = arith.constant 0 : index
    %641 = vector.load %arg1[%c944, %c0_314] : memref<1504x32xf32, #tpu.memory_space<vmem>>, vector<8x32xf32>
    %cst_315 = arith.constant dense<0.000000e+00> : vector<16x32xf32>
    %642 = tpu.matmul %640, %641, %cst_315 {dimension_numbers = #tpu.dot_dimension_numbers<[1], [0], [0], [1], [0, 0, 1, 1], [], []>} : vector<16x8xf32>, vector<8x32xf32>, vector<16x32xf32> -> vector<16x32xf32>
    %643 = arith.addf %582, %642 : vector<16x32xf32>
    %c800 = arith.constant 800 : index
    %c0_316 = arith.constant 0 : index
    %644 = vector.load %arg1[%c800, %c0_316] : memref<1504x32xf32, #tpu.memory_space<vmem>>, vector<8x32xf32>
    %c808 = arith.constant 808 : index
    %c0_317 = arith.constant 0 : index
    %645 = vector.load %arg1[%c808, %c0_317] : memref<1504x32xf32, #tpu.memory_space<vmem>>, vector<8x32xf32>
    %c816 = arith.constant 816 : index
    %c0_318 = arith.constant 0 : index
    %646 = vector.load %arg1[%c816, %c0_318] : memref<1504x32xf32, #tpu.memory_space<vmem>>, vector<8x32xf32>
    %c824 = arith.constant 824 : index
    %c0_319 = arith.constant 0 : index
    %647 = vector.load %arg1[%c824, %c0_319] : memref<1504x32xf32, #tpu.memory_space<vmem>>, vector<8x8xf32>
    %c832 = arith.constant 832 : index
    %c0_320 = arith.constant 0 : index
    %648 = vector.load %arg1[%c832, %c0_320] : memref<1504x32xf32, #tpu.memory_space<vmem>>, vector<8x8xf32>
    %c840 = arith.constant 840 : index
    %c0_321 = arith.constant 0 : index
    %649 = vector.load %arg1[%c840, %c0_321] : memref<1504x32xf32, #tpu.memory_space<vmem>>, vector<8x8xf32>
    %cst_322 = arith.constant dense<0.000000e+00> : vector<16x8xf32>
    %650 = tpu.matmul %581, %644, %cst_322 {dimension_numbers = #tpu.dot_dimension_numbers<[1], [1], [0], [0], [0, 0, 1, 0], [], []>} : vector<16x32xf32>, vector<8x32xf32>, vector<16x8xf32> -> vector<16x8xf32>
    %cst_323 = arith.constant dense<0.000000e+00> : vector<16x8xf32>
    %651 = tpu.matmul %581, %645, %cst_323 {dimension_numbers = #tpu.dot_dimension_numbers<[1], [1], [0], [0], [0, 0, 1, 0], [], []>} : vector<16x32xf32>, vector<8x32xf32>, vector<16x8xf32> -> vector<16x8xf32>
    %cst_324 = arith.constant dense<0.000000e+00> : vector<16x8xf32>
    %652 = tpu.matmul %581, %646, %cst_324 {dimension_numbers = #tpu.dot_dimension_numbers<[1], [1], [0], [0], [0, 0, 1, 0], [], []>} : vector<16x32xf32>, vector<8x32xf32>, vector<16x8xf32> -> vector<16x8xf32>
    %653 = vector.extract_strided_slice %650 {offsets = [0, 0], sizes = [8, 8], strides = [1, 1]} : vector<16x8xf32> to vector<8x8xf32>
    %654 = arith.addf %653, %647 : vector<8x8xf32>
    %655 = vector.extract_strided_slice %651 {offsets = [0, 0], sizes = [8, 8], strides = [1, 1]} : vector<16x8xf32> to vector<8x8xf32>
    %656 = arith.addf %655, %648 : vector<8x8xf32>
    %657 = vector.extract_strided_slice %652 {offsets = [0, 0], sizes = [8, 8], strides = [1, 1]} : vector<16x8xf32> to vector<8x8xf32>
    %658 = arith.addf %657, %649 : vector<8x8xf32>
    %cst_325 = arith.constant dense<0.000000e+00> : vector<8x8xf32>
    %659 = tpu.matmul %654, %656, %cst_325 {dimension_numbers = #tpu.dot_dimension_numbers<[1], [1], [0], [0], [0, 0, 1, 0], [], []>} : vector<8x8xf32>, vector<8x8xf32>, vector<8x8xf32> -> vector<8x8xf32>
    %cst_326 = arith.constant 0.353553385 : f32
    %660 = vector.broadcast %cst_326 : f32 to vector<8x8xf32>
    %661 = arith.mulf %659, %660 : vector<8x8xf32>
    %662 = vector.extract_strided_slice %2 {offsets = [0, 0], sizes = [8, 8], strides = [1, 1]} : vector<16x8xf32> to vector<8x8xf32>
    %663 = arith.addf %661, %662 : vector<8x8xf32>
    %cst_327 = arith.constant dense<0xFF800000> : vector<8xf32>
    %664 = vector.multi_reduction <maximumf>, %663, %cst_327 [1] : vector<8x8xf32> to vector<8xf32>
    %665 = vector.shape_cast %664 : vector<8xf32> to vector<8x1xf32>
    %666 = vector.broadcast %665 : vector<8x1xf32> to vector<8x8xf32>
    %667 = arith.subf %663, %666 : vector<8x8xf32>
    %668 = math.exp %667 : vector<8x8xf32>
    %cst_328 = arith.constant dense<0.000000e+00> : vector<8xf32>
    %669 = vector.multi_reduction <add>, %668, %cst_328 [1] : vector<8x8xf32> to vector<8xf32>
    %670 = vector.shape_cast %669 : vector<8xf32> to vector<8x1xf32>
    %671 = vector.broadcast %670 : vector<8x1xf32> to vector<8x8xf32>
    %672 = arith.divf %668, %671 : vector<8x8xf32>
    %c1_329 = arith.constant 1 : index
    %c0_330 = arith.constant 0 : index
    %c1_331 = arith.constant 1 : index
    %c0_332 = arith.constant 0 : index
    %c0_333 = arith.constant 0 : index
    %673 = vector.load %arg3[%c1_329, %c0_330, %c1_331, %c0_332, %c0_333] : memref<2x2x8x8x8xf32, #tpu.memory_space<vmem>>, vector<1x1x1x8x8xf32>
    %674 = vector.shape_cast %673 : vector<1x1x1x8x8xf32> to vector<8x8xf32>
    %675 = vector.shape_cast %672 : vector<8x8xf32> to vector<1x1x1x8x8xf32>
    tpu.vector_store %arg3[%c1_329, %c0_330, %c1_331, %c0_332, %c0_333], %675 {strides = array<i32>} : memref<2x2x8x8x8xf32, #tpu.memory_space<vmem>>, vector<1x1x1x8x8xf32>,
    %cst_334 = arith.constant dense<0.000000e+00> : vector<8x8xf32>
    %676 = tpu.matmul %672, %658, %cst_334 {dimension_numbers = #tpu.dot_dimension_numbers<[1], [0], [0], [1], [0, 0, 1, 1], [], []>} : vector<8x8xf32>, vector<8x8xf32>, vector<8x8xf32> -> vector<8x8xf32>
    %677 = vector.extract_strided_slice %650 {offsets = [8, 0], sizes = [8, 8], strides = [1, 1]} : vector<16x8xf32> to vector<8x8xf32>
    %678 = arith.addf %677, %647 : vector<8x8xf32>
    %679 = vector.extract_strided_slice %651 {offsets = [8, 0], sizes = [8, 8], strides = [1, 1]} : vector<16x8xf32> to vector<8x8xf32>
    %680 = arith.addf %679, %648 : vector<8x8xf32>
    %681 = vector.extract_strided_slice %652 {offsets = [8, 0], sizes = [8, 8], strides = [1, 1]} : vector<16x8xf32> to vector<8x8xf32>
    %682 = arith.addf %681, %649 : vector<8x8xf32>
    %cst_335 = arith.constant dense<0.000000e+00> : vector<8x8xf32>
    %683 = tpu.matmul %678, %680, %cst_335 {dimension_numbers = #tpu.dot_dimension_numbers<[1], [1], [0], [0], [0, 0, 1, 0], [], []>} : vector<8x8xf32>, vector<8x8xf32>, vector<8x8xf32> -> vector<8x8xf32>
    %cst_336 = arith.constant 0.353553385 : f32
    %684 = vector.broadcast %cst_336 : f32 to vector<8x8xf32>
    %685 = arith.mulf %683, %684 : vector<8x8xf32>
    %686 = vector.extract_strided_slice %2 {offsets = [8, 0], sizes = [8, 8], strides = [1, 1]} : vector<16x8xf32> to vector<8x8xf32>
    %687 = arith.addf %685, %686 : vector<8x8xf32>
    %cst_337 = arith.constant dense<0xFF800000> : vector<8xf32>
    %688 = vector.multi_reduction <maximumf>, %687, %cst_337 [1] : vector<8x8xf32> to vector<8xf32>
    %689 = vector.shape_cast %688 : vector<8xf32> to vector<8x1xf32>
    %690 = vector.broadcast %689 : vector<8x1xf32> to vector<8x8xf32>
    %691 = arith.subf %687, %690 : vector<8x8xf32>
    %692 = math.exp %691 : vector<8x8xf32>
    %cst_338 = arith.constant dense<0.000000e+00> : vector<8xf32>
    %693 = vector.multi_reduction <add>, %692, %cst_338 [1] : vector<8x8xf32> to vector<8xf32>
    %694 = vector.shape_cast %693 : vector<8xf32> to vector<8x1xf32>
    %695 = vector.broadcast %694 : vector<8x1xf32> to vector<8x8xf32>
    %696 = arith.divf %692, %695 : vector<8x8xf32>
    %c1_339 = arith.constant 1 : index
    %c0_340 = arith.constant 0 : index
    %c5_341 = arith.constant 5 : index
    %c0_342 = arith.constant 0 : index
    %c0_343 = arith.constant 0 : index
    %697 = vector.load %arg3[%c1_339, %c0_340, %c5_341, %c0_342, %c0_343] : memref<2x2x8x8x8xf32, #tpu.memory_space<vmem>>, vector<1x1x1x8x8xf32>
    %698 = vector.shape_cast %697 : vector<1x1x1x8x8xf32> to vector<8x8xf32>
    %699 = vector.shape_cast %696 : vector<8x8xf32> to vector<1x1x1x8x8xf32>
    tpu.vector_store %arg3[%c1_339, %c0_340, %c5_341, %c0_342, %c0_343], %699 {strides = array<i32>} : memref<2x2x8x8x8xf32, #tpu.memory_space<vmem>>, vector<1x1x1x8x8xf32>,
    %cst_344 = arith.constant dense<0.000000e+00> : vector<8x8xf32>
    %700 = tpu.matmul %696, %682, %cst_344 {dimension_numbers = #tpu.dot_dimension_numbers<[1], [0], [0], [1], [0, 0, 1, 1], [], []>} : vector<8x8xf32>, vector<8x8xf32>, vector<8x8xf32> -> vector<8x8xf32>
    %701 = tpu.concatenate %676, %700 in 0 : vector<8x8xf32>, vector<8x8xf32> -> vector<16x8xf32>
    %c952 = arith.constant 952 : index
    %c0_345 = arith.constant 0 : index
    %702 = vector.load %arg1[%c952, %c0_345] : memref<1504x32xf32, #tpu.memory_space<vmem>>, vector<8x32xf32>
    %cst_346 = arith.constant dense<0.000000e+00> : vector<16x32xf32>
    %703 = tpu.matmul %701, %702, %cst_346 {dimension_numbers = #tpu.dot_dimension_numbers<[1], [0], [0], [1], [0, 0, 1, 1], [], []>} : vector<16x8xf32>, vector<8x32xf32>, vector<16x32xf32> -> vector<16x32xf32>
    %704 = arith.addf %643, %703 : vector<16x32xf32>
    %c848 = arith.constant 848 : index
    %c0_347 = arith.constant 0 : index
    %705 = vector.load %arg1[%c848, %c0_347] : memref<1504x32xf32, #tpu.memory_space<vmem>>, vector<8x32xf32>
    %c856 = arith.constant 856 : index
    %c0_348 = arith.constant 0 : index
    %706 = vector.load %arg1[%c856, %c0_348] : memref<1504x32xf32, #tpu.memory_space<vmem>>, vector<8x32xf32>
    %c864 = arith.constant 864 : index
    %c0_349 = arith.constant 0 : index
    %707 = vector.load %arg1[%c864, %c0_349] : memref<1504x32xf32, #tpu.memory_space<vmem>>, vector<8x32xf32>
    %c872 = arith.constant 872 : index
    %c0_350 = arith.constant 0 : index
    %708 = vector.load %arg1[%c872, %c0_350] : memref<1504x32xf32, #tpu.memory_space<vmem>>, vector<8x8xf32>
    %c880 = arith.constant 880 : index
    %c0_351 = arith.constant 0 : index
    %709 = vector.load %arg1[%c880, %c0_351] : memref<1504x32xf32, #tpu.memory_space<vmem>>, vector<8x8xf32>
    %c888 = arith.constant 888 : index
    %c0_352 = arith.constant 0 : index
    %710 = vector.load %arg1[%c888, %c0_352] : memref<1504x32xf32, #tpu.memory_space<vmem>>, vector<8x8xf32>
    %cst_353 = arith.constant dense<0.000000e+00> : vector<16x8xf32>
    %711 = tpu.matmul %581, %705, %cst_353 {dimension_numbers = #tpu.dot_dimension_numbers<[1], [1], [0], [0], [0, 0, 1, 0], [], []>} : vector<16x32xf32>, vector<8x32xf32>, vector<16x8xf32> -> vector<16x8xf32>
    %cst_354 = arith.constant dense<0.000000e+00> : vector<16x8xf32>
    %712 = tpu.matmul %581, %706, %cst_354 {dimension_numbers = #tpu.dot_dimension_numbers<[1], [1], [0], [0], [0, 0, 1, 0], [], []>} : vector<16x32xf32>, vector<8x32xf32>, vector<16x8xf32> -> vector<16x8xf32>
    %cst_355 = arith.constant dense<0.000000e+00> : vector<16x8xf32>
    %713 = tpu.matmul %581, %707, %cst_355 {dimension_numbers = #tpu.dot_dimension_numbers<[1], [1], [0], [0], [0, 0, 1, 0], [], []>} : vector<16x32xf32>, vector<8x32xf32>, vector<16x8xf32> -> vector<16x8xf32>
    %714 = vector.extract_strided_slice %711 {offsets = [0, 0], sizes = [8, 8], strides = [1, 1]} : vector<16x8xf32> to vector<8x8xf32>
    %715 = arith.addf %714, %708 : vector<8x8xf32>
    %716 = vector.extract_strided_slice %712 {offsets = [0, 0], sizes = [8, 8], strides = [1, 1]} : vector<16x8xf32> to vector<8x8xf32>
    %717 = arith.addf %716, %709 : vector<8x8xf32>
    %718 = vector.extract_strided_slice %713 {offsets = [0, 0], sizes = [8, 8], strides = [1, 1]} : vector<16x8xf32> to vector<8x8xf32>
    %719 = arith.addf %718, %710 : vector<8x8xf32>
    %cst_356 = arith.constant dense<0.000000e+00> : vector<8x8xf32>
    %720 = tpu.matmul %715, %717, %cst_356 {dimension_numbers = #tpu.dot_dimension_numbers<[1], [1], [0], [0], [0, 0, 1, 0], [], []>} : vector<8x8xf32>, vector<8x8xf32>, vector<8x8xf32> -> vector<8x8xf32>
    %cst_357 = arith.constant 0.353553385 : f32
    %721 = vector.broadcast %cst_357 : f32 to vector<8x8xf32>
    %722 = arith.mulf %720, %721 : vector<8x8xf32>
    %723 = vector.extract_strided_slice %2 {offsets = [0, 0], sizes = [8, 8], strides = [1, 1]} : vector<16x8xf32> to vector<8x8xf32>
    %724 = arith.addf %722, %723 : vector<8x8xf32>
    %cst_358 = arith.constant dense<0xFF800000> : vector<8xf32>
    %725 = vector.multi_reduction <maximumf>, %724, %cst_358 [1] : vector<8x8xf32> to vector<8xf32>
    %726 = vector.shape_cast %725 : vector<8xf32> to vector<8x1xf32>
    %727 = vector.broadcast %726 : vector<8x1xf32> to vector<8x8xf32>
    %728 = arith.subf %724, %727 : vector<8x8xf32>
    %729 = math.exp %728 : vector<8x8xf32>
    %cst_359 = arith.constant dense<0.000000e+00> : vector<8xf32>
    %730 = vector.multi_reduction <add>, %729, %cst_359 [1] : vector<8x8xf32> to vector<8xf32>
    %731 = vector.shape_cast %730 : vector<8xf32> to vector<8x1xf32>
    %732 = vector.broadcast %731 : vector<8x1xf32> to vector<8x8xf32>
    %733 = arith.divf %729, %732 : vector<8x8xf32>
    %c1_360 = arith.constant 1 : index
    %c0_361 = arith.constant 0 : index
    %c2_362 = arith.constant 2 : index
    %c0_363 = arith.constant 0 : index
    %c0_364 = arith.constant 0 : index
    %734 = vector.load %arg3[%c1_360, %c0_361, %c2_362, %c0_363, %c0_364] : memref<2x2x8x8x8xf32, #tpu.memory_space<vmem>>, vector<1x1x1x8x8xf32>
    %735 = vector.shape_cast %734 : vector<1x1x1x8x8xf32> to vector<8x8xf32>
    %736 = vector.shape_cast %733 : vector<8x8xf32> to vector<1x1x1x8x8xf32>
    tpu.vector_store %arg3[%c1_360, %c0_361, %c2_362, %c0_363, %c0_364], %736 {strides = array<i32>} : memref<2x2x8x8x8xf32, #tpu.memory_space<vmem>>, vector<1x1x1x8x8xf32>,
    %cst_365 = arith.constant dense<0.000000e+00> : vector<8x8xf32>
    %737 = tpu.matmul %733, %719, %cst_365 {dimension_numbers = #tpu.dot_dimension_numbers<[1], [0], [0], [1], [0, 0, 1, 1], [], []>} : vector<8x8xf32>, vector<8x8xf32>, vector<8x8xf32> -> vector<8x8xf32>
    %738 = vector.extract_strided_slice %711 {offsets = [8, 0], sizes = [8, 8], strides = [1, 1]} : vector<16x8xf32> to vector<8x8xf32>
    %739 = arith.addf %738, %708 : vector<8x8xf32>
    %740 = vector.extract_strided_slice %712 {offsets = [8, 0], sizes = [8, 8], strides = [1, 1]} : vector<16x8xf32> to vector<8x8xf32>
    %741 = arith.addf %740, %709 : vector<8x8xf32>
    %742 = vector.extract_strided_slice %713 {offsets = [8, 0], sizes = [8, 8], strides = [1, 1]} : vector<16x8xf32> to vector<8x8xf32>
    %743 = arith.addf %742, %710 : vector<8x8xf32>
    %cst_366 = arith.constant dense<0.000000e+00> : vector<8x8xf32>
    %744 = tpu.matmul %739, %741, %cst_366 {dimension_numbers = #tpu.dot_dimension_numbers<[1], [1], [0], [0], [0, 0, 1, 0], [], []>} : vector<8x8xf32>, vector<8x8xf32>, vector<8x8xf32> -> vector<8x8xf32>
    %cst_367 = arith.constant 0.353553385 : f32
    %745 = vector.broadcast %cst_367 : f32 to vector<8x8xf32>
    %746 = arith.mulf %744, %745 : vector<8x8xf32>
    %747 = vector.extract_strided_slice %2 {offsets = [8, 0], sizes = [8, 8], strides = [1, 1]} : vector<16x8xf32> to vector<8x8xf32>
    %748 = arith.addf %746, %747 : vector<8x8xf32>
    %cst_368 = arith.constant dense<0xFF800000> : vector<8xf32>
    %749 = vector.multi_reduction <maximumf>, %748, %cst_368 [1] : vector<8x8xf32> to vector<8xf32>
    %750 = vector.shape_cast %749 : vector<8xf32> to vector<8x1xf32>
    %751 = vector.broadcast %750 : vector<8x1xf32> to vector<8x8xf32>
    %752 = arith.subf %748, %751 : vector<8x8xf32>
    %753 = math.exp %752 : vector<8x8xf32>
    %cst_369 = arith.constant dense<0.000000e+00> : vector<8xf32>
    %754 = vector.multi_reduction <add>, %753, %cst_369 [1] : vector<8x8xf32> to vector<8xf32>
    %755 = vector.shape_cast %754 : vector<8xf32> to vector<8x1xf32>
    %756 = vector.broadcast %755 : vector<8x1xf32> to vector<8x8xf32>
    %757 = arith.divf %753, %756 : vector<8x8xf32>
    %c1_370 = arith.constant 1 : index
    %c0_371 = arith.constant 0 : index
    %c6_372 = arith.constant 6 : index
    %c0_373 = arith.constant 0 : index
    %c0_374 = arith.constant 0 : index
    %758 = vector.load %arg3[%c1_370, %c0_371, %c6_372, %c0_373, %c0_374] : memref<2x2x8x8x8xf32, #tpu.memory_space<vmem>>, vector<1x1x1x8x8xf32>
    %759 = vector.shape_cast %758 : vector<1x1x1x8x8xf32> to vector<8x8xf32>
    %760 = vector.shape_cast %757 : vector<8x8xf32> to vector<1x1x1x8x8xf32>
    tpu.vector_store %arg3[%c1_370, %c0_371, %c6_372, %c0_373, %c0_374], %760 {strides = array<i32>} : memref<2x2x8x8x8xf32, #tpu.memory_space<vmem>>, vector<1x1x1x8x8xf32>,
    %cst_375 = arith.constant dense<0.000000e+00> : vector<8x8xf32>
    %761 = tpu.matmul %757, %743, %cst_375 {dimension_numbers = #tpu.dot_dimension_numbers<[1], [0], [0], [1], [0, 0, 1, 1], [], []>} : vector<8x8xf32>, vector<8x8xf32>, vector<8x8xf32> -> vector<8x8xf32>
    %762 = tpu.concatenate %737, %761 in 0 : vector<8x8xf32>, vector<8x8xf32> -> vector<16x8xf32>
    %c960 = arith.constant 960 : index
    %c0_376 = arith.constant 0 : index
    %763 = vector.load %arg1[%c960, %c0_376] : memref<1504x32xf32, #tpu.memory_space<vmem>>, vector<8x32xf32>
    %cst_377 = arith.constant dense<0.000000e+00> : vector<16x32xf32>
    %764 = tpu.matmul %762, %763, %cst_377 {dimension_numbers = #tpu.dot_dimension_numbers<[1], [0], [0], [1], [0, 0, 1, 1], [], []>} : vector<16x8xf32>, vector<8x32xf32>, vector<16x32xf32> -> vector<16x32xf32>
    %765 = arith.addf %704, %764 : vector<16x32xf32>
    %c896 = arith.constant 896 : index
    %c0_378 = arith.constant 0 : index
    %766 = vector.load %arg1[%c896, %c0_378] : memref<1504x32xf32, #tpu.memory_space<vmem>>, vector<8x32xf32>
    %c904 = arith.constant 904 : index
    %c0_379 = arith.constant 0 : index
    %767 = vector.load %arg1[%c904, %c0_379] : memref<1504x32xf32, #tpu.memory_space<vmem>>, vector<8x32xf32>
    %c912 = arith.constant 912 : index
    %c0_380 = arith.constant 0 : index
    %768 = vector.load %arg1[%c912, %c0_380] : memref<1504x32xf32, #tpu.memory_space<vmem>>, vector<8x32xf32>
    %c920 = arith.constant 920 : index
    %c0_381 = arith.constant 0 : index
    %769 = vector.load %arg1[%c920, %c0_381] : memref<1504x32xf32, #tpu.memory_space<vmem>>, vector<8x8xf32>
    %c928 = arith.constant 928 : index
    %c0_382 = arith.constant 0 : index
    %770 = vector.load %arg1[%c928, %c0_382] : memref<1504x32xf32, #tpu.memory_space<vmem>>, vector<8x8xf32>
    %c936 = arith.constant 936 : index
    %c0_383 = arith.constant 0 : index
    %771 = vector.load %arg1[%c936, %c0_383] : memref<1504x32xf32, #tpu.memory_space<vmem>>, vector<8x8xf32>
    %cst_384 = arith.constant dense<0.000000e+00> : vector<16x8xf32>
    %772 = tpu.matmul %581, %766, %cst_384 {dimension_numbers = #tpu.dot_dimension_numbers<[1], [1], [0], [0], [0, 0, 1, 0], [], []>} : vector<16x32xf32>, vector<8x32xf32>, vector<16x8xf32> -> vector<16x8xf32>
    %cst_385 = arith.constant dense<0.000000e+00> : vector<16x8xf32>
    %773 = tpu.matmul %581, %767, %cst_385 {dimension_numbers = #tpu.dot_dimension_numbers<[1], [1], [0], [0], [0, 0, 1, 0], [], []>} : vector<16x32xf32>, vector<8x32xf32>, vector<16x8xf32> -> vector<16x8xf32>
    %cst_386 = arith.constant dense<0.000000e+00> : vector<16x8xf32>
    %774 = tpu.matmul %581, %768, %cst_386 {dimension_numbers = #tpu.dot_dimension_numbers<[1], [1], [0], [0], [0, 0, 1, 0], [], []>} : vector<16x32xf32>, vector<8x32xf32>, vector<16x8xf32> -> vector<16x8xf32>
    %775 = vector.extract_strided_slice %772 {offsets = [0, 0], sizes = [8, 8], strides = [1, 1]} : vector<16x8xf32> to vector<8x8xf32>
    %776 = arith.addf %775, %769 : vector<8x8xf32>
    %777 = vector.extract_strided_slice %773 {offsets = [0, 0], sizes = [8, 8], strides = [1, 1]} : vector<16x8xf32> to vector<8x8xf32>
    %778 = arith.addf %777, %770 : vector<8x8xf32>
    %779 = vector.extract_strided_slice %774 {offsets = [0, 0], sizes = [8, 8], strides = [1, 1]} : vector<16x8xf32> to vector<8x8xf32>
    %780 = arith.addf %779, %771 : vector<8x8xf32>
    %cst_387 = arith.constant dense<0.000000e+00> : vector<8x8xf32>
    %781 = tpu.matmul %776, %778, %cst_387 {dimension_numbers = #tpu.dot_dimension_numbers<[1], [1], [0], [0], [0, 0, 1, 0], [], []>} : vector<8x8xf32>, vector<8x8xf32>, vector<8x8xf32> -> vector<8x8xf32>
    %cst_388 = arith.constant 0.353553385 : f32
    %782 = vector.broadcast %cst_388 : f32 to vector<8x8xf32>
    %783 = arith.mulf %781, %782 : vector<8x8xf32>
    %784 = vector.extract_strided_slice %2 {offsets = [0, 0], sizes = [8, 8], strides = [1, 1]} : vector<16x8xf32> to vector<8x8xf32>
    %785 = arith.addf %783, %784 : vector<8x8xf32>
    %cst_389 = arith.constant dense<0xFF800000> : vector<8xf32>
    %786 = vector.multi_reduction <maximumf>, %785, %cst_389 [1] : vector<8x8xf32> to vector<8xf32>
    %787 = vector.shape_cast %786 : vector<8xf32> to vector<8x1xf32>
    %788 = vector.broadcast %787 : vector<8x1xf32> to vector<8x8xf32>
    %789 = arith.subf %785, %788 : vector<8x8xf32>
    %790 = math.exp %789 : vector<8x8xf32>
    %cst_390 = arith.constant dense<0.000000e+00> : vector<8xf32>
    %791 = vector.multi_reduction <add>, %790, %cst_390 [1] : vector<8x8xf32> to vector<8xf32>
    %792 = vector.shape_cast %791 : vector<8xf32> to vector<8x1xf32>
    %793 = vector.broadcast %792 : vector<8x1xf32> to vector<8x8xf32>
    %794 = arith.divf %790, %793 : vector<8x8xf32>
    %c1_391 = arith.constant 1 : index
    %c0_392 = arith.constant 0 : index
    %c3_393 = arith.constant 3 : index
    %c0_394 = arith.constant 0 : index
    %c0_395 = arith.constant 0 : index
    %795 = vector.load %arg3[%c1_391, %c0_392, %c3_393, %c0_394, %c0_395] : memref<2x2x8x8x8xf32, #tpu.memory_space<vmem>>, vector<1x1x1x8x8xf32>
    %796 = vector.shape_cast %795 : vector<1x1x1x8x8xf32> to vector<8x8xf32>
    %797 = vector.shape_cast %794 : vector<8x8xf32> to vector<1x1x1x8x8xf32>
    tpu.vector_store %arg3[%c1_391, %c0_392, %c3_393, %c0_394, %c0_395], %797 {strides = array<i32>} : memref<2x2x8x8x8xf32, #tpu.memory_space<vmem>>, vector<1x1x1x8x8xf32>,
    %cst_396 = arith.constant dense<0.000000e+00> : vector<8x8xf32>
    %798 = tpu.matmul %794, %780, %cst_396 {dimension_numbers = #tpu.dot_dimension_numbers<[1], [0], [0], [1], [0, 0, 1, 1], [], []>} : vector<8x8xf32>, vector<8x8xf32>, vector<8x8xf32> -> vector<8x8xf32>
    %799 = vector.extract_strided_slice %772 {offsets = [8, 0], sizes = [8, 8], strides = [1, 1]} : vector<16x8xf32> to vector<8x8xf32>
    %800 = arith.addf %799, %769 : vector<8x8xf32>
    %801 = vector.extract_strided_slice %773 {offsets = [8, 0], sizes = [8, 8], strides = [1, 1]} : vector<16x8xf32> to vector<8x8xf32>
    %802 = arith.addf %801, %770 : vector<8x8xf32>
    %803 = vector.extract_strided_slice %774 {offsets = [8, 0], sizes = [8, 8], strides = [1, 1]} : vector<16x8xf32> to vector<8x8xf32>
    %804 = arith.addf %803, %771 : vector<8x8xf32>
    %cst_397 = arith.constant dense<0.000000e+00> : vector<8x8xf32>
    %805 = tpu.matmul %800, %802, %cst_397 {dimension_numbers = #tpu.dot_dimension_numbers<[1], [1], [0], [0], [0, 0, 1, 0], [], []>} : vector<8x8xf32>, vector<8x8xf32>, vector<8x8xf32> -> vector<8x8xf32>
    %cst_398 = arith.constant 0.353553385 : f32
    %806 = vector.broadcast %cst_398 : f32 to vector<8x8xf32>
    %807 = arith.mulf %805, %806 : vector<8x8xf32>
    %808 = vector.extract_strided_slice %2 {offsets = [8, 0], sizes = [8, 8], strides = [1, 1]} : vector<16x8xf32> to vector<8x8xf32>
    %809 = arith.addf %807, %808 : vector<8x8xf32>
    %cst_399 = arith.constant dense<0xFF800000> : vector<8xf32>
    %810 = vector.multi_reduction <maximumf>, %809, %cst_399 [1] : vector<8x8xf32> to vector<8xf32>
    %811 = vector.shape_cast %810 : vector<8xf32> to vector<8x1xf32>
    %812 = vector.broadcast %811 : vector<8x1xf32> to vector<8x8xf32>
    %813 = arith.subf %809, %812 : vector<8x8xf32>
    %814 = math.exp %813 : vector<8x8xf32>
    %cst_400 = arith.constant dense<0.000000e+00> : vector<8xf32>
    %815 = vector.multi_reduction <add>, %814, %cst_400 [1] : vector<8x8xf32> to vector<8xf32>
    %816 = vector.shape_cast %815 : vector<8xf32> to vector<8x1xf32>
    %817 = vector.broadcast %816 : vector<8x1xf32> to vector<8x8xf32>
    %818 = arith.divf %814, %817 : vector<8x8xf32>
    %c1_401 = arith.constant 1 : index
    %c0_402 = arith.constant 0 : index
    %c7_403 = arith.constant 7 : index
    %c0_404 = arith.constant 0 : index
    %c0_405 = arith.constant 0 : index
    %819 = vector.load %arg3[%c1_401, %c0_402, %c7_403, %c0_404, %c0_405] : memref<2x2x8x8x8xf32, #tpu.memory_space<vmem>>, vector<1x1x1x8x8xf32>
    %820 = vector.shape_cast %819 : vector<1x1x1x8x8xf32> to vector<8x8xf32>
    %821 = vector.shape_cast %818 : vector<8x8xf32> to vector<1x1x1x8x8xf32>
    tpu.vector_store %arg3[%c1_401, %c0_402, %c7_403, %c0_404, %c0_405], %821 {strides = array<i32>} : memref<2x2x8x8x8xf32, #tpu.memory_space<vmem>>, vector<1x1x1x8x8xf32>,
    %cst_406 = arith.constant dense<0.000000e+00> : vector<8x8xf32>
    %822 = tpu.matmul %818, %804, %cst_406 {dimension_numbers = #tpu.dot_dimension_numbers<[1], [0], [0], [1], [0, 0, 1, 1], [], []>} : vector<8x8xf32>, vector<8x8xf32>, vector<8x8xf32> -> vector<8x8xf32>
    %823 = tpu.concatenate %798, %822 in 0 : vector<8x8xf32>, vector<8x8xf32> -> vector<16x8xf32>
    %c968 = arith.constant 968 : index
    %c0_407 = arith.constant 0 : index
    %824 = vector.load %arg1[%c968, %c0_407] : memref<1504x32xf32, #tpu.memory_space<vmem>>, vector<8x32xf32>
    %cst_408 = arith.constant dense<0.000000e+00> : vector<16x32xf32>
    %825 = tpu.matmul %823, %824, %cst_408 {dimension_numbers = #tpu.dot_dimension_numbers<[1], [0], [0], [1], [0, 0, 1, 1], [], []>} : vector<16x8xf32>, vector<8x32xf32>, vector<16x32xf32> -> vector<16x32xf32>
    %826 = arith.addf %765, %825 : vector<16x32xf32>
    %c992 = arith.constant 992 : index
    %c0_409 = arith.constant 0 : index
    %827 = vector.load %arg1[%c992, %c0_409] : memref<1504x32xf32, #tpu.memory_space<vmem>>, vector<16x32xf32>
    %c1008 = arith.constant 1008 : index
    %c0_410 = arith.constant 0 : index
    %828 = vector.load %arg1[%c1008, %c0_410] : memref<1504x32xf32, #tpu.memory_space<vmem>>, vector<16x32xf32>
    %829 = arith.addf %826, %581 : vector<16x32xf32>
    %cst_411 = arith.constant dense<0.000000e+00> : vector<16xf32>
    %830 = vector.multi_reduction <add>, %829, %cst_411 [1] : vector<16x32xf32> to vector<16xf32>
    %831 = vector.shape_cast %830 : vector<16xf32> to vector<16x1xf32>
    %cst_412 = arith.constant 3.200000e+01 : f32
    %832 = vector.broadcast %cst_412 : f32 to vector<16x1xf32>
    %833 = arith.divf %831, %832 : vector<16x1xf32>
    %834 = vector.broadcast %833 : vector<16x1xf32> to vector<16x32xf32>
    %835 = arith.subf %829, %834 : vector<16x32xf32>
    %836 = arith.mulf %835, %835 : vector<16x32xf32>
    %cst_413 = arith.constant dense<0.000000e+00> : vector<16xf32>
    %837 = vector.multi_reduction <add>, %836, %cst_413 [1] : vector<16x32xf32> to vector<16xf32>
    %838 = vector.shape_cast %837 : vector<16xf32> to vector<16x1xf32>
    %cst_414 = arith.constant 3.200000e+01 : f32
    %839 = vector.broadcast %cst_414 : f32 to vector<16x1xf32>
    %840 = arith.divf %838, %839 : vector<16x1xf32>
    %841 = vector.broadcast %833 : vector<16x1xf32> to vector<16x32xf32>
    %842 = arith.subf %829, %841 : vector<16x32xf32>
    %843 = arith.mulf %827, %842 : vector<16x32xf32>
    %cst_415 = arith.constant 9.99999974E-6 : f32
    %844 = vector.broadcast %cst_415 : f32 to vector<16x1xf32>
    %845 = arith.addf %840, %844 : vector<16x1xf32>
    %846 = math.rsqrt %845 : vector<16x1xf32>
    %847 = vector.broadcast %846 : vector<16x1xf32> to vector<16x32xf32>
    %848 = arith.mulf %843, %847 : vector<16x32xf32>
    %849 = arith.addf %848, %828 : vector<16x32xf32>
    %c1248 = arith.constant 1248 : index
    %c0_416 = arith.constant 0 : index
    %850 = vector.load %arg1[%c1248, %c0_416] : memref<1504x32xf32, #tpu.memory_space<vmem>>, vector<16x32xf32>
    %c1024 = arith.constant 1024 : index
    %c0_417 = arith.constant 0 : index
    %851 = vector.load %arg1[%c1024, %c0_417] : memref<1504x32xf32, #tpu.memory_space<vmem>>, vector<8x32xf32>
    %c1032 = arith.constant 1032 : index
    %c0_418 = arith.constant 0 : index
    %852 = vector.load %arg1[%c1032, %c0_418] : memref<1504x32xf32, #tpu.memory_space<vmem>>, vector<8x32xf32>
    %c1040 = arith.constant 1040 : index
    %c0_419 = arith.constant 0 : index
    %853 = vector.load %arg1[%c1040, %c0_419] : memref<1504x32xf32, #tpu.memory_space<vmem>>, vector<8x32xf32>
    %c1048 = arith.constant 1048 : index
    %c0_420 = arith.constant 0 : index
    %854 = vector.load %arg1[%c1048, %c0_420] : memref<1504x32xf32, #tpu.memory_space<vmem>>, vector<8x8xf32>
    %c1056 = arith.constant 1056 : index
    %c0_421 = arith.constant 0 : index
    %855 = vector.load %arg1[%c1056, %c0_421] : memref<1504x32xf32, #tpu.memory_space<vmem>>, vector<8x8xf32>
    %c1064 = arith.constant 1064 : index
    %c0_422 = arith.constant 0 : index
    %856 = vector.load %arg1[%c1064, %c0_422] : memref<1504x32xf32, #tpu.memory_space<vmem>>, vector<8x8xf32>
    %cst_423 = arith.constant dense<0.000000e+00> : vector<16x8xf32>
    %857 = tpu.matmul %849, %851, %cst_423 {dimension_numbers = #tpu.dot_dimension_numbers<[1], [1], [0], [0], [0, 0, 1, 0], [], []>} : vector<16x32xf32>, vector<8x32xf32>, vector<16x8xf32> -> vector<16x8xf32>
    %cst_424 = arith.constant dense<0.000000e+00> : vector<16x8xf32>
    %858 = tpu.matmul %1, %852, %cst_424 {dimension_numbers = #tpu.dot_dimension_numbers<[1], [1], [0], [0], [0, 0, 1, 0], [], []>} : vector<16x32xf32>, vector<8x32xf32>, vector<16x8xf32> -> vector<16x8xf32>
    %cst_425 = arith.constant dense<0.000000e+00> : vector<16x8xf32>
    %859 = tpu.matmul %1, %853, %cst_425 {dimension_numbers = #tpu.dot_dimension_numbers<[1], [1], [0], [0], [0, 0, 1, 0], [], []>} : vector<16x32xf32>, vector<8x32xf32>, vector<16x8xf32> -> vector<16x8xf32>
    %860 = vector.extract_strided_slice %857 {offsets = [0, 0], sizes = [8, 8], strides = [1, 1]} : vector<16x8xf32> to vector<8x8xf32>
    %861 = arith.addf %860, %854 : vector<8x8xf32>
    %862 = vector.extract_strided_slice %858 {offsets = [0, 0], sizes = [8, 8], strides = [1, 1]} : vector<16x8xf32> to vector<8x8xf32>
    %863 = arith.addf %862, %855 : vector<8x8xf32>
    %864 = vector.extract_strided_slice %859 {offsets = [0, 0], sizes = [8, 8], strides = [1, 1]} : vector<16x8xf32> to vector<8x8xf32>
    %865 = arith.addf %864, %856 : vector<8x8xf32>
    %cst_426 = arith.constant dense<0.000000e+00> : vector<8x8xf32>
    %866 = tpu.matmul %861, %863, %cst_426 {dimension_numbers = #tpu.dot_dimension_numbers<[1], [1], [0], [0], [0, 0, 1, 0], [], []>} : vector<8x8xf32>, vector<8x8xf32>, vector<8x8xf32> -> vector<8x8xf32>
    %cst_427 = arith.constant 0.353553385 : f32
    %867 = vector.broadcast %cst_427 : f32 to vector<8x8xf32>
    %868 = arith.mulf %866, %867 : vector<8x8xf32>
    %869 = vector.extract_strided_slice %3 {offsets = [0, 0], sizes = [8, 8], strides = [1, 1]} : vector<16x8xf32> to vector<8x8xf32>
    %870 = arith.addf %868, %869 : vector<8x8xf32>
    %cst_428 = arith.constant dense<0xFF800000> : vector<8xf32>
    %871 = vector.multi_reduction <maximumf>, %870, %cst_428 [1] : vector<8x8xf32> to vector<8xf32>
    %872 = vector.shape_cast %871 : vector<8xf32> to vector<8x1xf32>
    %873 = vector.broadcast %872 : vector<8x1xf32> to vector<8x8xf32>
    %874 = arith.subf %870, %873 : vector<8x8xf32>
    %875 = math.exp %874 : vector<8x8xf32>
    %cst_429 = arith.constant dense<0.000000e+00> : vector<8xf32>
    %876 = vector.multi_reduction <add>, %875, %cst_429 [1] : vector<8x8xf32> to vector<8xf32>
    %877 = vector.shape_cast %876 : vector<8xf32> to vector<8x1xf32>
    %878 = vector.broadcast %877 : vector<8x1xf32> to vector<8x8xf32>
    %879 = arith.divf %875, %878 : vector<8x8xf32>
    %c1_430 = arith.constant 1 : index
    %c1_431 = arith.constant 1 : index
    %c0_432 = arith.constant 0 : index
    %c0_433 = arith.constant 0 : index
    %c0_434 = arith.constant 0 : index
    %880 = vector.load %arg3[%c1_430, %c1_431, %c0_432, %c0_433, %c0_434] : memref<2x2x8x8x8xf32, #tpu.memory_space<vmem>>, vector<1x1x1x8x8xf32>
    %881 = vector.shape_cast %880 : vector<1x1x1x8x8xf32> to vector<8x8xf32>
    %882 = vector.shape_cast %879 : vector<8x8xf32> to vector<1x1x1x8x8xf32>
    tpu.vector_store %arg3[%c1_430, %c1_431, %c0_432, %c0_433, %c0_434], %882 {strides = array<i32>} : memref<2x2x8x8x8xf32, #tpu.memory_space<vmem>>, vector<1x1x1x8x8xf32>,
    %cst_435 = arith.constant dense<0.000000e+00> : vector<8x8xf32>
    %883 = tpu.matmul %879, %865, %cst_435 {dimension_numbers = #tpu.dot_dimension_numbers<[1], [0], [0], [1], [0, 0, 1, 1], [], []>} : vector<8x8xf32>, vector<8x8xf32>, vector<8x8xf32> -> vector<8x8xf32>
    %884 = vector.extract_strided_slice %857 {offsets = [8, 0], sizes = [8, 8], strides = [1, 1]} : vector<16x8xf32> to vector<8x8xf32>
    %885 = arith.addf %884, %854 : vector<8x8xf32>
    %886 = vector.extract_strided_slice %858 {offsets = [8, 0], sizes = [8, 8], strides = [1, 1]} : vector<16x8xf32> to vector<8x8xf32>
    %887 = arith.addf %886, %855 : vector<8x8xf32>
    %888 = vector.extract_strided_slice %859 {offsets = [8, 0], sizes = [8, 8], strides = [1, 1]} : vector<16x8xf32> to vector<8x8xf32>
    %889 = arith.addf %888, %856 : vector<8x8xf32>
    %cst_436 = arith.constant dense<0.000000e+00> : vector<8x8xf32>
    %890 = tpu.matmul %885, %887, %cst_436 {dimension_numbers = #tpu.dot_dimension_numbers<[1], [1], [0], [0], [0, 0, 1, 0], [], []>} : vector<8x8xf32>, vector<8x8xf32>, vector<8x8xf32> -> vector<8x8xf32>
    %cst_437 = arith.constant 0.353553385 : f32
    %891 = vector.broadcast %cst_437 : f32 to vector<8x8xf32>
    %892 = arith.mulf %890, %891 : vector<8x8xf32>
    %893 = vector.extract_strided_slice %3 {offsets = [8, 0], sizes = [8, 8], strides = [1, 1]} : vector<16x8xf32> to vector<8x8xf32>
    %894 = arith.addf %892, %893 : vector<8x8xf32>
    %cst_438 = arith.constant dense<0xFF800000> : vector<8xf32>
    %895 = vector.multi_reduction <maximumf>, %894, %cst_438 [1] : vector<8x8xf32> to vector<8xf32>
    %896 = vector.shape_cast %895 : vector<8xf32> to vector<8x1xf32>
    %897 = vector.broadcast %896 : vector<8x1xf32> to vector<8x8xf32>
    %898 = arith.subf %894, %897 : vector<8x8xf32>
    %899 = math.exp %898 : vector<8x8xf32>
    %cst_439 = arith.constant dense<0.000000e+00> : vector<8xf32>
    %900 = vector.multi_reduction <add>, %899, %cst_439 [1] : vector<8x8xf32> to vector<8xf32>
    %901 = vector.shape_cast %900 : vector<8xf32> to vector<8x1xf32>
    %902 = vector.broadcast %901 : vector<8x1xf32> to vector<8x8xf32>
    %903 = arith.divf %899, %902 : vector<8x8xf32>
    %c1_440 = arith.constant 1 : index
    %c1_441 = arith.constant 1 : index
    %c4_442 = arith.constant 4 : index
    %c0_443 = arith.constant 0 : index
    %c0_444 = arith.constant 0 : index
    %904 = vector.load %arg3[%c1_440, %c1_441, %c4_442, %c0_443, %c0_444] : memref<2x2x8x8x8xf32, #tpu.memory_space<vmem>>, vector<1x1x1x8x8xf32>
    %905 = vector.shape_cast %904 : vector<1x1x1x8x8xf32> to vector<8x8xf32>
    %906 = vector.shape_cast %903 : vector<8x8xf32> to vector<1x1x1x8x8xf32>
    tpu.vector_store %arg3[%c1_440, %c1_441, %c4_442, %c0_443, %c0_444], %906 {strides = array<i32>} : memref<2x2x8x8x8xf32, #tpu.memory_space<vmem>>, vector<1x1x1x8x8xf32>,
    %cst_445 = arith.constant dense<0.000000e+00> : vector<8x8xf32>
    %907 = tpu.matmul %903, %889, %cst_445 {dimension_numbers = #tpu.dot_dimension_numbers<[1], [0], [0], [1], [0, 0, 1, 1], [], []>} : vector<8x8xf32>, vector<8x8xf32>, vector<8x8xf32> -> vector<8x8xf32>
    %908 = tpu.concatenate %883, %907 in 0 : vector<8x8xf32>, vector<8x8xf32> -> vector<16x8xf32>
    %c1216 = arith.constant 1216 : index
    %c0_446 = arith.constant 0 : index
    %909 = vector.load %arg1[%c1216, %c0_446] : memref<1504x32xf32, #tpu.memory_space<vmem>>, vector<8x32xf32>
    %cst_447 = arith.constant dense<0.000000e+00> : vector<16x32xf32>
    %910 = tpu.matmul %908, %909, %cst_447 {dimension_numbers = #tpu.dot_dimension_numbers<[1], [0], [0], [1], [0, 0, 1, 1], [], []>} : vector<16x8xf32>, vector<8x32xf32>, vector<16x32xf32> -> vector<16x32xf32>
    %911 = arith.addf %850, %910 : vector<16x32xf32>
    %c1072 = arith.constant 1072 : index
    %c0_448 = arith.constant 0 : index
    %912 = vector.load %arg1[%c1072, %c0_448] : memref<1504x32xf32, #tpu.memory_space<vmem>>, vector<8x32xf32>
    %c1080 = arith.constant 1080 : index
    %c0_449 = arith.constant 0 : index
    %913 = vector.load %arg1[%c1080, %c0_449] : memref<1504x32xf32, #tpu.memory_space<vmem>>, vector<8x32xf32>
    %c1088 = arith.constant 1088 : index
    %c0_450 = arith.constant 0 : index
    %914 = vector.load %arg1[%c1088, %c0_450] : memref<1504x32xf32, #tpu.memory_space<vmem>>, vector<8x32xf32>
    %c1096 = arith.constant 1096 : index
    %c0_451 = arith.constant 0 : index
    %915 = vector.load %arg1[%c1096, %c0_451] : memref<1504x32xf32, #tpu.memory_space<vmem>>, vector<8x8xf32>
    %c1104 = arith.constant 1104 : index
    %c0_452 = arith.constant 0 : index
    %916 = vector.load %arg1[%c1104, %c0_452] : memref<1504x32xf32, #tpu.memory_space<vmem>>, vector<8x8xf32>
    %c1112 = arith.constant 1112 : index
    %c0_453 = arith.constant 0 : index
    %917 = vector.load %arg1[%c1112, %c0_453] : memref<1504x32xf32, #tpu.memory_space<vmem>>, vector<8x8xf32>
    %cst_454 = arith.constant dense<0.000000e+00> : vector<16x8xf32>
    %918 = tpu.matmul %849, %912, %cst_454 {dimension_numbers = #tpu.dot_dimension_numbers<[1], [1], [0], [0], [0, 0, 1, 0], [], []>} : vector<16x32xf32>, vector<8x32xf32>, vector<16x8xf32> -> vector<16x8xf32>
    %cst_455 = arith.constant dense<0.000000e+00> : vector<16x8xf32>
    %919 = tpu.matmul %1, %913, %cst_455 {dimension_numbers = #tpu.dot_dimension_numbers<[1], [1], [0], [0], [0, 0, 1, 0], [], []>} : vector<16x32xf32>, vector<8x32xf32>, vector<16x8xf32> -> vector<16x8xf32>
    %cst_456 = arith.constant dense<0.000000e+00> : vector<16x8xf32>
    %920 = tpu.matmul %1, %914, %cst_456 {dimension_numbers = #tpu.dot_dimension_numbers<[1], [1], [0], [0], [0, 0, 1, 0], [], []>} : vector<16x32xf32>, vector<8x32xf32>, vector<16x8xf32> -> vector<16x8xf32>
    %921 = vector.extract_strided_slice %918 {offsets = [0, 0], sizes = [8, 8], strides = [1, 1]} : vector<16x8xf32> to vector<8x8xf32>
    %922 = arith.addf %921, %915 : vector<8x8xf32>
    %923 = vector.extract_strided_slice %919 {offsets = [0, 0], sizes = [8, 8], strides = [1, 1]} : vector<16x8xf32> to vector<8x8xf32>
    %924 = arith.addf %923, %916 : vector<8x8xf32>
    %925 = vector.extract_strided_slice %920 {offsets = [0, 0], sizes = [8, 8], strides = [1, 1]} : vector<16x8xf32> to vector<8x8xf32>
    %926 = arith.addf %925, %917 : vector<8x8xf32>
    %cst_457 = arith.constant dense<0.000000e+00> : vector<8x8xf32>
    %927 = tpu.matmul %922, %924, %cst_457 {dimension_numbers = #tpu.dot_dimension_numbers<[1], [1], [0], [0], [0, 0, 1, 0], [], []>} : vector<8x8xf32>, vector<8x8xf32>, vector<8x8xf32> -> vector<8x8xf32>
    %cst_458 = arith.constant 0.353553385 : f32
    %928 = vector.broadcast %cst_458 : f32 to vector<8x8xf32>
    %929 = arith.mulf %927, %928 : vector<8x8xf32>
    %930 = vector.extract_strided_slice %3 {offsets = [0, 0], sizes = [8, 8], strides = [1, 1]} : vector<16x8xf32> to vector<8x8xf32>
    %931 = arith.addf %929, %930 : vector<8x8xf32>
    %cst_459 = arith.constant dense<0xFF800000> : vector<8xf32>
    %932 = vector.multi_reduction <maximumf>, %931, %cst_459 [1] : vector<8x8xf32> to vector<8xf32>
    %933 = vector.shape_cast %932 : vector<8xf32> to vector<8x1xf32>
    %934 = vector.broadcast %933 : vector<8x1xf32> to vector<8x8xf32>
    %935 = arith.subf %931, %934 : vector<8x8xf32>
    %936 = math.exp %935 : vector<8x8xf32>
    %cst_460 = arith.constant dense<0.000000e+00> : vector<8xf32>
    %937 = vector.multi_reduction <add>, %936, %cst_460 [1] : vector<8x8xf32> to vector<8xf32>
    %938 = vector.shape_cast %937 : vector<8xf32> to vector<8x1xf32>
    %939 = vector.broadcast %938 : vector<8x1xf32> to vector<8x8xf32>
    %940 = arith.divf %936, %939 : vector<8x8xf32>
    %c1_461 = arith.constant 1 : index
    %c1_462 = arith.constant 1 : index
    %c1_463 = arith.constant 1 : index
    %c0_464 = arith.constant 0 : index
    %c0_465 = arith.constant 0 : index
    %941 = vector.load %arg3[%c1_461, %c1_462, %c1_463, %c0_464, %c0_465] : memref<2x2x8x8x8xf32, #tpu.memory_space<vmem>>, vector<1x1x1x8x8xf32>
    %942 = vector.shape_cast %941 : vector<1x1x1x8x8xf32> to vector<8x8xf32>
    %943 = vector.shape_cast %940 : vector<8x8xf32> to vector<1x1x1x8x8xf32>
    tpu.vector_store %arg3[%c1_461, %c1_462, %c1_463, %c0_464, %c0_465], %943 {strides = array<i32>} : memref<2x2x8x8x8xf32, #tpu.memory_space<vmem>>, vector<1x1x1x8x8xf32>,
    %cst_466 = arith.constant dense<0.000000e+00> : vector<8x8xf32>
    %944 = tpu.matmul %940, %926, %cst_466 {dimension_numbers = #tpu.dot_dimension_numbers<[1], [0], [0], [1], [0, 0, 1, 1], [], []>} : vector<8x8xf32>, vector<8x8xf32>, vector<8x8xf32> -> vector<8x8xf32>
    %945 = vector.extract_strided_slice %918 {offsets = [8, 0], sizes = [8, 8], strides = [1, 1]} : vector<16x8xf32> to vector<8x8xf32>
    %946 = arith.addf %945, %915 : vector<8x8xf32>
    %947 = vector.extract_strided_slice %919 {offsets = [8, 0], sizes = [8, 8], strides = [1, 1]} : vector<16x8xf32> to vector<8x8xf32>
    %948 = arith.addf %947, %916 : vector<8x8xf32>
    %949 = vector.extract_strided_slice %920 {offsets = [8, 0], sizes = [8, 8], strides = [1, 1]} : vector<16x8xf32> to vector<8x8xf32>
    %950 = arith.addf %949, %917 : vector<8x8xf32>
    %cst_467 = arith.constant dense<0.000000e+00> : vector<8x8xf32>
    %951 = tpu.matmul %946, %948, %cst_467 {dimension_numbers = #tpu.dot_dimension_numbers<[1], [1], [0], [0], [0, 0, 1, 0], [], []>} : vector<8x8xf32>, vector<8x8xf32>, vector<8x8xf32> -> vector<8x8xf32>
    %cst_468 = arith.constant 0.353553385 : f32
    %952 = vector.broadcast %cst_468 : f32 to vector<8x8xf32>
    %953 = arith.mulf %951, %952 : vector<8x8xf32>
    %954 = vector.extract_strided_slice %3 {offsets = [8, 0], sizes = [8, 8], strides = [1, 1]} : vector<16x8xf32> to vector<8x8xf32>
    %955 = arith.addf %953, %954 : vector<8x8xf32>
    %cst_469 = arith.constant dense<0xFF800000> : vector<8xf32>
    %956 = vector.multi_reduction <maximumf>, %955, %cst_469 [1] : vector<8x8xf32> to vector<8xf32>
    %957 = vector.shape_cast %956 : vector<8xf32> to vector<8x1xf32>
    %958 = vector.broadcast %957 : vector<8x1xf32> to vector<8x8xf32>
    %959 = arith.subf %955, %958 : vector<8x8xf32>
    %960 = math.exp %959 : vector<8x8xf32>
    %cst_470 = arith.constant dense<0.000000e+00> : vector<8xf32>
    %961 = vector.multi_reduction <add>, %960, %cst_470 [1] : vector<8x8xf32> to vector<8xf32>
    %962 = vector.shape_cast %961 : vector<8xf32> to vector<8x1xf32>
    %963 = vector.broadcast %962 : vector<8x1xf32> to vector<8x8xf32>
    %964 = arith.divf %960, %963 : vector<8x8xf32>
    %c1_471 = arith.constant 1 : index
    %c1_472 = arith.constant 1 : index
    %c5_473 = arith.constant 5 : index
    %c0_474 = arith.constant 0 : index
    %c0_475 = arith.constant 0 : index
    %965 = vector.load %arg3[%c1_471, %c1_472, %c5_473, %c0_474, %c0_475] : memref<2x2x8x8x8xf32, #tpu.memory_space<vmem>>, vector<1x1x1x8x8xf32>
    %966 = vector.shape_cast %965 : vector<1x1x1x8x8xf32> to vector<8x8xf32>
    %967 = vector.shape_cast %964 : vector<8x8xf32> to vector<1x1x1x8x8xf32>
    tpu.vector_store %arg3[%c1_471, %c1_472, %c5_473, %c0_474, %c0_475], %967 {strides = array<i32>} : memref<2x2x8x8x8xf32, #tpu.memory_space<vmem>>, vector<1x1x1x8x8xf32>,
    %cst_476 = arith.constant dense<0.000000e+00> : vector<8x8xf32>
    %968 = tpu.matmul %964, %950, %cst_476 {dimension_numbers = #tpu.dot_dimension_numbers<[1], [0], [0], [1], [0, 0, 1, 1], [], []>} : vector<8x8xf32>, vector<8x8xf32>, vector<8x8xf32> -> vector<8x8xf32>
    %969 = tpu.concatenate %944, %968 in 0 : vector<8x8xf32>, vector<8x8xf32> -> vector<16x8xf32>
    %c1224 = arith.constant 1224 : index
    %c0_477 = arith.constant 0 : index
    %970 = vector.load %arg1[%c1224, %c0_477] : memref<1504x32xf32, #tpu.memory_space<vmem>>, vector<8x32xf32>
    %cst_478 = arith.constant dense<0.000000e+00> : vector<16x32xf32>
    %971 = tpu.matmul %969, %970, %cst_478 {dimension_numbers = #tpu.dot_dimension_numbers<[1], [0], [0], [1], [0, 0, 1, 1], [], []>} : vector<16x8xf32>, vector<8x32xf32>, vector<16x32xf32> -> vector<16x32xf32>
    %972 = arith.addf %911, %971 : vector<16x32xf32>
    %c1120 = arith.constant 1120 : index
    %c0_479 = arith.constant 0 : index
    %973 = vector.load %arg1[%c1120, %c0_479] : memref<1504x32xf32, #tpu.memory_space<vmem>>, vector<8x32xf32>
    %c1128 = arith.constant 1128 : index
    %c0_480 = arith.constant 0 : index
    %974 = vector.load %arg1[%c1128, %c0_480] : memref<1504x32xf32, #tpu.memory_space<vmem>>, vector<8x32xf32>
    %c1136 = arith.constant 1136 : index
    %c0_481 = arith.constant 0 : index
    %975 = vector.load %arg1[%c1136, %c0_481] : memref<1504x32xf32, #tpu.memory_space<vmem>>, vector<8x32xf32>
    %c1144 = arith.constant 1144 : index
    %c0_482 = arith.constant 0 : index
    %976 = vector.load %arg1[%c1144, %c0_482] : memref<1504x32xf32, #tpu.memory_space<vmem>>, vector<8x8xf32>
    %c1152 = arith.constant 1152 : index
    %c0_483 = arith.constant 0 : index
    %977 = vector.load %arg1[%c1152, %c0_483] : memref<1504x32xf32, #tpu.memory_space<vmem>>, vector<8x8xf32>
    %c1160 = arith.constant 1160 : index
    %c0_484 = arith.constant 0 : index
    %978 = vector.load %arg1[%c1160, %c0_484] : memref<1504x32xf32, #tpu.memory_space<vmem>>, vector<8x8xf32>
    %cst_485 = arith.constant dense<0.000000e+00> : vector<16x8xf32>
    %979 = tpu.matmul %849, %973, %cst_485 {dimension_numbers = #tpu.dot_dimension_numbers<[1], [1], [0], [0], [0, 0, 1, 0], [], []>} : vector<16x32xf32>, vector<8x32xf32>, vector<16x8xf32> -> vector<16x8xf32>
    %cst_486 = arith.constant dense<0.000000e+00> : vector<16x8xf32>
    %980 = tpu.matmul %1, %974, %cst_486 {dimension_numbers = #tpu.dot_dimension_numbers<[1], [1], [0], [0], [0, 0, 1, 0], [], []>} : vector<16x32xf32>, vector<8x32xf32>, vector<16x8xf32> -> vector<16x8xf32>
    %cst_487 = arith.constant dense<0.000000e+00> : vector<16x8xf32>
    %981 = tpu.matmul %1, %975, %cst_487 {dimension_numbers = #tpu.dot_dimension_numbers<[1], [1], [0], [0], [0, 0, 1, 0], [], []>} : vector<16x32xf32>, vector<8x32xf32>, vector<16x8xf32> -> vector<16x8xf32>
    %982 = vector.extract_strided_slice %979 {offsets = [0, 0], sizes = [8, 8], strides = [1, 1]} : vector<16x8xf32> to vector<8x8xf32>
    %983 = arith.addf %982, %976 : vector<8x8xf32>
    %984 = vector.extract_strided_slice %980 {offsets = [0, 0], sizes = [8, 8], strides = [1, 1]} : vector<16x8xf32> to vector<8x8xf32>
    %985 = arith.addf %984, %977 : vector<8x8xf32>
    %986 = vector.extract_strided_slice %981 {offsets = [0, 0], sizes = [8, 8], strides = [1, 1]} : vector<16x8xf32> to vector<8x8xf32>
    %987 = arith.addf %986, %978 : vector<8x8xf32>
    %cst_488 = arith.constant dense<0.000000e+00> : vector<8x8xf32>
    %988 = tpu.matmul %983, %985, %cst_488 {dimension_numbers = #tpu.dot_dimension_numbers<[1], [1], [0], [0], [0, 0, 1, 0], [], []>} : vector<8x8xf32>, vector<8x8xf32>, vector<8x8xf32> -> vector<8x8xf32>
    %cst_489 = arith.constant 0.353553385 : f32
    %989 = vector.broadcast %cst_489 : f32 to vector<8x8xf32>
    %990 = arith.mulf %988, %989 : vector<8x8xf32>
    %991 = vector.extract_strided_slice %3 {offsets = [0, 0], sizes = [8, 8], strides = [1, 1]} : vector<16x8xf32> to vector<8x8xf32>
    %992 = arith.addf %990, %991 : vector<8x8xf32>
    %cst_490 = arith.constant dense<0xFF800000> : vector<8xf32>
    %993 = vector.multi_reduction <maximumf>, %992, %cst_490 [1] : vector<8x8xf32> to vector<8xf32>
    %994 = vector.shape_cast %993 : vector<8xf32> to vector<8x1xf32>
    %995 = vector.broadcast %994 : vector<8x1xf32> to vector<8x8xf32>
    %996 = arith.subf %992, %995 : vector<8x8xf32>
    %997 = math.exp %996 : vector<8x8xf32>
    %cst_491 = arith.constant dense<0.000000e+00> : vector<8xf32>
    %998 = vector.multi_reduction <add>, %997, %cst_491 [1] : vector<8x8xf32> to vector<8xf32>
    %999 = vector.shape_cast %998 : vector<8xf32> to vector<8x1xf32>
    %1000 = vector.broadcast %999 : vector<8x1xf32> to vector<8x8xf32>
    %1001 = arith.divf %997, %1000 : vector<8x8xf32>
    %c1_492 = arith.constant 1 : index
    %c1_493 = arith.constant 1 : index
    %c2_494 = arith.constant 2 : index
    %c0_495 = arith.constant 0 : index
    %c0_496 = arith.constant 0 : index
    %1002 = vector.load %arg3[%c1_492, %c1_493, %c2_494, %c0_495, %c0_496] : memref<2x2x8x8x8xf32, #tpu.memory_space<vmem>>, vector<1x1x1x8x8xf32>
    %1003 = vector.shape_cast %1002 : vector<1x1x1x8x8xf32> to vector<8x8xf32>
    %1004 = vector.shape_cast %1001 : vector<8x8xf32> to vector<1x1x1x8x8xf32>
    tpu.vector_store %arg3[%c1_492, %c1_493, %c2_494, %c0_495, %c0_496], %1004 {strides = array<i32>} : memref<2x2x8x8x8xf32, #tpu.memory_space<vmem>>, vector<1x1x1x8x8xf32>,
    %cst_497 = arith.constant dense<0.000000e+00> : vector<8x8xf32>
    %1005 = tpu.matmul %1001, %987, %cst_497 {dimension_numbers = #tpu.dot_dimension_numbers<[1], [0], [0], [1], [0, 0, 1, 1], [], []>} : vector<8x8xf32>, vector<8x8xf32>, vector<8x8xf32> -> vector<8x8xf32>
    %1006 = vector.extract_strided_slice %979 {offsets = [8, 0], sizes = [8, 8], strides = [1, 1]} : vector<16x8xf32> to vector<8x8xf32>
    %1007 = arith.addf %1006, %976 : vector<8x8xf32>
    %1008 = vector.extract_strided_slice %980 {offsets = [8, 0], sizes = [8, 8], strides = [1, 1]} : vector<16x8xf32> to vector<8x8xf32>
    %1009 = arith.addf %1008, %977 : vector<8x8xf32>
    %1010 = vector.extract_strided_slice %981 {offsets = [8, 0], sizes = [8, 8], strides = [1, 1]} : vector<16x8xf32> to vector<8x8xf32>
    %1011 = arith.addf %1010, %978 : vector<8x8xf32>
    %cst_498 = arith.constant dense<0.000000e+00> : vector<8x8xf32>
    %1012 = tpu.matmul %1007, %1009, %cst_498 {dimension_numbers = #tpu.dot_dimension_numbers<[1], [1], [0], [0], [0, 0, 1, 0], [], []>} : vector<8x8xf32>, vector<8x8xf32>, vector<8x8xf32> -> vector<8x8xf32>
    %cst_499 = arith.constant 0.353553385 : f32
    %1013 = vector.broadcast %cst_499 : f32 to vector<8x8xf32>
    %1014 = arith.mulf %1012, %1013 : vector<8x8xf32>
    %1015 = vector.extract_strided_slice %3 {offsets = [8, 0], sizes = [8, 8], strides = [1, 1]} : vector<16x8xf32> to vector<8x8xf32>
    %1016 = arith.addf %1014, %1015 : vector<8x8xf32>
    %cst_500 = arith.constant dense<0xFF800000> : vector<8xf32>
    %1017 = vector.multi_reduction <maximumf>, %1016, %cst_500 [1] : vector<8x8xf32> to vector<8xf32>
    %1018 = vector.shape_cast %1017 : vector<8xf32> to vector<8x1xf32>
    %1019 = vector.broadcast %1018 : vector<8x1xf32> to vector<8x8xf32>
    %1020 = arith.subf %1016, %1019 : vector<8x8xf32>
    %1021 = math.exp %1020 : vector<8x8xf32>
    %cst_501 = arith.constant dense<0.000000e+00> : vector<8xf32>
    %1022 = vector.multi_reduction <add>, %1021, %cst_501 [1] : vector<8x8xf32> to vector<8xf32>
    %1023 = vector.shape_cast %1022 : vector<8xf32> to vector<8x1xf32>
    %1024 = vector.broadcast %1023 : vector<8x1xf32> to vector<8x8xf32>
    %1025 = arith.divf %1021, %1024 : vector<8x8xf32>
    %c1_502 = arith.constant 1 : index
    %c1_503 = arith.constant 1 : index
    %c6_504 = arith.constant 6 : index
    %c0_505 = arith.constant 0 : index
    %c0_506 = arith.constant 0 : index
    %1026 = vector.load %arg3[%c1_502, %c1_503, %c6_504, %c0_505, %c0_506] : memref<2x2x8x8x8xf32, #tpu.memory_space<vmem>>, vector<1x1x1x8x8xf32>
    %1027 = vector.shape_cast %1026 : vector<1x1x1x8x8xf32> to vector<8x8xf32>
    %1028 = vector.shape_cast %1025 : vector<8x8xf32> to vector<1x1x1x8x8xf32>
    tpu.vector_store %arg3[%c1_502, %c1_503, %c6_504, %c0_505, %c0_506], %1028 {strides = array<i32>} : memref<2x2x8x8x8xf32, #tpu.memory_space<vmem>>, vector<1x1x1x8x8xf32>,
    %cst_507 = arith.constant dense<0.000000e+00> : vector<8x8xf32>
    %1029 = tpu.matmul %1025, %1011, %cst_507 {dimension_numbers = #tpu.dot_dimension_numbers<[1], [0], [0], [1], [0, 0, 1, 1], [], []>} : vector<8x8xf32>, vector<8x8xf32>, vector<8x8xf32> -> vector<8x8xf32>
    %1030 = tpu.concatenate %1005, %1029 in 0 : vector<8x8xf32>, vector<8x8xf32> -> vector<16x8xf32>
    %c1232 = arith.constant 1232 : index
    %c0_508 = arith.constant 0 : index
    %1031 = vector.load %arg1[%c1232, %c0_508] : memref<1504x32xf32, #tpu.memory_space<vmem>>, vector<8x32xf32>
    %cst_509 = arith.constant dense<0.000000e+00> : vector<16x32xf32>
    %1032 = tpu.matmul %1030, %1031, %cst_509 {dimension_numbers = #tpu.dot_dimension_numbers<[1], [0], [0], [1], [0, 0, 1, 1], [], []>} : vector<16x8xf32>, vector<8x32xf32>, vector<16x32xf32> -> vector<16x32xf32>
    %1033 = arith.addf %972, %1032 : vector<16x32xf32>
    %c1168 = arith.constant 1168 : index
    %c0_510 = arith.constant 0 : index
    %1034 = vector.load %arg1[%c1168, %c0_510] : memref<1504x32xf32, #tpu.memory_space<vmem>>, vector<8x32xf32>
    %c1176 = arith.constant 1176 : index
    %c0_511 = arith.constant 0 : index
    %1035 = vector.load %arg1[%c1176, %c0_511] : memref<1504x32xf32, #tpu.memory_space<vmem>>, vector<8x32xf32>
    %c1184 = arith.constant 1184 : index
    %c0_512 = arith.constant 0 : index
    %1036 = vector.load %arg1[%c1184, %c0_512] : memref<1504x32xf32, #tpu.memory_space<vmem>>, vector<8x32xf32>
    %c1192 = arith.constant 1192 : index
    %c0_513 = arith.constant 0 : index
    %1037 = vector.load %arg1[%c1192, %c0_513] : memref<1504x32xf32, #tpu.memory_space<vmem>>, vector<8x8xf32>
    %c1200 = arith.constant 1200 : index
    %c0_514 = arith.constant 0 : index
    %1038 = vector.load %arg1[%c1200, %c0_514] : memref<1504x32xf32, #tpu.memory_space<vmem>>, vector<8x8xf32>
    %c1208 = arith.constant 1208 : index
    %c0_515 = arith.constant 0 : index
    %1039 = vector.load %arg1[%c1208, %c0_515] : memref<1504x32xf32, #tpu.memory_space<vmem>>, vector<8x8xf32>
    %cst_516 = arith.constant dense<0.000000e+00> : vector<16x8xf32>
    %1040 = tpu.matmul %849, %1034, %cst_516 {dimension_numbers = #tpu.dot_dimension_numbers<[1], [1], [0], [0], [0, 0, 1, 0], [], []>} : vector<16x32xf32>, vector<8x32xf32>, vector<16x8xf32> -> vector<16x8xf32>
    %cst_517 = arith.constant dense<0.000000e+00> : vector<16x8xf32>
    %1041 = tpu.matmul %1, %1035, %cst_517 {dimension_numbers = #tpu.dot_dimension_numbers<[1], [1], [0], [0], [0, 0, 1, 0], [], []>} : vector<16x32xf32>, vector<8x32xf32>, vector<16x8xf32> -> vector<16x8xf32>
    %cst_518 = arith.constant dense<0.000000e+00> : vector<16x8xf32>
    %1042 = tpu.matmul %1, %1036, %cst_518 {dimension_numbers = #tpu.dot_dimension_numbers<[1], [1], [0], [0], [0, 0, 1, 0], [], []>} : vector<16x32xf32>, vector<8x32xf32>, vector<16x8xf32> -> vector<16x8xf32>
    %1043 = vector.extract_strided_slice %1040 {offsets = [0, 0], sizes = [8, 8], strides = [1, 1]} : vector<16x8xf32> to vector<8x8xf32>
    %1044 = arith.addf %1043, %1037 : vector<8x8xf32>
    %1045 = vector.extract_strided_slice %1041 {offsets = [0, 0], sizes = [8, 8], strides = [1, 1]} : vector<16x8xf32> to vector<8x8xf32>
    %1046 = arith.addf %1045, %1038 : vector<8x8xf32>
    %1047 = vector.extract_strided_slice %1042 {offsets = [0, 0], sizes = [8, 8], strides = [1, 1]} : vector<16x8xf32> to vector<8x8xf32>
    %1048 = arith.addf %1047, %1039 : vector<8x8xf32>
    %cst_519 = arith.constant dense<0.000000e+00> : vector<8x8xf32>
    %1049 = tpu.matmul %1044, %1046, %cst_519 {dimension_numbers = #tpu.dot_dimension_numbers<[1], [1], [0], [0], [0, 0, 1, 0], [], []>} : vector<8x8xf32>, vector<8x8xf32>, vector<8x8xf32> -> vector<8x8xf32>
    %cst_520 = arith.constant 0.353553385 : f32
    %1050 = vector.broadcast %cst_520 : f32 to vector<8x8xf32>
    %1051 = arith.mulf %1049, %1050 : vector<8x8xf32>
    %1052 = vector.extract_strided_slice %3 {offsets = [0, 0], sizes = [8, 8], strides = [1, 1]} : vector<16x8xf32> to vector<8x8xf32>
    %1053 = arith.addf %1051, %1052 : vector<8x8xf32>
    %cst_521 = arith.constant dense<0xFF800000> : vector<8xf32>
    %1054 = vector.multi_reduction <maximumf>, %1053, %cst_521 [1] : vector<8x8xf32> to vector<8xf32>
    %1055 = vector.shape_cast %1054 : vector<8xf32> to vector<8x1xf32>
    %1056 = vector.broadcast %1055 : vector<8x1xf32> to vector<8x8xf32>
    %1057 = arith.subf %1053, %1056 : vector<8x8xf32>
    %1058 = math.exp %1057 : vector<8x8xf32>
    %cst_522 = arith.constant dense<0.000000e+00> : vector<8xf32>
    %1059 = vector.multi_reduction <add>, %1058, %cst_522 [1] : vector<8x8xf32> to vector<8xf32>
    %1060 = vector.shape_cast %1059 : vector<8xf32> to vector<8x1xf32>
    %1061 = vector.broadcast %1060 : vector<8x1xf32> to vector<8x8xf32>
    %1062 = arith.divf %1058, %1061 : vector<8x8xf32>
    %c1_523 = arith.constant 1 : index
    %c1_524 = arith.constant 1 : index
    %c3_525 = arith.constant 3 : index
    %c0_526 = arith.constant 0 : index
    %c0_527 = arith.constant 0 : index
    %1063 = vector.load %arg3[%c1_523, %c1_524, %c3_525, %c0_526, %c0_527] : memref<2x2x8x8x8xf32, #tpu.memory_space<vmem>>, vector<1x1x1x8x8xf32>
    %1064 = vector.shape_cast %1063 : vector<1x1x1x8x8xf32> to vector<8x8xf32>
    %1065 = vector.shape_cast %1062 : vector<8x8xf32> to vector<1x1x1x8x8xf32>
    tpu.vector_store %arg3[%c1_523, %c1_524, %c3_525, %c0_526, %c0_527], %1065 {strides = array<i32>} : memref<2x2x8x8x8xf32, #tpu.memory_space<vmem>>, vector<1x1x1x8x8xf32>,
    %cst_528 = arith.constant dense<0.000000e+00> : vector<8x8xf32>
    %1066 = tpu.matmul %1062, %1048, %cst_528 {dimension_numbers = #tpu.dot_dimension_numbers<[1], [0], [0], [1], [0, 0, 1, 1], [], []>} : vector<8x8xf32>, vector<8x8xf32>, vector<8x8xf32> -> vector<8x8xf32>
    %1067 = vector.extract_strided_slice %1040 {offsets = [8, 0], sizes = [8, 8], strides = [1, 1]} : vector<16x8xf32> to vector<8x8xf32>
    %1068 = arith.addf %1067, %1037 : vector<8x8xf32>
    %1069 = vector.extract_strided_slice %1041 {offsets = [8, 0], sizes = [8, 8], strides = [1, 1]} : vector<16x8xf32> to vector<8x8xf32>
    %1070 = arith.addf %1069, %1038 : vector<8x8xf32>
    %1071 = vector.extract_strided_slice %1042 {offsets = [8, 0], sizes = [8, 8], strides = [1, 1]} : vector<16x8xf32> to vector<8x8xf32>
    %1072 = arith.addf %1071, %1039 : vector<8x8xf32>
    %cst_529 = arith.constant dense<0.000000e+00> : vector<8x8xf32>
    %1073 = tpu.matmul %1068, %1070, %cst_529 {dimension_numbers = #tpu.dot_dimension_numbers<[1], [1], [0], [0], [0, 0, 1, 0], [], []>} : vector<8x8xf32>, vector<8x8xf32>, vector<8x8xf32> -> vector<8x8xf32>
    %cst_530 = arith.constant 0.353553385 : f32
    %1074 = vector.broadcast %cst_530 : f32 to vector<8x8xf32>
    %1075 = arith.mulf %1073, %1074 : vector<8x8xf32>
    %1076 = vector.extract_strided_slice %3 {offsets = [8, 0], sizes = [8, 8], strides = [1, 1]} : vector<16x8xf32> to vector<8x8xf32>
    %1077 = arith.addf %1075, %1076 : vector<8x8xf32>
    %cst_531 = arith.constant dense<0xFF800000> : vector<8xf32>
    %1078 = vector.multi_reduction <maximumf>, %1077, %cst_531 [1] : vector<8x8xf32> to vector<8xf32>
    %1079 = vector.shape_cast %1078 : vector<8xf32> to vector<8x1xf32>
    %1080 = vector.broadcast %1079 : vector<8x1xf32> to vector<8x8xf32>
    %1081 = arith.subf %1077, %1080 : vector<8x8xf32>
    %1082 = math.exp %1081 : vector<8x8xf32>
    %cst_532 = arith.constant dense<0.000000e+00> : vector<8xf32>
    %1083 = vector.multi_reduction <add>, %1082, %cst_532 [1] : vector<8x8xf32> to vector<8xf32>
    %1084 = vector.shape_cast %1083 : vector<8xf32> to vector<8x1xf32>
    %1085 = vector.broadcast %1084 : vector<8x1xf32> to vector<8x8xf32>
    %1086 = arith.divf %1082, %1085 : vector<8x8xf32>
    %c1_533 = arith.constant 1 : index
    %c1_534 = arith.constant 1 : index
    %c7_535 = arith.constant 7 : index
    %c0_536 = arith.constant 0 : index
    %c0_537 = arith.constant 0 : index
    %1087 = vector.load %arg3[%c1_533, %c1_534, %c7_535, %c0_536, %c0_537] : memref<2x2x8x8x8xf32, #tpu.memory_space<vmem>>, vector<1x1x1x8x8xf32>
    %1088 = vector.shape_cast %1087 : vector<1x1x1x8x8xf32> to vector<8x8xf32>
    %1089 = vector.shape_cast %1086 : vector<8x8xf32> to vector<1x1x1x8x8xf32>
    tpu.vector_store %arg3[%c1_533, %c1_534, %c7_535, %c0_536, %c0_537], %1089 {strides = array<i32>} : memref<2x2x8x8x8xf32, #tpu.memory_space<vmem>>, vector<1x1x1x8x8xf32>,
    %cst_538 = arith.constant dense<0.000000e+00> : vector<8x8xf32>
    %1090 = tpu.matmul %1086, %1072, %cst_538 {dimension_numbers = #tpu.dot_dimension_numbers<[1], [0], [0], [1], [0, 0, 1, 1], [], []>} : vector<8x8xf32>, vector<8x8xf32>, vector<8x8xf32> -> vector<8x8xf32>
    %1091 = tpu.concatenate %1066, %1090 in 0 : vector<8x8xf32>, vector<8x8xf32> -> vector<16x8xf32>
    %c1240 = arith.constant 1240 : index
    %c0_539 = arith.constant 0 : index
    %1092 = vector.load %arg1[%c1240, %c0_539] : memref<1504x32xf32, #tpu.memory_space<vmem>>, vector<8x32xf32>
    %cst_540 = arith.constant dense<0.000000e+00> : vector<16x32xf32>
    %1093 = tpu.matmul %1091, %1092, %cst_540 {dimension_numbers = #tpu.dot_dimension_numbers<[1], [0], [0], [1], [0, 0, 1, 1], [], []>} : vector<16x8xf32>, vector<8x32xf32>, vector<16x32xf32> -> vector<16x32xf32>
    %1094 = arith.addf %1033, %1093 : vector<16x32xf32>
    %c1264 = arith.constant 1264 : index
    %c0_541 = arith.constant 0 : index
    %1095 = vector.load %arg1[%c1264, %c0_541] : memref<1504x32xf32, #tpu.memory_space<vmem>>, vector<16x32xf32>
    %c1280 = arith.constant 1280 : index
    %c0_542 = arith.constant 0 : index
    %1096 = vector.load %arg1[%c1280, %c0_542] : memref<1504x32xf32, #tpu.memory_space<vmem>>, vector<16x32xf32>
    %1097 = arith.addf %1094, %849 : vector<16x32xf32>
    %cst_543 = arith.constant dense<0.000000e+00> : vector<16xf32>
    %1098 = vector.multi_reduction <add>, %1097, %cst_543 [1] : vector<16x32xf32> to vector<16xf32>
    %1099 = vector.shape_cast %1098 : vector<16xf32> to vector<16x1xf32>
    %cst_544 = arith.constant 3.200000e+01 : f32
    %1100 = vector.broadcast %cst_544 : f32 to vector<16x1xf32>
    %1101 = arith.divf %1099, %1100 : vector<16x1xf32>
    %1102 = vector.broadcast %1101 : vector<16x1xf32> to vector<16x32xf32>
    %1103 = arith.subf %1097, %1102 : vector<16x32xf32>
    %1104 = arith.mulf %1103, %1103 : vector<16x32xf32>
    %cst_545 = arith.constant dense<0.000000e+00> : vector<16xf32>
    %1105 = vector.multi_reduction <add>, %1104, %cst_545 [1] : vector<16x32xf32> to vector<16xf32>
    %1106 = vector.shape_cast %1105 : vector<16xf32> to vector<16x1xf32>
    %cst_546 = arith.constant 3.200000e+01 : f32
    %1107 = vector.broadcast %cst_546 : f32 to vector<16x1xf32>
    %1108 = arith.divf %1106, %1107 : vector<16x1xf32>
    %1109 = vector.broadcast %1101 : vector<16x1xf32> to vector<16x32xf32>
    %1110 = arith.subf %1097, %1109 : vector<16x32xf32>
    %1111 = arith.mulf %1095, %1110 : vector<16x32xf32>
    %cst_547 = arith.constant 9.99999974E-6 : f32
    %1112 = vector.broadcast %cst_547 : f32 to vector<16x1xf32>
    %1113 = arith.addf %1108, %1112 : vector<16x1xf32>
    %1114 = math.rsqrt %1113 : vector<16x1xf32>
    %1115 = vector.broadcast %1114 : vector<16x1xf32> to vector<16x32xf32>
    %1116 = arith.mulf %1111, %1115 : vector<16x32xf32>
    %1117 = arith.addf %1116, %1096 : vector<16x32xf32>
    %c1296 = arith.constant 1296 : index
    %c0_548 = arith.constant 0 : index
    %1118 = vector.load %arg1[%c1296, %c0_548] : memref<1504x32xf32, #tpu.memory_space<vmem>>, vector<32x32xf32>
    %c1328 = arith.constant 1328 : index
    %c0_549 = arith.constant 0 : index
    %1119 = vector.load %arg1[%c1328, %c0_549] : memref<1504x32xf32, #tpu.memory_space<vmem>>, vector<32x32xf32>
    %c1360 = arith.constant 1360 : index
    %c0_550 = arith.constant 0 : index
    %1120 = vector.load %arg1[%c1360, %c0_550] : memref<1504x32xf32, #tpu.memory_space<vmem>>, vector<16x32xf32>
    %c1376 = arith.constant 1376 : index
    %c0_551 = arith.constant 0 : index
    %1121 = vector.load %arg1[%c1376, %c0_551] : memref<1504x32xf32, #tpu.memory_space<vmem>>, vector<16x32xf32>
    %c1392 = arith.constant 1392 : index
    %c0_552 = arith.constant 0 : index
    %1122 = vector.load %arg1[%c1392, %c0_552] : memref<1504x32xf32, #tpu.memory_space<vmem>>, vector<32x32xf32>
    %c1424 = arith.constant 1424 : index
    %c0_553 = arith.constant 0 : index
    %1123 = vector.load %arg1[%c1424, %c0_553] : memref<1504x32xf32, #tpu.memory_space<vmem>>, vector<32x32xf32>
    %c1456 = arith.constant 1456 : index
    %c0_554 = arith.constant 0 : index
    %1124 = vector.load %arg1[%c1456, %c0_554] : memref<1504x32xf32, #tpu.memory_space<vmem>>, vector<16x32xf32>
    %c1472 = arith.constant 1472 : index
    %c0_555 = arith.constant 0 : index
    %1125 = vector.load %arg1[%c1472, %c0_555] : memref<1504x32xf32, #tpu.memory_space<vmem>>, vector<16x32xf32>
    %c1488 = arith.constant 1488 : index
    %c0_556 = arith.constant 0 : index
    %1126 = vector.load %arg1[%c1488, %c0_556] : memref<1504x32xf32, #tpu.memory_space<vmem>>, vector<16x32xf32>
    %cst_557 = arith.constant dense<0.000000e+00> : vector<16x32xf32>
    %1127 = tpu.matmul %1117, %1118, %cst_557 {dimension_numbers = #tpu.dot_dimension_numbers<[1], [1], [0], [0], [0, 0, 1, 0], [], []>} : vector<16x32xf32>, vector<32x32xf32>, vector<16x32xf32> -> vector<16x32xf32>
    %1128 = arith.addf %1127, %1120 : vector<16x32xf32>
    %cst_558 = arith.constant 0.000000e+00 : f32
    %1129 = vector.broadcast %cst_558 : f32 to vector<16x32xf32>
    %1130 = arith.maximumf %1128, %1129 : vector<16x32xf32>
    %cst_559 = arith.constant dense<0.000000e+00> : vector<16x32xf32>
    %1131 = tpu.matmul %1117, %1119, %cst_559 {dimension_numbers = #tpu.dot_dimension_numbers<[1], [1], [0], [0], [0, 0, 1, 0], [], []>} : vector<16x32xf32>, vector<32x32xf32>, vector<16x32xf32> -> vector<16x32xf32>
    %1132 = arith.addf %1131, %1121 : vector<16x32xf32>
    %cst_560 = arith.constant 0.000000e+00 : f32
    %1133 = vector.broadcast %cst_560 : f32 to vector<16x32xf32>
    %1134 = arith.maximumf %1132, %1133 : vector<16x32xf32>
    %cst_561 = arith.constant dense<0.000000e+00> : vector<16x32xf32>
    %1135 = tpu.matmul %1130, %1122, %cst_561 {dimension_numbers = #tpu.dot_dimension_numbers<[1], [1], [0], [0], [0, 0, 1, 0], [], []>} : vector<16x32xf32>, vector<32x32xf32>, vector<16x32xf32> -> vector<16x32xf32>
    %cst_562 = arith.constant dense<0.000000e+00> : vector<16x32xf32>
    %1136 = tpu.matmul %1134, %1123, %cst_562 {dimension_numbers = #tpu.dot_dimension_numbers<[1], [1], [0], [0], [0, 0, 1, 0], [], []>} : vector<16x32xf32>, vector<32x32xf32>, vector<16x32xf32> -> vector<16x32xf32>
    %1137 = arith.addf %1135, %1136 : vector<16x32xf32>
    %1138 = arith.addf %1137, %1124 : vector<16x32xf32>
    %1139 = arith.addf %1138, %1117 : vector<16x32xf32>
    %cst_563 = arith.constant dense<0.000000e+00> : vector<16xf32>
    %1140 = vector.multi_reduction <add>, %1139, %cst_563 [1] : vector<16x32xf32> to vector<16xf32>
    %1141 = vector.shape_cast %1140 : vector<16xf32> to vector<16x1xf32>
    %cst_564 = arith.constant 3.200000e+01 : f32
    %1142 = vector.broadcast %cst_564 : f32 to vector<16x1xf32>
    %1143 = arith.divf %1141, %1142 : vector<16x1xf32>
    %1144 = vector.broadcast %1143 : vector<16x1xf32> to vector<16x32xf32>
    %1145 = arith.subf %1139, %1144 : vector<16x32xf32>
    %1146 = arith.mulf %1145, %1145 : vector<16x32xf32>
    %cst_565 = arith.constant dense<0.000000e+00> : vector<16xf32>
    %1147 = vector.multi_reduction <add>, %1146, %cst_565 [1] : vector<16x32xf32> to vector<16xf32>
    %1148 = vector.shape_cast %1147 : vector<16xf32> to vector<16x1xf32>
    %cst_566 = arith.constant 3.200000e+01 : f32
    %1149 = vector.broadcast %cst_566 : f32 to vector<16x1xf32>
    %1150 = arith.divf %1148, %1149 : vector<16x1xf32>
    %1151 = vector.broadcast %1143 : vector<16x1xf32> to vector<16x32xf32>
    %1152 = arith.subf %1139, %1151 : vector<16x32xf32>
    %1153 = arith.mulf %1125, %1152 : vector<16x32xf32>
    %cst_567 = arith.constant 9.99999974E-6 : f32
    %1154 = vector.broadcast %cst_567 : f32 to vector<16x1xf32>
    %1155 = arith.addf %1150, %1154 : vector<16x1xf32>
    %1156 = math.rsqrt %1155 : vector<16x1xf32>
    %1157 = vector.broadcast %1156 : vector<16x1xf32> to vector<16x32xf32>
    %1158 = arith.mulf %1153, %1157 : vector<16x32xf32>
    %1159 = arith.addf %1158, %1126 : vector<16x32xf32>
    %c0_568 = arith.constant 0 : index
    %c0_569 = arith.constant 0 : index
    %1160 = vector.load %arg2[%c0_568, %c0_569] : memref<16x32xf32, #tpu.memory_space<vmem>>, vector<16x32xf32>
    tpu.vector_store %arg2[%c0_568, %c0_569], %1159 {strides = array<i32>} : memref<16x32xf32, #tpu.memory_space<vmem>>, vector<16x32xf32>,
    return
  }
}

</mosaic_0001>

<llo_original>
// kernel: _decoder_forward.1
$region0: #{_decoder_forward.1}
  #allocation0 [shape = 'u32[]', space=smem, size = 0x4, offset = 0x4, fixed_abs, tag = 'smem constant byte address 0x4 - core index']
  #allocation1 [shape = 'u32[72,128]{1,0:T(1,128)}', space=vmem, size = 0x9000, scoped, tag = 'internal scratch']
  %s0 = inlined_call_operand.vmem [shape: f32[64,32], index: 0, kind: input, shape index: {}]
  %s1 = inlined_call_operand.vmem [shape: f32[1504,32], index: 1, kind: input, shape index: {}]
  %s2 = inlined_call_operand.vmem [shape: f32[16,32], index: 2, kind: output, shape index: {0}]
  %s3 = inlined_call_operand.vmem [shape: f32[2,2,8,8,8], index: 3, kind: output, shape index: {1}]
  %4 = xla_tuple %s2, %s3
  %s5 = sld [smem:[#allocation0]]
  $region26: #{_decoder_forward.1} parent=0
    _
  %s7 = ssub.s32 1, %s5
  %s8 = scalar_select 0, %s7, %s5
  // Predicated region
  $region2: #{_decoder_forward.1} parent=0 // pred_check
    _
  $region3: #{_decoder_forward.1} parent=0 // pred_check_branch
    %10 = sbr.rel (0) target = $region5
  $region4: #{_decoder_forward.1} parent=0 // pred_region
    _
  $region5: #{_decoder_forward.1} parent=0 // pred_fallthru
    _
  // Predicated region
  $region6: #{_decoder_forward.1} parent=0 // pred_check
    _
  $region7: #{_decoder_forward.1} parent=0 // pred_check_branch
    %12 = sbr.rel (0) target = $region9
  $region8: #{_decoder_forward.1} parent=0 // pred_region
    _
  $region9: #{_decoder_forward.1} parent=0 // pred_fallthru
    _
  %v13 = vld [vmem:[%s0] sm:$0xff]
  %v14 = vld [vmem:[%s0 + $0x8] sm:$0xff]
  %v15 = vld [vmem:[%s0 + $0x10] sm:$0xff]
  %v16 = vld [vmem:[%s0 + $0x18] sm:$0xff]
  %v17 = vld [vmem:[%s0 + $0x20] sm:$0xff]
  %v18 = vld [vmem:[%s0 + $0x28] sm:$0xff]
  %v19 = vld [vmem:[%s0 + $0x30] sm:$0xff]
  %v20 = vld [vmem:[%s0 + $0x38] sm:$0xff]
  %v21 = vld [vmem:[%s1 + $0xe0] sm:$0xff]
  %v22 = vld [vmem:[%s1 + $0xe8] sm:$0xff]
  %v23 = vld [vmem:[%s1] sm:$0xff]
  %v24 = vld [vmem:[%s1 + $0x8] sm:$0xff]
  %v25 = vld [vmem:[%s1 + $0x10] sm:$0xff]
  %v26 = vld [vmem:[%s1 + $0x18] sm:$0xff]
  %v27 = vld [vmem:[%s1 + $0x20] sm:$0xff]
  %v28 = vld [vmem:[%s1 + $0x28] sm:$0xff]
  %vm29 = vcmask 261120
  %v31 = vsel %vm29, %v13, 0
  %v34 = vsel %vm29, %v14, 0
  %v37 = vsel %vm29, %v23, 0
  %39 = vmatpush.xpose.msra.mxu0 0.0
  %40 = vmatpush.xpose.msra.mxu0 0.0
  %41 = vmatpush.xpose.msra.mxu0 0.0
  %42 = vmatpush.xpose.msra.mxu0 0.0
  %43 = vmatpush.xpose.msra.mxu0 0.0
  %44 = vmatpush.xpose.msra.mxu0 0.0
  %45 = vmatpush.xpose.msra.mxu0 0.0
  %46 = vmatpush.xpose.msra.mxu0 0.0
  %47 = vmatpush.xpose.msra.mxu0 0.0
  %48 = vmatpush.xpose.msra.mxu0 0.0
  %49 = vmatpush.xpose.msra.mxu0 0.0
  %50 = vmatpush.xpose.msra.mxu0 0.0
  %51 = vmatpush.xpose.msra.mxu0 0.0
  %52 = vmatpush.xpose.msra.mxu0 0.0
  %53 = vmatpush.xpose.msra.mxu0 0.0
  %54 = vmatpush.xpose.msra.mxu0 %v37
  %55 = vmatmul.f32.gmra.mxu0 %v31
  %v56 = vpop.f32.mrf.mxu0
  %v57 = vadd.f32 0.0, %v56
  %58 = vmatmul.f32.gmra.mxu0 %v34
  %v59 = vpop.f32.mrf.mxu0
  %v60 = vadd.f32 0.0, %v59
  %61 = vdwg.mxu0
  %v63 = vsel %vm29, %v24, 0
  %65 = vmatpush.xpose.msra.mxu0 0.0
  %66 = vmatpush.xpose.msra.mxu0 0.0
  %67 = vmatpush.xpose.msra.mxu0 0.0
  %68 = vmatpush.xpose.msra.mxu0 0.0
  %69 = vmatpush.xpose.msra.mxu0 0.0
  %70 = vmatpush.xpose.msra.mxu0 0.0
  %71 = vmatpush.xpose.msra.mxu0 0.0
  %72 = vmatpush.xpose.msra.mxu0 0.0
  %73 = vmatpush.xpose.msra.mxu0 0.0
  %74 = vmatpush.xpose.msra.mxu0 0.0
  %75 = vmatpush.xpose.msra.mxu0 0.0
  %76 = vmatpush.xpose.msra.mxu0 0.0
  %77 = vmatpush.xpose.msra.mxu0 0.0
  %78 = vmatpush.xpose.msra.mxu0 0.0
  %79 = vmatpush.xpose.msra.mxu0 0.0
  %80 = vmatpush.xpose.msra.mxu0 %v63
  %81 = vmatmul.f32.gmra.mxu0 %v31
  %v82 = vpop.f32.mrf.mxu0
  %v83 = vadd.f32 0.0, %v82
  %84 = vmatmul.f32.gmra.mxu0 %v34
  %v85 = vpop.f32.mrf.mxu0
  %v86 = vadd.f32 0.0, %v85
  %87 = vdwg.mxu0
  %v89 = vsel %vm29, %v25, 0
  %91 = vmatpush.xpose.msra.mxu0 0.0
  %92 = vmatpush.xpose.msra.mxu0 0.0
  %93 = vmatpush.xpose.msra.mxu0 0.0
  %94 = vmatpush.xpose.msra.mxu0 0.0
  %95 = vmatpush.xpose.msra.mxu0 0.0
  %96 = vmatpush.xpose.msra.mxu0 0.0
  %97 = vmatpush.xpose.msra.mxu0 0.0
  %98 = vmatpush.xpose.msra.mxu0 0.0
  %99 = vmatpush.xpose.msra.mxu0 0.0
  %100 = vmatpush.xpose.msra.mxu0 0.0
  %101 = vmatpush.xpose.msra.mxu0 0.0
  %102 = vmatpush.xpose.msra.mxu0 0.0
  %103 = vmatpush.xpose.msra.mxu0 0.0
  %104 = vmatpush.xpose.msra.mxu0 0.0
  %105 = vmatpush.xpose.msra.mxu0 0.0
  %106 = vmatpush.xpose.msra.mxu0 %v89
  %107 = vmatmul.f32.gmra.mxu0 %v31
  %v108 = vpop.f32.mrf.mxu0
  %v109 = vadd.f32 0.0, %v108
  %110 = vmatmul.f32.gmra.mxu0 %v34
  %v111 = vpop.f32.mrf.mxu0
  %v112 = vadd.f32 0.0, %v111
  %113 = vdwg.mxu0
  %v114 = vadd.f32 %v57, %v26
  %v115 = vadd.f32 %v83, %v27
  %v116 = vadd.f32 %v109, %v28
  %vm117 = vcmask 64512
  %v119 = vsel %vm117, %v114, 0
  %v122 = vsel %vm117, %v115, 0
  %124 = vmatpush.xpose.msra.mxu0 0.0
  %125 = vmatpush.xpose.msra.mxu0 0.0
  %126 = vmatpush.xpose.msra.mxu0 0.0
  %127 = vmatpush.xpose.msra.mxu0 0.0
  %128 = vmatpush.xpose.msra.mxu0 0.0
  %129 = vmatpush.xpose.msra.mxu0 0.0
  %130 = vmatpush.xpose.msra.mxu0 0.0
  %131 = vmatpush.xpose.msra.mxu0 0.0
  %132 = vmatpush.xpose.msra.mxu0 0.0
  %133 = vmatpush.xpose.msra.mxu0 0.0
  %134 = vmatpush.xpose.msra.mxu0 0.0
  %135 = vmatpush.xpose.msra.mxu0 0.0
  %136 = vmatpush.xpose.msra.mxu0 0.0
  %137 = vmatpush.xpose.msra.mxu0 0.0
  %138 = vmatpush.xpose.msra.mxu0 0.0
  %139 = vmatpush.xpose.msra.mxu0 %v122
  %140 = vmatmul.f32.gmra.mxu0 %v119
  %v141 = vpop.f32.mrf.mxu0
  %v142 = vadd.f32 0.0, %v141
  %143 = vdwg.mxu0
  %v144 = vmul.f32 %v142, 0.35355338
  %v145 = vadd.f32 %v144, %v17
  %v146 = vsel %vm117, %v145, -inf
  %147 = vmax.xlane.f32.xlu0 %v146
  %v148 = vpop.xlane.xlu0 %147
  %v149 = vsub.f32 %v145, %v148
  %v150 = vmul.f32 %v149, 1.442695
  %v151 = vpow.pop %v150
  %v152 = vsel %vm117, %v151, 0.0
  %153 = vadd.xlane.f32.xlu0 %v152
  %v154 = vpop.xlane.xlu0 %153
  %v155 = vrcp.pop %v154
  %v156 = vmul.f32 %v154, %v155
  %v157 = vsub.f32 1.0, %v156
  %v158 = vmul.f32 %v155, %v157
  %v159 = vadd.f32 %v155, %v158
  %vm160 = vweird.f32 %v154
  %vm161 = vweird.f32 %v155
  %vm162 = vmor %vm160, %vm161
  %v163 = vsel %vm162, %v155, %v159
  %v164 = vand.u32 2147483647, %v154
  %vm165 = vcmp.eq.f32.partialorder %v164, 8.507059e+37
  %v166 = vand.u32 %v154, 2147483648
  %v167 = vor.u32 1.1754944e-38, %v166
  %v168 = vsel %vm165, %v167, %v163
  %v169 = vmul.f32 %v151, %v168
  %170 = vst.msk [vmem:[%s3] sm:$0xff] %vm117, %v169
  %v172 = vsel %vm117, %v169, 0
  %174 = vmatpush.msra.mxu0 0.0
  %175 = vmatpush.msra.mxu0 0.0
  %176 = vmatpush.msra.mxu0 0.0
  %177 = vmatpush.msra.mxu0 0.0
  %178 = vmatpush.msra.mxu0 0.0
  %179 = vmatpush.msra.mxu0 0.0
  %180 = vmatpush.msra.mxu0 0.0
  %181 = vmatpush.msra.mxu0 0.0
  %182 = vmatpush.msra.mxu0 0.0
  %183 = vmatpush.msra.mxu0 0.0
  %184 = vmatpush.msra.mxu0 0.0
  %185 = vmatpush.msra.mxu0 0.0
  %186 = vmatpush.msra.mxu0 0.0
  %187 = vmatpush.msra.mxu0 0.0
  %188 = vmatpush.msra.mxu0 0.0
  %189 = vmatpush.msra.mxu0 %v116
  %190 = vmatmul.f32.gmra.mxu0 %v172
  %v191 = vpop.f32.mrf.mxu0
  %v192 = vadd.f32 0.0, %v191
  %193 = vdwg.mxu0
  %v194 = vadd.f32 %v60, %v26
  %v195 = vadd.f32 %v86, %v27
  %v196 = vadd.f32 %v112, %v28
  %v198 = vsel %vm117, %v194, 0
  %v201 = vsel %vm117, %v195, 0
  %203 = vmatpush.xpose.msra.mxu0 0.0
  %204 = vmatpush.xpose.msra.mxu0 0.0
  %205 = vmatpush.xpose.msra.mxu0 0.0
  %206 = vmatpush.xpose.msra.mxu0 0.0
  %207 = vmatpush.xpose.msra.mxu0 0.0
  %208 = vmatpush.xpose.msra.mxu0 0.0
  %209 = vmatpush.xpose.msra.mxu0 0.0
  %210 = vmatpush.xpose.msra.mxu0 0.0
  %211 = vmatpush.xpose.msra.mxu0 0.0
  %212 = vmatpush.xpose.msra.mxu0 0.0
  %213 = vmatpush.xpose.msra.mxu0 0.0
  %214 = vmatpush.xpose.msra.mxu0 0.0
  %215 = vmatpush.xpose.msra.mxu0 0.0
  %216 = vmatpush.xpose.msra.mxu0 0.0
  %217 = vmatpush.xpose.msra.mxu0 0.0
  %218 = vmatpush.xpose.msra.mxu0 %v201
  %219 = vmatmul.f32.gmra.mxu0 %v198
  %v220 = vpop.f32.mrf.mxu0
  %v221 = vadd.f32 0.0, %v220
  %222 = vdwg.mxu0
  %v223 = vmul.f32 %v221, 0.35355338
  %v224 = vadd.f32 %v223, %v18
  %v225 = vsel %vm117, %v224, -inf
  %226 = vmax.xlane.f32.xlu0 %v225
  %v227 = vpop.xlane.xlu0 %226
  %v228 = vsub.f32 %v224, %v227
  %v229 = vmul.f32 %v228, 1.442695
  %v230 = vpow.pop %v229
  %v231 = vsel %vm117, %v230, 0.0
  %232 = vadd.xlane.f32.xlu0 %v231
  %v233 = vpop.xlane.xlu0 %232
  %v234 = vrcp.pop %v233
  %v235 = vmul.f32 %v233, %v234
  %v236 = vsub.f32 1.0, %v235
  %v237 = vmul.f32 %v234, %v236
  %v238 = vadd.f32 %v234, %v237
  %vm239 = vweird.f32 %v233
  %vm240 = vweird.f32 %v234
  %vm241 = vmor %vm239, %vm240
  %v242 = vsel %vm241, %v234, %v238
  %v243 = vand.u32 2147483647, %v233
  %vm244 = vcmp.eq.f32.partialorder %v243, 8.507059e+37
  %v245 = vand.u32 %v233, 2147483648
  %v246 = vor.u32 1.1754944e-38, %v245
  %v247 = vsel %vm244, %v246, %v242
  %v248 = vmul.f32 %v230, %v247
  %s249 = scalar_lea.vmem %s3, 32
  %250 = vst.msk [vmem:[%s249] sm:$0xff] %vm117, %v248
  %v252 = vsel %vm117, %v248, 0
  %254 = vmatpush.msra.mxu0 0.0
  %255 = vmatpush.msra.mxu0 0.0
  %256 = vmatpush.msra.mxu0 0.0
  %257 = vmatpush.msra.mxu0 0.0
  %258 = vmatpush.msra.mxu0 0.0
  %259 = vmatpush.msra.mxu0 0.0
  %260 = vmatpush.msra.mxu0 0.0
  %261 = vmatpush.msra.mxu0 0.0
  %262 = vmatpush.msra.mxu0 0.0
  %263 = vmatpush.msra.mxu0 0.0
  %264 = vmatpush.msra.mxu0 0.0
  %265 = vmatpush.msra.mxu0 0.0
  %266 = vmatpush.msra.mxu0 0.0
  %267 = vmatpush.msra.mxu0 0.0
  %268 = vmatpush.msra.mxu0 0.0
  %269 = vmatpush.msra.mxu0 %v196
  %270 = vmatmul.f32.gmra.mxu0 %v252
  %v271 = vpop.f32.mrf.mxu0
  %v272 = vadd.f32 0.0, %v271
  %273 = vdwg.mxu0
  %v274 = vld [vmem:[%s1 + $0xc0] sm:$0xff]
  %v276 = vsel %vm117, %v192, 0
  %v279 = vsel %vm117, %v272, 0
  %281 = vmatpush.msra.mxu0 0.0
  %282 = vmatpush.msra.mxu0 0.0
  %283 = vmatpush.msra.mxu0 0.0
  %284 = vmatpush.msra.mxu0 0.0
  %285 = vmatpush.msra.mxu0 0.0
  %286 = vmatpush.msra.mxu0 0.0
  %287 = vmatpush.msra.mxu0 0.0
  %288 = vmatpush.msra.mxu0 0.0
  %289 = vmatpush.msra.mxu0 0.0
  %290 = vmatpush.msra.mxu0 0.0
  %291 = vmatpush.msra.mxu0 0.0
  %292 = vmatpush.msra.mxu0 0.0
  %293 = vmatpush.msra.mxu0 0.0
  %294 = vmatpush.msra.mxu0 0.0
  %295 = vmatpush.msra.mxu0 0.0
  %296 = vmatpush.msra.mxu0 %v274
  %297 = vmatmul.f32.gmra.mxu0 %v276
  %v298 = vpop.f32.mrf.mxu0
  %v299 = vadd.f32 0.0, %v298
  %300 = vmatmul.f32.gmra.mxu0 %v279
  %v301 = vpop.f32.mrf.mxu0
  %v302 = vadd.f32 0.0, %v301
  %303 = vdwg.mxu0
  %v304 = vadd.f32 %v21, %v299
  %v305 = vadd.f32 %v22, %v302
  %v306 = vld [vmem:[%s1 + $0x30] sm:$0xff]
  %v307 = vld [vmem:[%s1 + $0x38] sm:$0xff]
  %v308 = vld [vmem:[%s1 + $0x40] sm:$0xff]
  %v309 = vld [vmem:[%s1 + $0x48] sm:$0xff]
  %v310 = vld [vmem:[%s1 + $0x50] sm:$0xff]
  %v311 = vld [vmem:[%s1 + $0x58] sm:$0xff]
  %v313 = vsel %vm29, %v306, 0
  %315 = vmatpush.xpose.msra.mxu0 0.0
  %316 = vmatpush.xpose.msra.mxu0 0.0
  %317 = vmatpush.xpose.msra.mxu0 0.0
  %318 = vmatpush.xpose.msra.mxu0 0.0
  %319 = vmatpush.xpose.msra.mxu0 0.0
  %320 = vmatpush.xpose.msra.mxu0 0.0
  %321 = vmatpush.xpose.msra.mxu0 0.0
  %322 = vmatpush.xpose.msra.mxu0 0.0
  %323 = vmatpush.xpose.msra.mxu0 0.0
  %324 = vmatpush.xpose.msra.mxu0 0.0
  %325 = vmatpush.xpose.msra.mxu0 0.0
  %326 = vmatpush.xpose.msra.mxu0 0.0
  %327 = vmatpush.xpose.msra.mxu0 0.0
  %328 = vmatpush.xpose.msra.mxu0 0.0
  %329 = vmatpush.xpose.msra.mxu0 0.0
  %330 = vmatpush.xpose.msra.mxu0 %v313
  %331 = vmatmul.f32.gmra.mxu0 %v31
  %v332 = vpop.f32.mrf.mxu0
  %v333 = vadd.f32 0.0, %v332
  %334 = vmatmul.f32.gmra.mxu0 %v34
  %v335 = vpop.f32.mrf.mxu0
  %v336 = vadd.f32 0.0, %v335
  %337 = vdwg.mxu0
  %v339 = vsel %vm29, %v307, 0
  %341 = vmatpush.xpose.msra.mxu0 0.0
  %342 = vmatpush.xpose.msra.mxu0 0.0
  %343 = vmatpush.xpose.msra.mxu0 0.0
  %344 = vmatpush.xpose.msra.mxu0 0.0
  %345 = vmatpush.xpose.msra.mxu0 0.0
  %346 = vmatpush.xpose.msra.mxu0 0.0
  %347 = vmatpush.xpose.msra.mxu0 0.0
  %348 = vmatpush.xpose.msra.mxu0 0.0
  %349 = vmatpush.xpose.msra.mxu0 0.0
  %350 = vmatpush.xpose.msra.mxu0 0.0
  %351 = vmatpush.xpose.msra.mxu0 0.0
  %352 = vmatpush.xpose.msra.mxu0 0.0
  %353 = vmatpush.xpose.msra.mxu0 0.0
  %354 = vmatpush.xpose.msra.mxu0 0.0
  %355 = vmatpush.xpose.msra.mxu0 0.0
  %356 = vmatpush.xpose.msra.mxu0 %v339
  %357 = vmatmul.f32.gmra.mxu0 %v31
  %v358 = vpop.f32.mrf.mxu0
  %v359 = vadd.f32 0.0, %v358
  %360 = vmatmul.f32.gmra.mxu0 %v34
  %v361 = vpop.f32.mrf.mxu0
  %v362 = vadd.f32 0.0, %v361
  %363 = vdwg.mxu0
  %v365 = vsel %vm29, %v308, 0
  %367 = vmatpush.xpose.msra.mxu0 0.0
  %368 = vmatpush.xpose.msra.mxu0 0.0
  %369 = vmatpush.xpose.msra.mxu0 0.0
  %370 = vmatpush.xpose.msra.mxu0 0.0
  %371 = vmatpush.xpose.msra.mxu0 0.0
  %372 = vmatpush.xpose.msra.mxu0 0.0
  %373 = vmatpush.xpose.msra.mxu0 0.0
  %374 = vmatpush.xpose.msra.mxu0 0.0
  %375 = vmatpush.xpose.msra.mxu0 0.0
  %376 = vmatpush.xpose.msra.mxu0 0.0
  %377 = vmatpush.xpose.msra.mxu0 0.0
  %378 = vmatpush.xpose.msra.mxu0 0.0
  %379 = vmatpush.xpose.msra.mxu0 0.0
  %380 = vmatpush.xpose.msra.mxu0 0.0
  %381 = vmatpush.xpose.msra.mxu0 0.0
  %382 = vmatpush.xpose.msra.mxu0 %v365
  %383 = vmatmul.f32.gmra.mxu0 %v31
  %v384 = vpop.f32.mrf.mxu0
  %v385 = vadd.f32 0.0, %v384
  %386 = vmatmul.f32.gmra.mxu0 %v34
  %v387 = vpop.f32.mrf.mxu0
  %v388 = vadd.f32 0.0, %v387
  %389 = vdwg.mxu0
  %v390 = vadd.f32 %v333, %v309
  %v391 = vadd.f32 %v359, %v310
  %v392 = vadd.f32 %v385, %v311
  %v394 = vsel %vm117, %v390, 0
  %v397 = vsel %vm117, %v391, 0
  %399 = vmatpush.xpose.msra.mxu0 0.0
  %400 = vmatpush.xpose.msra.mxu0 0.0
  %401 = vmatpush.xpose.msra.mxu0 0.0
  %402 = vmatpush.xpose.msra.mxu0 0.0
  %403 = vmatpush.xpose.msra.mxu0 0.0
  %404 = vmatpush.xpose.msra.mxu0 0.0
  %405 = vmatpush.xpose.msra.mxu0 0.0
  %406 = vmatpush.xpose.msra.mxu0 0.0
  %407 = vmatpush.xpose.msra.mxu0 0.0
  %408 = vmatpush.xpose.msra.mxu0 0.0
  %409 = vmatpush.xpose.msra.mxu0 0.0
  %410 = vmatpush.xpose.msra.mxu0 0.0
  %411 = vmatpush.xpose.msra.mxu0 0.0
  %412 = vmatpush.xpose.msra.mxu0 0.0
  %413 = vmatpush.xpose.msra.mxu0 0.0
  %414 = vmatpush.xpose.msra.mxu0 %v397
  %415 = vmatmul.f32.gmra.mxu0 %v394
  %v416 = vpop.f32.mrf.mxu0
  %v417 = vadd.f32 0.0, %v416
  %418 = vdwg.mxu0
  %v419 = vmul.f32 %v417, 0.35355338
  %v420 = vadd.f32 %v419, %v17
  %v421 = vsel %vm117, %v420, -inf
  %422 = vmax.xlane.f32.xlu0 %v421
  %v423 = vpop.xlane.xlu0 %422
  %v424 = vsub.f32 %v420, %v423
  %v425 = vmul.f32 %v424, 1.442695
  %v426 = vpow.pop %v425
  %v427 = vsel %vm117, %v426, 0.0
  %428 = vadd.xlane.f32.xlu0 %v427
  %v429 = vpop.xlane.xlu0 %428
  %v430 = vrcp.pop %v429
  %v431 = vmul.f32 %v429, %v430
  %v432 = vsub.f32 1.0, %v431
  %v433 = vmul.f32 %v430, %v432
  %v434 = vadd.f32 %v430, %v433
  %vm435 = vweird.f32 %v429
  %vm436 = vweird.f32 %v430
  %vm437 = vmor %vm435, %vm436
  %v438 = vsel %vm437, %v430, %v434
  %v439 = vand.u32 2147483647, %v429
  %vm440 = vcmp.eq.f32.partialorder %v439, 8.507059e+37
  %v441 = vand.u32 %v429, 2147483648
  %v442 = vor.u32 1.1754944e-38, %v441
  %v443 = vsel %vm440, %v442, %v438
  %v444 = vmul.f32 %v426, %v443
  %s445 = scalar_lea.vmem %s3, 8
  %446 = vst.msk [vmem:[%s445] sm:$0xff] %vm117, %v444
  %v448 = vsel %vm117, %v444, 0
  %450 = vmatpush.msra.mxu0 0.0
  %451 = vmatpush.msra.mxu0 0.0
  %452 = vmatpush.msra.mxu0 0.0
  %453 = vmatpush.msra.mxu0 0.0
  %454 = vmatpush.msra.mxu0 0.0
  %455 = vmatpush.msra.mxu0 0.0
  %456 = vmatpush.msra.mxu0 0.0
  %457 = vmatpush.msra.mxu0 0.0
  %458 = vmatpush.msra.mxu0 0.0
  %459 = vmatpush.msra.mxu0 0.0
  %460 = vmatpush.msra.mxu0 0.0
  %461 = vmatpush.msra.mxu0 0.0
  %462 = vmatpush.msra.mxu0 0.0
  %463 = vmatpush.msra.mxu0 0.0
  %464 = vmatpush.msra.mxu0 0.0
  %465 = vmatpush.msra.mxu0 %v392
  %466 = vmatmul.f32.gmra.mxu0 %v448
  %v467 = vpop.f32.mrf.mxu0
  %v468 = vadd.f32 0.0, %v467
  %469 = vdwg.mxu0
  %v470 = vadd.f32 %v336, %v309
  %v471 = vadd.f32 %v362, %v310
  %v472 = vadd.f32 %v388, %v311
  %v474 = vsel %vm117, %v470, 0
  %v477 = vsel %vm117, %v471, 0
  %479 = vmatpush.xpose.msra.mxu0 0.0
  %480 = vmatpush.xpose.msra.mxu0 0.0
  %481 = vmatpush.xpose.msra.mxu0 0.0
  %482 = vmatpush.xpose.msra.mxu0 0.0
  %483 = vmatpush.xpose.msra.mxu0 0.0
  %484 = vmatpush.xpose.msra.mxu0 0.0
  %485 = vmatpush.xpose.msra.mxu0 0.0
  %486 = vmatpush.xpose.msra.mxu0 0.0
  %487 = vmatpush.xpose.msra.mxu0 0.0
  %488 = vmatpush.xpose.msra.mxu0 0.0
  %489 = vmatpush.xpose.msra.mxu0 0.0
  %490 = vmatpush.xpose.msra.mxu0 0.0
  %491 = vmatpush.xpose.msra.mxu0 0.0
  %492 = vmatpush.xpose.msra.mxu0 0.0
  %493 = vmatpush.xpose.msra.mxu0 0.0
  %494 = vmatpush.xpose.msra.mxu0 %v477
  %495 = vmatmul.f32.gmra.mxu0 %v474
  %v496 = vpop.f32.mrf.mxu0
  %v497 = vadd.f32 0.0, %v496
  %498 = vdwg.mxu0
  %v499 = vmul.f32 %v497, 0.35355338
  %v500 = vadd.f32 %v499, %v18
  %v501 = vsel %vm117, %v500, -inf
  %502 = vmax.xlane.f32.xlu0 %v501
  %v503 = vpop.xlane.xlu0 %502
  %v504 = vsub.f32 %v500, %v503
  %v505 = vmul.f32 %v504, 1.442695
  %v506 = vpow.pop %v505
  %v507 = vsel %vm117, %v506, 0.0
  %508 = vadd.xlane.f32.xlu0 %v507
  %v509 = vpop.xlane.xlu0 %508
  %v510 = vrcp.pop %v509
  %v511 = vmul.f32 %v509, %v510
  %v512 = vsub.f32 1.0, %v511
  %v513 = vmul.f32 %v510, %v512
  %v514 = vadd.f32 %v510, %v513
  %vm515 = vweird.f32 %v509
  %vm516 = vweird.f32 %v510
  %vm517 = vmor %vm515, %vm516
  %v518 = vsel %vm517, %v510, %v514
  %v519 = vand.u32 2147483647, %v509
  %vm520 = vcmp.eq.f32.partialorder %v519, 8.507059e+37
  %v521 = vand.u32 %v509, 2147483648
  %v522 = vor.u32 1.1754944e-38, %v521
  %v523 = vsel %vm520, %v522, %v518
  %v524 = vmul.f32 %v506, %v523
  %s525 = scalar_lea.vmem %s3, 40
  %526 = vst.msk [vmem:[%s525] sm:$0xff] %vm117, %v524
  %v528 = vsel %vm117, %v524, 0
  %530 = vmatpush.msra.mxu0 0.0
  %531 = vmatpush.msra.mxu0 0.0
  %532 = vmatpush.msra.mxu0 0.0
  %533 = vmatpush.msra.mxu0 0.0
  %534 = vmatpush.msra.mxu0 0.0
  %535 = vmatpush.msra.mxu0 0.0
  %536 = vmatpush.msra.mxu0 0.0
  %537 = vmatpush.msra.mxu0 0.0
  %538 = vmatpush.msra.mxu0 0.0
  %539 = vmatpush.msra.mxu0 0.0
  %540 = vmatpush.msra.mxu0 0.0
  %541 = vmatpush.msra.mxu0 0.0
  %542 = vmatpush.msra.mxu0 0.0
  %543 = vmatpush.msra.mxu0 0.0
  %544 = vmatpush.msra.mxu0 0.0
  %545 = vmatpush.msra.mxu0 %v472
  %546 = vmatmul.f32.gmra.mxu0 %v528
  %v547 = vpop.f32.mrf.mxu0
  %v548 = vadd.f32 0.0, %v547
  %549 = vdwg.mxu0
  %v550 = vld [vmem:[%s1 + $0xc8] sm:$0xff]
  %v552 = vsel %vm117, %v468, 0
  %v555 = vsel %vm117, %v548, 0
  %557 = vmatpush.msra.mxu0 0.0
  %558 = vmatpush.msra.mxu0 0.0
  %559 = vmatpush.msra.mxu0 0.0
  %560 = vmatpush.msra.mxu0 0.0
  %561 = vmatpush.msra.mxu0 0.0
  %562 = vmatpush.msra.mxu0 0.0
  %563 = vmatpush.msra.mxu0 0.0
  %564 = vmatpush.msra.mxu0 0.0
  %565 = vmatpush.msra.mxu0 0.0
  %566 = vmatpush.msra.mxu0 0.0
  %567 = vmatpush.msra.mxu0 0.0
  %568 = vmatpush.msra.mxu0 0.0
  %569 = vmatpush.msra.mxu0 0.0
  %570 = vmatpush.msra.mxu0 0.0
  %571 = vmatpush.msra.mxu0 0.0
  %572 = vmatpush.msra.mxu0 %v550
  %573 = vmatmul.f32.gmra.mxu0 %v552
  %v574 = vpop.f32.mrf.mxu0
  %v575 = vadd.f32 0.0, %v574
  %576 = vmatmul.f32.gmra.mxu0 %v555
  %v577 = vpop.f32.mrf.mxu0
  %v578 = vadd.f32 0.0, %v577
  %579 = vdwg.mxu0
  %v580 = vadd.f32 %v304, %v575
  %v581 = vadd.f32 %v305, %v578
  %v582 = vld [vmem:[%s1 + $0x60] sm:$0xff]
  %v583 = vld [vmem:[%s1 + $0x68] sm:$0xff]
  %v584 = vld [vmem:[%s1 + $0x70] sm:$0xff]
  %v585 = vld [vmem:[%s1 + $0x78] sm:$0xff]
  %v586 = vld [vmem:[%s1 + $0x80] sm:$0xff]
  %v587 = vld [vmem:[%s1 + $0x88] sm:$0xff]
  %v589 = vsel %vm29, %v582, 0
  %591 = vmatpush.xpose.msra.mxu0 0.0
  %592 = vmatpush.xpose.msra.mxu0 0.0
  %593 = vmatpush.xpose.msra.mxu0 0.0
  %594 = vmatpush.xpose.msra.mxu0 0.0
  %595 = vmatpush.xpose.msra.mxu0 0.0
  %596 = vmatpush.xpose.msra.mxu0 0.0
  %597 = vmatpush.xpose.msra.mxu0 0.0
  %598 = vmatpush.xpose.msra.mxu0 0.0
  %599 = vmatpush.xpose.msra.mxu0 0.0
  %600 = vmatpush.xpose.msra.mxu0 0.0
  %601 = vmatpush.xpose.msra.mxu0 0.0
  %602 = vmatpush.xpose.msra.mxu0 0.0
  %603 = vmatpush.xpose.msra.mxu0 0.0
  %604 = vmatpush.xpose.msra.mxu0 0.0
  %605 = vmatpush.xpose.msra.mxu0 0.0
  %606 = vmatpush.xpose.msra.mxu0 %v589
  %607 = vmatmul.f32.gmra.mxu0 %v31
  %v608 = vpop.f32.mrf.mxu0
  %v609 = vadd.f32 0.0, %v608
  %610 = vmatmul.f32.gmra.mxu0 %v34
  %v611 = vpop.f32.mrf.mxu0
  %v612 = vadd.f32 0.0, %v611
  %613 = vdwg.mxu0
  %v615 = vsel %vm29, %v583, 0
  %617 = vmatpush.xpose.msra.mxu0 0.0
  %618 = vmatpush.xpose.msra.mxu0 0.0
  %619 = vmatpush.xpose.msra.mxu0 0.0
  %620 = vmatpush.xpose.msra.mxu0 0.0
  %621 = vmatpush.xpose.msra.mxu0 0.0
  %622 = vmatpush.xpose.msra.mxu0 0.0
  %623 = vmatpush.xpose.msra.mxu0 0.0
  %624 = vmatpush.xpose.msra.mxu0 0.0
  %625 = vmatpush.xpose.msra.mxu0 0.0
  %626 = vmatpush.xpose.msra.mxu0 0.0
  %627 = vmatpush.xpose.msra.mxu0 0.0
  %628 = vmatpush.xpose.msra.mxu0 0.0
  %629 = vmatpush.xpose.msra.mxu0 0.0
  %630 = vmatpush.xpose.msra.mxu0 0.0
  %631 = vmatpush.xpose.msra.mxu0 0.0
  %632 = vmatpush.xpose.msra.mxu0 %v615
  %633 = vmatmul.f32.gmra.mxu0 %v31
  %v634 = vpop.f32.mrf.mxu0
  %v635 = vadd.f32 0.0, %v634
  %636 = vmatmul.f32.gmra.mxu0 %v34
  %v637 = vpop.f32.mrf.mxu0
  %v638 = vadd.f32 0.0, %v637
  %639 = vdwg.mxu0
  %v641 = vsel %vm29, %v584, 0
  %643 = vmatpush.xpose.msra.mxu0 0.0
  %644 = vmatpush.xpose.msra.mxu0 0.0
  %645 = vmatpush.xpose.msra.mxu0 0.0
  %646 = vmatpush.xpose.msra.mxu0 0.0
  %647 = vmatpush.xpose.msra.mxu0 0.0
  %648 = vmatpush.xpose.msra.mxu0 0.0
  %649 = vmatpush.xpose.msra.mxu0 0.0
  %650 = vmatpush.xpose.msra.mxu0 0.0
  %651 = vmatpush.xpose.msra.mxu0 0.0
  %652 = vmatpush.xpose.msra.mxu0 0.0
  %653 = vmatpush.xpose.msra.mxu0 0.0
  %654 = vmatpush.xpose.msra.mxu0 0.0
  %655 = vmatpush.xpose.msra.mxu0 0.0
  %656 = vmatpush.xpose.msra.mxu0 0.0
  %657 = vmatpush.xpose.msra.mxu0 0.0
  %658 = vmatpush.xpose.msra.mxu0 %v641
  %659 = vmatmul.f32.gmra.mxu0 %v31
  %v660 = vpop.f32.mrf.mxu0
  %v661 = vadd.f32 0.0, %v660
  %662 = vmatmul.f32.gmra.mxu0 %v34
  %v663 = vpop.f32.mrf.mxu0
  %v664 = vadd.f32 0.0, %v663
  %665 = vdwg.mxu0
  %v666 = vadd.f32 %v609, %v585
  %v667 = vadd.f32 %v635, %v586
  %v668 = vadd.f32 %v661, %v587
  %v670 = vsel %vm117, %v666, 0
  %v673 = vsel %vm117, %v667, 0
  %675 = vmatpush.xpose.msra.mxu0 0.0
  %676 = vmatpush.xpose.msra.mxu0 0.0
  %677 = vmatpush.xpose.msra.mxu0 0.0
  %678 = vmatpush.xpose.msra.mxu0 0.0
  %679 = vmatpush.xpose.msra.mxu0 0.0
  %680 = vmatpush.xpose.msra.mxu0 0.0
  %681 = vmatpush.xpose.msra.mxu0 0.0
  %682 = vmatpush.xpose.msra.mxu0 0.0
  %683 = vmatpush.xpose.msra.mxu0 0.0
  %684 = vmatpush.xpose.msra.mxu0 0.0
  %685 = vmatpush.xpose.msra.mxu0 0.0
  %686 = vmatpush.xpose.msra.mxu0 0.0
  %687 = vmatpush.xpose.msra.mxu0 0.0
  %688 = vmatpush.xpose.msra.mxu0 0.0
  %689 = vmatpush.xpose.msra.mxu0 0.0
  %690 = vmatpush.xpose.msra.mxu0 %v673
  %691 = vmatmul.f32.gmra.mxu0 %v670
  %v692 = vpop.f32.mrf.mxu0
  %v693 = vadd.f32 0.0, %v692
  %694 = vdwg.mxu0
  %v695 = vmul.f32 %v693, 0.35355338
  %v696 = vadd.f32 %v695, %v17
  %v697 = vsel %vm117, %v696, -inf
  %698 = vmax.xlane.f32.xlu0 %v697
  %v699 = vpop.xlane.xlu0 %698
  %v700 = vsub.f32 %v696, %v699
  %v701 = vmul.f32 %v700, 1.442695
  %v702 = vpow.pop %v701
  %v703 = vsel %vm117, %v702, 0.0
  %704 = vadd.xlane.f32.xlu0 %v703
  %v705 = vpop.xlane.xlu0 %704
  %v706 = vrcp.pop %v705
  %v707 = vmul.f32 %v705, %v706
  %v708 = vsub.f32 1.0, %v707
  %v709 = vmul.f32 %v706, %v708
  %v710 = vadd.f32 %v706, %v709
  %vm711 = vweird.f32 %v705
  %vm712 = vweird.f32 %v706
  %vm713 = vmor %vm711, %vm712
  %v714 = vsel %vm713, %v706, %v710
  %v715 = vand.u32 2147483647, %v705
  %vm716 = vcmp.eq.f32.partialorder %v715, 8.507059e+37
  %v717 = vand.u32 %v705, 2147483648
  %v718 = vor.u32 1.1754944e-38, %v717
  %v719 = vsel %vm716, %v718, %v714
  %v720 = vmul.f32 %v702, %v719
  %s721 = scalar_lea.vmem %s3, 16
  %722 = vst.msk [vmem:[%s721] sm:$0xff] %vm117, %v720
  %v724 = vsel %vm117, %v720, 0
  %726 = vmatpush.msra.mxu0 0.0
  %727 = vmatpush.msra.mxu0 0.0
  %728 = vmatpush.msra.mxu0 0.0
  %729 = vmatpush.msra.mxu0 0.0
  %730 = vmatpush.msra.mxu0 0.0
  %731 = vmatpush.msra.mxu0 0.0
  %732 = vmatpush.msra.mxu0 0.0
  %733 = vmatpush.msra.mxu0 0.0
  %734 = vmatpush.msra.mxu0 0.0
  %735 = vmatpush.msra.mxu0 0.0
  %736 = vmatpush.msra.mxu0 0.0
  %737 = vmatpush.msra.mxu0 0.0
  %738 = vmatpush.msra.mxu0 0.0
  %739 = vmatpush.msra.mxu0 0.0
  %740 = vmatpush.msra.mxu0 0.0
  %741 = vmatpush.msra.mxu0 %v668
  %742 = vmatmul.f32.gmra.mxu0 %v724
  %v743 = vpop.f32.mrf.mxu0
  %v744 = vadd.f32 0.0, %v743
  %745 = vdwg.mxu0
  %v746 = vadd.f32 %v612, %v585
  %v747 = vadd.f32 %v638, %v586
  %v748 = vadd.f32 %v664, %v587
  %v750 = vsel %vm117, %v746, 0
  %v753 = vsel %vm117, %v747, 0
  %755 = vmatpush.xpose.msra.mxu0 0.0
  %756 = vmatpush.xpose.msra.mxu0 0.0
  %757 = vmatpush.xpose.msra.mxu0 0.0
  %758 = vmatpush.xpose.msra.mxu0 0.0
  %759 = vmatpush.xpose.msra.mxu0 0.0
  %760 = vmatpush.xpose.msra.mxu0 0.0
  %761 = vmatpush.xpose.msra.mxu0 0.0
  %762 = vmatpush.xpose.msra.mxu0 0.0
  %763 = vmatpush.xpose.msra.mxu0 0.0
  %764 = vmatpush.xpose.msra.mxu0 0.0
  %765 = vmatpush.xpose.msra.mxu0 0.0
  %766 = vmatpush.xpose.msra.mxu0 0.0
  %767 = vmatpush.xpose.msra.mxu0 0.0
  %768 = vmatpush.xpose.msra.mxu0 0.0
  %769 = vmatpush.xpose.msra.mxu0 0.0
  %770 = vmatpush.xpose.msra.mxu0 %v753
  %771 = vmatmul.f32.gmra.mxu0 %v750
  %v772 = vpop.f32.mrf.mxu0
  %v773 = vadd.f32 0.0, %v772
  %774 = vdwg.mxu0
  %v775 = vmul.f32 %v773, 0.35355338
  %v776 = vadd.f32 %v775, %v18
  %v777 = vsel %vm117, %v776, -inf
  %778 = vmax.xlane.f32.xlu0 %v777
  %v779 = vpop.xlane.xlu0 %778
  %v780 = vsub.f32 %v776, %v779
  %v781 = vmul.f32 %v780, 1.442695
  %v782 = vpow.pop %v781
  %v783 = vsel %vm117, %v782, 0.0
  %784 = vadd.xlane.f32.xlu0 %v783
  %v785 = vpop.xlane.xlu0 %784
  %v786 = vrcp.pop %v785
  %v787 = vmul.f32 %v785, %v786
  %v788 = vsub.f32 1.0, %v787
  %v789 = vmul.f32 %v786, %v788
  %v790 = vadd.f32 %v786, %v789
  %vm791 = vweird.f32 %v785
  %vm792 = vweird.f32 %v786
  %vm793 = vmor %vm791, %vm792
  %v794 = vsel %vm793, %v786, %v790
  %v795 = vand.u32 2147483647, %v785
  %vm796 = vcmp.eq.f32.partialorder %v795, 8.507059e+37
  %v797 = vand.u32 %v785, 2147483648
  %v798 = vor.u32 1.1754944e-38, %v797
  %v799 = vsel %vm796, %v798, %v794
  %v800 = vmul.f32 %v782, %v799
  %s801 = scalar_lea.vmem %s3, 48
  %802 = vst.msk [vmem:[%s801] sm:$0xff] %vm117, %v800
  %v804 = vsel %vm117, %v800, 0
  %806 = vmatpush.msra.mxu0 0.0
  %807 = vmatpush.msra.mxu0 0.0
  %808 = vmatpush.msra.mxu0 0.0
  %809 = vmatpush.msra.mxu0 0.0
  %810 = vmatpush.msra.mxu0 0.0
  %811 = vmatpush.msra.mxu0 0.0
  %812 = vmatpush.msra.mxu0 0.0
  %813 = vmatpush.msra.mxu0 0.0
  %814 = vmatpush.msra.mxu0 0.0
  %815 = vmatpush.msra.mxu0 0.0
  %816 = vmatpush.msra.mxu0 0.0
  %817 = vmatpush.msra.mxu0 0.0
  %818 = vmatpush.msra.mxu0 0.0
  %819 = vmatpush.msra.mxu0 0.0
  %820 = vmatpush.msra.mxu0 0.0
  %821 = vmatpush.msra.mxu0 %v748
  %822 = vmatmul.f32.gmra.mxu0 %v804
  %v823 = vpop.f32.mrf.mxu0
  %v824 = vadd.f32 0.0, %v823
  %825 = vdwg.mxu0
  %v826 = vld [vmem:[%s1 + $0xd0] sm:$0xff]
  %v828 = vsel %vm117, %v744, 0
  %v831 = vsel %vm117, %v824, 0
  %833 = vmatpush.msra.mxu0 0.0
  %834 = vmatpush.msra.mxu0 0.0
  %835 = vmatpush.msra.mxu0 0.0
  %836 = vmatpush.msra.mxu0 0.0
  %837 = vmatpush.msra.mxu0 0.0
  %838 = vmatpush.msra.mxu0 0.0
  %839 = vmatpush.msra.mxu0 0.0
  %840 = vmatpush.msra.mxu0 0.0
  %841 = vmatpush.msra.mxu0 0.0
  %842 = vmatpush.msra.mxu0 0.0
  %843 = vmatpush.msra.mxu0 0.0
  %844 = vmatpush.msra.mxu0 0.0
  %845 = vmatpush.msra.mxu0 0.0
  %846 = vmatpush.msra.mxu0 0.0
  %847 = vmatpush.msra.mxu0 0.0
  %848 = vmatpush.msra.mxu0 %v826
  %849 = vmatmul.f32.gmra.mxu0 %v828
  %v850 = vpop.f32.mrf.mxu0
  %v851 = vadd.f32 0.0, %v850
  %852 = vmatmul.f32.gmra.mxu0 %v831
  %v853 = vpop.f32.mrf.mxu0
  %v854 = vadd.f32 0.0, %v853
  %855 = vdwg.mxu0
  %v856 = vadd.f32 %v580, %v851
  %v857 = vadd.f32 %v581, %v854
  %v858 = vld [vmem:[%s1 + $0x90] sm:$0xff]
  %v859 = vld [vmem:[%s1 + $0x98] sm:$0xff]
  %v860 = vld [vmem:[%s1 + $0xa0] sm:$0xff]
  %v861 = vld [vmem:[%s1 + $0xa8] sm:$0xff]
  %v862 = vld [vmem:[%s1 + $0xb0] sm:$0xff]
  %v863 = vld [vmem:[%s1 + $0xb8] sm:$0xff]
  %v865 = vsel %vm29, %v858, 0
  %867 = vmatpush.xpose.msra.mxu0 0.0
  %868 = vmatpush.xpose.msra.mxu0 0.0
  %869 = vmatpush.xpose.msra.mxu0 0.0
  %870 = vmatpush.xpose.msra.mxu0 0.0
  %871 = vmatpush.xpose.msra.mxu0 0.0
  %872 = vmatpush.xpose.msra.mxu0 0.0
  %873 = vmatpush.xpose.msra.mxu0 0.0
  %874 = vmatpush.xpose.msra.mxu0 0.0
  %875 = vmatpush.xpose.msra.mxu0 0.0
  %876 = vmatpush.xpose.msra.mxu0 0.0
  %877 = vmatpush.xpose.msra.mxu0 0.0
  %878 = vmatpush.xpose.msra.mxu0 0.0
  %879 = vmatpush.xpose.msra.mxu0 0.0
  %880 = vmatpush.xpose.msra.mxu0 0.0
  %881 = vmatpush.xpose.msra.mxu0 0.0
  %882 = vmatpush.xpose.msra.mxu0 %v865
  %883 = vmatmul.f32.gmra.mxu0 %v31
  %v884 = vpop.f32.mrf.mxu0
  %v885 = vadd.f32 0.0, %v884
  %886 = vmatmul.f32.gmra.mxu0 %v34
  %v887 = vpop.f32.mrf.mxu0
  %v888 = vadd.f32 0.0, %v887
  %889 = vdwg.mxu0
  %v891 = vsel %vm29, %v859, 0
  %893 = vmatpush.xpose.msra.mxu0 0.0
  %894 = vmatpush.xpose.msra.mxu0 0.0
  %895 = vmatpush.xpose.msra.mxu0 0.0
  %896 = vmatpush.xpose.msra.mxu0 0.0
  %897 = vmatpush.xpose.msra.mxu0 0.0
  %898 = vmatpush.xpose.msra.mxu0 0.0
  %899 = vmatpush.xpose.msra.mxu0 0.0
  %900 = vmatpush.xpose.msra.mxu0 0.0
  %901 = vmatpush.xpose.msra.mxu0 0.0
  %902 = vmatpush.xpose.msra.mxu0 0.0
  %903 = vmatpush.xpose.msra.mxu0 0.0
  %904 = vmatpush.xpose.msra.mxu0 0.0
  %905 = vmatpush.xpose.msra.mxu0 0.0
  %906 = vmatpush.xpose.msra.mxu0 0.0
  %907 = vmatpush.xpose.msra.mxu0 0.0
  %908 = vmatpush.xpose.msra.mxu0 %v891
  %909 = vmatmul.f32.gmra.mxu0 %v31
  %v910 = vpop.f32.mrf.mxu0
  %v911 = vadd.f32 0.0, %v910
  %912 = vmatmul.f32.gmra.mxu0 %v34
  %v913 = vpop.f32.mrf.mxu0
  %v914 = vadd.f32 0.0, %v913
  %915 = vdwg.mxu0
  %v917 = vsel %vm29, %v860, 0
  %919 = vmatpush.xpose.msra.mxu0 0.0
  %920 = vmatpush.xpose.msra.mxu0 0.0
  %921 = vmatpush.xpose.msra.mxu0 0.0
  %922 = vmatpush.xpose.msra.mxu0 0.0
  %923 = vmatpush.xpose.msra.mxu0 0.0
  %924 = vmatpush.xpose.msra.mxu0 0.0
  %925 = vmatpush.xpose.msra.mxu0 0.0
  %926 = vmatpush.xpose.msra.mxu0 0.0
  %927 = vmatpush.xpose.msra.mxu0 0.0
  %928 = vmatpush.xpose.msra.mxu0 0.0
  %929 = vmatpush.xpose.msra.mxu0 0.0
  %930 = vmatpush.xpose.msra.mxu0 0.0
  %931 = vmatpush.xpose.msra.mxu0 0.0
  %932 = vmatpush.xpose.msra.mxu0 0.0
  %933 = vmatpush.xpose.msra.mxu0 0.0
  %934 = vmatpush.xpose.msra.mxu0 %v917
  %935 = vmatmul.f32.gmra.mxu0 %v31
  %v936 = vpop.f32.mrf.mxu0
  %v937 = vadd.f32 0.0, %v936
  %938 = vmatmul.f32.gmra.mxu0 %v34
  %v939 = vpop.f32.mrf.mxu0
  %v940 = vadd.f32 0.0, %v939
  %941 = vdwg.mxu0
  %v942 = vadd.f32 %v885, %v861
  %v943 = vadd.f32 %v911, %v862
  %v944 = vadd.f32 %v937, %v863
  %v946 = vsel %vm117, %v942, 0
  %v949 = vsel %vm117, %v943, 0
  %951 = vmatpush.xpose.msra.mxu0 0.0
  %952 = vmatpush.xpose.msra.mxu0 0.0
  %953 = vmatpush.xpose.msra.mxu0 0.0
  %954 = vmatpush.xpose.msra.mxu0 0.0
  %955 = vmatpush.xpose.msra.mxu0 0.0
  %956 = vmatpush.xpose.msra.mxu0 0.0
  %957 = vmatpush.xpose.msra.mxu0 0.0
  %958 = vmatpush.xpose.msra.mxu0 0.0
  %959 = vmatpush.xpose.msra.mxu0 0.0
  %960 = vmatpush.xpose.msra.mxu0 0.0
  %961 = vmatpush.xpose.msra.mxu0 0.0
  %962 = vmatpush.xpose.msra.mxu0 0.0
  %963 = vmatpush.xpose.msra.mxu0 0.0
  %964 = vmatpush.xpose.msra.mxu0 0.0
  %965 = vmatpush.xpose.msra.mxu0 0.0
  %966 = vmatpush.xpose.msra.mxu0 %v949
  %967 = vmatmul.f32.gmra.mxu0 %v946
  %v968 = vpop.f32.mrf.mxu0
  %v969 = vadd.f32 0.0, %v968
  %970 = vdwg.mxu0
  %v971 = vmul.f32 %v969, 0.35355338
  %v972 = vadd.f32 %v971, %v17
  %v973 = vsel %vm117, %v972, -inf
  %974 = vmax.xlane.f32.xlu0 %v973
  %v975 = vpop.xlane.xlu0 %974
  %v976 = vsub.f32 %v972, %v975
  %v977 = vmul.f32 %v976, 1.442695
  %v978 = vpow.pop %v977
  %v979 = vsel %vm117, %v978, 0.0
  %980 = vadd.xlane.f32.xlu0 %v979
  %v981 = vpop.xlane.xlu0 %980
  %v982 = vrcp.pop %v981
  %v983 = vmul.f32 %v981, %v982
  %v984 = vsub.f32 1.0, %v983
  %v985 = vmul.f32 %v982, %v984
  %v986 = vadd.f32 %v982, %v985
  %vm987 = vweird.f32 %v981
  %vm988 = vweird.f32 %v982
  %vm989 = vmor %vm987, %vm988
  %v990 = vsel %vm989, %v982, %v986
  %v991 = vand.u32 2147483647, %v981
  %vm992 = vcmp.eq.f32.partialorder %v991, 8.507059e+37
  %v993 = vand.u32 %v981, 2147483648
  %v994 = vor.u32 1.1754944e-38, %v993
  %v995 = vsel %vm992, %v994, %v990
  %v996 = vmul.f32 %v978, %v995
  %s997 = scalar_lea.vmem %s3, 24
  %998 = vst.msk [vmem:[%s997] sm:$0xff] %vm117, %v996
  %v1000 = vsel %vm117, %v996, 0
  %1002 = vmatpush.msra.mxu0 0.0
  %1003 = vmatpush.msra.mxu0 0.0
  %1004 = vmatpush.msra.mxu0 0.0
  %1005 = vmatpush.msra.mxu0 0.0
  %1006 = vmatpush.msra.mxu0 0.0
  %1007 = vmatpush.msra.mxu0 0.0
  %1008 = vmatpush.msra.mxu0 0.0
  %1009 = vmatpush.msra.mxu0 0.0
  %1010 = vmatpush.msra.mxu0 0.0
  %1011 = vmatpush.msra.mxu0 0.0
  %1012 = vmatpush.msra.mxu0 0.0
  %1013 = vmatpush.msra.mxu0 0.0
  %1014 = vmatpush.msra.mxu0 0.0
  %1015 = vmatpush.msra.mxu0 0.0
  %1016 = vmatpush.msra.mxu0 0.0
  %1017 = vmatpush.msra.mxu0 %v944
  %1018 = vmatmul.f32.gmra.mxu0 %v1000
  %v1019 = vpop.f32.mrf.mxu0
  %v1020 = vadd.f32 0.0, %v1019
  %1021 = vdwg.mxu0
  %v1022 = vadd.f32 %v888, %v861
  %v1023 = vadd.f32 %v914, %v862
  %v1024 = vadd.f32 %v940, %v863
  %v1026 = vsel %vm117, %v1022, 0
  %v1029 = vsel %vm117, %v1023, 0
  %1031 = vmatpush.xpose.msra.mxu0 0.0
  %1032 = vmatpush.xpose.msra.mxu0 0.0
  %1033 = vmatpush.xpose.msra.mxu0 0.0
  %1034 = vmatpush.xpose.msra.mxu0 0.0
  %1035 = vmatpush.xpose.msra.mxu0 0.0
  %1036 = vmatpush.xpose.msra.mxu0 0.0
  %1037 = vmatpush.xpose.msra.mxu0 0.0
  %1038 = vmatpush.xpose.msra.mxu0 0.0
  %1039 = vmatpush.xpose.msra.mxu0 0.0
  %1040 = vmatpush.xpose.msra.mxu0 0.0
  %1041 = vmatpush.xpose.msra.mxu0 0.0
  %1042 = vmatpush.xpose.msra.mxu0 0.0
  %1043 = vmatpush.xpose.msra.mxu0 0.0
  %1044 = vmatpush.xpose.msra.mxu0 0.0
  %1045 = vmatpush.xpose.msra.mxu0 0.0
  %1046 = vmatpush.xpose.msra.mxu0 %v1029
  %1047 = vmatmul.f32.gmra.mxu0 %v1026
  %v1048 = vpop.f32.mrf.mxu0
  %v1049 = vadd.f32 0.0, %v1048
  %1050 = vdwg.mxu0
  %v1051 = vmul.f32 %v1049, 0.35355338
  %v1052 = vadd.f32 %v1051, %v18
  %v1053 = vsel %vm117, %v1052, -inf
  %1054 = vmax.xlane.f32.xlu0 %v1053
  %v1055 = vpop.xlane.xlu0 %1054
  %v1056 = vsub.f32 %v1052, %v1055
  %v1057 = vmul.f32 %v1056, 1.442695
  %v1058 = vpow.pop %v1057
  %v1059 = vsel %vm117, %v1058, 0.0
  %1060 = vadd.xlane.f32.xlu0 %v1059
  %v1061 = vpop.xlane.xlu0 %1060
  %v1062 = vrcp.pop %v1061
  %v1063 = vmul.f32 %v1061, %v1062
  %v1064 = vsub.f32 1.0, %v1063
  %v1065 = vmul.f32 %v1062, %v1064
  %v1066 = vadd.f32 %v1062, %v1065
  %vm1067 = vweird.f32 %v1061
  %vm1068 = vweird.f32 %v1062
  %vm1069 = vmor %vm1067, %vm1068
  %v1070 = vsel %vm1069, %v1062, %v1066
  %v1071 = vand.u32 2147483647, %v1061
  %vm1072 = vcmp.eq.f32.partialorder %v1071, 8.507059e+37
  %v1073 = vand.u32 %v1061, 2147483648
  %v1074 = vor.u32 1.1754944e-38, %v1073
  %v1075 = vsel %vm1072, %v1074, %v1070
  %v1076 = vmul.f32 %v1058, %v1075
  %s1077 = scalar_lea.vmem %s3, 56
  %1078 = vst.msk [vmem:[%s1077] sm:$0xff] %vm117, %v1076
  %v1080 = vsel %vm117, %v1076, 0
  %1082 = vmatpush.msra.mxu0 0.0
  %1083 = vmatpush.msra.mxu0 0.0
  %1084 = vmatpush.msra.mxu0 0.0
  %1085 = vmatpush.msra.mxu0 0.0
  %1086 = vmatpush.msra.mxu0 0.0
  %1087 = vmatpush.msra.mxu0 0.0
  %1088 = vmatpush.msra.mxu0 0.0
  %1089 = vmatpush.msra.mxu0 0.0
  %1090 = vmatpush.msra.mxu0 0.0
  %1091 = vmatpush.msra.mxu0 0.0
  %1092 = vmatpush.msra.mxu0 0.0
  %1093 = vmatpush.msra.mxu0 0.0
  %1094 = vmatpush.msra.mxu0 0.0
  %1095 = vmatpush.msra.mxu0 0.0
  %1096 = vmatpush.msra.mxu0 0.0
  %1097 = vmatpush.msra.mxu0 %v1024
  %1098 = vmatmul.f32.gmra.mxu0 %v1080
  %v1099 = vpop.f32.mrf.mxu0
  %v1100 = vadd.f32 0.0, %v1099
  %1101 = vdwg.mxu0
  %v1102 = vld [vmem:[%s1 + $0xd8] sm:$0xff]
  %v1104 = vsel %vm117, %v1020, 0
  %v1107 = vsel %vm117, %v1100, 0
  %1109 = vmatpush.msra.mxu0 0.0
  %1110 = vmatpush.msra.mxu0 0.0
  %1111 = vmatpush.msra.mxu0 0.0
  %1112 = vmatpush.msra.mxu0 0.0
  %1113 = vmatpush.msra.mxu0 0.0
  %1114 = vmatpush.msra.mxu0 0.0
  %1115 = vmatpush.msra.mxu0 0.0
  %1116 = vmatpush.msra.mxu0 0.0
  %1117 = vmatpush.msra.mxu0 0.0
  %1118 = vmatpush.msra.mxu0 0.0
  %1119 = vmatpush.msra.mxu0 0.0
  %1120 = vmatpush.msra.mxu0 0.0
  %1121 = vmatpush.msra.mxu0 0.0
  %1122 = vmatpush.msra.mxu0 0.0
  %1123 = vmatpush.msra.mxu0 0.0
  %1124 = vmatpush.msra.mxu0 %v1102
  %1125 = vmatmul.f32.gmra.mxu0 %v1104
  %v1126 = vpop.f32.mrf.mxu0
  %v1127 = vadd.f32 0.0, %v1126
  %1128 = vmatmul.f32.gmra.mxu0 %v1107
  %v1129 = vpop.f32.mrf.mxu0
  %v1130 = vadd.f32 0.0, %v1129
  %1131 = vdwg.mxu0
  %v1132 = vadd.f32 %v856, %v1127
  %v1133 = vadd.f32 %v857, %v1130
  %v1134 = vld [vmem:[%s1 + $0xf0] sm:$0xff]
  %v1135 = vld [vmem:[%s1 + $0xf8] sm:$0xff]
  %v1136 = vld [vmem:[%s1 + $0x100] sm:$0xff]
  %v1137 = vld [vmem:[%s1 + $0x108] sm:$0xff]
  %v1138 = vadd.f32 %v1132, %v13
  %v1139 = vadd.f32 %v1133, %v14
  %v1140 = vsel %vm29, %v1138, 0.0
  %1141 = vadd.xlane.f32.xlu0 %v1140
  %v1142 = vpop.xlane.xlu0 %1141
  %v1143 = vsel %vm29, %v1139, 0.0
  %1144 = vadd.xlane.f32.xlu0 %v1143
  %v1145 = vpop.xlane.xlu0 %1144
  %v1146 = vrcp.pop 32.0
  %v1147 = vmul.f32 32.0, %v1146
  %v1148 = vsub.f32 1.0, %v1147
  %v1149 = vmul.f32 %v1146, %v1148
  %v1150 = vadd.f32 %v1146, %v1149
  %vm1151 = vweird.f32 %v1146
  %v1152 = vsel %vm1151, %v1146, %v1150
  %v1153 = vmul.f32 %v1142, %v1152
  %v1154 = vmul.f32 %v1145, %v1152
  %v1155 = vsub.f32 %v1138, %v1153
  %v1156 = vsub.f32 %v1139, %v1154
  %v1157 = vmul.f32 %v1155, %v1155
  %v1158 = vmul.f32 %v1156, %v1156
  %v1159 = vsel %vm29, %v1157, 0.0
  %1160 = vadd.xlane.f32.xlu0 %v1159
  %v1161 = vpop.xlane.xlu0 %1160
  %v1162 = vsel %vm29, %v1158, 0.0
  %1163 = vadd.xlane.f32.xlu0 %v1162
  %v1164 = vpop.xlane.xlu0 %1163
  %v1165 = vmul.f32 %v1161, %v1152
  %v1166 = vmul.f32 %v1164, %v1152
  %v1167 = vmul.f32 %v1134, %v1155
  %v1168 = vmul.f32 %v1135, %v1156
  %v1169 = vadd.f32 %v1165, 1e-05
  %v1170 = vadd.f32 %v1166, 1e-05
  %v1171 = vrsqrt.pop %v1169
  %v1172 = vmul.f32 %v1171, %v1169
  %v1173 = vmul.f32 %v1172, %v1171
  %v1174 = vmul.f32 0.5, %v1173
  %v1175 = vsub.f32 1.5, %v1174
  %v1176 = vmul.f32 %v1171, %v1175
  %vm1177 = vweird.f32 %v1169
  %vm1178 = vweird.f32 %v1171
  %vm1179 = vmor %vm1177, %vm1178
  %v1180 = vsel %vm1179, %v1171, %v1176
  %v1181 = vrsqrt.pop %v1170
  %v1182 = vmul.f32 %v1181, %v1170
  %v1183 = vmul.f32 %v1182, %v1181
  %v1184 = vmul.f32 0.5, %v1183
  %v1185 = vsub.f32 1.5, %v1184
  %v1186 = vmul.f32 %v1181, %v1185
  %vm1187 = vweird.f32 %v1170
  %vm1188 = vweird.f32 %v1181
  %vm1189 = vmor %vm1187, %vm1188
  %v1190 = vsel %vm1189, %v1181, %v1186
  %v1191 = vmul.f32 %v1167, %v1180
  %v1192 = vmul.f32 %v1168, %v1190
  %v1193 = vadd.f32 %v1191, %v1136
  %v1194 = vadd.f32 %v1192, %v1137
  %v1195 = vld [vmem:[%s1 + $0x1f0] sm:$0xff]
  %v1196 = vld [vmem:[%s1 + $0x1f8] sm:$0xff]
  %v1197 = vld [vmem:[%s1 + $0x110] sm:$0xff]
  %v1198 = vld [vmem:[%s1 + $0x118] sm:$0xff]
  %v1199 = vld [vmem:[%s1 + $0x120] sm:$0xff]
  %v1200 = vld [vmem:[%s1 + $0x128] sm:$0xff]
  %v1201 = vld [vmem:[%s1 + $0x130] sm:$0xff]
  %v1202 = vld [vmem:[%s1 + $0x138] sm:$0xff]
  %v1204 = vsel %vm29, %v1193, 0
  %v1207 = vsel %vm29, %v1194, 0
  %v1210 = vsel %vm29, %v1197, 0
  %1212 = vmatpush.xpose.msra.mxu0 0.0
  %1213 = vmatpush.xpose.msra.mxu0 0.0
  %1214 = vmatpush.xpose.msra.mxu0 0.0
  %1215 = vmatpush.xpose.msra.mxu0 0.0
  %1216 = vmatpush.xpose.msra.mxu0 0.0
  %1217 = vmatpush.xpose.msra.mxu0 0.0
  %1218 = vmatpush.xpose.msra.mxu0 0.0
  %1219 = vmatpush.xpose.msra.mxu0 0.0
  %1220 = vmatpush.xpose.msra.mxu0 0.0
  %1221 = vmatpush.xpose.msra.mxu0 0.0
  %1222 = vmatpush.xpose.msra.mxu0 0.0
  %1223 = vmatpush.xpose.msra.mxu0 0.0
  %1224 = vmatpush.xpose.msra.mxu0 0.0
  %1225 = vmatpush.xpose.msra.mxu0 0.0
  %1226 = vmatpush.xpose.msra.mxu0 0.0
  %1227 = vmatpush.xpose.msra.mxu0 %v1210
  %1228 = vmatmul.f32.gmra.mxu0 %v1204
  %v1229 = vpop.f32.mrf.mxu0
  %v1230 = vadd.f32 0.0, %v1229
  %1231 = vmatmul.f32.gmra.mxu0 %v1207
  %v1232 = vpop.f32.mrf.mxu0
  %v1233 = vadd.f32 0.0, %v1232
  %1234 = vdwg.mxu0
  %v1236 = vsel %vm29, %v15, 0
  %v1239 = vsel %vm29, %v16, 0
  %v1242 = vsel %vm29, %v1198, 0
  %1244 = vmatpush.xpose.msra.mxu0 0.0
  %1245 = vmatpush.xpose.msra.mxu0 0.0
  %1246 = vmatpush.xpose.msra.mxu0 0.0
  %1247 = vmatpush.xpose.msra.mxu0 0.0
  %1248 = vmatpush.xpose.msra.mxu0 0.0
  %1249 = vmatpush.xpose.msra.mxu0 0.0
  %1250 = vmatpush.xpose.msra.mxu0 0.0
  %1251 = vmatpush.xpose.msra.mxu0 0.0
  %1252 = vmatpush.xpose.msra.mxu0 0.0
  %1253 = vmatpush.xpose.msra.mxu0 0.0
  %1254 = vmatpush.xpose.msra.mxu0 0.0
  %1255 = vmatpush.xpose.msra.mxu0 0.0
  %1256 = vmatpush.xpose.msra.mxu0 0.0
  %1257 = vmatpush.xpose.msra.mxu0 0.0
  %1258 = vmatpush.xpose.msra.mxu0 0.0
  %1259 = vmatpush.xpose.msra.mxu0 %v1242
  %1260 = vmatmul.f32.gmra.mxu0 %v1236
  %v1261 = vpop.f32.mrf.mxu0
  %v1262 = vadd.f32 0.0, %v1261
  %1263 = vmatmul.f32.gmra.mxu0 %v1239
  %v1264 = vpop.f32.mrf.mxu0
  %v1265 = vadd.f32 0.0, %v1264
  %1266 = vdwg.mxu0
  %v1268 = vsel %vm29, %v1199, 0
  %1270 = vmatpush.xpose.msra.mxu0 0.0
  %1271 = vmatpush.xpose.msra.mxu0 0.0
  %1272 = vmatpush.xpose.msra.mxu0 0.0
  %1273 = vmatpush.xpose.msra.mxu0 0.0
  %1274 = vmatpush.xpose.msra.mxu0 0.0
  %1275 = vmatpush.xpose.msra.mxu0 0.0
  %1276 = vmatpush.xpose.msra.mxu0 0.0
  %1277 = vmatpush.xpose.msra.mxu0 0.0
  %1278 = vmatpush.xpose.msra.mxu0 0.0
  %1279 = vmatpush.xpose.msra.mxu0 0.0
  %1280 = vmatpush.xpose.msra.mxu0 0.0
  %1281 = vmatpush.xpose.msra.mxu0 0.0
  %1282 = vmatpush.xpose.msra.mxu0 0.0
  %1283 = vmatpush.xpose.msra.mxu0 0.0
  %1284 = vmatpush.xpose.msra.mxu0 0.0
  %1285 = vmatpush.xpose.msra.mxu0 %v1268
  %1286 = vmatmul.f32.gmra.mxu0 %v1236
  %v1287 = vpop.f32.mrf.mxu0
  %v1288 = vadd.f32 0.0, %v1287
  %1289 = vmatmul.f32.gmra.mxu0 %v1239
  %v1290 = vpop.f32.mrf.mxu0
  %v1291 = vadd.f32 0.0, %v1290
  %1292 = vdwg.mxu0
  %v1293 = vadd.f32 %v1230, %v1200
  %v1294 = vadd.f32 %v1262, %v1201
  %v1295 = vadd.f32 %v1288, %v1202
  %v1297 = vsel %vm117, %v1293, 0
  %v1300 = vsel %vm117, %v1294, 0
  %1302 = vmatpush.xpose.msra.mxu0 0.0
  %1303 = vmatpush.xpose.msra.mxu0 0.0
  %1304 = vmatpush.xpose.msra.mxu0 0.0
  %1305 = vmatpush.xpose.msra.mxu0 0.0
  %1306 = vmatpush.xpose.msra.mxu0 0.0
  %1307 = vmatpush.xpose.msra.mxu0 0.0
  %1308 = vmatpush.xpose.msra.mxu0 0.0
  %1309 = vmatpush.xpose.msra.mxu0 0.0
  %1310 = vmatpush.xpose.msra.mxu0 0.0
  %1311 = vmatpush.xpose.msra.mxu0 0.0
  %1312 = vmatpush.xpose.msra.mxu0 0.0
  %1313 = vmatpush.xpose.msra.mxu0 0.0
  %1314 = vmatpush.xpose.msra.mxu0 0.0
  %1315 = vmatpush.xpose.msra.mxu0 0.0
  %1316 = vmatpush.xpose.msra.mxu0 0.0
  %1317 = vmatpush.xpose.msra.mxu0 %v1300
  %1318 = vmatmul.f32.gmra.mxu0 %v1297
  %v1319 = vpop.f32.mrf.mxu0
  %v1320 = vadd.f32 0.0, %v1319
  %1321 = vdwg.mxu0
  %v1322 = vmul.f32 %v1320, 0.35355338
  %v1323 = vadd.f32 %v1322, %v19
  %v1324 = vsel %vm117, %v1323, -inf
  %1325 = vmax.xlane.f32.xlu0 %v1324
  %v1326 = vpop.xlane.xlu0 %1325
  %v1327 = vsub.f32 %v1323, %v1326
  %v1328 = vmul.f32 %v1327, 1.442695
  %v1329 = vpow.pop %v1328
  %v1330 = vsel %vm117, %v1329, 0.0
  %1331 = vadd.xlane.f32.xlu0 %v1330
  %v1332 = vpop.xlane.xlu0 %1331
  %v1333 = vrcp.pop %v1332
  %v1334 = vmul.f32 %v1332, %v1333
  %v1335 = vsub.f32 1.0, %v1334
  %v1336 = vmul.f32 %v1333, %v1335
  %v1337 = vadd.f32 %v1333, %v1336
  %vm1338 = vweird.f32 %v1332
  %vm1339 = vweird.f32 %v1333
  %vm1340 = vmor %vm1338, %vm1339
  %v1341 = vsel %vm1340, %v1333, %v1337
  %v1342 = vand.u32 2147483647, %v1332
  %vm1343 = vcmp.eq.f32.partialorder %v1342, 8.507059e+37
  %v1344 = vand.u32 %v1332, 2147483648
  %v1345 = vor.u32 1.1754944e-38, %v1344
  %v1346 = vsel %vm1343, %v1345, %v1341
  %v1347 = vmul.f32 %v1329, %v1346
  %s1348 = scalar_lea.vmem %s3, 64
  %1349 = vst.msk [vmem:[%s1348] sm:$0xff] %vm117, %v1347
  %v1351 = vsel %vm117, %v1347, 0
  %1353 = vmatpush.msra.mxu0 0.0
  %1354 = vmatpush.msra.mxu0 0.0
  %1355 = vmatpush.msra.mxu0 0.0
  %1356 = vmatpush.msra.mxu0 0.0
  %1357 = vmatpush.msra.mxu0 0.0
  %1358 = vmatpush.msra.mxu0 0.0
  %1359 = vmatpush.msra.mxu0 0.0
  %1360 = vmatpush.msra.mxu0 0.0
  %1361 = vmatpush.msra.mxu0 0.0
  %1362 = vmatpush.msra.mxu0 0.0
  %1363 = vmatpush.msra.mxu0 0.0
  %1364 = vmatpush.msra.mxu0 0.0
  %1365 = vmatpush.msra.mxu0 0.0
  %1366 = vmatpush.msra.mxu0 0.0
  %1367 = vmatpush.msra.mxu0 0.0
  %1368 = vmatpush.msra.mxu0 %v1295
  %1369 = vmatmul.f32.gmra.mxu0 %v1351
  %v1370 = vpop.f32.mrf.mxu0
  %v1371 = vadd.f32 0.0, %v1370
  %1372 = vdwg.mxu0
  %v1373 = vadd.f32 %v1233, %v1200
  %v1374 = vadd.f32 %v1265, %v1201
  %v1375 = vadd.f32 %v1291, %v1202
  %v1377 = vsel %vm117, %v1373, 0
  %v1380 = vsel %vm117, %v1374, 0
  %1382 = vmatpush.xpose.msra.mxu0 0.0
  %1383 = vmatpush.xpose.msra.mxu0 0.0
  %1384 = vmatpush.xpose.msra.mxu0 0.0
  %1385 = vmatpush.xpose.msra.mxu0 0.0
  %1386 = vmatpush.xpose.msra.mxu0 0.0
  %1387 = vmatpush.xpose.msra.mxu0 0.0
  %1388 = vmatpush.xpose.msra.mxu0 0.0
  %1389 = vmatpush.xpose.msra.mxu0 0.0
  %1390 = vmatpush.xpose.msra.mxu0 0.0
  %1391 = vmatpush.xpose.msra.mxu0 0.0
  %1392 = vmatpush.xpose.msra.mxu0 0.0
  %1393 = vmatpush.xpose.msra.mxu0 0.0
  %1394 = vmatpush.xpose.msra.mxu0 0.0
  %1395 = vmatpush.xpose.msra.mxu0 0.0
  %1396 = vmatpush.xpose.msra.mxu0 0.0
  %1397 = vmatpush.xpose.msra.mxu0 %v1380
  %1398 = vmatmul.f32.gmra.mxu0 %v1377
  %v1399 = vpop.f32.mrf.mxu0
  %v1400 = vadd.f32 0.0, %v1399
  %1401 = vdwg.mxu0
  %v1402 = vmul.f32 %v1400, 0.35355338
  %v1403 = vadd.f32 %v1402, %v20
  %v1404 = vsel %vm117, %v1403, -inf
  %1405 = vmax.xlane.f32.xlu0 %v1404
  %v1406 = vpop.xlane.xlu0 %1405
  %v1407 = vsub.f32 %v1403, %v1406
  %v1408 = vmul.f32 %v1407, 1.442695
  %v1409 = vpow.pop %v1408
  %v1410 = vsel %vm117, %v1409, 0.0
  %1411 = vadd.xlane.f32.xlu0 %v1410
  %v1412 = vpop.xlane.xlu0 %1411
  %v1413 = vrcp.pop %v1412
  %v1414 = vmul.f32 %v1412, %v1413
  %v1415 = vsub.f32 1.0, %v1414
  %v1416 = vmul.f32 %v1413, %v1415
  %v1417 = vadd.f32 %v1413, %v1416
  %vm1418 = vweird.f32 %v1412
  %vm1419 = vweird.f32 %v1413
  %vm1420 = vmor %vm1418, %vm1419
  %v1421 = vsel %vm1420, %v1413, %v1417
  %v1422 = vand.u32 2147483647, %v1412
  %vm1423 = vcmp.eq.f32.partialorder %v1422, 8.507059e+37
  %v1424 = vand.u32 %v1412, 2147483648
  %v1425 = vor.u32 1.1754944e-38, %v1424
  %v1426 = vsel %vm1423, %v1425, %v1421
  %v1427 = vmul.f32 %v1409, %v1426
  %s1428 = scalar_lea.vmem %s3, 96
  %1429 = vst.msk [vmem:[%s1428] sm:$0xff] %vm117, %v1427
  %v1431 = vsel %vm117, %v1427, 0
  %1433 = vmatpush.msra.mxu0 0.0
  %1434 = vmatpush.msra.mxu0 0.0
  %1435 = vmatpush.msra.mxu0 0.0
  %1436 = vmatpush.msra.mxu0 0.0
  %1437 = vmatpush.msra.mxu0 0.0
  %1438 = vmatpush.msra.mxu0 0.0
  %1439 = vmatpush.msra.mxu0 0.0
  %1440 = vmatpush.msra.mxu0 0.0
  %1441 = vmatpush.msra.mxu0 0.0
  %1442 = vmatpush.msra.mxu0 0.0
  %1443 = vmatpush.msra.mxu0 0.0
  %1444 = vmatpush.msra.mxu0 0.0
  %1445 = vmatpush.msra.mxu0 0.0
  %1446 = vmatpush.msra.mxu0 0.0
  %1447 = vmatpush.msra.mxu0 0.0
  %1448 = vmatpush.msra.mxu0 %v1375
  %1449 = vmatmul.f32.gmra.mxu0 %v1431
  %v1450 = vpop.f32.mrf.mxu0
  %v1451 = vadd.f32 0.0, %v1450
  %1452 = vdwg.mxu0
  %v1453 = vld [vmem:[%s1 + $0x1d0] sm:$0xff]
  %v1455 = vsel %vm117, %v1371, 0
  %v1458 = vsel %vm117, %v1451, 0
  %1460 = vmatpush.msra.mxu0 0.0
  %1461 = vmatpush.msra.mxu0 0.0
  %1462 = vmatpush.msra.mxu0 0.0
  %1463 = vmatpush.msra.mxu0 0.0
  %1464 = vmatpush.msra.mxu0 0.0
  %1465 = vmatpush.msra.mxu0 0.0
  %1466 = vmatpush.msra.mxu0 0.0
  %1467 = vmatpush.msra.mxu0 0.0
  %1468 = vmatpush.msra.mxu0 0.0
  %1469 = vmatpush.msra.mxu0 0.0
  %1470 = vmatpush.msra.mxu0 0.0
  %1471 = vmatpush.msra.mxu0 0.0
  %1472 = vmatpush.msra.mxu0 0.0
  %1473 = vmatpush.msra.mxu0 0.0
  %1474 = vmatpush.msra.mxu0 0.0
  %1475 = vmatpush.msra.mxu0 %v1453
  %1476 = vmatmul.f32.gmra.mxu0 %v1455
  %v1477 = vpop.f32.mrf.mxu0
  %v1478 = vadd.f32 0.0, %v1477
  %1479 = vmatmul.f32.gmra.mxu0 %v1458
  %v1480 = vpop.f32.mrf.mxu0
  %v1481 = vadd.f32 0.0, %v1480
  %1482 = vdwg.mxu0
  %v1483 = vadd.f32 %v1195, %v1478
  %v1484 = vadd.f32 %v1196, %v1481
  %v1485 = vld [vmem:[%s1 + $0x140] sm:$0xff]
  %v1486 = vld [vmem:[%s1 + $0x148] sm:$0xff]
  %v1487 = vld [vmem:[%s1 + $0x150] sm:$0xff]
  %v1488 = vld [vmem:[%s1 + $0x158] sm:$0xff]
  %v1489 = vld [vmem:[%s1 + $0x160] sm:$0xff]
  %v1490 = vld [vmem:[%s1 + $0x168] sm:$0xff]
  %v1492 = vsel %vm29, %v1485, 0
  %1494 = vmatpush.xpose.msra.mxu0 0.0
  %1495 = vmatpush.xpose.msra.mxu0 0.0
  %1496 = vmatpush.xpose.msra.mxu0 0.0
  %1497 = vmatpush.xpose.msra.mxu0 0.0
  %1498 = vmatpush.xpose.msra.mxu0 0.0
  %1499 = vmatpush.xpose.msra.mxu0 0.0
  %1500 = vmatpush.xpose.msra.mxu0 0.0
  %1501 = vmatpush.xpose.msra.mxu0 0.0
  %1502 = vmatpush.xpose.msra.mxu0 0.0
  %1503 = vmatpush.xpose.msra.mxu0 0.0
  %1504 = vmatpush.xpose.msra.mxu0 0.0
  %1505 = vmatpush.xpose.msra.mxu0 0.0
  %1506 = vmatpush.xpose.msra.mxu0 0.0
  %1507 = vmatpush.xpose.msra.mxu0 0.0
  %1508 = vmatpush.xpose.msra.mxu0 0.0
  %1509 = vmatpush.xpose.msra.mxu0 %v1492
  %1510 = vmatmul.f32.gmra.mxu0 %v1204
  %v1511 = vpop.f32.mrf.mxu0
  %v1512 = vadd.f32 0.0, %v1511
  %1513 = vmatmul.f32.gmra.mxu0 %v1207
  %v1514 = vpop.f32.mrf.mxu0
  %v1515 = vadd.f32 0.0, %v1514
  %1516 = vdwg.mxu0
  %v1518 = vsel %vm29, %v1486, 0
  %1520 = vmatpush.xpose.msra.mxu0 0.0
  %1521 = vmatpush.xpose.msra.mxu0 0.0
  %1522 = vmatpush.xpose.msra.mxu0 0.0
  %1523 = vmatpush.xpose.msra.mxu0 0.0
  %1524 = vmatpush.xpose.msra.mxu0 0.0
  %1525 = vmatpush.xpose.msra.mxu0 0.0
  %1526 = vmatpush.xpose.msra.mxu0 0.0
  %1527 = vmatpush.xpose.msra.mxu0 0.0
  %1528 = vmatpush.xpose.msra.mxu0 0.0
  %1529 = vmatpush.xpose.msra.mxu0 0.0
  %1530 = vmatpush.xpose.msra.mxu0 0.0
  %1531 = vmatpush.xpose.msra.mxu0 0.0
  %1532 = vmatpush.xpose.msra.mxu0 0.0
  %1533 = vmatpush.xpose.msra.mxu0 0.0
  %1534 = vmatpush.xpose.msra.mxu0 0.0
  %1535 = vmatpush.xpose.msra.mxu0 %v1518
  %1536 = vmatmul.f32.gmra.mxu0 %v1236
  %v1537 = vpop.f32.mrf.mxu0
  %v1538 = vadd.f32 0.0, %v1537
  %1539 = vmatmul.f32.gmra.mxu0 %v1239
  %v1540 = vpop.f32.mrf.mxu0
  %v1541 = vadd.f32 0.0, %v1540
  %1542 = vdwg.mxu0
  %v1544 = vsel %vm29, %v1487, 0
  %1546 = vmatpush.xpose.msra.mxu0 0.0
  %1547 = vmatpush.xpose.msra.mxu0 0.0
  %1548 = vmatpush.xpose.msra.mxu0 0.0
  %1549 = vmatpush.xpose.msra.mxu0 0.0
  %1550 = vmatpush.xpose.msra.mxu0 0.0
  %1551 = vmatpush.xpose.msra.mxu0 0.0
  %1552 = vmatpush.xpose.msra.mxu0 0.0
  %1553 = vmatpush.xpose.msra.mxu0 0.0
  %1554 = vmatpush.xpose.msra.mxu0 0.0
  %1555 = vmatpush.xpose.msra.mxu0 0.0
  %1556 = vmatpush.xpose.msra.mxu0 0.0
  %1557 = vmatpush.xpose.msra.mxu0 0.0
  %1558 = vmatpush.xpose.msra.mxu0 0.0
  %1559 = vmatpush.xpose.msra.mxu0 0.0
  %1560 = vmatpush.xpose.msra.mxu0 0.0
  %1561 = vmatpush.xpose.msra.mxu0 %v1544
  %1562 = vmatmul.f32.gmra.mxu0 %v1236
  %v1563 = vpop.f32.mrf.mxu0
  %v1564 = vadd.f32 0.0, %v1563
  %1565 = vmatmul.f32.gmra.mxu0 %v1239
  %v1566 = vpop.f32.mrf.mxu0
  %v1567 = vadd.f32 0.0, %v1566
  %1568 = vdwg.mxu0
  %v1569 = vadd.f32 %v1512, %v1488
  %v1570 = vadd.f32 %v1538, %v1489
  %v1571 = vadd.f32 %v1564, %v1490
  %v1573 = vsel %vm117, %v1569, 0
  %v1576 = vsel %vm117, %v1570, 0
  %1578 = vmatpush.xpose.msra.mxu0 0.0
  %1579 = vmatpush.xpose.msra.mxu0 0.0
  %1580 = vmatpush.xpose.msra.mxu0 0.0
  %1581 = vmatpush.xpose.msra.mxu0 0.0
  %1582 = vmatpush.xpose.msra.mxu0 0.0
  %1583 = vmatpush.xpose.msra.mxu0 0.0
  %1584 = vmatpush.xpose.msra.mxu0 0.0
  %1585 = vmatpush.xpose.msra.mxu0 0.0
  %1586 = vmatpush.xpose.msra.mxu0 0.0
  %1587 = vmatpush.xpose.msra.mxu0 0.0
  %1588 = vmatpush.xpose.msra.mxu0 0.0
  %1589 = vmatpush.xpose.msra.mxu0 0.0
  %1590 = vmatpush.xpose.msra.mxu0 0.0
  %1591 = vmatpush.xpose.msra.mxu0 0.0
  %1592 = vmatpush.xpose.msra.mxu0 0.0
  %1593 = vmatpush.xpose.msra.mxu0 %v1576
  %1594 = vmatmul.f32.gmra.mxu0 %v1573
  %v1595 = vpop.f32.mrf.mxu0
  %v1596 = vadd.f32 0.0, %v1595
  %1597 = vdwg.mxu0
  %v1598 = vmul.f32 %v1596, 0.35355338
  %v1599 = vadd.f32 %v1598, %v19
  %v1600 = vsel %vm117, %v1599, -inf
  %1601 = vmax.xlane.f32.xlu0 %v1600
  %v1602 = vpop.xlane.xlu0 %1601
  %v1603 = vsub.f32 %v1599, %v1602
  %v1604 = vmul.f32 %v1603, 1.442695
  %v1605 = vpow.pop %v1604
  %v1606 = vsel %vm117, %v1605, 0.0
  %1607 = vadd.xlane.f32.xlu0 %v1606
  %v1608 = vpop.xlane.xlu0 %1607
  %v1609 = vrcp.pop %v1608
  %v1610 = vmul.f32 %v1608, %v1609
  %v1611 = vsub.f32 1.0, %v1610
  %v1612 = vmul.f32 %v1609, %v1611
  %v1613 = vadd.f32 %v1609, %v1612
  %vm1614 = vweird.f32 %v1608
  %vm1615 = vweird.f32 %v1609
  %vm1616 = vmor %vm1614, %vm1615
  %v1617 = vsel %vm1616, %v1609, %v1613
  %v1618 = vand.u32 2147483647, %v1608
  %vm1619 = vcmp.eq.f32.partialorder %v1618, 8.507059e+37
  %v1620 = vand.u32 %v1608, 2147483648
  %v1621 = vor.u32 1.1754944e-38, %v1620
  %v1622 = vsel %vm1619, %v1621, %v1617
  %v1623 = vmul.f32 %v1605, %v1622
  %s1624 = scalar_lea.vmem %s3, 72
  %1625 = vst.msk [vmem:[%s1624] sm:$0xff] %vm117, %v1623
  %v1627 = vsel %vm117, %v1623, 0
  %1629 = vmatpush.msra.mxu0 0.0
  %1630 = vmatpush.msra.mxu0 0.0
  %1631 = vmatpush.msra.mxu0 0.0
  %1632 = vmatpush.msra.mxu0 0.0
  %1633 = vmatpush.msra.mxu0 0.0
  %1634 = vmatpush.msra.mxu0 0.0
  %1635 = vmatpush.msra.mxu0 0.0
  %1636 = vmatpush.msra.mxu0 0.0
  %1637 = vmatpush.msra.mxu0 0.0
  %1638 = vmatpush.msra.mxu0 0.0
  %1639 = vmatpush.msra.mxu0 0.0
  %1640 = vmatpush.msra.mxu0 0.0
  %1641 = vmatpush.msra.mxu0 0.0
  %1642 = vmatpush.msra.mxu0 0.0
  %1643 = vmatpush.msra.mxu0 0.0
  %1644 = vmatpush.msra.mxu0 %v1571
  %1645 = vmatmul.f32.gmra.mxu0 %v1627
  %v1646 = vpop.f32.mrf.mxu0
  %v1647 = vadd.f32 0.0, %v1646
  %1648 = vdwg.mxu0
  %v1649 = vadd.f32 %v1515, %v1488
  %v1650 = vadd.f32 %v1541, %v1489
  %v1651 = vadd.f32 %v1567, %v1490
  %v1653 = vsel %vm117, %v1649, 0
  %v1656 = vsel %vm117, %v1650, 0
  %1658 = vmatpush.xpose.msra.mxu0 0.0
  %1659 = vmatpush.xpose.msra.mxu0 0.0
  %1660 = vmatpush.xpose.msra.mxu0 0.0
  %1661 = vmatpush.xpose.msra.mxu0 0.0
  %1662 = vmatpush.xpose.msra.mxu0 0.0
  %1663 = vmatpush.xpose.msra.mxu0 0.0
  %1664 = vmatpush.xpose.msra.mxu0 0.0
  %1665 = vmatpush.xpose.msra.mxu0 0.0
  %1666 = vmatpush.xpose.msra.mxu0 0.0
  %1667 = vmatpush.xpose.msra.mxu0 0.0
  %1668 = vmatpush.xpose.msra.mxu0 0.0
  %1669 = vmatpush.xpose.msra.mxu0 0.0
  %1670 = vmatpush.xpose.msra.mxu0 0.0
  %1671 = vmatpush.xpose.msra.mxu0 0.0
  %1672 = vmatpush.xpose.msra.mxu0 0.0
  %1673 = vmatpush.xpose.msra.mxu0 %v1656
  %1674 = vmatmul.f32.gmra.mxu0 %v1653
  %v1675 = vpop.f32.mrf.mxu0
  %v1676 = vadd.f32 0.0, %v1675
  %1677 = vdwg.mxu0
  %v1678 = vmul.f32 %v1676, 0.35355338
  %v1679 = vadd.f32 %v1678, %v20
  %v1680 = vsel %vm117, %v1679, -inf
  %1681 = vmax.xlane.f32.xlu0 %v1680
  %v1682 = vpop.xlane.xlu0 %1681
  %v1683 = vsub.f32 %v1679, %v1682
  %v1684 = vmul.f32 %v1683, 1.442695
  %v1685 = vpow.pop %v1684
  %v1686 = vsel %vm117, %v1685, 0.0
  %1687 = vadd.xlane.f32.xlu0 %v1686
  %v1688 = vpop.xlane.xlu0 %1687
  %v1689 = vrcp.pop %v1688
  %v1690 = vmul.f32 %v1688, %v1689
  %v1691 = vsub.f32 1.0, %v1690
  %v1692 = vmul.f32 %v1689, %v1691
  %v1693 = vadd.f32 %v1689, %v1692
  %vm1694 = vweird.f32 %v1688
  %vm1695 = vweird.f32 %v1689
  %vm1696 = vmor %vm1694, %vm1695
  %v1697 = vsel %vm1696, %v1689, %v1693
  %v1698 = vand.u32 2147483647, %v1688
  %vm1699 = vcmp.eq.f32.partialorder %v1698, 8.507059e+37
  %v1700 = vand.u32 %v1688, 2147483648
  %v1701 = vor.u32 1.1754944e-38, %v1700
  %v1702 = vsel %vm1699, %v1701, %v1697
  %v1703 = vmul.f32 %v1685, %v1702
  %s1704 = scalar_lea.vmem %s3, 104
  %1705 = vst.msk [vmem:[%s1704] sm:$0xff] %vm117, %v1703
  %v1707 = vsel %vm117, %v1703, 0
  %1709 = vmatpush.msra.mxu0 0.0
  %1710 = vmatpush.msra.mxu0 0.0
  %1711 = vmatpush.msra.mxu0 0.0
  %1712 = vmatpush.msra.mxu0 0.0
  %1713 = vmatpush.msra.mxu0 0.0
  %1714 = vmatpush.msra.mxu0 0.0
  %1715 = vmatpush.msra.mxu0 0.0
  %1716 = vmatpush.msra.mxu0 0.0
  %1717 = vmatpush.msra.mxu0 0.0
  %1718 = vmatpush.msra.mxu0 0.0
  %1719 = vmatpush.msra.mxu0 0.0
  %1720 = vmatpush.msra.mxu0 0.0
  %1721 = vmatpush.msra.mxu0 0.0
  %1722 = vmatpush.msra.mxu0 0.0
  %1723 = vmatpush.msra.mxu0 0.0
  %1724 = vmatpush.msra.mxu0 %v1651
  %1725 = vmatmul.f32.gmra.mxu0 %v1707
  %v1726 = vpop.f32.mrf.mxu0
  %v1727 = vadd.f32 0.0, %v1726
  %1728 = vdwg.mxu0
  %v1729 = vld [vmem:[%s1 + $0x1d8] sm:$0xff]
  %v1731 = vsel %vm117, %v1647, 0
  %v1734 = vsel %vm117, %v1727, 0
  %1736 = vmatpush.msra.mxu0 0.0
  %1737 = vmatpush.msra.mxu0 0.0
  %1738 = vmatpush.msra.mxu0 0.0
  %1739 = vmatpush.msra.mxu0 0.0
  %1740 = vmatpush.msra.mxu0 0.0
  %1741 = vmatpush.msra.mxu0 0.0
  %1742 = vmatpush.msra.mxu0 0.0
  %1743 = vmatpush.msra.mxu0 0.0
  %1744 = vmatpush.msra.mxu0 0.0
  %1745 = vmatpush.msra.mxu0 0.0
  %1746 = vmatpush.msra.mxu0 0.0
  %1747 = vmatpush.msra.mxu0 0.0
  %1748 = vmatpush.msra.mxu0 0.0
  %1749 = vmatpush.msra.mxu0 0.0
  %1750 = vmatpush.msra.mxu0 0.0
  %1751 = vmatpush.msra.mxu0 %v1729
  %1752 = vmatmul.f32.gmra.mxu0 %v1731
  %v1753 = vpop.f32.mrf.mxu0
  %v1754 = vadd.f32 0.0, %v1753
  %1755 = vmatmul.f32.gmra.mxu0 %v1734
  %v1756 = vpop.f32.mrf.mxu0
  %v1757 = vadd.f32 0.0, %v1756
  %1758 = vdwg.mxu0
  %v1759 = vadd.f32 %v1483, %v1754
  %v1760 = vadd.f32 %v1484, %v1757
  %v1761 = vld [vmem:[%s1 + $0x170] sm:$0xff]
  %v1762 = vld [vmem:[%s1 + $0x178] sm:$0xff]
  %v1763 = vld [vmem:[%s1 + $0x180] sm:$0xff]
  %v1764 = vld [vmem:[%s1 + $0x188] sm:$0xff]
  %v1765 = vld [vmem:[%s1 + $0x190] sm:$0xff]
  %v1766 = vld [vmem:[%s1 + $0x198] sm:$0xff]
  %v1768 = vsel %vm29, %v1761, 0
  %1770 = vmatpush.xpose.msra.mxu0 0.0
  %1771 = vmatpush.xpose.msra.mxu0 0.0
  %1772 = vmatpush.xpose.msra.mxu0 0.0
  %1773 = vmatpush.xpose.msra.mxu0 0.0
  %1774 = vmatpush.xpose.msra.mxu0 0.0
  %1775 = vmatpush.xpose.msra.mxu0 0.0
  %1776 = vmatpush.xpose.msra.mxu0 0.0
  %1777 = vmatpush.xpose.msra.mxu0 0.0
  %1778 = vmatpush.xpose.msra.mxu0 0.0
  %1779 = vmatpush.xpose.msra.mxu0 0.0
  %1780 = vmatpush.xpose.msra.mxu0 0.0
  %1781 = vmatpush.xpose.msra.mxu0 0.0
  %1782 = vmatpush.xpose.msra.mxu0 0.0
  %1783 = vmatpush.xpose.msra.mxu0 0.0
  %1784 = vmatpush.xpose.msra.mxu0 0.0
  %1785 = vmatpush.xpose.msra.mxu0 %v1768
  %1786 = vmatmul.f32.gmra.mxu0 %v1204
  %v1787 = vpop.f32.mrf.mxu0
  %v1788 = vadd.f32 0.0, %v1787
  %1789 = vmatmul.f32.gmra.mxu0 %v1207
  %v1790 = vpop.f32.mrf.mxu0
  %v1791 = vadd.f32 0.0, %v1790
  %1792 = vdwg.mxu0
  %v1794 = vsel %vm29, %v1762, 0
  %1796 = vmatpush.xpose.msra.mxu0 0.0
  %1797 = vmatpush.xpose.msra.mxu0 0.0
  %1798 = vmatpush.xpose.msra.mxu0 0.0
  %1799 = vmatpush.xpose.msra.mxu0 0.0
  %1800 = vmatpush.xpose.msra.mxu0 0.0
  %1801 = vmatpush.xpose.msra.mxu0 0.0
  %1802 = vmatpush.xpose.msra.mxu0 0.0
  %1803 = vmatpush.xpose.msra.mxu0 0.0
  %1804 = vmatpush.xpose.msra.mxu0 0.0
  %1805 = vmatpush.xpose.msra.mxu0 0.0
  %1806 = vmatpush.xpose.msra.mxu0 0.0
  %1807 = vmatpush.xpose.msra.mxu0 0.0
  %1808 = vmatpush.xpose.msra.mxu0 0.0
  %1809 = vmatpush.xpose.msra.mxu0 0.0
  %1810 = vmatpush.xpose.msra.mxu0 0.0
  %1811 = vmatpush.xpose.msra.mxu0 %v1794
  %1812 = vmatmul.f32.gmra.mxu0 %v1236
  %v1813 = vpop.f32.mrf.mxu0
  %v1814 = vadd.f32 0.0, %v1813
  %1815 = vmatmul.f32.gmra.mxu0 %v1239
  %v1816 = vpop.f32.mrf.mxu0
  %v1817 = vadd.f32 0.0, %v1816
  %1818 = vdwg.mxu0
  %v1820 = vsel %vm29, %v1763, 0
  %1822 = vmatpush.xpose.msra.mxu0 0.0
  %1823 = vmatpush.xpose.msra.mxu0 0.0
  %1824 = vmatpush.xpose.msra.mxu0 0.0
  %1825 = vmatpush.xpose.msra.mxu0 0.0
  %1826 = vmatpush.xpose.msra.mxu0 0.0
  %1827 = vmatpush.xpose.msra.mxu0 0.0
  %1828 = vmatpush.xpose.msra.mxu0 0.0
  %1829 = vmatpush.xpose.msra.mxu0 0.0
  %1830 = vmatpush.xpose.msra.mxu0 0.0
  %1831 = vmatpush.xpose.msra.mxu0 0.0
  %1832 = vmatpush.xpose.msra.mxu0 0.0
  %1833 = vmatpush.xpose.msra.mxu0 0.0
  %1834 = vmatpush.xpose.msra.mxu0 0.0
  %1835 = vmatpush.xpose.msra.mxu0 0.0
  %1836 = vmatpush.xpose.msra.mxu0 0.0
  %1837 = vmatpush.xpose.msra.mxu0 %v1820
  %1838 = vmatmul.f32.gmra.mxu0 %v1236
  %v1839 = vpop.f32.mrf.mxu0
  %v1840 = vadd.f32 0.0, %v1839
  %1841 = vmatmul.f32.gmra.mxu0 %v1239
  %v1842 = vpop.f32.mrf.mxu0
  %v1843 = vadd.f32 0.0, %v1842
  %1844 = vdwg.mxu0
  %v1845 = vadd.f32 %v1788, %v1764
  %v1846 = vadd.f32 %v1814, %v1765
  %v1847 = vadd.f32 %v1840, %v1766
  %v1849 = vsel %vm117, %v1845, 0
  %v1852 = vsel %vm117, %v1846, 0
  %1854 = vmatpush.xpose.msra.mxu0 0.0
  %1855 = vmatpush.xpose.msra.mxu0 0.0
  %1856 = vmatpush.xpose.msra.mxu0 0.0
  %1857 = vmatpush.xpose.msra.mxu0 0.0
  %1858 = vmatpush.xpose.msra.mxu0 0.0
  %1859 = vmatpush.xpose.msra.mxu0 0.0
  %1860 = vmatpush.xpose.msra.mxu0 0.0
  %1861 = vmatpush.xpose.msra.mxu0 0.0
  %1862 = vmatpush.xpose.msra.mxu0 0.0
  %1863 = vmatpush.xpose.msra.mxu0 0.0
  %1864 = vmatpush.xpose.msra.mxu0 0.0
  %1865 = vmatpush.xpose.msra.mxu0 0.0
  %1866 = vmatpush.xpose.msra.mxu0 0.0
  %1867 = vmatpush.xpose.msra.mxu0 0.0
  %1868 = vmatpush.xpose.msra.mxu0 0.0
  %1869 = vmatpush.xpose.msra.mxu0 %v1852
  %1870 = vmatmul.f32.gmra.mxu0 %v1849
  %v1871 = vpop.f32.mrf.mxu0
  %v1872 = vadd.f32 0.0, %v1871
  %1873 = vdwg.mxu0
  %v1874 = vmul.f32 %v1872, 0.35355338
  %v1875 = vadd.f32 %v1874, %v19
  %v1876 = vsel %vm117, %v1875, -inf
  %1877 = vmax.xlane.f32.xlu0 %v1876
  %v1878 = vpop.xlane.xlu0 %1877
  %v1879 = vsub.f32 %v1875, %v1878
  %v1880 = vmul.f32 %v1879, 1.442695
  %v1881 = vpow.pop %v1880
  %v1882 = vsel %vm117, %v1881, 0.0
  %1883 = vadd.xlane.f32.xlu0 %v1882
  %v1884 = vpop.xlane.xlu0 %1883
  %v1885 = vrcp.pop %v1884
  %v1886 = vmul.f32 %v1884, %v1885
  %v1887 = vsub.f32 1.0, %v1886
  %v1888 = vmul.f32 %v1885, %v1887
  %v1889 = vadd.f32 %v1885, %v1888
  %vm1890 = vweird.f32 %v1884
  %vm1891 = vweird.f32 %v1885
  %vm1892 = vmor %vm1890, %vm1891
  %v1893 = vsel %vm1892, %v1885, %v1889
  %v1894 = vand.u32 2147483647, %v1884
  %vm1895 = vcmp.eq.f32.partialorder %v1894, 8.507059e+37
  %v1896 = vand.u32 %v1884, 2147483648
  %v1897 = vor.u32 1.1754944e-38, %v1896
  %v1898 = vsel %vm1895, %v1897, %v1893
  %v1899 = vmul.f32 %v1881, %v1898
  %s1900 = scalar_lea.vmem %s3, 80
  %1901 = vst.msk [vmem:[%s1900] sm:$0xff] %vm117, %v1899
  %v1903 = vsel %vm117, %v1899, 0
  %1905 = vmatpush.msra.mxu0 0.0
  %1906 = vmatpush.msra.mxu0 0.0
  %1907 = vmatpush.msra.mxu0 0.0
  %1908 = vmatpush.msra.mxu0 0.0
  %1909 = vmatpush.msra.mxu0 0.0
  %1910 = vmatpush.msra.mxu0 0.0
  %1911 = vmatpush.msra.mxu0 0.0
  %1912 = vmatpush.msra.mxu0 0.0
  %1913 = vmatpush.msra.mxu0 0.0
  %1914 = vmatpush.msra.mxu0 0.0
  %1915 = vmatpush.msra.mxu0 0.0
  %1916 = vmatpush.msra.mxu0 0.0
  %1917 = vmatpush.msra.mxu0 0.0
  %1918 = vmatpush.msra.mxu0 0.0
  %1919 = vmatpush.msra.mxu0 0.0
  %1920 = vmatpush.msra.mxu0 %v1847
  %1921 = vmatmul.f32.gmra.mxu0 %v1903
  %v1922 = vpop.f32.mrf.mxu0
  %v1923 = vadd.f32 0.0, %v1922
  %1924 = vdwg.mxu0
  %v1925 = vadd.f32 %v1791, %v1764
  %v1926 = vadd.f32 %v1817, %v1765
  %v1927 = vadd.f32 %v1843, %v1766
  %v1929 = vsel %vm117, %v1925, 0
  %v1932 = vsel %vm117, %v1926, 0
  %1934 = vmatpush.xpose.msra.mxu0 0.0
  %1935 = vmatpush.xpose.msra.mxu0 0.0
  %1936 = vmatpush.xpose.msra.mxu0 0.0
  %1937 = vmatpush.xpose.msra.mxu0 0.0
  %1938 = vmatpush.xpose.msra.mxu0 0.0
  %1939 = vmatpush.xpose.msra.mxu0 0.0
  %1940 = vmatpush.xpose.msra.mxu0 0.0
  %1941 = vmatpush.xpose.msra.mxu0 0.0
  %1942 = vmatpush.xpose.msra.mxu0 0.0
  %1943 = vmatpush.xpose.msra.mxu0 0.0
  %1944 = vmatpush.xpose.msra.mxu0 0.0
  %1945 = vmatpush.xpose.msra.mxu0 0.0
  %1946 = vmatpush.xpose.msra.mxu0 0.0
  %1947 = vmatpush.xpose.msra.mxu0 0.0
  %1948 = vmatpush.xpose.msra.mxu0 0.0
  %1949 = vmatpush.xpose.msra.mxu0 %v1932
  %1950 = vmatmul.f32.gmra.mxu0 %v1929
  %v1951 = vpop.f32.mrf.mxu0
  %v1952 = vadd.f32 0.0, %v1951
  %1953 = vdwg.mxu0
  %v1954 = vmul.f32 %v1952, 0.35355338
  %v1955 = vadd.f32 %v1954, %v20
  %v1956 = vsel %vm117, %v1955, -inf
  %1957 = vmax.xlane.f32.xlu0 %v1956
  %v1958 = vpop.xlane.xlu0 %1957
  %v1959 = vsub.f32 %v1955, %v1958
  %v1960 = vmul.f32 %v1959, 1.442695
  %v1961 = vpow.pop %v1960
  %v1962 = vsel %vm117, %v1961, 0.0
  %1963 = vadd.xlane.f32.xlu0 %v1962
  %v1964 = vpop.xlane.xlu0 %1963
  %v1965 = vrcp.pop %v1964
  %v1966 = vmul.f32 %v1964, %v1965
  %v1967 = vsub.f32 1.0, %v1966
  %v1968 = vmul.f32 %v1965, %v1967
  %v1969 = vadd.f32 %v1965, %v1968
  %vm1970 = vweird.f32 %v1964
  %vm1971 = vweird.f32 %v1965
  %vm1972 = vmor %vm1970, %vm1971
  %v1973 = vsel %vm1972, %v1965, %v1969
  %v1974 = vand.u32 2147483647, %v1964
  %vm1975 = vcmp.eq.f32.partialorder %v1974, 8.507059e+37
  %v1976 = vand.u32 %v1964, 2147483648
  %v1977 = vor.u32 1.1754944e-38, %v1976
  %v1978 = vsel %vm1975, %v1977, %v1973
  %v1979 = vmul.f32 %v1961, %v1978
  %s1980 = scalar_lea.vmem %s3, 112
  %1981 = vst.msk [vmem:[%s1980] sm:$0xff] %vm117, %v1979
  %v1983 = vsel %vm117, %v1979, 0
  %1985 = vmatpush.msra.mxu0 0.0
  %1986 = vmatpush.msra.mxu0 0.0
  %1987 = vmatpush.msra.mxu0 0.0
  %1988 = vmatpush.msra.mxu0 0.0
  %1989 = vmatpush.msra.mxu0 0.0
  %1990 = vmatpush.msra.mxu0 0.0
  %1991 = vmatpush.msra.mxu0 0.0
  %1992 = vmatpush.msra.mxu0 0.0
  %1993 = vmatpush.msra.mxu0 0.0
  %1994 = vmatpush.msra.mxu0 0.0
  %1995 = vmatpush.msra.mxu0 0.0
  %1996 = vmatpush.msra.mxu0 0.0
  %1997 = vmatpush.msra.mxu0 0.0
  %1998 = vmatpush.msra.mxu0 0.0
  %1999 = vmatpush.msra.mxu0 0.0
  %2000 = vmatpush.msra.mxu0 %v1927
  %2001 = vmatmul.f32.gmra.mxu0 %v1983
  %v2002 = vpop.f32.mrf.mxu0
  %v2003 = vadd.f32 0.0, %v2002
  %2004 = vdwg.mxu0
  %v2005 = vld [vmem:[%s1 + $0x1e0] sm:$0xff]
  %v2007 = vsel %vm117, %v1923, 0
  %v2010 = vsel %vm117, %v2003, 0
  %2012 = vmatpush.msra.mxu0 0.0
  %2013 = vmatpush.msra.mxu0 0.0
  %2014 = vmatpush.msra.mxu0 0.0
  %2015 = vmatpush.msra.mxu0 0.0
  %2016 = vmatpush.msra.mxu0 0.0
  %2017 = vmatpush.msra.mxu0 0.0
  %2018 = vmatpush.msra.mxu0 0.0
  %2019 = vmatpush.msra.mxu0 0.0
  %2020 = vmatpush.msra.mxu0 0.0
  %2021 = vmatpush.msra.mxu0 0.0
  %2022 = vmatpush.msra.mxu0 0.0
  %2023 = vmatpush.msra.mxu0 0.0
  %2024 = vmatpush.msra.mxu0 0.0
  %2025 = vmatpush.msra.mxu0 0.0
  %2026 = vmatpush.msra.mxu0 0.0
  %2027 = vmatpush.msra.mxu0 %v2005
  %2028 = vmatmul.f32.gmra.mxu0 %v2007
  %v2029 = vpop.f32.mrf.mxu0
  %v2030 = vadd.f32 0.0, %v2029
  %2031 = vmatmul.f32.gmra.mxu0 %v2010
  %v2032 = vpop.f32.mrf.mxu0
  %v2033 = vadd.f32 0.0, %v2032
  %2034 = vdwg.mxu0
  %v2035 = vadd.f32 %v1759, %v2030
  %v2036 = vadd.f32 %v1760, %v2033
  %v2037 = vld [vmem:[%s1 + $0x1a0] sm:$0xff]
  %v2038 = vld [vmem:[%s1 + $0x1a8] sm:$0xff]
  %v2039 = vld [vmem:[%s1 + $0x1b0] sm:$0xff]
  %v2040 = vld [vmem:[%s1 + $0x1b8] sm:$0xff]
  %v2041 = vld [vmem:[%s1 + $0x1c0] sm:$0xff]
  %v2042 = vld [vmem:[%s1 + $0x1c8] sm:$0xff]
  %v2044 = vsel %vm29, %v2037, 0
  %2046 = vmatpush.xpose.msra.mxu0 0.0
  %2047 = vmatpush.xpose.msra.mxu0 0.0
  %2048 = vmatpush.xpose.msra.mxu0 0.0
  %2049 = vmatpush.xpose.msra.mxu0 0.0
  %2050 = vmatpush.xpose.msra.mxu0 0.0
  %2051 = vmatpush.xpose.msra.mxu0 0.0
  %2052 = vmatpush.xpose.msra.mxu0 0.0
  %2053 = vmatpush.xpose.msra.mxu0 0.0
  %2054 = vmatpush.xpose.msra.mxu0 0.0
  %2055 = vmatpush.xpose.msra.mxu0 0.0
  %2056 = vmatpush.xpose.msra.mxu0 0.0
  %2057 = vmatpush.xpose.msra.mxu0 0.0
  %2058 = vmatpush.xpose.msra.mxu0 0.0
  %2059 = vmatpush.xpose.msra.mxu0 0.0
  %2060 = vmatpush.xpose.msra.mxu0 0.0
  %2061 = vmatpush.xpose.msra.mxu0 %v2044
  %2062 = vmatmul.f32.gmra.mxu0 %v1204
  %v2063 = vpop.f32.mrf.mxu0
  %v2064 = vadd.f32 0.0, %v2063
  %2065 = vmatmul.f32.gmra.mxu0 %v1207
  %v2066 = vpop.f32.mrf.mxu0
  %v2067 = vadd.f32 0.0, %v2066
  %2068 = vdwg.mxu0
  %v2070 = vsel %vm29, %v2038, 0
  %2072 = vmatpush.xpose.msra.mxu0 0.0
  %2073 = vmatpush.xpose.msra.mxu0 0.0
  %2074 = vmatpush.xpose.msra.mxu0 0.0
  %2075 = vmatpush.xpose.msra.mxu0 0.0
  %2076 = vmatpush.xpose.msra.mxu0 0.0
  %2077 = vmatpush.xpose.msra.mxu0 0.0
  %2078 = vmatpush.xpose.msra.mxu0 0.0
  %2079 = vmatpush.xpose.msra.mxu0 0.0
  %2080 = vmatpush.xpose.msra.mxu0 0.0
  %2081 = vmatpush.xpose.msra.mxu0 0.0
  %2082 = vmatpush.xpose.msra.mxu0 0.0
  %2083 = vmatpush.xpose.msra.mxu0 0.0
  %2084 = vmatpush.xpose.msra.mxu0 0.0
  %2085 = vmatpush.xpose.msra.mxu0 0.0
  %2086 = vmatpush.xpose.msra.mxu0 0.0
  %2087 = vmatpush.xpose.msra.mxu0 %v2070
  %2088 = vmatmul.f32.gmra.mxu0 %v1236
  %v2089 = vpop.f32.mrf.mxu0
  %v2090 = vadd.f32 0.0, %v2089
  %2091 = vmatmul.f32.gmra.mxu0 %v1239
  %v2092 = vpop.f32.mrf.mxu0
  %v2093 = vadd.f32 0.0, %v2092
  %2094 = vdwg.mxu0
  %v2096 = vsel %vm29, %v2039, 0
  %2098 = vmatpush.xpose.msra.mxu0 0.0
  %2099 = vmatpush.xpose.msra.mxu0 0.0
  %2100 = vmatpush.xpose.msra.mxu0 0.0
  %2101 = vmatpush.xpose.msra.mxu0 0.0
  %2102 = vmatpush.xpose.msra.mxu0 0.0
  %2103 = vmatpush.xpose.msra.mxu0 0.0
  %2104 = vmatpush.xpose.msra.mxu0 0.0
  %2105 = vmatpush.xpose.msra.mxu0 0.0
  %2106 = vmatpush.xpose.msra.mxu0 0.0
  %2107 = vmatpush.xpose.msra.mxu0 0.0
  %2108 = vmatpush.xpose.msra.mxu0 0.0
  %2109 = vmatpush.xpose.msra.mxu0 0.0
  %2110 = vmatpush.xpose.msra.mxu0 0.0
  %2111 = vmatpush.xpose.msra.mxu0 0.0
  %2112 = vmatpush.xpose.msra.mxu0 0.0
  %2113 = vmatpush.xpose.msra.mxu0 %v2096
  %2114 = vmatmul.f32.gmra.mxu0 %v1236
  %v2115 = vpop.f32.mrf.mxu0
  %v2116 = vadd.f32 0.0, %v2115
  %2117 = vmatmul.f32.gmra.mxu0 %v1239
  %v2118 = vpop.f32.mrf.mxu0
  %v2119 = vadd.f32 0.0, %v2118
  %2120 = vdwg.mxu0
  %v2121 = vadd.f32 %v2064, %v2040
  %v2122 = vadd.f32 %v2090, %v2041
  %v2123 = vadd.f32 %v2116, %v2042
  %v2125 = vsel %vm117, %v2121, 0
  %v2128 = vsel %vm117, %v2122, 0
  %2130 = vmatpush.xpose.msra.mxu0 0.0
  %2131 = vmatpush.xpose.msra.mxu0 0.0
  %2132 = vmatpush.xpose.msra.mxu0 0.0
  %2133 = vmatpush.xpose.msra.mxu0 0.0
  %2134 = vmatpush.xpose.msra.mxu0 0.0
  %2135 = vmatpush.xpose.msra.mxu0 0.0
  %2136 = vmatpush.xpose.msra.mxu0 0.0
  %2137 = vmatpush.xpose.msra.mxu0 0.0
  %2138 = vmatpush.xpose.msra.mxu0 0.0
  %2139 = vmatpush.xpose.msra.mxu0 0.0
  %2140 = vmatpush.xpose.msra.mxu0 0.0
  %2141 = vmatpush.xpose.msra.mxu0 0.0
  %2142 = vmatpush.xpose.msra.mxu0 0.0
  %2143 = vmatpush.xpose.msra.mxu0 0.0
  %2144 = vmatpush.xpose.msra.mxu0 0.0
  %2145 = vmatpush.xpose.msra.mxu0 %v2128
  %2146 = vmatmul.f32.gmra.mxu0 %v2125
  %v2147 = vpop.f32.mrf.mxu0
  %v2148 = vadd.f32 0.0, %v2147
  %2149 = vdwg.mxu0
  %v2150 = vmul.f32 %v2148, 0.35355338
  %v2151 = vadd.f32 %v2150, %v19
  %v2152 = vsel %vm117, %v2151, -inf
  %2153 = vmax.xlane.f32.xlu0 %v2152
  %v2154 = vpop.xlane.xlu0 %2153
  %v2155 = vsub.f32 %v2151, %v2154
  %v2156 = vmul.f32 %v2155, 1.442695
  %v2157 = vpow.pop %v2156
  %v2158 = vsel %vm117, %v2157, 0.0
  %2159 = vadd.xlane.f32.xlu0 %v2158
  %v2160 = vpop.xlane.xlu0 %2159
  %v2161 = vrcp.pop %v2160
  %v2162 = vmul.f32 %v2160, %v2161
  %v2163 = vsub.f32 1.0, %v2162
  %v2164 = vmul.f32 %v2161, %v2163
  %v2165 = vadd.f32 %v2161, %v2164
  %vm2166 = vweird.f32 %v2160
  %vm2167 = vweird.f32 %v2161
  %vm2168 = vmor %vm2166, %vm2167
  %v2169 = vsel %vm2168, %v2161, %v2165
  %v2170 = vand.u32 2147483647, %v2160
  %vm2171 = vcmp.eq.f32.partialorder %v2170, 8.507059e+37
  %v2172 = vand.u32 %v2160, 2147483648
  %v2173 = vor.u32 1.1754944e-38, %v2172
  %v2174 = vsel %vm2171, %v2173, %v2169
  %v2175 = vmul.f32 %v2157, %v2174
  %s2176 = scalar_lea.vmem %s3, 88
  %2177 = vst.msk [vmem:[%s2176] sm:$0xff] %vm117, %v2175
  %v2179 = vsel %vm117, %v2175, 0
  %2181 = vmatpush.msra.mxu0 0.0
  %2182 = vmatpush.msra.mxu0 0.0
  %2183 = vmatpush.msra.mxu0 0.0
  %2184 = vmatpush.msra.mxu0 0.0
  %2185 = vmatpush.msra.mxu0 0.0
  %2186 = vmatpush.msra.mxu0 0.0
  %2187 = vmatpush.msra.mxu0 0.0
  %2188 = vmatpush.msra.mxu0 0.0
  %2189 = vmatpush.msra.mxu0 0.0
  %2190 = vmatpush.msra.mxu0 0.0
  %2191 = vmatpush.msra.mxu0 0.0
  %2192 = vmatpush.msra.mxu0 0.0
  %2193 = vmatpush.msra.mxu0 0.0
  %2194 = vmatpush.msra.mxu0 0.0
  %2195 = vmatpush.msra.mxu0 0.0
  %2196 = vmatpush.msra.mxu0 %v2123
  %2197 = vmatmul.f32.gmra.mxu0 %v2179
  %v2198 = vpop.f32.mrf.mxu0
  %v2199 = vadd.f32 0.0, %v2198
  %2200 = vdwg.mxu0
  %v2201 = vadd.f32 %v2067, %v2040
  %v2202 = vadd.f32 %v2093, %v2041
  %v2203 = vadd.f32 %v2119, %v2042
  %v2205 = vsel %vm117, %v2201, 0
  %v2208 = vsel %vm117, %v2202, 0
  %2210 = vmatpush.xpose.msra.mxu0 0.0
  %2211 = vmatpush.xpose.msra.mxu0 0.0
  %2212 = vmatpush.xpose.msra.mxu0 0.0
  %2213 = vmatpush.xpose.msra.mxu0 0.0
  %2214 = vmatpush.xpose.msra.mxu0 0.0
  %2215 = vmatpush.xpose.msra.mxu0 0.0
  %2216 = vmatpush.xpose.msra.mxu0 0.0
  %2217 = vmatpush.xpose.msra.mxu0 0.0
  %2218 = vmatpush.xpose.msra.mxu0 0.0
  %2219 = vmatpush.xpose.msra.mxu0 0.0
  %2220 = vmatpush.xpose.msra.mxu0 0.0
  %2221 = vmatpush.xpose.msra.mxu0 0.0
  %2222 = vmatpush.xpose.msra.mxu0 0.0
  %2223 = vmatpush.xpose.msra.mxu0 0.0
  %2224 = vmatpush.xpose.msra.mxu0 0.0
  %2225 = vmatpush.xpose.msra.mxu0 %v2208
  %2226 = vmatmul.f32.gmra.mxu0 %v2205
  %v2227 = vpop.f32.mrf.mxu0
  %v2228 = vadd.f32 0.0, %v2227
  %2229 = vdwg.mxu0
  %v2230 = vmul.f32 %v2228, 0.35355338
  %v2231 = vadd.f32 %v2230, %v20
  %v2232 = vsel %vm117, %v2231, -inf
  %2233 = vmax.xlane.f32.xlu0 %v2232
  %v2234 = vpop.xlane.xlu0 %2233
  %v2235 = vsub.f32 %v2231, %v2234
  %v2236 = vmul.f32 %v2235, 1.442695
  %v2237 = vpow.pop %v2236
  %v2238 = vsel %vm117, %v2237, 0.0
  %2239 = vadd.xlane.f32.xlu0 %v2238
  %v2240 = vpop.xlane.xlu0 %2239
  %v2241 = vrcp.pop %v2240
  %v2242 = vmul.f32 %v2240, %v2241
  %v2243 = vsub.f32 1.0, %v2242
  %v2244 = vmul.f32 %v2241, %v2243
  %v2245 = vadd.f32 %v2241, %v2244
  %vm2246 = vweird.f32 %v2240
  %vm2247 = vweird.f32 %v2241
  %vm2248 = vmor %vm2246, %vm2247
  %v2249 = vsel %vm2248, %v2241, %v2245
  %v2250 = vand.u32 2147483647, %v2240
  %vm2251 = vcmp.eq.f32.partialorder %v2250, 8.507059e+37
  %v2252 = vand.u32 %v2240, 2147483648
  %v2253 = vor.u32 1.1754944e-38, %v2252
  %v2254 = vsel %vm2251, %v2253, %v2249
  %v2255 = vmul.f32 %v2237, %v2254
  %s2256 = scalar_lea.vmem %s3, 120
  %2257 = vst.msk [vmem:[%s2256] sm:$0xff] %vm117, %v2255
  %v2259 = vsel %vm117, %v2255, 0
  %2261 = vmatpush.msra.mxu0 0.0
  %2262 = vmatpush.msra.mxu0 0.0
  %2263 = vmatpush.msra.mxu0 0.0
  %2264 = vmatpush.msra.mxu0 0.0
  %2265 = vmatpush.msra.mxu0 0.0
  %2266 = vmatpush.msra.mxu0 0.0
  %2267 = vmatpush.msra.mxu0 0.0
  %2268 = vmatpush.msra.mxu0 0.0
  %2269 = vmatpush.msra.mxu0 0.0
  %2270 = vmatpush.msra.mxu0 0.0
  %2271 = vmatpush.msra.mxu0 0.0
  %2272 = vmatpush.msra.mxu0 0.0
  %2273 = vmatpush.msra.mxu0 0.0
  %2274 = vmatpush.msra.mxu0 0.0
  %2275 = vmatpush.msra.mxu0 0.0
  %2276 = vmatpush.msra.mxu0 %v2203
  %2277 = vmatmul.f32.gmra.mxu0 %v2259
  %v2278 = vpop.f32.mrf.mxu0
  %v2279 = vadd.f32 0.0, %v2278
  %2280 = vdwg.mxu0
  %v2281 = vld [vmem:[%s1 + $0x1e8] sm:$0xff]
  %v2283 = vsel %vm117, %v2199, 0
  %v2286 = vsel %vm117, %v2279, 0
  %2288 = vmatpush.msra.mxu0 0.0
  %2289 = vmatpush.msra.mxu0 0.0
  %2290 = vmatpush.msra.mxu0 0.0
  %2291 = vmatpush.msra.mxu0 0.0
  %2292 = vmatpush.msra.mxu0 0.0
  %2293 = vmatpush.msra.mxu0 0.0
  %2294 = vmatpush.msra.mxu0 0.0
  %2295 = vmatpush.msra.mxu0 0.0
  %2296 = vmatpush.msra.mxu0 0.0
  %2297 = vmatpush.msra.mxu0 0.0
  %2298 = vmatpush.msra.mxu0 0.0
  %2299 = vmatpush.msra.mxu0 0.0
  %2300 = vmatpush.msra.mxu0 0.0
  %2301 = vmatpush.msra.mxu0 0.0
  %2302 = vmatpush.msra.mxu0 0.0
  %2303 = vmatpush.msra.mxu0 %v2281
  %2304 = vmatmul.f32.gmra.mxu0 %v2283
  %v2305 = vpop.f32.mrf.mxu0
  %v2306 = vadd.f32 0.0, %v2305
  %2307 = vmatmul.f32.gmra.mxu0 %v2286
  %v2308 = vpop.f32.mrf.mxu0
  %v2309 = vadd.f32 0.0, %v2308
  %2310 = vdwg.mxu0
  %v2311 = vadd.f32 %v2035, %v2306
  %v2312 = vadd.f32 %v2036, %v2309
  %v2313 = vld [vmem:[%s1 + $0x200] sm:$0xff]
  %v2314 = vld [vmem:[%s1 + $0x208] sm:$0xff]
  %v2315 = vld [vmem:[%s1 + $0x210] sm:$0xff]
  %v2316 = vld [vmem:[%s1 + $0x218] sm:$0xff]
  %v2317 = vadd.f32 %v2311, %v1193
  %v2318 = vadd.f32 %v2312, %v1194
  %v2319 = vsel %vm29, %v2317, 0.0
  %2320 = vadd.xlane.f32.xlu0 %v2319
  %v2321 = vpop.xlane.xlu0 %2320
  %v2322 = vsel %vm29, %v2318, 0.0
  %2323 = vadd.xlane.f32.xlu0 %v2322
  %v2324 = vpop.xlane.xlu0 %2323
  %v2325 = vmul.f32 %v2321, %v1152
  %v2326 = vmul.f32 %v2324, %v1152
  %v2327 = vsub.f32 %v2317, %v2325
  %v2328 = vsub.f32 %v2318, %v2326
  %v2329 = vmul.f32 %v2327, %v2327
  %v2330 = vmul.f32 %v2328, %v2328
  %v2331 = vsel %vm29, %v2329, 0.0
  %2332 = vadd.xlane.f32.xlu0 %v2331
  %v2333 = vpop.xlane.xlu0 %2332
  %v2334 = vsel %vm29, %v2330, 0.0
  %2335 = vadd.xlane.f32.xlu0 %v2334
  %v2336 = vpop.xlane.xlu0 %2335
  %v2337 = vmul.f32 %v2333, %v1152
  %v2338 = vmul.f32 %v2336, %v1152
  %v2339 = vmul.f32 %v2313, %v2327
  %v2340 = vmul.f32 %v2314, %v2328
  %v2341 = vadd.f32 %v2337, 1e-05
  %v2342 = vadd.f32 %v2338, 1e-05
  %v2343 = vrsqrt.pop %v2341
  %v2344 = vmul.f32 %v2343, %v2341
  %v2345 = vmul.f32 %v2344, %v2343
  %v2346 = vmul.f32 0.5, %v2345
  %v2347 = vsub.f32 1.5, %v2346
  %v2348 = vmul.f32 %v2343, %v2347
  %vm2349 = vweird.f32 %v2341
  %vm2350 = vweird.f32 %v2343
  %vm2351 = vmor %vm2349, %vm2350
  %v2352 = vsel %vm2351, %v2343, %v2348
  %v2353 = vrsqrt.pop %v2342
  %v2354 = vmul.f32 %v2353, %v2342
  %v2355 = vmul.f32 %v2354, %v2353
  %v2356 = vmul.f32 0.5, %v2355
  %v2357 = vsub.f32 1.5, %v2356
  %v2358 = vmul.f32 %v2353, %v2357
  %vm2359 = vweird.f32 %v2342
  %vm2360 = vweird.f32 %v2353
  %vm2361 = vmor %vm2359, %vm2360
  %v2362 = vsel %vm2361, %v2353, %v2358
  %v2363 = vmul.f32 %v2339, %v2352
  %v2364 = vmul.f32 %v2340, %v2362
  %v2365 = vadd.f32 %v2363, %v2315
  %v2366 = vadd.f32 %v2364, %v2316
  %v2367 = vld [vmem:[%s1 + $0x220] sm:$0xff]
  %v2368 = vld [vmem:[%s1 + $0x228] sm:$0xff]
  %v2369 = vld [vmem:[%s1 + $0x230] sm:$0xff]
  %v2370 = vld [vmem:[%s1 + $0x238] sm:$0xff]
  %v2371 = vld [vmem:[%s1 + $0x240] sm:$0xff]
  %v2372 = vld [vmem:[%s1 + $0x248] sm:$0xff]
  %v2373 = vld [vmem:[%s1 + $0x250] sm:$0xff]
  %v2374 = vld [vmem:[%s1 + $0x258] sm:$0xff]
  %v2375 = vld [vmem:[%s1 + $0x260] sm:$0xff]
  %v2376 = vld [vmem:[%s1 + $0x268] sm:$0xff]
  %v2377 = vld [vmem:[%s1 + $0x270] sm:$0xff]
  %v2378 = vld [vmem:[%s1 + $0x278] sm:$0xff]
  %v2379 = vld [vmem:[%s1 + $0x280] sm:$0xff]
  %v2380 = vld [vmem:[%s1 + $0x288] sm:$0xff]
  %v2381 = vld [vmem:[%s1 + $0x290] sm:$0xff]
  %v2382 = vld [vmem:[%s1 + $0x298] sm:$0xff]
  %v2383 = vld [vmem:[%s1 + $0x2a0] sm:$0xff]
  %v2384 = vld [vmem:[%s1 + $0x2a8] sm:$0xff]
  %v2385 = vld [vmem:[%s1 + $0x2b0] sm:$0xff]
  %v2386 = vld [vmem:[%s1 + $0x2b8] sm:$0xff]
  %v2387 = vld [vmem:[%s1 + $0x2c0] sm:$0xff]
  %v2388 = vld [vmem:[%s1 + $0x2c8] sm:$0xff]
  %v2389 = vld [vmem:[%s1 + $0x2d0] sm:$0xff]
  %v2390 = vld [vmem:[%s1 + $0x2d8] sm:$0xff]
  %v2391 = vld [vmem:[%s1 + $0x2e0] sm:$0xff]
  %v2392 = vld [vmem:[%s1 + $0x2e8] sm:$0xff]
  %v2394 = vsel %vm29, %v2365, 0
  %v2397 = vsel %vm29, %v2366, 0
  %v2400 = vsel %vm29, %v2367, 0
  %v2403 = vsel %vm29, %v2368, 0
  %v2406 = vsel %vm29, %v2369, 0
  %v2409 = vsel %vm29, %v2370, 0
  %2411 = vmatpush.xpose.msra.mxu0 0.0
  %2412 = vmatpush.xpose.msra.mxu0 0.0
  %2413 = vmatpush.xpose.msra.mxu0 0.0
  %2414 = vmatpush.xpose.msra.mxu0 0.0
  %2415 = vmatpush.xpose.msra.mxu0 0.0
  %2416 = vmatpush.xpose.msra.mxu0 0.0
  %2417 = vmatpush.xpose.msra.mxu0 0.0
  %2418 = vmatpush.xpose.msra.mxu0 0.0
  %2419 = vmatpush.xpose.msra.mxu0 0.0
  %2420 = vmatpush.xpose.msra.mxu0 0.0
  %2421 = vmatpush.xpose.msra.mxu0 0.0
  %2422 = vmatpush.xpose.msra.mxu0 0.0
  %2423 = vmatpush.xpose.msra.mxu0 %v2409
  %2424 = vmatpush.xpose.msra.mxu0 %v2406
  %2425 = vmatpush.xpose.msra.mxu0 %v2403
  %2426 = vmatpush.xpose.msra.mxu0 %v2400
  %2427 = vmatmul.f32.gmra.mxu0 %v2394
  %v2428 = vpop.f32.mrf.mxu0
  %v2429 = vadd.f32 %v2375, %v2428
  %2430 = vmatmul.f32.gmra.mxu0 %v2397
  %v2431 = vpop.f32.mrf.mxu0
  %v2432 = vadd.f32 %v2376, %v2431
  %2433 = vdwg.mxu0
  %v2434 = vmax.f32 %v2429, 0.0
  %v2435 = vmax.f32 %v2432, 0.0
  %v2437 = vsel %vm29, %v2371, 0
  %v2440 = vsel %vm29, %v2372, 0
  %v2443 = vsel %vm29, %v2373, 0
  %v2446 = vsel %vm29, %v2374, 0
  %2448 = vmatpush.xpose.msra.mxu0 0.0
  %2449 = vmatpush.xpose.msra.mxu0 0.0
  %2450 = vmatpush.xpose.msra.mxu0 0.0
  %2451 = vmatpush.xpose.msra.mxu0 0.0
  %2452 = vmatpush.xpose.msra.mxu0 0.0
  %2453 = vmatpush.xpose.msra.mxu0 0.0
  %2454 = vmatpush.xpose.msra.mxu0 0.0
  %2455 = vmatpush.xpose.msra.mxu0 0.0
  %2456 = vmatpush.xpose.msra.mxu0 0.0
  %2457 = vmatpush.xpose.msra.mxu0 0.0
  %2458 = vmatpush.xpose.msra.mxu0 0.0
  %2459 = vmatpush.xpose.msra.mxu0 0.0
  %2460 = vmatpush.xpose.msra.mxu0 %v2446
  %2461 = vmatpush.xpose.msra.mxu0 %v2443
  %2462 = vmatpush.xpose.msra.mxu0 %v2440
  %2463 = vmatpush.xpose.msra.mxu0 %v2437
  %2464 = vmatmul.f32.gmra.mxu0 %v2394
  %v2465 = vpop.f32.mrf.mxu0
  %v2466 = vadd.f32 %v2377, %v2465
  %2467 = vmatmul.f32.gmra.mxu0 %v2397
  %v2468 = vpop.f32.mrf.mxu0
  %v2469 = vadd.f32 %v2378, %v2468
  %2470 = vdwg.mxu0
  %v2471 = vmax.f32 %v2466, 0.0
  %v2472 = vmax.f32 %v2469, 0.0
  %v2474 = vsel %vm29, %v2471, 0
  %v2477 = vsel %vm29, %v2472, 0
  %v2480 = vsel %vm29, %v2383, 0
  %v2483 = vsel %vm29, %v2384, 0
  %v2486 = vsel %vm29, %v2385, 0
  %v2489 = vsel %vm29, %v2386, 0
  %2491 = vmatpush.xpose.msra.mxu0 0.0
  %2492 = vmatpush.xpose.msra.mxu0 0.0
  %2493 = vmatpush.xpose.msra.mxu0 0.0
  %2494 = vmatpush.xpose.msra.mxu0 0.0
  %2495 = vmatpush.xpose.msra.mxu0 0.0
  %2496 = vmatpush.xpose.msra.mxu0 0.0
  %2497 = vmatpush.xpose.msra.mxu0 0.0
  %2498 = vmatpush.xpose.msra.mxu0 0.0
  %2499 = vmatpush.xpose.msra.mxu0 0.0
  %2500 = vmatpush.xpose.msra.mxu0 0.0
  %2501 = vmatpush.xpose.msra.mxu0 0.0
  %2502 = vmatpush.xpose.msra.mxu0 0.0
  %2503 = vmatpush.xpose.msra.mxu0 %v2489
  %2504 = vmatpush.xpose.msra.mxu0 %v2486
  %2505 = vmatpush.xpose.msra.mxu0 %v2483
  %2506 = vmatpush.xpose.msra.mxu0 %v2480
  %2507 = vmatmul.f32.gmra.mxu0 %v2474
  %v2508 = vpop.f32.mrf.mxu0
  %v2509 = vadd.f32 0.0, %v2508
  %2510 = vmatmul.f32.gmra.mxu0 %v2477
  %v2511 = vpop.f32.mrf.mxu0
  %v2512 = vadd.f32 0.0, %v2511
  %2513 = vdwg.mxu0
  %v2515 = vsel %vm29, %v2434, 0
  %v2518 = vsel %vm29, %v2435, 0
  %v2521 = vsel %vm29, %v2379, 0
  %v2524 = vsel %vm29, %v2380, 0
  %v2527 = vsel %vm29, %v2381, 0
  %v2530 = vsel %vm29, %v2382, 0
  %2532 = vmatpush.xpose.msra.mxu0 0.0
  %2533 = vmatpush.xpose.msra.mxu0 0.0
  %2534 = vmatpush.xpose.msra.mxu0 0.0
  %2535 = vmatpush.xpose.msra.mxu0 0.0
  %2536 = vmatpush.xpose.msra.mxu0 0.0
  %2537 = vmatpush.xpose.msra.mxu0 0.0
  %2538 = vmatpush.xpose.msra.mxu0 0.0
  %2539 = vmatpush.xpose.msra.mxu0 0.0
  %2540 = vmatpush.xpose.msra.mxu0 0.0
  %2541 = vmatpush.xpose.msra.mxu0 0.0
  %2542 = vmatpush.xpose.msra.mxu0 0.0
  %2543 = vmatpush.xpose.msra.mxu0 0.0
  %2544 = vmatpush.xpose.msra.mxu0 %v2530
  %2545 = vmatpush.xpose.msra.mxu0 %v2527
  %2546 = vmatpush.xpose.msra.mxu0 %v2524
  %2547 = vmatpush.xpose.msra.mxu0 %v2521
  %2548 = vmatmul.f32.gmra.mxu0 %v2515
  %v2549 = vpop.f32.mrf.mxu0
  %v2550 = vadd.f32 %v2509, %v2549
  %2551 = vmatmul.f32.gmra.mxu0 %v2518
  %v2552 = vpop.f32.mrf.mxu0
  %v2553 = vadd.f32 %v2512, %v2552
  %2554 = vdwg.mxu0
  %v2555 = vadd.f32 %v2550, %v2387
  %v2556 = vadd.f32 %v2553, %v2388
  %v2557 = vadd.f32 %v2555, %v2365
  %v2558 = vadd.f32 %v2556, %v2366
  %v2559 = vsel %vm29, %v2557, 0.0
  %2560 = vadd.xlane.f32.xlu0 %v2559
  %v2561 = vpop.xlane.xlu0 %2560
  %v2562 = vsel %vm29, %v2558, 0.0
  %2563 = vadd.xlane.f32.xlu0 %v2562
  %v2564 = vpop.xlane.xlu0 %2563
  %v2565 = vmul.f32 %v2561, %v1152
  %v2566 = vmul.f32 %v2564, %v1152
  %v2567 = vsub.f32 %v2557, %v2565
  %v2568 = vsub.f32 %v2558, %v2566
  %v2569 = vmul.f32 %v2567, %v2567
  %v2570 = vmul.f32 %v2568, %v2568
  %v2571 = vsel %vm29, %v2569, 0.0
  %2572 = vadd.xlane.f32.xlu0 %v2571
  %v2573 = vpop.xlane.xlu0 %2572
  %v2574 = vsel %vm29, %v2570, 0.0
  %2575 = vadd.xlane.f32.xlu0 %v2574
  %v2576 = vpop.xlane.xlu0 %2575
  %v2577 = vmul.f32 %v2573, %v1152
  %v2578 = vmul.f32 %v2576, %v1152
  %v2579 = vmul.f32 %v2389, %v2567
  %v2580 = vmul.f32 %v2390, %v2568
  %v2581 = vadd.f32 %v2577, 1e-05
  %v2582 = vadd.f32 %v2578, 1e-05
  %v2583 = vrsqrt.pop %v2581
  %v2584 = vmul.f32 %v2583, %v2581
  %v2585 = vmul.f32 %v2584, %v2583
  %v2586 = vmul.f32 0.5, %v2585
  %v2587 = vsub.f32 1.5, %v2586
  %v2588 = vmul.f32 %v2583, %v2587
  %vm2589 = vweird.f32 %v2581
  %vm2590 = vweird.f32 %v2583
  %vm2591 = vmor %vm2589, %vm2590
  %v2592 = vsel %vm2591, %v2583, %v2588
  %v2593 = vrsqrt.pop %v2582
  %v2594 = vmul.f32 %v2593, %v2582
  %v2595 = vmul.f32 %v2594, %v2593
  %v2596 = vmul.f32 0.5, %v2595
  %v2597 = vsub.f32 1.5, %v2596
  %v2598 = vmul.f32 %v2593, %v2597
  %vm2599 = vweird.f32 %v2582
  %vm2600 = vweird.f32 %v2593
  %vm2601 = vmor %vm2599, %vm2600
  %v2602 = vsel %vm2601, %v2593, %v2598
  %v2603 = vmul.f32 %v2579, %v2592
  %v2604 = vmul.f32 %v2580, %v2602
  %v2605 = vadd.f32 %v2603, %v2391
  %v2606 = vadd.f32 %v2604, %v2392
  %v2607 = vld [vmem:[%s1 + $0x3d0] sm:$0xff]
  %v2608 = vld [vmem:[%s1 + $0x3d8] sm:$0xff]
  %v2609 = vld [vmem:[%s1 + $0x2f0] sm:$0xff]
  %v2610 = vld [vmem:[%s1 + $0x2f8] sm:$0xff]
  %v2611 = vld [vmem:[%s1 + $0x300] sm:$0xff]
  %v2612 = vld [vmem:[%s1 + $0x308] sm:$0xff]
  %v2613 = vld [vmem:[%s1 + $0x310] sm:$0xff]
  %v2614 = vld [vmem:[%s1 + $0x318] sm:$0xff]
  %v2616 = vsel %vm29, %v2605, 0
  %v2619 = vsel %vm29, %v2606, 0
  %v2622 = vsel %vm29, %v2609, 0
  %2624 = vmatpush.xpose.msra.mxu0 0.0
  %2625 = vmatpush.xpose.msra.mxu0 0.0
  %2626 = vmatpush.xpose.msra.mxu0 0.0
  %2627 = vmatpush.xpose.msra.mxu0 0.0
  %2628 = vmatpush.xpose.msra.mxu0 0.0
  %2629 = vmatpush.xpose.msra.mxu0 0.0
  %2630 = vmatpush.xpose.msra.mxu0 0.0
  %2631 = vmatpush.xpose.msra.mxu0 0.0
  %2632 = vmatpush.xpose.msra.mxu0 0.0
  %2633 = vmatpush.xpose.msra.mxu0 0.0
  %2634 = vmatpush.xpose.msra.mxu0 0.0
  %2635 = vmatpush.xpose.msra.mxu0 0.0
  %2636 = vmatpush.xpose.msra.mxu0 0.0
  %2637 = vmatpush.xpose.msra.mxu0 0.0
  %2638 = vmatpush.xpose.msra.mxu0 0.0
  %2639 = vmatpush.xpose.msra.mxu0 %v2622
  %2640 = vmatmul.f32.gmra.mxu0 %v2616
  %v2641 = vpop.f32.mrf.mxu0
  %v2642 = vadd.f32 0.0, %v2641
  %2643 = vmatmul.f32.gmra.mxu0 %v2619
  %v2644 = vpop.f32.mrf.mxu0
  %v2645 = vadd.f32 0.0, %v2644
  %2646 = vdwg.mxu0
  %v2648 = vsel %vm29, %v2610, 0
  %2650 = vmatpush.xpose.msra.mxu0 0.0
  %2651 = vmatpush.xpose.msra.mxu0 0.0
  %2652 = vmatpush.xpose.msra.mxu0 0.0
  %2653 = vmatpush.xpose.msra.mxu0 0.0
  %2654 = vmatpush.xpose.msra.mxu0 0.0
  %2655 = vmatpush.xpose.msra.mxu0 0.0
  %2656 = vmatpush.xpose.msra.mxu0 0.0
  %2657 = vmatpush.xpose.msra.mxu0 0.0
  %2658 = vmatpush.xpose.msra.mxu0 0.0
  %2659 = vmatpush.xpose.msra.mxu0 0.0
  %2660 = vmatpush.xpose.msra.mxu0 0.0
  %2661 = vmatpush.xpose.msra.mxu0 0.0
  %2662 = vmatpush.xpose.msra.mxu0 0.0
  %2663 = vmatpush.xpose.msra.mxu0 0.0
  %2664 = vmatpush.xpose.msra.mxu0 0.0
  %2665 = vmatpush.xpose.msra.mxu0 %v2648
  %2666 = vmatmul.f32.gmra.mxu0 %v2616
  %v2667 = vpop.f32.mrf.mxu0
  %v2668 = vadd.f32 0.0, %v2667
  %2669 = vmatmul.f32.gmra.mxu0 %v2619
  %v2670 = vpop.f32.mrf.mxu0
  %v2671 = vadd.f32 0.0, %v2670
  %2672 = vdwg.mxu0
  %v2674 = vsel %vm29, %v2611, 0
  %2676 = vmatpush.xpose.msra.mxu0 0.0
  %2677 = vmatpush.xpose.msra.mxu0 0.0
  %2678 = vmatpush.xpose.msra.mxu0 0.0
  %2679 = vmatpush.xpose.msra.mxu0 0.0
  %2680 = vmatpush.xpose.msra.mxu0 0.0
  %2681 = vmatpush.xpose.msra.mxu0 0.0
  %2682 = vmatpush.xpose.msra.mxu0 0.0
  %2683 = vmatpush.xpose.msra.mxu0 0.0
  %2684 = vmatpush.xpose.msra.mxu0 0.0
  %2685 = vmatpush.xpose.msra.mxu0 0.0
  %2686 = vmatpush.xpose.msra.mxu0 0.0
  %2687 = vmatpush.xpose.msra.mxu0 0.0
  %2688 = vmatpush.xpose.msra.mxu0 0.0
  %2689 = vmatpush.xpose.msra.mxu0 0.0
  %2690 = vmatpush.xpose.msra.mxu0 0.0
  %2691 = vmatpush.xpose.msra.mxu0 %v2674
  %2692 = vmatmul.f32.gmra.mxu0 %v2616
  %v2693 = vpop.f32.mrf.mxu0
  %v2694 = vadd.f32 0.0, %v2693
  %2695 = vmatmul.f32.gmra.mxu0 %v2619
  %v2696 = vpop.f32.mrf.mxu0
  %v2697 = vadd.f32 0.0, %v2696
  %2698 = vdwg.mxu0
  %v2699 = vadd.f32 %v2642, %v2612
  %v2700 = vadd.f32 %v2668, %v2613
  %v2701 = vadd.f32 %v2694, %v2614
  %v2703 = vsel %vm117, %v2699, 0
  %v2706 = vsel %vm117, %v2700, 0
  %2708 = vmatpush.xpose.msra.mxu0 0.0
  %2709 = vmatpush.xpose.msra.mxu0 0.0
  %2710 = vmatpush.xpose.msra.mxu0 0.0
  %2711 = vmatpush.xpose.msra.mxu0 0.0
  %2712 = vmatpush.xpose.msra.mxu0 0.0
  %2713 = vmatpush.xpose.msra.mxu0 0.0
  %2714 = vmatpush.xpose.msra.mxu0 0.0
  %2715 = vmatpush.xpose.msra.mxu0 0.0
  %2716 = vmatpush.xpose.msra.mxu0 0.0
  %2717 = vmatpush.xpose.msra.mxu0 0.0
  %2718 = vmatpush.xpose.msra.mxu0 0.0
  %2719 = vmatpush.xpose.msra.mxu0 0.0
  %2720 = vmatpush.xpose.msra.mxu0 0.0
  %2721 = vmatpush.xpose.msra.mxu0 0.0
  %2722 = vmatpush.xpose.msra.mxu0 0.0
  %2723 = vmatpush.xpose.msra.mxu0 %v2706
  %2724 = vmatmul.f32.gmra.mxu0 %v2703
  %v2725 = vpop.f32.mrf.mxu0
  %v2726 = vadd.f32 0.0, %v2725
  %2727 = vdwg.mxu0
  %v2728 = vmul.f32 %v2726, 0.35355338
  %v2729 = vadd.f32 %v2728, %v17
  %v2730 = vsel %vm117, %v2729, -inf
  %2731 = vmax.xlane.f32.xlu0 %v2730
  %v2732 = vpop.xlane.xlu0 %2731
  %v2733 = vsub.f32 %v2729, %v2732
  %v2734 = vmul.f32 %v2733, 1.442695
  %v2735 = vpow.pop %v2734
  %v2736 = vsel %vm117, %v2735, 0.0
  %2737 = vadd.xlane.f32.xlu0 %v2736
  %v2738 = vpop.xlane.xlu0 %2737
  %v2739 = vrcp.pop %v2738
  %v2740 = vmul.f32 %v2738, %v2739
  %v2741 = vsub.f32 1.0, %v2740
  %v2742 = vmul.f32 %v2739, %v2741
  %v2743 = vadd.f32 %v2739, %v2742
  %vm2744 = vweird.f32 %v2738
  %vm2745 = vweird.f32 %v2739
  %vm2746 = vmor %vm2744, %vm2745
  %v2747 = vsel %vm2746, %v2739, %v2743
  %v2748 = vand.u32 2147483647, %v2738
  %vm2749 = vcmp.eq.f32.partialorder %v2748, 8.507059e+37
  %v2750 = vand.u32 %v2738, 2147483648
  %v2751 = vor.u32 1.1754944e-38, %v2750
  %v2752 = vsel %vm2749, %v2751, %v2747
  %v2753 = vmul.f32 %v2735, %v2752
  %s2754 = scalar_lea.vmem %s3, 128
  %2755 = vst.msk [vmem:[%s2754] sm:$0xff] %vm117, %v2753
  %v2757 = vsel %vm117, %v2753, 0
  %2759 = vmatpush.msra.mxu0 0.0
  %2760 = vmatpush.msra.mxu0 0.0
  %2761 = vmatpush.msra.mxu0 0.0
  %2762 = vmatpush.msra.mxu0 0.0
  %2763 = vmatpush.msra.mxu0 0.0
  %2764 = vmatpush.msra.mxu0 0.0
  %2765 = vmatpush.msra.mxu0 0.0
  %2766 = vmatpush.msra.mxu0 0.0
  %2767 = vmatpush.msra.mxu0 0.0
  %2768 = vmatpush.msra.mxu0 0.0
  %2769 = vmatpush.msra.mxu0 0.0
  %2770 = vmatpush.msra.mxu0 0.0
  %2771 = vmatpush.msra.mxu0 0.0
  %2772 = vmatpush.msra.mxu0 0.0
  %2773 = vmatpush.msra.mxu0 0.0
  %2774 = vmatpush.msra.mxu0 %v2701
  %2775 = vmatmul.f32.gmra.mxu0 %v2757
  %v2776 = vpop.f32.mrf.mxu0
  %v2777 = vadd.f32 0.0, %v2776
  %2778 = vdwg.mxu0
  %v2779 = vadd.f32 %v2645, %v2612
  %v2780 = vadd.f32 %v2671, %v2613
  %v2781 = vadd.f32 %v2697, %v2614
  %v2783 = vsel %vm117, %v2779, 0
  %v2786 = vsel %vm117, %v2780, 0
  %2788 = vmatpush.xpose.msra.mxu0 0.0
  %2789 = vmatpush.xpose.msra.mxu0 0.0
  %2790 = vmatpush.xpose.msra.mxu0 0.0
  %2791 = vmatpush.xpose.msra.mxu0 0.0
  %2792 = vmatpush.xpose.msra.mxu0 0.0
  %2793 = vmatpush.xpose.msra.mxu0 0.0
  %2794 = vmatpush.xpose.msra.mxu0 0.0
  %2795 = vmatpush.xpose.msra.mxu0 0.0
  %2796 = vmatpush.xpose.msra.mxu0 0.0
  %2797 = vmatpush.xpose.msra.mxu0 0.0
  %2798 = vmatpush.xpose.msra.mxu0 0.0
  %2799 = vmatpush.xpose.msra.mxu0 0.0
  %2800 = vmatpush.xpose.msra.mxu0 0.0
  %2801 = vmatpush.xpose.msra.mxu0 0.0
  %2802 = vmatpush.xpose.msra.mxu0 0.0
  %2803 = vmatpush.xpose.msra.mxu0 %v2786
  %2804 = vmatmul.f32.gmra.mxu0 %v2783
  %v2805 = vpop.f32.mrf.mxu0
  %v2806 = vadd.f32 0.0, %v2805
  %2807 = vdwg.mxu0
  %v2808 = vmul.f32 %v2806, 0.35355338
  %v2809 = vadd.f32 %v2808, %v18
  %v2810 = vsel %vm117, %v2809, -inf
  %2811 = vmax.xlane.f32.xlu0 %v2810
  %v2812 = vpop.xlane.xlu0 %2811
  %v2813 = vsub.f32 %v2809, %v2812
  %v2814 = vmul.f32 %v2813, 1.442695
  %v2815 = vpow.pop %v2814
  %v2816 = vsel %vm117, %v2815, 0.0
  %2817 = vadd.xlane.f32.xlu0 %v2816
  %v2818 = vpop.xlane.xlu0 %2817
  %v2819 = vrcp.pop %v2818
  %v2820 = vmul.f32 %v2818, %v2819
  %v2821 = vsub.f32 1.0, %v2820
  %v2822 = vmul.f32 %v2819, %v2821
  %v2823 = vadd.f32 %v2819, %v2822
  %vm2824 = vweird.f32 %v2818
  %vm2825 = vweird.f32 %v2819
  %vm2826 = vmor %vm2824, %vm2825
  %v2827 = vsel %vm2826, %v2819, %v2823
  %v2828 = vand.u32 2147483647, %v2818
  %vm2829 = vcmp.eq.f32.partialorder %v2828, 8.507059e+37
  %v2830 = vand.u32 %v2818, 2147483648
  %v2831 = vor.u32 1.1754944e-38, %v2830
  %v2832 = vsel %vm2829, %v2831, %v2827
  %v2833 = vmul.f32 %v2815, %v2832
  %s2834 = scalar_lea.vmem %s3, 160
  %2835 = vst.msk [vmem:[%s2834] sm:$0xff] %vm117, %v2833
  %v2837 = vsel %vm117, %v2833, 0
  %2839 = vmatpush.msra.mxu0 0.0
  %2840 = vmatpush.msra.mxu0 0.0
  %2841 = vmatpush.msra.mxu0 0.0
  %2842 = vmatpush.msra.mxu0 0.0
  %2843 = vmatpush.msra.mxu0 0.0
  %2844 = vmatpush.msra.mxu0 0.0
  %2845 = vmatpush.msra.mxu0 0.0
  %2846 = vmatpush.msra.mxu0 0.0
  %2847 = vmatpush.msra.mxu0 0.0
  %2848 = vmatpush.msra.mxu0 0.0
  %2849 = vmatpush.msra.mxu0 0.0
  %2850 = vmatpush.msra.mxu0 0.0
  %2851 = vmatpush.msra.mxu0 0.0
  %2852 = vmatpush.msra.mxu0 0.0
  %2853 = vmatpush.msra.mxu0 0.0
  %2854 = vmatpush.msra.mxu0 %v2781
  %2855 = vmatmul.f32.gmra.mxu0 %v2837
  %v2856 = vpop.f32.mrf.mxu0
  %v2857 = vadd.f32 0.0, %v2856
  %2858 = vdwg.mxu0
  %v2859 = vld [vmem:[%s1 + $0x3b0] sm:$0xff]
  %v2861 = vsel %vm117, %v2777, 0
  %v2864 = vsel %vm117, %v2857, 0
  %2866 = vmatpush.msra.mxu0 0.0
  %2867 = vmatpush.msra.mxu0 0.0
  %2868 = vmatpush.msra.mxu0 0.0
  %2869 = vmatpush.msra.mxu0 0.0
  %2870 = vmatpush.msra.mxu0 0.0
  %2871 = vmatpush.msra.mxu0 0.0
  %2872 = vmatpush.msra.mxu0 0.0
  %2873 = vmatpush.msra.mxu0 0.0
  %2874 = vmatpush.msra.mxu0 0.0
  %2875 = vmatpush.msra.mxu0 0.0
  %2876 = vmatpush.msra.mxu0 0.0
  %2877 = vmatpush.msra.mxu0 0.0
  %2878 = vmatpush.msra.mxu0 0.0
  %2879 = vmatpush.msra.mxu0 0.0
  %2880 = vmatpush.msra.mxu0 0.0
  %2881 = vmatpush.msra.mxu0 %v2859
  %2882 = vmatmul.f32.gmra.mxu0 %v2861
  %v2883 = vpop.f32.mrf.mxu0
  %v2884 = vadd.f32 0.0, %v2883
  %2885 = vmatmul.f32.gmra.mxu0 %v2864
  %v2886 = vpop.f32.mrf.mxu0
  %v2887 = vadd.f32 0.0, %v2886
  %2888 = vdwg.mxu0
  %v2889 = vadd.f32 %v2607, %v2884
  %v2890 = vadd.f32 %v2608, %v2887
  %v2891 = vld [vmem:[%s1 + $0x320] sm:$0xff]
  %v2892 = vld [vmem:[%s1 + $0x328] sm:$0xff]
  %v2893 = vld [vmem:[%s1 + $0x330] sm:$0xff]
  %v2894 = vld [vmem:[%s1 + $0x338] sm:$0xff]
  %v2895 = vld [vmem:[%s1 + $0x340] sm:$0xff]
  %v2896 = vld [vmem:[%s1 + $0x348] sm:$0xff]
  %v2898 = vsel %vm29, %v2891, 0
  %2900 = vmatpush.xpose.msra.mxu0 0.0
  %2901 = vmatpush.xpose.msra.mxu0 0.0
  %2902 = vmatpush.xpose.msra.mxu0 0.0
  %2903 = vmatpush.xpose.msra.mxu0 0.0
  %2904 = vmatpush.xpose.msra.mxu0 0.0
  %2905 = vmatpush.xpose.msra.mxu0 0.0
  %2906 = vmatpush.xpose.msra.mxu0 0.0
  %2907 = vmatpush.xpose.msra.mxu0 0.0
  %2908 = vmatpush.xpose.msra.mxu0 0.0
  %2909 = vmatpush.xpose.msra.mxu0 0.0
  %2910 = vmatpush.xpose.msra.mxu0 0.0
  %2911 = vmatpush.xpose.msra.mxu0 0.0
  %2912 = vmatpush.xpose.msra.mxu0 0.0
  %2913 = vmatpush.xpose.msra.mxu0 0.0
  %2914 = vmatpush.xpose.msra.mxu0 0.0
  %2915 = vmatpush.xpose.msra.mxu0 %v2898
  %2916 = vmatmul.f32.gmra.mxu0 %v2616
  %v2917 = vpop.f32.mrf.mxu0
  %v2918 = vadd.f32 0.0, %v2917
  %2919 = vmatmul.f32.gmra.mxu0 %v2619
  %v2920 = vpop.f32.mrf.mxu0
  %v2921 = vadd.f32 0.0, %v2920
  %2922 = vdwg.mxu0
  %v2924 = vsel %vm29, %v2892, 0
  %2926 = vmatpush.xpose.msra.mxu0 0.0
  %2927 = vmatpush.xpose.msra.mxu0 0.0
  %2928 = vmatpush.xpose.msra.mxu0 0.0
  %2929 = vmatpush.xpose.msra.mxu0 0.0
  %2930 = vmatpush.xpose.msra.mxu0 0.0
  %2931 = vmatpush.xpose.msra.mxu0 0.0
  %2932 = vmatpush.xpose.msra.mxu0 0.0
  %2933 = vmatpush.xpose.msra.mxu0 0.0
  %2934 = vmatpush.xpose.msra.mxu0 0.0
  %2935 = vmatpush.xpose.msra.mxu0 0.0
  %2936 = vmatpush.xpose.msra.mxu0 0.0
  %2937 = vmatpush.xpose.msra.mxu0 0.0
  %2938 = vmatpush.xpose.msra.mxu0 0.0
  %2939 = vmatpush.xpose.msra.mxu0 0.0
  %2940 = vmatpush.xpose.msra.mxu0 0.0
  %2941 = vmatpush.xpose.msra.mxu0 %v2924
  %2942 = vmatmul.f32.gmra.mxu0 %v2616
  %v2943 = vpop.f32.mrf.mxu0
  %v2944 = vadd.f32 0.0, %v2943
  %2945 = vmatmul.f32.gmra.mxu0 %v2619
  %v2946 = vpop.f32.mrf.mxu0
  %v2947 = vadd.f32 0.0, %v2946
  %2948 = vdwg.mxu0
  %v2950 = vsel %vm29, %v2893, 0
  %2952 = vmatpush.xpose.msra.mxu0 0.0
  %2953 = vmatpush.xpose.msra.mxu0 0.0
  %2954 = vmatpush.xpose.msra.mxu0 0.0
  %2955 = vmatpush.xpose.msra.mxu0 0.0
  %2956 = vmatpush.xpose.msra.mxu0 0.0
  %2957 = vmatpush.xpose.msra.mxu0 0.0
  %2958 = vmatpush.xpose.msra.mxu0 0.0
  %2959 = vmatpush.xpose.msra.mxu0 0.0
  %2960 = vmatpush.xpose.msra.mxu0 0.0
  %2961 = vmatpush.xpose.msra.mxu0 0.0
  %2962 = vmatpush.xpose.msra.mxu0 0.0
  %2963 = vmatpush.xpose.msra.mxu0 0.0
  %2964 = vmatpush.xpose.msra.mxu0 0.0
  %2965 = vmatpush.xpose.msra.mxu0 0.0
  %2966 = vmatpush.xpose.msra.mxu0 0.0
  %2967 = vmatpush.xpose.msra.mxu0 %v2950
  %2968 = vmatmul.f32.gmra.mxu0 %v2616
  %v2969 = vpop.f32.mrf.mxu0
  %v2970 = vadd.f32 0.0, %v2969
  %2971 = vmatmul.f32.gmra.mxu0 %v2619
  %v2972 = vpop.f32.mrf.mxu0
  %v2973 = vadd.f32 0.0, %v2972
  %2974 = vdwg.mxu0
  %v2975 = vadd.f32 %v2918, %v2894
  %v2976 = vadd.f32 %v2944, %v2895
  %v2977 = vadd.f32 %v2970, %v2896
  %v2979 = vsel %vm117, %v2975, 0
  %v2982 = vsel %vm117, %v2976, 0
  %2984 = vmatpush.xpose.msra.mxu0 0.0
  %2985 = vmatpush.xpose.msra.mxu0 0.0
  %2986 = vmatpush.xpose.msra.mxu0 0.0
  %2987 = vmatpush.xpose.msra.mxu0 0.0
  %2988 = vmatpush.xpose.msra.mxu0 0.0
  %2989 = vmatpush.xpose.msra.mxu0 0.0
  %2990 = vmatpush.xpose.msra.mxu0 0.0
  %2991 = vmatpush.xpose.msra.mxu0 0.0
  %2992 = vmatpush.xpose.msra.mxu0 0.0
  %2993 = vmatpush.xpose.msra.mxu0 0.0
  %2994 = vmatpush.xpose.msra.mxu0 0.0
  %2995 = vmatpush.xpose.msra.mxu0 0.0
  %2996 = vmatpush.xpose.msra.mxu0 0.0
  %2997 = vmatpush.xpose.msra.mxu0 0.0
  %2998 = vmatpush.xpose.msra.mxu0 0.0
  %2999 = vmatpush.xpose.msra.mxu0 %v2982
  %3000 = vmatmul.f32.gmra.mxu0 %v2979
  %v3001 = vpop.f32.mrf.mxu0
  %v3002 = vadd.f32 0.0, %v3001
  %3003 = vdwg.mxu0
  %v3004 = vmul.f32 %v3002, 0.35355338
  %v3005 = vadd.f32 %v3004, %v17
  %v3006 = vsel %vm117, %v3005, -inf
  %3007 = vmax.xlane.f32.xlu0 %v3006
  %v3008 = vpop.xlane.xlu0 %3007
  %v3009 = vsub.f32 %v3005, %v3008
  %v3010 = vmul.f32 %v3009, 1.442695
  %v3011 = vpow.pop %v3010
  %v3012 = vsel %vm117, %v3011, 0.0
  %3013 = vadd.xlane.f32.xlu0 %v3012
  %v3014 = vpop.xlane.xlu0 %3013
  %v3015 = vrcp.pop %v3014
  %v3016 = vmul.f32 %v3014, %v3015
  %v3017 = vsub.f32 1.0, %v3016
  %v3018 = vmul.f32 %v3015, %v3017
  %v3019 = vadd.f32 %v3015, %v3018
  %vm3020 = vweird.f32 %v3014
  %vm3021 = vweird.f32 %v3015
  %vm3022 = vmor %vm3020, %vm3021
  %v3023 = vsel %vm3022, %v3015, %v3019
  %v3024 = vand.u32 2147483647, %v3014
  %vm3025 = vcmp.eq.f32.partialorder %v3024, 8.507059e+37
  %v3026 = vand.u32 %v3014, 2147483648
  %v3027 = vor.u32 1.1754944e-38, %v3026
  %v3028 = vsel %vm3025, %v3027, %v3023
  %v3029 = vmul.f32 %v3011, %v3028
  %s3030 = scalar_lea.vmem %s3, 136
  %3031 = vst.msk [vmem:[%s3030] sm:$0xff] %vm117, %v3029
  %v3033 = vsel %vm117, %v3029, 0
  %3035 = vmatpush.msra.mxu0 0.0
  %3036 = vmatpush.msra.mxu0 0.0
  %3037 = vmatpush.msra.mxu0 0.0
  %3038 = vmatpush.msra.mxu0 0.0
  %3039 = vmatpush.msra.mxu0 0.0
  %3040 = vmatpush.msra.mxu0 0.0
  %3041 = vmatpush.msra.mxu0 0.0
  %3042 = vmatpush.msra.mxu0 0.0
  %3043 = vmatpush.msra.mxu0 0.0
  %3044 = vmatpush.msra.mxu0 0.0
  %3045 = vmatpush.msra.mxu0 0.0
  %3046 = vmatpush.msra.mxu0 0.0
  %3047 = vmatpush.msra.mxu0 0.0
  %3048 = vmatpush.msra.mxu0 0.0
  %3049 = vmatpush.msra.mxu0 0.0
  %3050 = vmatpush.msra.mxu0 %v2977
  %3051 = vmatmul.f32.gmra.mxu0 %v3033
  %v3052 = vpop.f32.mrf.mxu0
  %v3053 = vadd.f32 0.0, %v3052
  %3054 = vdwg.mxu0
  %v3055 = vadd.f32 %v2921, %v2894
  %v3056 = vadd.f32 %v2947, %v2895
  %v3057 = vadd.f32 %v2973, %v2896
  %v3059 = vsel %vm117, %v3055, 0
  %v3062 = vsel %vm117, %v3056, 0
  %3064 = vmatpush.xpose.msra.mxu0 0.0
  %3065 = vmatpush.xpose.msra.mxu0 0.0
  %3066 = vmatpush.xpose.msra.mxu0 0.0
  %3067 = vmatpush.xpose.msra.mxu0 0.0
  %3068 = vmatpush.xpose.msra.mxu0 0.0
  %3069 = vmatpush.xpose.msra.mxu0 0.0
  %3070 = vmatpush.xpose.msra.mxu0 0.0
  %3071 = vmatpush.xpose.msra.mxu0 0.0
  %3072 = vmatpush.xpose.msra.mxu0 0.0
  %3073 = vmatpush.xpose.msra.mxu0 0.0
  %3074 = vmatpush.xpose.msra.mxu0 0.0
  %3075 = vmatpush.xpose.msra.mxu0 0.0
  %3076 = vmatpush.xpose.msra.mxu0 0.0
  %3077 = vmatpush.xpose.msra.mxu0 0.0
  %3078 = vmatpush.xpose.msra.mxu0 0.0
  %3079 = vmatpush.xpose.msra.mxu0 %v3062
  %3080 = vmatmul.f32.gmra.mxu0 %v3059
  %v3081 = vpop.f32.mrf.mxu0
  %v3082 = vadd.f32 0.0, %v3081
  %3083 = vdwg.mxu0
  %v3084 = vmul.f32 %v3082, 0.35355338
  %v3085 = vadd.f32 %v3084, %v18
  %v3086 = vsel %vm117, %v3085, -inf
  %3087 = vmax.xlane.f32.xlu0 %v3086
  %v3088 = vpop.xlane.xlu0 %3087
  %v3089 = vsub.f32 %v3085, %v3088
  %v3090 = vmul.f32 %v3089, 1.442695
  %v3091 = vpow.pop %v3090
  %v3092 = vsel %vm117, %v3091, 0.0
  %3093 = vadd.xlane.f32.xlu0 %v3092
  %v3094 = vpop.xlane.xlu0 %3093
  %v3095 = vrcp.pop %v3094
  %v3096 = vmul.f32 %v3094, %v3095
  %v3097 = vsub.f32 1.0, %v3096
  %v3098 = vmul.f32 %v3095, %v3097
  %v3099 = vadd.f32 %v3095, %v3098
  %vm3100 = vweird.f32 %v3094
  %vm3101 = vweird.f32 %v3095
  %vm3102 = vmor %vm3100, %vm3101
  %v3103 = vsel %vm3102, %v3095, %v3099
  %v3104 = vand.u32 2147483647, %v3094
  %vm3105 = vcmp.eq.f32.partialorder %v3104, 8.507059e+37
  %v3106 = vand.u32 %v3094, 2147483648
  %v3107 = vor.u32 1.1754944e-38, %v3106
  %v3108 = vsel %vm3105, %v3107, %v3103
  %v3109 = vmul.f32 %v3091, %v3108
  %s3110 = scalar_lea.vmem %s3, 168
  %3111 = vst.msk [vmem:[%s3110] sm:$0xff] %vm117, %v3109
  %v3113 = vsel %vm117, %v3109, 0
  %3115 = vmatpush.msra.mxu0 0.0
  %3116 = vmatpush.msra.mxu0 0.0
  %3117 = vmatpush.msra.mxu0 0.0
  %3118 = vmatpush.msra.mxu0 0.0
  %3119 = vmatpush.msra.mxu0 0.0
  %3120 = vmatpush.msra.mxu0 0.0
  %3121 = vmatpush.msra.mxu0 0.0
  %3122 = vmatpush.msra.mxu0 0.0
  %3123 = vmatpush.msra.mxu0 0.0
  %3124 = vmatpush.msra.mxu0 0.0
  %3125 = vmatpush.msra.mxu0 0.0
  %3126 = vmatpush.msra.mxu0 0.0
  %3127 = vmatpush.msra.mxu0 0.0
  %3128 = vmatpush.msra.mxu0 0.0
  %3129 = vmatpush.msra.mxu0 0.0
  %3130 = vmatpush.msra.mxu0 %v3057
  %3131 = vmatmul.f32.gmra.mxu0 %v3113
  %v3132 = vpop.f32.mrf.mxu0
  %v3133 = vadd.f32 0.0, %v3132
  %3134 = vdwg.mxu0
  %v3135 = vld [vmem:[%s1 + $0x3b8] sm:$0xff]
  %v3137 = vsel %vm117, %v3053, 0
  %v3140 = vsel %vm117, %v3133, 0
  %3142 = vmatpush.msra.mxu0 0.0
  %3143 = vmatpush.msra.mxu0 0.0
  %3144 = vmatpush.msra.mxu0 0.0
  %3145 = vmatpush.msra.mxu0 0.0
  %3146 = vmatpush.msra.mxu0 0.0
  %3147 = vmatpush.msra.mxu0 0.0
  %3148 = vmatpush.msra.mxu0 0.0
  %3149 = vmatpush.msra.mxu0 0.0
  %3150 = vmatpush.msra.mxu0 0.0
  %3151 = vmatpush.msra.mxu0 0.0
  %3152 = vmatpush.msra.mxu0 0.0
  %3153 = vmatpush.msra.mxu0 0.0
  %3154 = vmatpush.msra.mxu0 0.0
  %3155 = vmatpush.msra.mxu0 0.0
  %3156 = vmatpush.msra.mxu0 0.0
  %3157 = vmatpush.msra.mxu0 %v3135
  %3158 = vmatmul.f32.gmra.mxu0 %v3137
  %v3159 = vpop.f32.mrf.mxu0
  %v3160 = vadd.f32 0.0, %v3159
  %3161 = vmatmul.f32.gmra.mxu0 %v3140
  %v3162 = vpop.f32.mrf.mxu0
  %v3163 = vadd.f32 0.0, %v3162
  %3164 = vdwg.mxu0
  %v3165 = vadd.f32 %v2889, %v3160
  %v3166 = vadd.f32 %v2890, %v3163
  %v3167 = vld [vmem:[%s1 + $0x350] sm:$0xff]
  %v3168 = vld [vmem:[%s1 + $0x358] sm:$0xff]
  %v3169 = vld [vmem:[%s1 + $0x360] sm:$0xff]
  %v3170 = vld [vmem:[%s1 + $0x368] sm:$0xff]
  %v3171 = vld [vmem:[%s1 + $0x370] sm:$0xff]
  %v3172 = vld [vmem:[%s1 + $0x378] sm:$0xff]
  %v3174 = vsel %vm29, %v3167, 0
  %3176 = vmatpush.xpose.msra.mxu0 0.0
  %3177 = vmatpush.xpose.msra.mxu0 0.0
  %3178 = vmatpush.xpose.msra.mxu0 0.0
  %3179 = vmatpush.xpose.msra.mxu0 0.0
  %3180 = vmatpush.xpose.msra.mxu0 0.0
  %3181 = vmatpush.xpose.msra.mxu0 0.0
  %3182 = vmatpush.xpose.msra.mxu0 0.0
  %3183 = vmatpush.xpose.msra.mxu0 0.0
  %3184 = vmatpush.xpose.msra.mxu0 0.0
  %3185 = vmatpush.xpose.msra.mxu0 0.0
  %3186 = vmatpush.xpose.msra.mxu0 0.0
  %3187 = vmatpush.xpose.msra.mxu0 0.0
  %3188 = vmatpush.xpose.msra.mxu0 0.0
  %3189 = vmatpush.xpose.msra.mxu0 0.0
  %3190 = vmatpush.xpose.msra.mxu0 0.0
  %3191 = vmatpush.xpose.msra.mxu0 %v3174
  %3192 = vmatmul.f32.gmra.mxu0 %v2616
  %v3193 = vpop.f32.mrf.mxu0
  %v3194 = vadd.f32 0.0, %v3193
  %3195 = vmatmul.f32.gmra.mxu0 %v2619
  %v3196 = vpop.f32.mrf.mxu0
  %v3197 = vadd.f32 0.0, %v3196
  %3198 = vdwg.mxu0
  %v3200 = vsel %vm29, %v3168, 0
  %3202 = vmatpush.xpose.msra.mxu0 0.0
  %3203 = vmatpush.xpose.msra.mxu0 0.0
  %3204 = vmatpush.xpose.msra.mxu0 0.0
  %3205 = vmatpush.xpose.msra.mxu0 0.0
  %3206 = vmatpush.xpose.msra.mxu0 0.0
  %3207 = vmatpush.xpose.msra.mxu0 0.0
  %3208 = vmatpush.xpose.msra.mxu0 0.0
  %3209 = vmatpush.xpose.msra.mxu0 0.0
  %3210 = vmatpush.xpose.msra.mxu0 0.0
  %3211 = vmatpush.xpose.msra.mxu0 0.0
  %3212 = vmatpush.xpose.msra.mxu0 0.0
  %3213 = vmatpush.xpose.msra.mxu0 0.0
  %3214 = vmatpush.xpose.msra.mxu0 0.0
  %3215 = vmatpush.xpose.msra.mxu0 0.0
  %3216 = vmatpush.xpose.msra.mxu0 0.0
  %3217 = vmatpush.xpose.msra.mxu0 %v3200
  %3218 = vmatmul.f32.gmra.mxu0 %v2616
  %v3219 = vpop.f32.mrf.mxu0
  %v3220 = vadd.f32 0.0, %v3219
  %3221 = vmatmul.f32.gmra.mxu0 %v2619
  %v3222 = vpop.f32.mrf.mxu0
  %v3223 = vadd.f32 0.0, %v3222
  %3224 = vdwg.mxu0
  %v3226 = vsel %vm29, %v3169, 0
  %3228 = vmatpush.xpose.msra.mxu0 0.0
  %3229 = vmatpush.xpose.msra.mxu0 0.0
  %3230 = vmatpush.xpose.msra.mxu0 0.0
  %3231 = vmatpush.xpose.msra.mxu0 0.0
  %3232 = vmatpush.xpose.msra.mxu0 0.0
  %3233 = vmatpush.xpose.msra.mxu0 0.0
  %3234 = vmatpush.xpose.msra.mxu0 0.0
  %3235 = vmatpush.xpose.msra.mxu0 0.0
  %3236 = vmatpush.xpose.msra.mxu0 0.0
  %3237 = vmatpush.xpose.msra.mxu0 0.0
  %3238 = vmatpush.xpose.msra.mxu0 0.0
  %3239 = vmatpush.xpose.msra.mxu0 0.0
  %3240 = vmatpush.xpose.msra.mxu0 0.0
  %3241 = vmatpush.xpose.msra.mxu0 0.0
  %3242 = vmatpush.xpose.msra.mxu0 0.0
  %3243 = vmatpush.xpose.msra.mxu0 %v3226
  %3244 = vmatmul.f32.gmra.mxu0 %v2616
  %v3245 = vpop.f32.mrf.mxu0
  %v3246 = vadd.f32 0.0, %v3245
  %3247 = vmatmul.f32.gmra.mxu0 %v2619
  %v3248 = vpop.f32.mrf.mxu0
  %v3249 = vadd.f32 0.0, %v3248
  %3250 = vdwg.mxu0
  %v3251 = vadd.f32 %v3194, %v3170
  %v3252 = vadd.f32 %v3220, %v3171
  %v3253 = vadd.f32 %v3246, %v3172
  %v3255 = vsel %vm117, %v3251, 0
  %v3258 = vsel %vm117, %v3252, 0
  %3260 = vmatpush.xpose.msra.mxu0 0.0
  %3261 = vmatpush.xpose.msra.mxu0 0.0
  %3262 = vmatpush.xpose.msra.mxu0 0.0
  %3263 = vmatpush.xpose.msra.mxu0 0.0
  %3264 = vmatpush.xpose.msra.mxu0 0.0
  %3265 = vmatpush.xpose.msra.mxu0 0.0
  %3266 = vmatpush.xpose.msra.mxu0 0.0
  %3267 = vmatpush.xpose.msra.mxu0 0.0
  %3268 = vmatpush.xpose.msra.mxu0 0.0
  %3269 = vmatpush.xpose.msra.mxu0 0.0
  %3270 = vmatpush.xpose.msra.mxu0 0.0
  %3271 = vmatpush.xpose.msra.mxu0 0.0
  %3272 = vmatpush.xpose.msra.mxu0 0.0
  %3273 = vmatpush.xpose.msra.mxu0 0.0
  %3274 = vmatpush.xpose.msra.mxu0 0.0
  %3275 = vmatpush.xpose.msra.mxu0 %v3258
  %3276 = vmatmul.f32.gmra.mxu0 %v3255
  %v3277 = vpop.f32.mrf.mxu0
  %v3278 = vadd.f32 0.0, %v3277
  %3279 = vdwg.mxu0
  %v3280 = vmul.f32 %v3278, 0.35355338
  %v3281 = vadd.f32 %v3280, %v17
  %v3282 = vsel %vm117, %v3281, -inf
  %3283 = vmax.xlane.f32.xlu0 %v3282
  %v3284 = vpop.xlane.xlu0 %3283
  %v3285 = vsub.f32 %v3281, %v3284
  %v3286 = vmul.f32 %v3285, 1.442695
  %v3287 = vpow.pop %v3286
  %v3288 = vsel %vm117, %v3287, 0.0
  %3289 = vadd.xlane.f32.xlu0 %v3288
  %v3290 = vpop.xlane.xlu0 %3289
  %v3291 = vrcp.pop %v3290
  %v3292 = vmul.f32 %v3290, %v3291
  %v3293 = vsub.f32 1.0, %v3292
  %v3294 = vmul.f32 %v3291, %v3293
  %v3295 = vadd.f32 %v3291, %v3294
  %vm3296 = vweird.f32 %v3290
  %vm3297 = vweird.f32 %v3291
  %vm3298 = vmor %vm3296, %vm3297
  %v3299 = vsel %vm3298, %v3291, %v3295
  %v3300 = vand.u32 2147483647, %v3290
  %vm3301 = vcmp.eq.f32.partialorder %v3300, 8.507059e+37
  %v3302 = vand.u32 %v3290, 2147483648
  %v3303 = vor.u32 1.1754944e-38, %v3302
  %v3304 = vsel %vm3301, %v3303, %v3299
  %v3305 = vmul.f32 %v3287, %v3304
  %s3306 = scalar_lea.vmem %s3, 144
  %3307 = vst.msk [vmem:[%s3306] sm:$0xff] %vm117, %v3305
  %v3309 = vsel %vm117, %v3305, 0
  %3311 = vmatpush.msra.mxu0 0.0
  %3312 = vmatpush.msra.mxu0 0.0
  %3313 = vmatpush.msra.mxu0 0.0
  %3314 = vmatpush.msra.mxu0 0.0
  %3315 = vmatpush.msra.mxu0 0.0
  %3316 = vmatpush.msra.mxu0 0.0
  %3317 = vmatpush.msra.mxu0 0.0
  %3318 = vmatpush.msra.mxu0 0.0
  %3319 = vmatpush.msra.mxu0 0.0
  %3320 = vmatpush.msra.mxu0 0.0
  %3321 = vmatpush.msra.mxu0 0.0
  %3322 = vmatpush.msra.mxu0 0.0
  %3323 = vmatpush.msra.mxu0 0.0
  %3324 = vmatpush.msra.mxu0 0.0
  %3325 = vmatpush.msra.mxu0 0.0
  %3326 = vmatpush.msra.mxu0 %v3253
  %3327 = vmatmul.f32.gmra.mxu0 %v3309
  %v3328 = vpop.f32.mrf.mxu0
  %v3329 = vadd.f32 0.0, %v3328
  %3330 = vdwg.mxu0
  %v3331 = vadd.f32 %v3197, %v3170
  %v3332 = vadd.f32 %v3223, %v3171
  %v3333 = vadd.f32 %v3249, %v3172
  %v3335 = vsel %vm117, %v3331, 0
  %v3338 = vsel %vm117, %v3332, 0
  %3340 = vmatpush.xpose.msra.mxu0 0.0
  %3341 = vmatpush.xpose.msra.mxu0 0.0
  %3342 = vmatpush.xpose.msra.mxu0 0.0
  %3343 = vmatpush.xpose.msra.mxu0 0.0
  %3344 = vmatpush.xpose.msra.mxu0 0.0
  %3345 = vmatpush.xpose.msra.mxu0 0.0
  %3346 = vmatpush.xpose.msra.mxu0 0.0
  %3347 = vmatpush.xpose.msra.mxu0 0.0
  %3348 = vmatpush.xpose.msra.mxu0 0.0
  %3349 = vmatpush.xpose.msra.mxu0 0.0
  %3350 = vmatpush.xpose.msra.mxu0 0.0
  %3351 = vmatpush.xpose.msra.mxu0 0.0
  %3352 = vmatpush.xpose.msra.mxu0 0.0
  %3353 = vmatpush.xpose.msra.mxu0 0.0
  %3354 = vmatpush.xpose.msra.mxu0 0.0
  %3355 = vmatpush.xpose.msra.mxu0 %v3338
  %3356 = vmatmul.f32.gmra.mxu0 %v3335
  %v3357 = vpop.f32.mrf.mxu0
  %v3358 = vadd.f32 0.0, %v3357
  %3359 = vdwg.mxu0
  %v3360 = vmul.f32 %v3358, 0.35355338
  %v3361 = vadd.f32 %v3360, %v18
  %v3362 = vsel %vm117, %v3361, -inf
  %3363 = vmax.xlane.f32.xlu0 %v3362
  %v3364 = vpop.xlane.xlu0 %3363
  %v3365 = vsub.f32 %v3361, %v3364
  %v3366 = vmul.f32 %v3365, 1.442695
  %v3367 = vpow.pop %v3366
  %v3368 = vsel %vm117, %v3367, 0.0
  %3369 = vadd.xlane.f32.xlu0 %v3368
  %v3370 = vpop.xlane.xlu0 %3369
  %v3371 = vrcp.pop %v3370
  %v3372 = vmul.f32 %v3370, %v3371
  %v3373 = vsub.f32 1.0, %v3372
  %v3374 = vmul.f32 %v3371, %v3373
  %v3375 = vadd.f32 %v3371, %v3374
  %vm3376 = vweird.f32 %v3370
  %vm3377 = vweird.f32 %v3371
  %vm3378 = vmor %vm3376, %vm3377
  %v3379 = vsel %vm3378, %v3371, %v3375
  %v3380 = vand.u32 2147483647, %v3370
  %vm3381 = vcmp.eq.f32.partialorder %v3380, 8.507059e+37
  %v3382 = vand.u32 %v3370, 2147483648
  %v3383 = vor.u32 1.1754944e-38, %v3382
  %v3384 = vsel %vm3381, %v3383, %v3379
  %v3385 = vmul.f32 %v3367, %v3384
  %s3386 = scalar_lea.vmem %s3, 176
  %3387 = vst.msk [vmem:[%s3386] sm:$0xff] %vm117, %v3385
  %v3389 = vsel %vm117, %v3385, 0
  %3391 = vmatpush.msra.mxu0 0.0
  %3392 = vmatpush.msra.mxu0 0.0
  %3393 = vmatpush.msra.mxu0 0.0
  %3394 = vmatpush.msra.mxu0 0.0
  %3395 = vmatpush.msra.mxu0 0.0
  %3396 = vmatpush.msra.mxu0 0.0
  %3397 = vmatpush.msra.mxu0 0.0
  %3398 = vmatpush.msra.mxu0 0.0
  %3399 = vmatpush.msra.mxu0 0.0
  %3400 = vmatpush.msra.mxu0 0.0
  %3401 = vmatpush.msra.mxu0 0.0
  %3402 = vmatpush.msra.mxu0 0.0
  %3403 = vmatpush.msra.mxu0 0.0
  %3404 = vmatpush.msra.mxu0 0.0
  %3405 = vmatpush.msra.mxu0 0.0
  %3406 = vmatpush.msra.mxu0 %v3333
  %3407 = vmatmul.f32.gmra.mxu0 %v3389
  %v3408 = vpop.f32.mrf.mxu0
  %v3409 = vadd.f32 0.0, %v3408
  %3410 = vdwg.mxu0
  %v3411 = vld [vmem:[%s1 + $0x3c0] sm:$0xff]
  %v3413 = vsel %vm117, %v3329, 0
  %v3416 = vsel %vm117, %v3409, 0
  %3418 = vmatpush.msra.mxu0 0.0
  %3419 = vmatpush.msra.mxu0 0.0
  %3420 = vmatpush.msra.mxu0 0.0
  %3421 = vmatpush.msra.mxu0 0.0
  %3422 = vmatpush.msra.mxu0 0.0
  %3423 = vmatpush.msra.mxu0 0.0
  %3424 = vmatpush.msra.mxu0 0.0
  %3425 = vmatpush.msra.mxu0 0.0
  %3426 = vmatpush.msra.mxu0 0.0
  %3427 = vmatpush.msra.mxu0 0.0
  %3428 = vmatpush.msra.mxu0 0.0
  %3429 = vmatpush.msra.mxu0 0.0
  %3430 = vmatpush.msra.mxu0 0.0
  %3431 = vmatpush.msra.mxu0 0.0
  %3432 = vmatpush.msra.mxu0 0.0
  %3433 = vmatpush.msra.mxu0 %v3411
  %3434 = vmatmul.f32.gmra.mxu0 %v3413
  %v3435 = vpop.f32.mrf.mxu0
  %v3436 = vadd.f32 0.0, %v3435
  %3437 = vmatmul.f32.gmra.mxu0 %v3416
  %v3438 = vpop.f32.mrf.mxu0
  %v3439 = vadd.f32 0.0, %v3438
  %3440 = vdwg.mxu0
  %v3441 = vadd.f32 %v3165, %v3436
  %v3442 = vadd.f32 %v3166, %v3439
  %v3443 = vld [vmem:[%s1 + $0x380] sm:$0xff]
  %v3444 = vld [vmem:[%s1 + $0x388] sm:$0xff]
  %v3445 = vld [vmem:[%s1 + $0x390] sm:$0xff]
  %v3446 = vld [vmem:[%s1 + $0x398] sm:$0xff]
  %v3447 = vld [vmem:[%s1 + $0x3a0] sm:$0xff]
  %v3448 = vld [vmem:[%s1 + $0x3a8] sm:$0xff]
  %v3450 = vsel %vm29, %v3443, 0
  %3452 = vmatpush.xpose.msra.mxu0 0.0
  %3453 = vmatpush.xpose.msra.mxu0 0.0
  %3454 = vmatpush.xpose.msra.mxu0 0.0
  %3455 = vmatpush.xpose.msra.mxu0 0.0
  %3456 = vmatpush.xpose.msra.mxu0 0.0
  %3457 = vmatpush.xpose.msra.mxu0 0.0
  %3458 = vmatpush.xpose.msra.mxu0 0.0
  %3459 = vmatpush.xpose.msra.mxu0 0.0
  %3460 = vmatpush.xpose.msra.mxu0 0.0
  %3461 = vmatpush.xpose.msra.mxu0 0.0
  %3462 = vmatpush.xpose.msra.mxu0 0.0
  %3463 = vmatpush.xpose.msra.mxu0 0.0
  %3464 = vmatpush.xpose.msra.mxu0 0.0
  %3465 = vmatpush.xpose.msra.mxu0 0.0
  %3466 = vmatpush.xpose.msra.mxu0 0.0
  %3467 = vmatpush.xpose.msra.mxu0 %v3450
  %3468 = vmatmul.f32.gmra.mxu0 %v2616
  %v3469 = vpop.f32.mrf.mxu0
  %v3470 = vadd.f32 0.0, %v3469
  %3471 = vmatmul.f32.gmra.mxu0 %v2619
  %v3472 = vpop.f32.mrf.mxu0
  %v3473 = vadd.f32 0.0, %v3472
  %3474 = vdwg.mxu0
  %v3476 = vsel %vm29, %v3444, 0
  %3478 = vmatpush.xpose.msra.mxu0 0.0
  %3479 = vmatpush.xpose.msra.mxu0 0.0
  %3480 = vmatpush.xpose.msra.mxu0 0.0
  %3481 = vmatpush.xpose.msra.mxu0 0.0
  %3482 = vmatpush.xpose.msra.mxu0 0.0
  %3483 = vmatpush.xpose.msra.mxu0 0.0
  %3484 = vmatpush.xpose.msra.mxu0 0.0
  %3485 = vmatpush.xpose.msra.mxu0 0.0
  %3486 = vmatpush.xpose.msra.mxu0 0.0
  %3487 = vmatpush.xpose.msra.mxu0 0.0
  %3488 = vmatpush.xpose.msra.mxu0 0.0
  %3489 = vmatpush.xpose.msra.mxu0 0.0
  %3490 = vmatpush.xpose.msra.mxu0 0.0
  %3491 = vmatpush.xpose.msra.mxu0 0.0
  %3492 = vmatpush.xpose.msra.mxu0 0.0
  %3493 = vmatpush.xpose.msra.mxu0 %v3476
  %3494 = vmatmul.f32.gmra.mxu0 %v2616
  %v3495 = vpop.f32.mrf.mxu0
  %v3496 = vadd.f32 0.0, %v3495
  %3497 = vmatmul.f32.gmra.mxu0 %v2619
  %v3498 = vpop.f32.mrf.mxu0
  %v3499 = vadd.f32 0.0, %v3498
  %3500 = vdwg.mxu0
  %v3502 = vsel %vm29, %v3445, 0
  %3504 = vmatpush.xpose.msra.mxu0 0.0
  %3505 = vmatpush.xpose.msra.mxu0 0.0
  %3506 = vmatpush.xpose.msra.mxu0 0.0
  %3507 = vmatpush.xpose.msra.mxu0 0.0
  %3508 = vmatpush.xpose.msra.mxu0 0.0
  %3509 = vmatpush.xpose.msra.mxu0 0.0
  %3510 = vmatpush.xpose.msra.mxu0 0.0
  %3511 = vmatpush.xpose.msra.mxu0 0.0
  %3512 = vmatpush.xpose.msra.mxu0 0.0
  %3513 = vmatpush.xpose.msra.mxu0 0.0
  %3514 = vmatpush.xpose.msra.mxu0 0.0
  %3515 = vmatpush.xpose.msra.mxu0 0.0
  %3516 = vmatpush.xpose.msra.mxu0 0.0
  %3517 = vmatpush.xpose.msra.mxu0 0.0
  %3518 = vmatpush.xpose.msra.mxu0 0.0
  %3519 = vmatpush.xpose.msra.mxu0 %v3502
  %3520 = vmatmul.f32.gmra.mxu0 %v2616
  %v3521 = vpop.f32.mrf.mxu0
  %v3522 = vadd.f32 0.0, %v3521
  %3523 = vmatmul.f32.gmra.mxu0 %v2619
  %v3524 = vpop.f32.mrf.mxu0
  %v3525 = vadd.f32 0.0, %v3524
  %3526 = vdwg.mxu0
  %v3527 = vadd.f32 %v3470, %v3446
  %v3528 = vadd.f32 %v3496, %v3447
  %v3529 = vadd.f32 %v3522, %v3448
  %v3531 = vsel %vm117, %v3527, 0
  %v3534 = vsel %vm117, %v3528, 0
  %3536 = vmatpush.xpose.msra.mxu0 0.0
  %3537 = vmatpush.xpose.msra.mxu0 0.0
  %3538 = vmatpush.xpose.msra.mxu0 0.0
  %3539 = vmatpush.xpose.msra.mxu0 0.0
  %3540 = vmatpush.xpose.msra.mxu0 0.0
  %3541 = vmatpush.xpose.msra.mxu0 0.0
  %3542 = vmatpush.xpose.msra.mxu0 0.0
  %3543 = vmatpush.xpose.msra.mxu0 0.0
  %3544 = vmatpush.xpose.msra.mxu0 0.0
  %3545 = vmatpush.xpose.msra.mxu0 0.0
  %3546 = vmatpush.xpose.msra.mxu0 0.0
  %3547 = vmatpush.xpose.msra.mxu0 0.0
  %3548 = vmatpush.xpose.msra.mxu0 0.0
  %3549 = vmatpush.xpose.msra.mxu0 0.0
  %3550 = vmatpush.xpose.msra.mxu0 0.0
  %3551 = vmatpush.xpose.msra.mxu0 %v3534
  %3552 = vmatmul.f32.gmra.mxu0 %v3531
  %v3553 = vpop.f32.mrf.mxu0
  %v3554 = vadd.f32 0.0, %v3553
  %3555 = vdwg.mxu0
  %v3556 = vmul.f32 %v3554, 0.35355338
  %v3557 = vadd.f32 %v3556, %v17
  %v3558 = vsel %vm117, %v3557, -inf
  %3559 = vmax.xlane.f32.xlu0 %v3558
  %v3560 = vpop.xlane.xlu0 %3559
  %v3561 = vsub.f32 %v3557, %v3560
  %v3562 = vmul.f32 %v3561, 1.442695
  %v3563 = vpow.pop %v3562
  %v3564 = vsel %vm117, %v3563, 0.0
  %3565 = vadd.xlane.f32.xlu0 %v3564
  %v3566 = vpop.xlane.xlu0 %3565
  %v3567 = vrcp.pop %v3566
  %v3568 = vmul.f32 %v3566, %v3567
  %v3569 = vsub.f32 1.0, %v3568
  %v3570 = vmul.f32 %v3567, %v3569
  %v3571 = vadd.f32 %v3567, %v3570
  %vm3572 = vweird.f32 %v3566
  %vm3573 = vweird.f32 %v3567
  %vm3574 = vmor %vm3572, %vm3573
  %v3575 = vsel %vm3574, %v3567, %v3571
  %v3576 = vand.u32 2147483647, %v3566
  %vm3577 = vcmp.eq.f32.partialorder %v3576, 8.507059e+37
  %v3578 = vand.u32 %v3566, 2147483648
  %v3579 = vor.u32 1.1754944e-38, %v3578
  %v3580 = vsel %vm3577, %v3579, %v3575
  %v3581 = vmul.f32 %v3563, %v3580
  %s3582 = scalar_lea.vmem %s3, 152
  %3583 = vst.msk [vmem:[%s3582] sm:$0xff] %vm117, %v3581
  %v3585 = vsel %vm117, %v3581, 0
  %3587 = vmatpush.msra.mxu0 0.0
  %3588 = vmatpush.msra.mxu0 0.0
  %3589 = vmatpush.msra.mxu0 0.0
  %3590 = vmatpush.msra.mxu0 0.0
  %3591 = vmatpush.msra.mxu0 0.0
  %3592 = vmatpush.msra.mxu0 0.0
  %3593 = vmatpush.msra.mxu0 0.0
  %3594 = vmatpush.msra.mxu0 0.0
  %3595 = vmatpush.msra.mxu0 0.0
  %3596 = vmatpush.msra.mxu0 0.0
  %3597 = vmatpush.msra.mxu0 0.0
  %3598 = vmatpush.msra.mxu0 0.0
  %3599 = vmatpush.msra.mxu0 0.0
  %3600 = vmatpush.msra.mxu0 0.0
  %3601 = vmatpush.msra.mxu0 0.0
  %3602 = vmatpush.msra.mxu0 %v3529
  %3603 = vmatmul.f32.gmra.mxu0 %v3585
  %v3604 = vpop.f32.mrf.mxu0
  %v3605 = vadd.f32 0.0, %v3604
  %3606 = vdwg.mxu0
  %v3607 = vadd.f32 %v3473, %v3446
  %v3608 = vadd.f32 %v3499, %v3447
  %v3609 = vadd.f32 %v3525, %v3448
  %v3611 = vsel %vm117, %v3607, 0
  %v3614 = vsel %vm117, %v3608, 0
  %3616 = vmatpush.xpose.msra.mxu0 0.0
  %3617 = vmatpush.xpose.msra.mxu0 0.0
  %3618 = vmatpush.xpose.msra.mxu0 0.0
  %3619 = vmatpush.xpose.msra.mxu0 0.0
  %3620 = vmatpush.xpose.msra.mxu0 0.0
  %3621 = vmatpush.xpose.msra.mxu0 0.0
  %3622 = vmatpush.xpose.msra.mxu0 0.0
  %3623 = vmatpush.xpose.msra.mxu0 0.0
  %3624 = vmatpush.xpose.msra.mxu0 0.0
  %3625 = vmatpush.xpose.msra.mxu0 0.0
  %3626 = vmatpush.xpose.msra.mxu0 0.0
  %3627 = vmatpush.xpose.msra.mxu0 0.0
  %3628 = vmatpush.xpose.msra.mxu0 0.0
  %3629 = vmatpush.xpose.msra.mxu0 0.0
  %3630 = vmatpush.xpose.msra.mxu0 0.0
  %3631 = vmatpush.xpose.msra.mxu0 %v3614
  %3632 = vmatmul.f32.gmra.mxu0 %v3611
  %v3633 = vpop.f32.mrf.mxu0
  %v3634 = vadd.f32 0.0, %v3633
  %3635 = vdwg.mxu0
  %v3636 = vmul.f32 %v3634, 0.35355338
  %v3637 = vadd.f32 %v3636, %v18
  %v3638 = vsel %vm117, %v3637, -inf
  %3639 = vmax.xlane.f32.xlu0 %v3638
  %v3640 = vpop.xlane.xlu0 %3639
  %v3641 = vsub.f32 %v3637, %v3640
  %v3642 = vmul.f32 %v3641, 1.442695
  %v3643 = vpow.pop %v3642
  %v3644 = vsel %vm117, %v3643, 0.0
  %3645 = vadd.xlane.f32.xlu0 %v3644
  %v3646 = vpop.xlane.xlu0 %3645
  %v3647 = vrcp.pop %v3646
  %v3648 = vmul.f32 %v3646, %v3647
  %v3649 = vsub.f32 1.0, %v3648
  %v3650 = vmul.f32 %v3647, %v3649
  %v3651 = vadd.f32 %v3647, %v3650
  %vm3652 = vweird.f32 %v3646
  %vm3653 = vweird.f32 %v3647
  %vm3654 = vmor %vm3652, %vm3653
  %v3655 = vsel %vm3654, %v3647, %v3651
  %v3656 = vand.u32 2147483647, %v3646
  %vm3657 = vcmp.eq.f32.partialorder %v3656, 8.507059e+37
  %v3658 = vand.u32 %v3646, 2147483648
  %v3659 = vor.u32 1.1754944e-38, %v3658
  %v3660 = vsel %vm3657, %v3659, %v3655
  %v3661 = vmul.f32 %v3643, %v3660
  %s3662 = scalar_lea.vmem %s3, 184
  %3663 = vst.msk [vmem:[%s3662] sm:$0xff] %vm117, %v3661
  %v3665 = vsel %vm117, %v3661, 0
  %3667 = vmatpush.msra.mxu0 0.0
  %3668 = vmatpush.msra.mxu0 0.0
  %3669 = vmatpush.msra.mxu0 0.0
  %3670 = vmatpush.msra.mxu0 0.0
  %3671 = vmatpush.msra.mxu0 0.0
  %3672 = vmatpush.msra.mxu0 0.0
  %3673 = vmatpush.msra.mxu0 0.0
  %3674 = vmatpush.msra.mxu0 0.0
  %3675 = vmatpush.msra.mxu0 0.0
  %3676 = vmatpush.msra.mxu0 0.0
  %3677 = vmatpush.msra.mxu0 0.0
  %3678 = vmatpush.msra.mxu0 0.0
  %3679 = vmatpush.msra.mxu0 0.0
  %3680 = vmatpush.msra.mxu0 0.0
  %3681 = vmatpush.msra.mxu0 0.0
  %3682 = vmatpush.msra.mxu0 %v3609
  %3683 = vmatmul.f32.gmra.mxu0 %v3665
  %v3684 = vpop.f32.mrf.mxu0
  %v3685 = vadd.f32 0.0, %v3684
  %3686 = vdwg.mxu0
  %v3687 = vld [vmem:[%s1 + $0x3c8] sm:$0xff]
  %v3689 = vsel %vm117, %v3605, 0
  %v3692 = vsel %vm117, %v3685, 0
  %3694 = vmatpush.msra.mxu0 0.0
  %3695 = vmatpush.msra.mxu0 0.0
  %3696 = vmatpush.msra.mxu0 0.0
  %3697 = vmatpush.msra.mxu0 0.0
  %3698 = vmatpush.msra.mxu0 0.0
  %3699 = vmatpush.msra.mxu0 0.0
  %3700 = vmatpush.msra.mxu0 0.0
  %3701 = vmatpush.msra.mxu0 0.0
  %3702 = vmatpush.msra.mxu0 0.0
  %3703 = vmatpush.msra.mxu0 0.0
  %3704 = vmatpush.msra.mxu0 0.0
  %3705 = vmatpush.msra.mxu0 0.0
  %3706 = vmatpush.msra.mxu0 0.0
  %3707 = vmatpush.msra.mxu0 0.0
  %3708 = vmatpush.msra.mxu0 0.0
  %3709 = vmatpush.msra.mxu0 %v3687
  %3710 = vmatmul.f32.gmra.mxu0 %v3689
  %v3711 = vpop.f32.mrf.mxu0
  %v3712 = vadd.f32 0.0, %v3711
  %3713 = vmatmul.f32.gmra.mxu0 %v3692
  %v3714 = vpop.f32.mrf.mxu0
  %v3715 = vadd.f32 0.0, %v3714
  %3716 = vdwg.mxu0
  %v3717 = vadd.f32 %v3441, %v3712
  %v3718 = vadd.f32 %v3442, %v3715
  %v3719 = vld [vmem:[%s1 + $0x3e0] sm:$0xff]
  %v3720 = vld [vmem:[%s1 + $0x3e8] sm:$0xff]
  %v3721 = vld [vmem:[%s1 + $0x3f0] sm:$0xff]
  %v3722 = vld [vmem:[%s1 + $0x3f8] sm:$0xff]
  %v3723 = vadd.f32 %v3717, %v2605
  %v3724 = vadd.f32 %v3718, %v2606
  %v3725 = vsel %vm29, %v3723, 0.0
  %3726 = vadd.xlane.f32.xlu0 %v3725
  %v3727 = vpop.xlane.xlu0 %3726
  %v3728 = vsel %vm29, %v3724, 0.0
  %3729 = vadd.xlane.f32.xlu0 %v3728
  %v3730 = vpop.xlane.xlu0 %3729
  %v3731 = vmul.f32 %v3727, %v1152
  %v3732 = vmul.f32 %v3730, %v1152
  %v3733 = vsub.f32 %v3723, %v3731
  %v3734 = vsub.f32 %v3724, %v3732
  %v3735 = vmul.f32 %v3733, %v3733
  %v3736 = vmul.f32 %v3734, %v3734
  %v3737 = vsel %vm29, %v3735, 0.0
  %3738 = vadd.xlane.f32.xlu0 %v3737
  %v3739 = vpop.xlane.xlu0 %3738
  %v3740 = vsel %vm29, %v3736, 0.0
  %3741 = vadd.xlane.f32.xlu0 %v3740
  %v3742 = vpop.xlane.xlu0 %3741
  %v3743 = vmul.f32 %v3739, %v1152
  %v3744 = vmul.f32 %v3742, %v1152
  %v3745 = vmul.f32 %v3719, %v3733
  %v3746 = vmul.f32 %v3720, %v3734
  %v3747 = vadd.f32 %v3743, 1e-05
  %v3748 = vadd.f32 %v3744, 1e-05
  %v3749 = vrsqrt.pop %v3747
  %v3750 = vmul.f32 %v3749, %v3747
  %v3751 = vmul.f32 %v3750, %v3749
  %v3752 = vmul.f32 0.5, %v3751
  %v3753 = vsub.f32 1.5, %v3752
  %v3754 = vmul.f32 %v3749, %v3753
  %vm3755 = vweird.f32 %v3747
  %vm3756 = vweird.f32 %v3749
  %vm3757 = vmor %vm3755, %vm3756
  %v3758 = vsel %vm3757, %v3749, %v3754
  %v3759 = vrsqrt.pop %v3748
  %v3760 = vmul.f32 %v3759, %v3748
  %v3761 = vmul.f32 %v3760, %v3759
  %v3762 = vmul.f32 0.5, %v3761
  %v3763 = vsub.f32 1.5, %v3762
  %v3764 = vmul.f32 %v3759, %v3763
  %vm3765 = vweird.f32 %v3748
  %vm3766 = vweird.f32 %v3759
  %vm3767 = vmor %vm3765, %vm3766
  %v3768 = vsel %vm3767, %v3759, %v3764
  %v3769 = vmul.f32 %v3745, %v3758
  %v3770 = vmul.f32 %v3746, %v3768
  %v3771 = vadd.f32 %v3769, %v3721
  %v3772 = vadd.f32 %v3770, %v3722
  %v3773 = vld [vmem:[%s1 + $0x4e0] sm:$0xff]
  %v3774 = vld [vmem:[%s1 + $0x4e8] sm:$0xff]
  %v3775 = vld [vmem:[%s1 + $0x400] sm:$0xff]
  %v3776 = vld [vmem:[%s1 + $0x408] sm:$0xff]
  %v3777 = vld [vmem:[%s1 + $0x410] sm:$0xff]
  %v3778 = vld [vmem:[%s1 + $0x418] sm:$0xff]
  %v3779 = vld [vmem:[%s1 + $0x420] sm:$0xff]
  %v3780 = vld [vmem:[%s1 + $0x428] sm:$0xff]
  %v3782 = vsel %vm29, %v3771, 0
  %v3785 = vsel %vm29, %v3772, 0
  %v3788 = vsel %vm29, %v3775, 0
  %3790 = vmatpush.xpose.msra.mxu0 0.0
  %3791 = vmatpush.xpose.msra.mxu0 0.0
  %3792 = vmatpush.xpose.msra.mxu0 0.0
  %3793 = vmatpush.xpose.msra.mxu0 0.0
  %3794 = vmatpush.xpose.msra.mxu0 0.0
  %3795 = vmatpush.xpose.msra.mxu0 0.0
  %3796 = vmatpush.xpose.msra.mxu0 0.0
  %3797 = vmatpush.xpose.msra.mxu0 0.0
  %3798 = vmatpush.xpose.msra.mxu0 0.0
  %3799 = vmatpush.xpose.msra.mxu0 0.0
  %3800 = vmatpush.xpose.msra.mxu0 0.0
  %3801 = vmatpush.xpose.msra.mxu0 0.0
  %3802 = vmatpush.xpose.msra.mxu0 0.0
  %3803 = vmatpush.xpose.msra.mxu0 0.0
  %3804 = vmatpush.xpose.msra.mxu0 0.0
  %3805 = vmatpush.xpose.msra.mxu0 %v3788
  %3806 = vmatmul.f32.gmra.mxu0 %v3782
  %v3807 = vpop.f32.mrf.mxu0
  %v3808 = vadd.f32 0.0, %v3807
  %3809 = vmatmul.f32.gmra.mxu0 %v3785
  %v3810 = vpop.f32.mrf.mxu0
  %v3811 = vadd.f32 0.0, %v3810
  %3812 = vdwg.mxu0
  %v3814 = vsel %vm29, %v3776, 0
  %3816 = vmatpush.xpose.msra.mxu0 0.0
  %3817 = vmatpush.xpose.msra.mxu0 0.0
  %3818 = vmatpush.xpose.msra.mxu0 0.0
  %3819 = vmatpush.xpose.msra.mxu0 0.0
  %3820 = vmatpush.xpose.msra.mxu0 0.0
  %3821 = vmatpush.xpose.msra.mxu0 0.0
  %3822 = vmatpush.xpose.msra.mxu0 0.0
  %3823 = vmatpush.xpose.msra.mxu0 0.0
  %3824 = vmatpush.xpose.msra.mxu0 0.0
  %3825 = vmatpush.xpose.msra.mxu0 0.0
  %3826 = vmatpush.xpose.msra.mxu0 0.0
  %3827 = vmatpush.xpose.msra.mxu0 0.0
  %3828 = vmatpush.xpose.msra.mxu0 0.0
  %3829 = vmatpush.xpose.msra.mxu0 0.0
  %3830 = vmatpush.xpose.msra.mxu0 0.0
  %3831 = vmatpush.xpose.msra.mxu0 %v3814
  %3832 = vmatmul.f32.gmra.mxu0 %v1236
  %v3833 = vpop.f32.mrf.mxu0
  %v3834 = vadd.f32 0.0, %v3833
  %3835 = vmatmul.f32.gmra.mxu0 %v1239
  %v3836 = vpop.f32.mrf.mxu0
  %v3837 = vadd.f32 0.0, %v3836
  %3838 = vdwg.mxu0
  %v3840 = vsel %vm29, %v3777, 0
  %3842 = vmatpush.xpose.msra.mxu0 0.0
  %3843 = vmatpush.xpose.msra.mxu0 0.0
  %3844 = vmatpush.xpose.msra.mxu0 0.0
  %3845 = vmatpush.xpose.msra.mxu0 0.0
  %3846 = vmatpush.xpose.msra.mxu0 0.0
  %3847 = vmatpush.xpose.msra.mxu0 0.0
  %3848 = vmatpush.xpose.msra.mxu0 0.0
  %3849 = vmatpush.xpose.msra.mxu0 0.0
  %3850 = vmatpush.xpose.msra.mxu0 0.0
  %3851 = vmatpush.xpose.msra.mxu0 0.0
  %3852 = vmatpush.xpose.msra.mxu0 0.0
  %3853 = vmatpush.xpose.msra.mxu0 0.0
  %3854 = vmatpush.xpose.msra.mxu0 0.0
  %3855 = vmatpush.xpose.msra.mxu0 0.0
  %3856 = vmatpush.xpose.msra.mxu0 0.0
  %3857 = vmatpush.xpose.msra.mxu0 %v3840
  %3858 = vmatmul.f32.gmra.mxu0 %v1236
  %v3859 = vpop.f32.mrf.mxu0
  %v3860 = vadd.f32 0.0, %v3859
  %3861 = vmatmul.f32.gmra.mxu0 %v1239
  %v3862 = vpop.f32.mrf.mxu0
  %v3863 = vadd.f32 0.0, %v3862
  %3864 = vdwg.mxu0
  %v3865 = vadd.f32 %v3808, %v3778
  %v3866 = vadd.f32 %v3834, %v3779
  %v3867 = vadd.f32 %v3860, %v3780
  %v3869 = vsel %vm117, %v3865, 0
  %v3872 = vsel %vm117, %v3866, 0
  %3874 = vmatpush.xpose.msra.mxu0 0.0
  %3875 = vmatpush.xpose.msra.mxu0 0.0
  %3876 = vmatpush.xpose.msra.mxu0 0.0
  %3877 = vmatpush.xpose.msra.mxu0 0.0
  %3878 = vmatpush.xpose.msra.mxu0 0.0
  %3879 = vmatpush.xpose.msra.mxu0 0.0
  %3880 = vmatpush.xpose.msra.mxu0 0.0
  %3881 = vmatpush.xpose.msra.mxu0 0.0
  %3882 = vmatpush.xpose.msra.mxu0 0.0
  %3883 = vmatpush.xpose.msra.mxu0 0.0
  %3884 = vmatpush.xpose.msra.mxu0 0.0
  %3885 = vmatpush.xpose.msra.mxu0 0.0
  %3886 = vmatpush.xpose.msra.mxu0 0.0
  %3887 = vmatpush.xpose.msra.mxu0 0.0
  %3888 = vmatpush.xpose.msra.mxu0 0.0
  %3889 = vmatpush.xpose.msra.mxu0 %v3872
  %3890 = vmatmul.f32.gmra.mxu0 %v3869
  %v3891 = vpop.f32.mrf.mxu0
  %v3892 = vadd.f32 0.0, %v3891
  %3893 = vdwg.mxu0
  %v3894 = vmul.f32 %v3892, 0.35355338
  %v3895 = vadd.f32 %v3894, %v19
  %v3896 = vsel %vm117, %v3895, -inf
  %3897 = vmax.xlane.f32.xlu0 %v3896
  %v3898 = vpop.xlane.xlu0 %3897
  %v3899 = vsub.f32 %v3895, %v3898
  %v3900 = vmul.f32 %v3899, 1.442695
  %v3901 = vpow.pop %v3900
  %v3902 = vsel %vm117, %v3901, 0.0
  %3903 = vadd.xlane.f32.xlu0 %v3902
  %v3904 = vpop.xlane.xlu0 %3903
  %v3905 = vrcp.pop %v3904
  %v3906 = vmul.f32 %v3904, %v3905
  %v3907 = vsub.f32 1.0, %v3906
  %v3908 = vmul.f32 %v3905, %v3907
  %v3909 = vadd.f32 %v3905, %v3908
  %vm3910 = vweird.f32 %v3904
  %vm3911 = vweird.f32 %v3905
  %vm3912 = vmor %vm3910, %vm3911
  %v3913 = vsel %vm3912, %v3905, %v3909
  %v3914 = vand.u32 2147483647, %v3904
  %vm3915 = vcmp.eq.f32.partialorder %v3914, 8.507059e+37
  %v3916 = vand.u32 %v3904, 2147483648
  %v3917 = vor.u32 1.1754944e-38, %v3916
  %v3918 = vsel %vm3915, %v3917, %v3913
  %v3919 = vmul.f32 %v3901, %v3918
  %s3920 = scalar_lea.vmem %s3, 192
  %3921 = vst.msk [vmem:[%s3920] sm:$0xff] %vm117, %v3919
  %v3923 = vsel %vm117, %v3919, 0
  %3925 = vmatpush.msra.mxu0 0.0
  %3926 = vmatpush.msra.mxu0 0.0
  %3927 = vmatpush.msra.mxu0 0.0
  %3928 = vmatpush.msra.mxu0 0.0
  %3929 = vmatpush.msra.mxu0 0.0
  %3930 = vmatpush.msra.mxu0 0.0
  %3931 = vmatpush.msra.mxu0 0.0
  %3932 = vmatpush.msra.mxu0 0.0
  %3933 = vmatpush.msra.mxu0 0.0
  %3934 = vmatpush.msra.mxu0 0.0
  %3935 = vmatpush.msra.mxu0 0.0
  %3936 = vmatpush.msra.mxu0 0.0
  %3937 = vmatpush.msra.mxu0 0.0
  %3938 = vmatpush.msra.mxu0 0.0
  %3939 = vmatpush.msra.mxu0 0.0
  %3940 = vmatpush.msra.mxu0 %v3867
  %3941 = vmatmul.f32.gmra.mxu0 %v3923
  %v3942 = vpop.f32.mrf.mxu0
  %v3943 = vadd.f32 0.0, %v3942
  %3944 = vdwg.mxu0
  %v3945 = vadd.f32 %v3811, %v3778
  %v3946 = vadd.f32 %v3837, %v3779
  %v3947 = vadd.f32 %v3863, %v3780
  %v3949 = vsel %vm117, %v3945, 0
  %v3952 = vsel %vm117, %v3946, 0
  %3954 = vmatpush.xpose.msra.mxu0 0.0
  %3955 = vmatpush.xpose.msra.mxu0 0.0
  %3956 = vmatpush.xpose.msra.mxu0 0.0
  %3957 = vmatpush.xpose.msra.mxu0 0.0
  %3958 = vmatpush.xpose.msra.mxu0 0.0
  %3959 = vmatpush.xpose.msra.mxu0 0.0
  %3960 = vmatpush.xpose.msra.mxu0 0.0
  %3961 = vmatpush.xpose.msra.mxu0 0.0
  %3962 = vmatpush.xpose.msra.mxu0 0.0
  %3963 = vmatpush.xpose.msra.mxu0 0.0
  %3964 = vmatpush.xpose.msra.mxu0 0.0
  %3965 = vmatpush.xpose.msra.mxu0 0.0
  %3966 = vmatpush.xpose.msra.mxu0 0.0
  %3967 = vmatpush.xpose.msra.mxu0 0.0
  %3968 = vmatpush.xpose.msra.mxu0 0.0
  %3969 = vmatpush.xpose.msra.mxu0 %v3952
  %3970 = vmatmul.f32.gmra.mxu0 %v3949
  %v3971 = vpop.f32.mrf.mxu0
  %v3972 = vadd.f32 0.0, %v3971
  %3973 = vdwg.mxu0
  %v3974 = vmul.f32 %v3972, 0.35355338
  %v3975 = vadd.f32 %v3974, %v20
  %v3976 = vsel %vm117, %v3975, -inf
  %3977 = vmax.xlane.f32.xlu0 %v3976
  %v3978 = vpop.xlane.xlu0 %3977
  %v3979 = vsub.f32 %v3975, %v3978
  %v3980 = vmul.f32 %v3979, 1.442695
  %v3981 = vpow.pop %v3980
  %v3982 = vsel %vm117, %v3981, 0.0
  %3983 = vadd.xlane.f32.xlu0 %v3982
  %v3984 = vpop.xlane.xlu0 %3983
  %v3985 = vrcp.pop %v3984
  %v3986 = vmul.f32 %v3984, %v3985
  %v3987 = vsub.f32 1.0, %v3986
  %v3988 = vmul.f32 %v3985, %v3987
  %v3989 = vadd.f32 %v3985, %v3988
  %vm3990 = vweird.f32 %v3984
  %vm3991 = vweird.f32 %v3985
  %vm3992 = vmor %vm3990, %vm3991
  %v3993 = vsel %vm3992, %v3985, %v3989
  %v3994 = vand.u32 2147483647, %v3984
  %vm3995 = vcmp.eq.f32.partialorder %v3994, 8.507059e+37
  %v3996 = vand.u32 %v3984, 2147483648
  %v3997 = vor.u32 1.1754944e-38, %v3996
  %v3998 = vsel %vm3995, %v3997, %v3993
  %v3999 = vmul.f32 %v3981, %v3998
  %s4000 = scalar_lea.vmem %s3, 224
  %4001 = vst.msk [vmem:[%s4000] sm:$0xff] %vm117, %v3999
  %v4003 = vsel %vm117, %v3999, 0
  %4005 = vmatpush.msra.mxu0 0.0
  %4006 = vmatpush.msra.mxu0 0.0
  %4007 = vmatpush.msra.mxu0 0.0
  %4008 = vmatpush.msra.mxu0 0.0
  %4009 = vmatpush.msra.mxu0 0.0
  %4010 = vmatpush.msra.mxu0 0.0
  %4011 = vmatpush.msra.mxu0 0.0
  %4012 = vmatpush.msra.mxu0 0.0
  %4013 = vmatpush.msra.mxu0 0.0
  %4014 = vmatpush.msra.mxu0 0.0
  %4015 = vmatpush.msra.mxu0 0.0
  %4016 = vmatpush.msra.mxu0 0.0
  %4017 = vmatpush.msra.mxu0 0.0
  %4018 = vmatpush.msra.mxu0 0.0
  %4019 = vmatpush.msra.mxu0 0.0
  %4020 = vmatpush.msra.mxu0 %v3947
  %4021 = vmatmul.f32.gmra.mxu0 %v4003
  %v4022 = vpop.f32.mrf.mxu0
  %v4023 = vadd.f32 0.0, %v4022
  %4024 = vdwg.mxu0
  %v4025 = vld [vmem:[%s1 + $0x4c0] sm:$0xff]
  %v4027 = vsel %vm117, %v3943, 0
  %v4030 = vsel %vm117, %v4023, 0
  %4032 = vmatpush.msra.mxu0 0.0
  %4033 = vmatpush.msra.mxu0 0.0
  %4034 = vmatpush.msra.mxu0 0.0
  %4035 = vmatpush.msra.mxu0 0.0
  %4036 = vmatpush.msra.mxu0 0.0
  %4037 = vmatpush.msra.mxu0 0.0
  %4038 = vmatpush.msra.mxu0 0.0
  %4039 = vmatpush.msra.mxu0 0.0
  %4040 = vmatpush.msra.mxu0 0.0
  %4041 = vmatpush.msra.mxu0 0.0
  %4042 = vmatpush.msra.mxu0 0.0
  %4043 = vmatpush.msra.mxu0 0.0
  %4044 = vmatpush.msra.mxu0 0.0
  %4045 = vmatpush.msra.mxu0 0.0
  %4046 = vmatpush.msra.mxu0 0.0
  %4047 = vmatpush.msra.mxu0 %v4025
  %4048 = vmatmul.f32.gmra.mxu0 %v4027
  %v4049 = vpop.f32.mrf.mxu0
  %v4050 = vadd.f32 0.0, %v4049
  %4051 = vmatmul.f32.gmra.mxu0 %v4030
  %v4052 = vpop.f32.mrf.mxu0
  %v4053 = vadd.f32 0.0, %v4052
  %4054 = vdwg.mxu0
  %v4055 = vadd.f32 %v3773, %v4050
  %v4056 = vadd.f32 %v3774, %v4053
  %v4057 = vld [vmem:[%s1 + $0x430] sm:$0xff]
  %v4058 = vld [vmem:[%s1 + $0x438] sm:$0xff]
  %v4059 = vld [vmem:[%s1 + $0x440] sm:$0xff]
  %v4060 = vld [vmem:[%s1 + $0x448] sm:$0xff]
  %v4061 = vld [vmem:[%s1 + $0x450] sm:$0xff]
  %v4062 = vld [vmem:[%s1 + $0x458] sm:$0xff]
  %v4064 = vsel %vm29, %v4057, 0
  %4066 = vmatpush.xpose.msra.mxu0 0.0
  %4067 = vmatpush.xpose.msra.mxu0 0.0
  %4068 = vmatpush.xpose.msra.mxu0 0.0
  %4069 = vmatpush.xpose.msra.mxu0 0.0
  %4070 = vmatpush.xpose.msra.mxu0 0.0
  %4071 = vmatpush.xpose.msra.mxu0 0.0
  %4072 = vmatpush.xpose.msra.mxu0 0.0
  %4073 = vmatpush.xpose.msra.mxu0 0.0
  %4074 = vmatpush.xpose.msra.mxu0 0.0
  %4075 = vmatpush.xpose.msra.mxu0 0.0
  %4076 = vmatpush.xpose.msra.mxu0 0.0
  %4077 = vmatpush.xpose.msra.mxu0 0.0
  %4078 = vmatpush.xpose.msra.mxu0 0.0
  %4079 = vmatpush.xpose.msra.mxu0 0.0
  %4080 = vmatpush.xpose.msra.mxu0 0.0
  %4081 = vmatpush.xpose.msra.mxu0 %v4064
  %4082 = vmatmul.f32.gmra.mxu0 %v3782
  %v4083 = vpop.f32.mrf.mxu0
  %v4084 = vadd.f32 0.0, %v4083
  %4085 = vmatmul.f32.gmra.mxu0 %v3785
  %v4086 = vpop.f32.mrf.mxu0
  %v4087 = vadd.f32 0.0, %v4086
  %4088 = vdwg.mxu0
  %v4090 = vsel %vm29, %v4058, 0
  %4092 = vmatpush.xpose.msra.mxu0 0.0
  %4093 = vmatpush.xpose.msra.mxu0 0.0
  %4094 = vmatpush.xpose.msra.mxu0 0.0
  %4095 = vmatpush.xpose.msra.mxu0 0.0
  %4096 = vmatpush.xpose.msra.mxu0 0.0
  %4097 = vmatpush.xpose.msra.mxu0 0.0
  %4098 = vmatpush.xpose.msra.mxu0 0.0
  %4099 = vmatpush.xpose.msra.mxu0 0.0
  %4100 = vmatpush.xpose.msra.mxu0 0.0
  %4101 = vmatpush.xpose.msra.mxu0 0.0
  %4102 = vmatpush.xpose.msra.mxu0 0.0
  %4103 = vmatpush.xpose.msra.mxu0 0.0
  %4104 = vmatpush.xpose.msra.mxu0 0.0
  %4105 = vmatpush.xpose.msra.mxu0 0.0
  %4106 = vmatpush.xpose.msra.mxu0 0.0
  %4107 = vmatpush.xpose.msra.mxu0 %v4090
  %4108 = vmatmul.f32.gmra.mxu0 %v1236
  %v4109 = vpop.f32.mrf.mxu0
  %v4110 = vadd.f32 0.0, %v4109
  %4111 = vmatmul.f32.gmra.mxu0 %v1239
  %v4112 = vpop.f32.mrf.mxu0
  %v4113 = vadd.f32 0.0, %v4112
  %4114 = vdwg.mxu0
  %v4116 = vsel %vm29, %v4059, 0
  %4118 = vmatpush.xpose.msra.mxu0 0.0
  %4119 = vmatpush.xpose.msra.mxu0 0.0
  %4120 = vmatpush.xpose.msra.mxu0 0.0
  %4121 = vmatpush.xpose.msra.mxu0 0.0
  %4122 = vmatpush.xpose.msra.mxu0 0.0
  %4123 = vmatpush.xpose.msra.mxu0 0.0
  %4124 = vmatpush.xpose.msra.mxu0 0.0
  %4125 = vmatpush.xpose.msra.mxu0 0.0
  %4126 = vmatpush.xpose.msra.mxu0 0.0
  %4127 = vmatpush.xpose.msra.mxu0 0.0
  %4128 = vmatpush.xpose.msra.mxu0 0.0
  %4129 = vmatpush.xpose.msra.mxu0 0.0
  %4130 = vmatpush.xpose.msra.mxu0 0.0
  %4131 = vmatpush.xpose.msra.mxu0 0.0
  %4132 = vmatpush.xpose.msra.mxu0 0.0
  %4133 = vmatpush.xpose.msra.mxu0 %v4116
  %4134 = vmatmul.f32.gmra.mxu0 %v1236
  %v4135 = vpop.f32.mrf.mxu0
  %v4136 = vadd.f32 0.0, %v4135
  %4137 = vmatmul.f32.gmra.mxu0 %v1239
  %v4138 = vpop.f32.mrf.mxu0
  %v4139 = vadd.f32 0.0, %v4138
  %4140 = vdwg.mxu0
  %v4141 = vadd.f32 %v4084, %v4060
  %v4142 = vadd.f32 %v4110, %v4061
  %v4143 = vadd.f32 %v4136, %v4062
  %v4145 = vsel %vm117, %v4141, 0
  %v4148 = vsel %vm117, %v4142, 0
  %4150 = vmatpush.xpose.msra.mxu0 0.0
  %4151 = vmatpush.xpose.msra.mxu0 0.0
  %4152 = vmatpush.xpose.msra.mxu0 0.0
  %4153 = vmatpush.xpose.msra.mxu0 0.0
  %4154 = vmatpush.xpose.msra.mxu0 0.0
  %4155 = vmatpush.xpose.msra.mxu0 0.0
  %4156 = vmatpush.xpose.msra.mxu0 0.0
  %4157 = vmatpush.xpose.msra.mxu0 0.0
  %4158 = vmatpush.xpose.msra.mxu0 0.0
  %4159 = vmatpush.xpose.msra.mxu0 0.0
  %4160 = vmatpush.xpose.msra.mxu0 0.0
  %4161 = vmatpush.xpose.msra.mxu0 0.0
  %4162 = vmatpush.xpose.msra.mxu0 0.0
  %4163 = vmatpush.xpose.msra.mxu0 0.0
  %4164 = vmatpush.xpose.msra.mxu0 0.0
  %4165 = vmatpush.xpose.msra.mxu0 %v4148
  %4166 = vmatmul.f32.gmra.mxu0 %v4145
  %v4167 = vpop.f32.mrf.mxu0
  %v4168 = vadd.f32 0.0, %v4167
  %4169 = vdwg.mxu0
  %v4170 = vmul.f32 %v4168, 0.35355338
  %v4171 = vadd.f32 %v4170, %v19
  %v4172 = vsel %vm117, %v4171, -inf
  %4173 = vmax.xlane.f32.xlu0 %v4172
  %v4174 = vpop.xlane.xlu0 %4173
  %v4175 = vsub.f32 %v4171, %v4174
  %v4176 = vmul.f32 %v4175, 1.442695
  %v4177 = vpow.pop %v4176
  %v4178 = vsel %vm117, %v4177, 0.0
  %4179 = vadd.xlane.f32.xlu0 %v4178
  %v4180 = vpop.xlane.xlu0 %4179
  %v4181 = vrcp.pop %v4180
  %v4182 = vmul.f32 %v4180, %v4181
  %v4183 = vsub.f32 1.0, %v4182
  %v4184 = vmul.f32 %v4181, %v4183
  %v4185 = vadd.f32 %v4181, %v4184
  %vm4186 = vweird.f32 %v4180
  %vm4187 = vweird.f32 %v4181
  %vm4188 = vmor %vm4186, %vm4187
  %v4189 = vsel %vm4188, %v4181, %v4185
  %v4190 = vand.u32 2147483647, %v4180
  %vm4191 = vcmp.eq.f32.partialorder %v4190, 8.507059e+37
  %v4192 = vand.u32 %v4180, 2147483648
  %v4193 = vor.u32 1.1754944e-38, %v4192
  %v4194 = vsel %vm4191, %v4193, %v4189
  %v4195 = vmul.f32 %v4177, %v4194
  %s4196 = scalar_lea.vmem %s3, 200
  %4197 = vst.msk [vmem:[%s4196] sm:$0xff] %vm117, %v4195
  %v4199 = vsel %vm117, %v4195, 0
  %4201 = vmatpush.msra.mxu0 0.0
  %4202 = vmatpush.msra.mxu0 0.0
  %4203 = vmatpush.msra.mxu0 0.0
  %4204 = vmatpush.msra.mxu0 0.0
  %4205 = vmatpush.msra.mxu0 0.0
  %4206 = vmatpush.msra.mxu0 0.0
  %4207 = vmatpush.msra.mxu0 0.0
  %4208 = vmatpush.msra.mxu0 0.0
  %4209 = vmatpush.msra.mxu0 0.0
  %4210 = vmatpush.msra.mxu0 0.0
  %4211 = vmatpush.msra.mxu0 0.0
  %4212 = vmatpush.msra.mxu0 0.0
  %4213 = vmatpush.msra.mxu0 0.0
  %4214 = vmatpush.msra.mxu0 0.0
  %4215 = vmatpush.msra.mxu0 0.0
  %4216 = vmatpush.msra.mxu0 %v4143
  %4217 = vmatmul.f32.gmra.mxu0 %v4199
  %v4218 = vpop.f32.mrf.mxu0
  %v4219 = vadd.f32 0.0, %v4218
  %4220 = vdwg.mxu0
  %v4221 = vadd.f32 %v4087, %v4060
  %v4222 = vadd.f32 %v4113, %v4061
  %v4223 = vadd.f32 %v4139, %v4062
  %v4225 = vsel %vm117, %v4221, 0
  %v4228 = vsel %vm117, %v4222, 0
  %4230 = vmatpush.xpose.msra.mxu0 0.0
  %4231 = vmatpush.xpose.msra.mxu0 0.0
  %4232 = vmatpush.xpose.msra.mxu0 0.0
  %4233 = vmatpush.xpose.msra.mxu0 0.0
  %4234 = vmatpush.xpose.msra.mxu0 0.0
  %4235 = vmatpush.xpose.msra.mxu0 0.0
  %4236 = vmatpush.xpose.msra.mxu0 0.0
  %4237 = vmatpush.xpose.msra.mxu0 0.0
  %4238 = vmatpush.xpose.msra.mxu0 0.0
  %4239 = vmatpush.xpose.msra.mxu0 0.0
  %4240 = vmatpush.xpose.msra.mxu0 0.0
  %4241 = vmatpush.xpose.msra.mxu0 0.0
  %4242 = vmatpush.xpose.msra.mxu0 0.0
  %4243 = vmatpush.xpose.msra.mxu0 0.0
  %4244 = vmatpush.xpose.msra.mxu0 0.0
  %4245 = vmatpush.xpose.msra.mxu0 %v4228
  %4246 = vmatmul.f32.gmra.mxu0 %v4225
  %v4247 = vpop.f32.mrf.mxu0
  %v4248 = vadd.f32 0.0, %v4247
  %4249 = vdwg.mxu0
  %v4250 = vmul.f32 %v4248, 0.35355338
  %v4251 = vadd.f32 %v4250, %v20
  %v4252 = vsel %vm117, %v4251, -inf
  %4253 = vmax.xlane.f32.xlu0 %v4252
  %v4254 = vpop.xlane.xlu0 %4253
  %v4255 = vsub.f32 %v4251, %v4254
  %v4256 = vmul.f32 %v4255, 1.442695
  %v4257 = vpow.pop %v4256
  %v4258 = vsel %vm117, %v4257, 0.0
  %4259 = vadd.xlane.f32.xlu0 %v4258
  %v4260 = vpop.xlane.xlu0 %4259
  %v4261 = vrcp.pop %v4260
  %v4262 = vmul.f32 %v4260, %v4261
  %v4263 = vsub.f32 1.0, %v4262
  %v4264 = vmul.f32 %v4261, %v4263
  %v4265 = vadd.f32 %v4261, %v4264
  %vm4266 = vweird.f32 %v4260
  %vm4267 = vweird.f32 %v4261
  %vm4268 = vmor %vm4266, %vm4267
  %v4269 = vsel %vm4268, %v4261, %v4265
  %v4270 = vand.u32 2147483647, %v4260
  %vm4271 = vcmp.eq.f32.partialorder %v4270, 8.507059e+37
  %v4272 = vand.u32 %v4260, 2147483648
  %v4273 = vor.u32 1.1754944e-38, %v4272
  %v4274 = vsel %vm4271, %v4273, %v4269
  %v4275 = vmul.f32 %v4257, %v4274
  %s4276 = scalar_lea.vmem %s3, 232
  %4277 = vst.msk [vmem:[%s4276] sm:$0xff] %vm117, %v4275
  %v4279 = vsel %vm117, %v4275, 0
  %4281 = vmatpush.msra.mxu0 0.0
  %4282 = vmatpush.msra.mxu0 0.0
  %4283 = vmatpush.msra.mxu0 0.0
  %4284 = vmatpush.msra.mxu0 0.0
  %4285 = vmatpush.msra.mxu0 0.0
  %4286 = vmatpush.msra.mxu0 0.0
  %4287 = vmatpush.msra.mxu0 0.0
  %4288 = vmatpush.msra.mxu0 0.0
  %4289 = vmatpush.msra.mxu0 0.0
  %4290 = vmatpush.msra.mxu0 0.0
  %4291 = vmatpush.msra.mxu0 0.0
  %4292 = vmatpush.msra.mxu0 0.0
  %4293 = vmatpush.msra.mxu0 0.0
  %4294 = vmatpush.msra.mxu0 0.0
  %4295 = vmatpush.msra.mxu0 0.0
  %4296 = vmatpush.msra.mxu0 %v4223
  %4297 = vmatmul.f32.gmra.mxu0 %v4279
  %v4298 = vpop.f32.mrf.mxu0
  %v4299 = vadd.f32 0.0, %v4298
  %4300 = vdwg.mxu0
  %v4301 = vld [vmem:[%s1 + $0x4c8] sm:$0xff]
  %v4303 = vsel %vm117, %v4219, 0
  %v4306 = vsel %vm117, %v4299, 0
  %4308 = vmatpush.msra.mxu0 0.0
  %4309 = vmatpush.msra.mxu0 0.0
  %4310 = vmatpush.msra.mxu0 0.0
  %4311 = vmatpush.msra.mxu0 0.0
  %4312 = vmatpush.msra.mxu0 0.0
  %4313 = vmatpush.msra.mxu0 0.0
  %4314 = vmatpush.msra.mxu0 0.0
  %4315 = vmatpush.msra.mxu0 0.0
  %4316 = vmatpush.msra.mxu0 0.0
  %4317 = vmatpush.msra.mxu0 0.0
  %4318 = vmatpush.msra.mxu0 0.0
  %4319 = vmatpush.msra.mxu0 0.0
  %4320 = vmatpush.msra.mxu0 0.0
  %4321 = vmatpush.msra.mxu0 0.0
  %4322 = vmatpush.msra.mxu0 0.0
  %4323 = vmatpush.msra.mxu0 %v4301
  %4324 = vmatmul.f32.gmra.mxu0 %v4303
  %v4325 = vpop.f32.mrf.mxu0
  %v4326 = vadd.f32 0.0, %v4325
  %4327 = vmatmul.f32.gmra.mxu0 %v4306
  %v4328 = vpop.f32.mrf.mxu0
  %v4329 = vadd.f32 0.0, %v4328
  %4330 = vdwg.mxu0
  %v4331 = vadd.f32 %v4055, %v4326
  %v4332 = vadd.f32 %v4056, %v4329
  %v4333 = vld [vmem:[%s1 + $0x460] sm:$0xff]
  %v4334 = vld [vmem:[%s1 + $0x468] sm:$0xff]
  %v4335 = vld [vmem:[%s1 + $0x470] sm:$0xff]
  %v4336 = vld [vmem:[%s1 + $0x478] sm:$0xff]
  %v4337 = vld [vmem:[%s1 + $0x480] sm:$0xff]
  %v4338 = vld [vmem:[%s1 + $0x488] sm:$0xff]
  %v4340 = vsel %vm29, %v4333, 0
  %4342 = vmatpush.xpose.msra.mxu0 0.0
  %4343 = vmatpush.xpose.msra.mxu0 0.0
  %4344 = vmatpush.xpose.msra.mxu0 0.0
  %4345 = vmatpush.xpose.msra.mxu0 0.0
  %4346 = vmatpush.xpose.msra.mxu0 0.0
  %4347 = vmatpush.xpose.msra.mxu0 0.0
  %4348 = vmatpush.xpose.msra.mxu0 0.0
  %4349 = vmatpush.xpose.msra.mxu0 0.0
  %4350 = vmatpush.xpose.msra.mxu0 0.0
  %4351 = vmatpush.xpose.msra.mxu0 0.0
  %4352 = vmatpush.xpose.msra.mxu0 0.0
  %4353 = vmatpush.xpose.msra.mxu0 0.0
  %4354 = vmatpush.xpose.msra.mxu0 0.0
  %4355 = vmatpush.xpose.msra.mxu0 0.0
  %4356 = vmatpush.xpose.msra.mxu0 0.0
  %4357 = vmatpush.xpose.msra.mxu0 %v4340
  %4358 = vmatmul.f32.gmra.mxu0 %v3782
  %v4359 = vpop.f32.mrf.mxu0
  %v4360 = vadd.f32 0.0, %v4359
  %4361 = vmatmul.f32.gmra.mxu0 %v3785
  %v4362 = vpop.f32.mrf.mxu0
  %v4363 = vadd.f32 0.0, %v4362
  %4364 = vdwg.mxu0
  %v4366 = vsel %vm29, %v4334, 0
  %4368 = vmatpush.xpose.msra.mxu0 0.0
  %4369 = vmatpush.xpose.msra.mxu0 0.0
  %4370 = vmatpush.xpose.msra.mxu0 0.0
  %4371 = vmatpush.xpose.msra.mxu0 0.0
  %4372 = vmatpush.xpose.msra.mxu0 0.0
  %4373 = vmatpush.xpose.msra.mxu0 0.0
  %4374 = vmatpush.xpose.msra.mxu0 0.0
  %4375 = vmatpush.xpose.msra.mxu0 0.0
  %4376 = vmatpush.xpose.msra.mxu0 0.0
  %4377 = vmatpush.xpose.msra.mxu0 0.0
  %4378 = vmatpush.xpose.msra.mxu0 0.0
  %4379 = vmatpush.xpose.msra.mxu0 0.0
  %4380 = vmatpush.xpose.msra.mxu0 0.0
  %4381 = vmatpush.xpose.msra.mxu0 0.0
  %4382 = vmatpush.xpose.msra.mxu0 0.0
  %4383 = vmatpush.xpose.msra.mxu0 %v4366
  %4384 = vmatmul.f32.gmra.mxu0 %v1236
  %v4385 = vpop.f32.mrf.mxu0
  %v4386 = vadd.f32 0.0, %v4385
  %4387 = vmatmul.f32.gmra.mxu0 %v1239
  %v4388 = vpop.f32.mrf.mxu0
  %v4389 = vadd.f32 0.0, %v4388
  %4390 = vdwg.mxu0
  %v4392 = vsel %vm29, %v4335, 0
  %4394 = vmatpush.xpose.msra.mxu0 0.0
  %4395 = vmatpush.xpose.msra.mxu0 0.0
  %4396 = vmatpush.xpose.msra.mxu0 0.0
  %4397 = vmatpush.xpose.msra.mxu0 0.0
  %4398 = vmatpush.xpose.msra.mxu0 0.0
  %4399 = vmatpush.xpose.msra.mxu0 0.0
  %4400 = vmatpush.xpose.msra.mxu0 0.0
  %4401 = vmatpush.xpose.msra.mxu0 0.0
  %4402 = vmatpush.xpose.msra.mxu0 0.0
  %4403 = vmatpush.xpose.msra.mxu0 0.0
  %4404 = vmatpush.xpose.msra.mxu0 0.0
  %4405 = vmatpush.xpose.msra.mxu0 0.0
  %4406 = vmatpush.xpose.msra.mxu0 0.0
  %4407 = vmatpush.xpose.msra.mxu0 0.0
  %4408 = vmatpush.xpose.msra.mxu0 0.0
  %4409 = vmatpush.xpose.msra.mxu0 %v4392
  %4410 = vmatmul.f32.gmra.mxu0 %v1236
  %v4411 = vpop.f32.mrf.mxu0
  %v4412 = vadd.f32 0.0, %v4411
  %4413 = vmatmul.f32.gmra.mxu0 %v1239
  %v4414 = vpop.f32.mrf.mxu0
  %v4415 = vadd.f32 0.0, %v4414
  %4416 = vdwg.mxu0
  %v4417 = vadd.f32 %v4360, %v4336
  %v4418 = vadd.f32 %v4386, %v4337
  %v4419 = vadd.f32 %v4412, %v4338
  %v4421 = vsel %vm117, %v4417, 0
  %v4424 = vsel %vm117, %v4418, 0
  %4426 = vmatpush.xpose.msra.mxu0 0.0
  %4427 = vmatpush.xpose.msra.mxu0 0.0
  %4428 = vmatpush.xpose.msra.mxu0 0.0
  %4429 = vmatpush.xpose.msra.mxu0 0.0
  %4430 = vmatpush.xpose.msra.mxu0 0.0
  %4431 = vmatpush.xpose.msra.mxu0 0.0
  %4432 = vmatpush.xpose.msra.mxu0 0.0
  %4433 = vmatpush.xpose.msra.mxu0 0.0
  %4434 = vmatpush.xpose.msra.mxu0 0.0
  %4435 = vmatpush.xpose.msra.mxu0 0.0
  %4436 = vmatpush.xpose.msra.mxu0 0.0
  %4437 = vmatpush.xpose.msra.mxu0 0.0
  %4438 = vmatpush.xpose.msra.mxu0 0.0
  %4439 = vmatpush.xpose.msra.mxu0 0.0
  %4440 = vmatpush.xpose.msra.mxu0 0.0
  %4441 = vmatpush.xpose.msra.mxu0 %v4424
  %4442 = vmatmul.f32.gmra.mxu0 %v4421
  %v4443 = vpop.f32.mrf.mxu0
  %v4444 = vadd.f32 0.0, %v4443
  %4445 = vdwg.mxu0
  %v4446 = vmul.f32 %v4444, 0.35355338
  %v4447 = vadd.f32 %v4446, %v19
  %v4448 = vsel %vm117, %v4447, -inf
  %4449 = vmax.xlane.f32.xlu0 %v4448
  %v4450 = vpop.xlane.xlu0 %4449
  %v4451 = vsub.f32 %v4447, %v4450
  %v4452 = vmul.f32 %v4451, 1.442695
  %v4453 = vpow.pop %v4452
  %v4454 = vsel %vm117, %v4453, 0.0
  %4455 = vadd.xlane.f32.xlu0 %v4454
  %v4456 = vpop.xlane.xlu0 %4455
  %v4457 = vrcp.pop %v4456
  %v4458 = vmul.f32 %v4456, %v4457
  %v4459 = vsub.f32 1.0, %v4458
  %v4460 = vmul.f32 %v4457, %v4459
  %v4461 = vadd.f32 %v4457, %v4460
  %vm4462 = vweird.f32 %v4456
  %vm4463 = vweird.f32 %v4457
  %vm4464 = vmor %vm4462, %vm4463
  %v4465 = vsel %vm4464, %v4457, %v4461
  %v4466 = vand.u32 2147483647, %v4456
  %vm4467 = vcmp.eq.f32.partialorder %v4466, 8.507059e+37
  %v4468 = vand.u32 %v4456, 2147483648
  %v4469 = vor.u32 1.1754944e-38, %v4468
  %v4470 = vsel %vm4467, %v4469, %v4465
  %v4471 = vmul.f32 %v4453, %v4470
  %s4472 = scalar_lea.vmem %s3, 208
  %4473 = vst.msk [vmem:[%s4472] sm:$0xff] %vm117, %v4471
  %v4475 = vsel %vm117, %v4471, 0
  %4477 = vmatpush.msra.mxu0 0.0
  %4478 = vmatpush.msra.mxu0 0.0
  %4479 = vmatpush.msra.mxu0 0.0
  %4480 = vmatpush.msra.mxu0 0.0
  %4481 = vmatpush.msra.mxu0 0.0
  %4482 = vmatpush.msra.mxu0 0.0
  %4483 = vmatpush.msra.mxu0 0.0
  %4484 = vmatpush.msra.mxu0 0.0
  %4485 = vmatpush.msra.mxu0 0.0
  %4486 = vmatpush.msra.mxu0 0.0
  %4487 = vmatpush.msra.mxu0 0.0
  %4488 = vmatpush.msra.mxu0 0.0
  %4489 = vmatpush.msra.mxu0 0.0
  %4490 = vmatpush.msra.mxu0 0.0
  %4491 = vmatpush.msra.mxu0 0.0
  %4492 = vmatpush.msra.mxu0 %v4419
  %4493 = vmatmul.f32.gmra.mxu0 %v4475
  %v4494 = vpop.f32.mrf.mxu0
  %v4495 = vadd.f32 0.0, %v4494
  %4496 = vdwg.mxu0
  %v4497 = vadd.f32 %v4363, %v4336
  %v4498 = vadd.f32 %v4389, %v4337
  %v4499 = vadd.f32 %v4415, %v4338
  %v4501 = vsel %vm117, %v4497, 0
  %v4504 = vsel %vm117, %v4498, 0
  %4506 = vmatpush.xpose.msra.mxu0 0.0
  %4507 = vmatpush.xpose.msra.mxu0 0.0
  %4508 = vmatpush.xpose.msra.mxu0 0.0
  %4509 = vmatpush.xpose.msra.mxu0 0.0
  %4510 = vmatpush.xpose.msra.mxu0 0.0
  %4511 = vmatpush.xpose.msra.mxu0 0.0
  %4512 = vmatpush.xpose.msra.mxu0 0.0
  %4513 = vmatpush.xpose.msra.mxu0 0.0
  %4514 = vmatpush.xpose.msra.mxu0 0.0
  %4515 = vmatpush.xpose.msra.mxu0 0.0
  %4516 = vmatpush.xpose.msra.mxu0 0.0
  %4517 = vmatpush.xpose.msra.mxu0 0.0
  %4518 = vmatpush.xpose.msra.mxu0 0.0
  %4519 = vmatpush.xpose.msra.mxu0 0.0
  %4520 = vmatpush.xpose.msra.mxu0 0.0
  %4521 = vmatpush.xpose.msra.mxu0 %v4504
  %4522 = vmatmul.f32.gmra.mxu0 %v4501
  %v4523 = vpop.f32.mrf.mxu0
  %v4524 = vadd.f32 0.0, %v4523
  %4525 = vdwg.mxu0
  %v4526 = vmul.f32 %v4524, 0.35355338
  %v4527 = vadd.f32 %v4526, %v20
  %v4528 = vsel %vm117, %v4527, -inf
  %4529 = vmax.xlane.f32.xlu0 %v4528
  %v4530 = vpop.xlane.xlu0 %4529
  %v4531 = vsub.f32 %v4527, %v4530
  %v4532 = vmul.f32 %v4531, 1.442695
  %v4533 = vpow.pop %v4532
  %v4534 = vsel %vm117, %v4533, 0.0
  %4535 = vadd.xlane.f32.xlu0 %v4534
  %v4536 = vpop.xlane.xlu0 %4535
  %v4537 = vrcp.pop %v4536
  %v4538 = vmul.f32 %v4536, %v4537
  %v4539 = vsub.f32 1.0, %v4538
  %v4540 = vmul.f32 %v4537, %v4539
  %v4541 = vadd.f32 %v4537, %v4540
  %vm4542 = vweird.f32 %v4536
  %vm4543 = vweird.f32 %v4537
  %vm4544 = vmor %vm4542, %vm4543
  %v4545 = vsel %vm4544, %v4537, %v4541
  %v4546 = vand.u32 2147483647, %v4536
  %vm4547 = vcmp.eq.f32.partialorder %v4546, 8.507059e+37
  %v4548 = vand.u32 %v4536, 2147483648
  %v4549 = vor.u32 1.1754944e-38, %v4548
  %v4550 = vsel %vm4547, %v4549, %v4545
  %v4551 = vmul.f32 %v4533, %v4550
  %s4552 = scalar_lea.vmem %s3, 240
  %4553 = vst.msk [vmem:[%s4552] sm:$0xff] %vm117, %v4551
  %v4555 = vsel %vm117, %v4551, 0
  %4557 = vmatpush.msra.mxu0 0.0
  %4558 = vmatpush.msra.mxu0 0.0
  %4559 = vmatpush.msra.mxu0 0.0
  %4560 = vmatpush.msra.mxu0 0.0
  %4561 = vmatpush.msra.mxu0 0.0
  %4562 = vmatpush.msra.mxu0 0.0
  %4563 = vmatpush.msra.mxu0 0.0
  %4564 = vmatpush.msra.mxu0 0.0
  %4565 = vmatpush.msra.mxu0 0.0
  %4566 = vmatpush.msra.mxu0 0.0
  %4567 = vmatpush.msra.mxu0 0.0
  %4568 = vmatpush.msra.mxu0 0.0
  %4569 = vmatpush.msra.mxu0 0.0
  %4570 = vmatpush.msra.mxu0 0.0
  %4571 = vmatpush.msra.mxu0 0.0
  %4572 = vmatpush.msra.mxu0 %v4499
  %4573 = vmatmul.f32.gmra.mxu0 %v4555
  %v4574 = vpop.f32.mrf.mxu0
  %v4575 = vadd.f32 0.0, %v4574
  %4576 = vdwg.mxu0
  %v4577 = vld [vmem:[%s1 + $0x4d0] sm:$0xff]
  %v4579 = vsel %vm117, %v4495, 0
  %v4582 = vsel %vm117, %v4575, 0
  %4584 = vmatpush.msra.mxu0 0.0
  %4585 = vmatpush.msra.mxu0 0.0
  %4586 = vmatpush.msra.mxu0 0.0
  %4587 = vmatpush.msra.mxu0 0.0
  %4588 = vmatpush.msra.mxu0 0.0
  %4589 = vmatpush.msra.mxu0 0.0
  %4590 = vmatpush.msra.mxu0 0.0
  %4591 = vmatpush.msra.mxu0 0.0
  %4592 = vmatpush.msra.mxu0 0.0
  %4593 = vmatpush.msra.mxu0 0.0
  %4594 = vmatpush.msra.mxu0 0.0
  %4595 = vmatpush.msra.mxu0 0.0
  %4596 = vmatpush.msra.mxu0 0.0
  %4597 = vmatpush.msra.mxu0 0.0
  %4598 = vmatpush.msra.mxu0 0.0
  %4599 = vmatpush.msra.mxu0 %v4577
  %4600 = vmatmul.f32.gmra.mxu0 %v4579
  %v4601 = vpop.f32.mrf.mxu0
  %v4602 = vadd.f32 0.0, %v4601
  %4603 = vmatmul.f32.gmra.mxu0 %v4582
  %v4604 = vpop.f32.mrf.mxu0
  %v4605 = vadd.f32 0.0, %v4604
  %4606 = vdwg.mxu0
  %v4607 = vadd.f32 %v4331, %v4602
  %v4608 = vadd.f32 %v4332, %v4605
  %v4609 = vld [vmem:[%s1 + $0x490] sm:$0xff]
  %v4610 = vld [vmem:[%s1 + $0x498] sm:$0xff]
  %v4611 = vld [vmem:[%s1 + $0x4a0] sm:$0xff]
  %v4612 = vld [vmem:[%s1 + $0x4a8] sm:$0xff]
  %v4613 = vld [vmem:[%s1 + $0x4b0] sm:$0xff]
  %v4614 = vld [vmem:[%s1 + $0x4b8] sm:$0xff]
  %v4616 = vsel %vm29, %v4609, 0
  %4618 = vmatpush.xpose.msra.mxu0 0.0
  %4619 = vmatpush.xpose.msra.mxu0 0.0
  %4620 = vmatpush.xpose.msra.mxu0 0.0
  %4621 = vmatpush.xpose.msra.mxu0 0.0
  %4622 = vmatpush.xpose.msra.mxu0 0.0
  %4623 = vmatpush.xpose.msra.mxu0 0.0
  %4624 = vmatpush.xpose.msra.mxu0 0.0
  %4625 = vmatpush.xpose.msra.mxu0 0.0
  %4626 = vmatpush.xpose.msra.mxu0 0.0
  %4627 = vmatpush.xpose.msra.mxu0 0.0
  %4628 = vmatpush.xpose.msra.mxu0 0.0
  %4629 = vmatpush.xpose.msra.mxu0 0.0
  %4630 = vmatpush.xpose.msra.mxu0 0.0
  %4631 = vmatpush.xpose.msra.mxu0 0.0
  %4632 = vmatpush.xpose.msra.mxu0 0.0
  %4633 = vmatpush.xpose.msra.mxu0 %v4616
  %4634 = vmatmul.f32.gmra.mxu0 %v3782
  %v4635 = vpop.f32.mrf.mxu0
  %v4636 = vadd.f32 0.0, %v4635
  %4637 = vmatmul.f32.gmra.mxu0 %v3785
  %v4638 = vpop.f32.mrf.mxu0
  %v4639 = vadd.f32 0.0, %v4638
  %4640 = vdwg.mxu0
  %v4642 = vsel %vm29, %v4610, 0
  %4644 = vmatpush.xpose.msra.mxu0 0.0
  %4645 = vmatpush.xpose.msra.mxu0 0.0
  %4646 = vmatpush.xpose.msra.mxu0 0.0
  %4647 = vmatpush.xpose.msra.mxu0 0.0
  %4648 = vmatpush.xpose.msra.mxu0 0.0
  %4649 = vmatpush.xpose.msra.mxu0 0.0
  %4650 = vmatpush.xpose.msra.mxu0 0.0
  %4651 = vmatpush.xpose.msra.mxu0 0.0
  %4652 = vmatpush.xpose.msra.mxu0 0.0
  %4653 = vmatpush.xpose.msra.mxu0 0.0
  %4654 = vmatpush.xpose.msra.mxu0 0.0
  %4655 = vmatpush.xpose.msra.mxu0 0.0
  %4656 = vmatpush.xpose.msra.mxu0 0.0
  %4657 = vmatpush.xpose.msra.mxu0 0.0
  %4658 = vmatpush.xpose.msra.mxu0 0.0
  %4659 = vmatpush.xpose.msra.mxu0 %v4642
  %4660 = vmatmul.f32.gmra.mxu0 %v1236
  %v4661 = vpop.f32.mrf.mxu0
  %v4662 = vadd.f32 0.0, %v4661
  %4663 = vmatmul.f32.gmra.mxu0 %v1239
  %v4664 = vpop.f32.mrf.mxu0
  %v4665 = vadd.f32 0.0, %v4664
  %4666 = vdwg.mxu0
  %v4668 = vsel %vm29, %v4611, 0
  %4670 = vmatpush.xpose.msra.mxu0 0.0
  %4671 = vmatpush.xpose.msra.mxu0 0.0
  %4672 = vmatpush.xpose.msra.mxu0 0.0
  %4673 = vmatpush.xpose.msra.mxu0 0.0
  %4674 = vmatpush.xpose.msra.mxu0 0.0
  %4675 = vmatpush.xpose.msra.mxu0 0.0
  %4676 = vmatpush.xpose.msra.mxu0 0.0
  %4677 = vmatpush.xpose.msra.mxu0 0.0
  %4678 = vmatpush.xpose.msra.mxu0 0.0
  %4679 = vmatpush.xpose.msra.mxu0 0.0
  %4680 = vmatpush.xpose.msra.mxu0 0.0
  %4681 = vmatpush.xpose.msra.mxu0 0.0
  %4682 = vmatpush.xpose.msra.mxu0 0.0
  %4683 = vmatpush.xpose.msra.mxu0 0.0
  %4684 = vmatpush.xpose.msra.mxu0 0.0
  %4685 = vmatpush.xpose.msra.mxu0 %v4668
  %4686 = vmatmul.f32.gmra.mxu0 %v1236
  %v4687 = vpop.f32.mrf.mxu0
  %v4688 = vadd.f32 0.0, %v4687
  %4689 = vmatmul.f32.gmra.mxu0 %v1239
  %v4690 = vpop.f32.mrf.mxu0
  %v4691 = vadd.f32 0.0, %v4690
  %4692 = vdwg.mxu0
  %v4693 = vadd.f32 %v4636, %v4612
  %v4694 = vadd.f32 %v4662, %v4613
  %v4695 = vadd.f32 %v4688, %v4614
  %v4697 = vsel %vm117, %v4693, 0
  %v4700 = vsel %vm117, %v4694, 0
  %4702 = vmatpush.xpose.msra.mxu0 0.0
  %4703 = vmatpush.xpose.msra.mxu0 0.0
  %4704 = vmatpush.xpose.msra.mxu0 0.0
  %4705 = vmatpush.xpose.msra.mxu0 0.0
  %4706 = vmatpush.xpose.msra.mxu0 0.0
  %4707 = vmatpush.xpose.msra.mxu0 0.0
  %4708 = vmatpush.xpose.msra.mxu0 0.0
  %4709 = vmatpush.xpose.msra.mxu0 0.0
  %4710 = vmatpush.xpose.msra.mxu0 0.0
  %4711 = vmatpush.xpose.msra.mxu0 0.0
  %4712 = vmatpush.xpose.msra.mxu0 0.0
  %4713 = vmatpush.xpose.msra.mxu0 0.0
  %4714 = vmatpush.xpose.msra.mxu0 0.0
  %4715 = vmatpush.xpose.msra.mxu0 0.0
  %4716 = vmatpush.xpose.msra.mxu0 0.0
  %4717 = vmatpush.xpose.msra.mxu0 %v4700
  %4718 = vmatmul.f32.gmra.mxu0 %v4697
  %v4719 = vpop.f32.mrf.mxu0
  %v4720 = vadd.f32 0.0, %v4719
  %4721 = vdwg.mxu0
  %v4722 = vmul.f32 %v4720, 0.35355338
  %v4723 = vadd.f32 %v4722, %v19
  %v4724 = vsel %vm117, %v4723, -inf
  %4725 = vmax.xlane.f32.xlu0 %v4724
  %v4726 = vpop.xlane.xlu0 %4725
  %v4727 = vsub.f32 %v4723, %v4726
  %v4728 = vmul.f32 %v4727, 1.442695
  %v4729 = vpow.pop %v4728
  %v4730 = vsel %vm117, %v4729, 0.0
  %4731 = vadd.xlane.f32.xlu0 %v4730
  %v4732 = vpop.xlane.xlu0 %4731
  %v4733 = vrcp.pop %v4732
  %v4734 = vmul.f32 %v4732, %v4733
  %v4735 = vsub.f32 1.0, %v4734
  %v4736 = vmul.f32 %v4733, %v4735
  %v4737 = vadd.f32 %v4733, %v4736
  %vm4738 = vweird.f32 %v4732
  %vm4739 = vweird.f32 %v4733
  %vm4740 = vmor %vm4738, %vm4739
  %v4741 = vsel %vm4740, %v4733, %v4737
  %v4742 = vand.u32 2147483647, %v4732
  %vm4743 = vcmp.eq.f32.partialorder %v4742, 8.507059e+37
  %v4744 = vand.u32 %v4732, 2147483648
  %v4745 = vor.u32 1.1754944e-38, %v4744
  %v4746 = vsel %vm4743, %v4745, %v4741
  %v4747 = vmul.f32 %v4729, %v4746
  %s4748 = scalar_lea.vmem %s3, 216
  %4749 = vst.msk [vmem:[%s4748] sm:$0xff] %vm117, %v4747
  %v4751 = vsel %vm117, %v4747, 0
  %4753 = vmatpush.msra.mxu0 0.0
  %4754 = vmatpush.msra.mxu0 0.0
  %4755 = vmatpush.msra.mxu0 0.0
  %4756 = vmatpush.msra.mxu0 0.0
  %4757 = vmatpush.msra.mxu0 0.0
  %4758 = vmatpush.msra.mxu0 0.0
  %4759 = vmatpush.msra.mxu0 0.0
  %4760 = vmatpush.msra.mxu0 0.0
  %4761 = vmatpush.msra.mxu0 0.0
  %4762 = vmatpush.msra.mxu0 0.0
  %4763 = vmatpush.msra.mxu0 0.0
  %4764 = vmatpush.msra.mxu0 0.0
  %4765 = vmatpush.msra.mxu0 0.0
  %4766 = vmatpush.msra.mxu0 0.0
  %4767 = vmatpush.msra.mxu0 0.0
  %4768 = vmatpush.msra.mxu0 %v4695
  %4769 = vmatmul.f32.gmra.mxu0 %v4751
  %v4770 = vpop.f32.mrf.mxu0
  %v4771 = vadd.f32 0.0, %v4770
  %4772 = vdwg.mxu0
  %v4773 = vadd.f32 %v4639, %v4612
  %v4774 = vadd.f32 %v4665, %v4613
  %v4775 = vadd.f32 %v4691, %v4614
  %v4777 = vsel %vm117, %v4773, 0
  %v4780 = vsel %vm117, %v4774, 0
  %4782 = vmatpush.xpose.msra.mxu0 0.0
  %4783 = vmatpush.xpose.msra.mxu0 0.0
  %4784 = vmatpush.xpose.msra.mxu0 0.0
  %4785 = vmatpush.xpose.msra.mxu0 0.0
  %4786 = vmatpush.xpose.msra.mxu0 0.0
  %4787 = vmatpush.xpose.msra.mxu0 0.0
  %4788 = vmatpush.xpose.msra.mxu0 0.0
  %4789 = vmatpush.xpose.msra.mxu0 0.0
  %4790 = vmatpush.xpose.msra.mxu0 0.0
  %4791 = vmatpush.xpose.msra.mxu0 0.0
  %4792 = vmatpush.xpose.msra.mxu0 0.0
  %4793 = vmatpush.xpose.msra.mxu0 0.0
  %4794 = vmatpush.xpose.msra.mxu0 0.0
  %4795 = vmatpush.xpose.msra.mxu0 0.0
  %4796 = vmatpush.xpose.msra.mxu0 0.0
  %4797 = vmatpush.xpose.msra.mxu0 %v4780
  %4798 = vmatmul.f32.gmra.mxu0 %v4777
  %v4799 = vpop.f32.mrf.mxu0
  %v4800 = vadd.f32 0.0, %v4799
  %4801 = vdwg.mxu0
  %v4802 = vmul.f32 %v4800, 0.35355338
  %v4803 = vadd.f32 %v4802, %v20
  %v4804 = vsel %vm117, %v4803, -inf
  %4805 = vmax.xlane.f32.xlu0 %v4804
  %v4806 = vpop.xlane.xlu0 %4805
  %v4807 = vsub.f32 %v4803, %v4806
  %v4808 = vmul.f32 %v4807, 1.442695
  %v4809 = vpow.pop %v4808
  %v4810 = vsel %vm117, %v4809, 0.0
  %4811 = vadd.xlane.f32.xlu0 %v4810
  %v4812 = vpop.xlane.xlu0 %4811
  %v4813 = vrcp.pop %v4812
  %v4814 = vmul.f32 %v4812, %v4813
  %v4815 = vsub.f32 1.0, %v4814
  %v4816 = vmul.f32 %v4813, %v4815
  %v4817 = vadd.f32 %v4813, %v4816
  %vm4818 = vweird.f32 %v4812
  %vm4819 = vweird.f32 %v4813
  %vm4820 = vmor %vm4818, %vm4819
  %v4821 = vsel %vm4820, %v4813, %v4817
  %v4822 = vand.u32 2147483647, %v4812
  %vm4823 = vcmp.eq.f32.partialorder %v4822, 8.507059e+37
  %v4824 = vand.u32 %v4812, 2147483648
  %v4825 = vor.u32 1.1754944e-38, %v4824
  %v4826 = vsel %vm4823, %v4825, %v4821
  %v4827 = vmul.f32 %v4809, %v4826
  %s4828 = scalar_lea.vmem %s3, 248
  %4829 = vst.msk [vmem:[%s4828] sm:$0xff] %vm117, %v4827
  %v4831 = vsel %vm117, %v4827, 0
  %4833 = vmatpush.msra.mxu0 0.0
  %4834 = vmatpush.msra.mxu0 0.0
  %4835 = vmatpush.msra.mxu0 0.0
  %4836 = vmatpush.msra.mxu0 0.0
  %4837 = vmatpush.msra.mxu0 0.0
  %4838 = vmatpush.msra.mxu0 0.0
  %4839 = vmatpush.msra.mxu0 0.0
  %4840 = vmatpush.msra.mxu0 0.0
  %4841 = vmatpush.msra.mxu0 0.0
  %4842 = vmatpush.msra.mxu0 0.0
  %4843 = vmatpush.msra.mxu0 0.0
  %4844 = vmatpush.msra.mxu0 0.0
  %4845 = vmatpush.msra.mxu0 0.0
  %4846 = vmatpush.msra.mxu0 0.0
  %4847 = vmatpush.msra.mxu0 0.0
  %4848 = vmatpush.msra.mxu0 %v4775
  %4849 = vmatmul.f32.gmra.mxu0 %v4831
  %v4850 = vpop.f32.mrf.mxu0
  %v4851 = vadd.f32 0.0, %v4850
  %4852 = vdwg.mxu0
  %v4853 = vld [vmem:[%s1 + $0x4d8] sm:$0xff]
  %v4855 = vsel %vm117, %v4771, 0
  %v4858 = vsel %vm117, %v4851, 0
  %4860 = vmatpush.msra.mxu0 0.0
  %4861 = vmatpush.msra.mxu0 0.0
  %4862 = vmatpush.msra.mxu0 0.0
  %4863 = vmatpush.msra.mxu0 0.0
  %4864 = vmatpush.msra.mxu0 0.0
  %4865 = vmatpush.msra.mxu0 0.0
  %4866 = vmatpush.msra.mxu0 0.0
  %4867 = vmatpush.msra.mxu0 0.0
  %4868 = vmatpush.msra.mxu0 0.0
  %4869 = vmatpush.msra.mxu0 0.0
  %4870 = vmatpush.msra.mxu0 0.0
  %4871 = vmatpush.msra.mxu0 0.0
  %4872 = vmatpush.msra.mxu0 0.0
  %4873 = vmatpush.msra.mxu0 0.0
  %4874 = vmatpush.msra.mxu0 0.0
  %4875 = vmatpush.msra.mxu0 %v4853
  %4876 = vmatmul.f32.gmra.mxu0 %v4855
  %v4877 = vpop.f32.mrf.mxu0
  %v4878 = vadd.f32 0.0, %v4877
  %4879 = vmatmul.f32.gmra.mxu0 %v4858
  %v4880 = vpop.f32.mrf.mxu0
  %v4881 = vadd.f32 0.0, %v4880
  %4882 = vdwg.mxu0
  %v4883 = vadd.f32 %v4607, %v4878
  %v4884 = vadd.f32 %v4608, %v4881
  %v4885 = vld [vmem:[%s1 + $0x4f0] sm:$0xff]
  %v4886 = vld [vmem:[%s1 + $0x4f8] sm:$0xff]
  %v4887 = vld [vmem:[%s1 + $0x500] sm:$0xff]
  %v4888 = vld [vmem:[%s1 + $0x508] sm:$0xff]
  %v4889 = vadd.f32 %v4883, %v3771
  %v4890 = vadd.f32 %v4884, %v3772
  %v4891 = vsel %vm29, %v4889, 0.0
  %4892 = vadd.xlane.f32.xlu0 %v4891
  %v4893 = vpop.xlane.xlu0 %4892
  %v4894 = vsel %vm29, %v4890, 0.0
  %4895 = vadd.xlane.f32.xlu0 %v4894
  %v4896 = vpop.xlane.xlu0 %4895
  %v4897 = vmul.f32 %v4893, %v1152
  %v4898 = vmul.f32 %v4896, %v1152
  %v4899 = vsub.f32 %v4889, %v4897
  %v4900 = vsub.f32 %v4890, %v4898
  %v4901 = vmul.f32 %v4899, %v4899
  %v4902 = vmul.f32 %v4900, %v4900
  %v4903 = vsel %vm29, %v4901, 0.0
  %4904 = vadd.xlane.f32.xlu0 %v4903
  %v4905 = vpop.xlane.xlu0 %4904
  %v4906 = vsel %vm29, %v4902, 0.0
  %4907 = vadd.xlane.f32.xlu0 %v4906
  %v4908 = vpop.xlane.xlu0 %4907
  %v4909 = vmul.f32 %v4905, %v1152
  %v4910 = vmul.f32 %v4908, %v1152
  %v4911 = vmul.f32 %v4885, %v4899
  %v4912 = vmul.f32 %v4886, %v4900
  %v4913 = vadd.f32 %v4909, 1e-05
  %v4914 = vadd.f32 %v4910, 1e-05
  %v4915 = vrsqrt.pop %v4913
  %v4916 = vmul.f32 %v4915, %v4913
  %v4917 = vmul.f32 %v4916, %v4915
  %v4918 = vmul.f32 0.5, %v4917
  %v4919 = vsub.f32 1.5, %v4918
  %v4920 = vmul.f32 %v4915, %v4919
  %vm4921 = vweird.f32 %v4913
  %vm4922 = vweird.f32 %v4915
  %vm4923 = vmor %vm4921, %vm4922
  %v4924 = vsel %vm4923, %v4915, %v4920
  %v4925 = vrsqrt.pop %v4914
  %v4926 = vmul.f32 %v4925, %v4914
  %v4927 = vmul.f32 %v4926, %v4925
  %v4928 = vmul.f32 0.5, %v4927
  %v4929 = vsub.f32 1.5, %v4928
  %v4930 = vmul.f32 %v4925, %v4929
  %vm4931 = vweird.f32 %v4914
  %vm4932 = vweird.f32 %v4925
  %vm4933 = vmor %vm4931, %vm4932
  %v4934 = vsel %vm4933, %v4925, %v4930
  %v4935 = vmul.f32 %v4911, %v4924
  %v4936 = vmul.f32 %v4912, %v4934
  %v4937 = vadd.f32 %v4935, %v4887
  %v4938 = vadd.f32 %v4936, %v4888
  %v4939 = vld [vmem:[%s1 + $0x510] sm:$0xff]
  %v4940 = vld [vmem:[%s1 + $0x518] sm:$0xff]
  %v4941 = vld [vmem:[%s1 + $0x520] sm:$0xff]
  %v4942 = vld [vmem:[%s1 + $0x528] sm:$0xff]
  %v4943 = vld [vmem:[%s1 + $0x530] sm:$0xff]
  %v4944 = vld [vmem:[%s1 + $0x538] sm:$0xff]
  %v4945 = vld [vmem:[%s1 + $0x540] sm:$0xff]
  %v4946 = vld [vmem:[%s1 + $0x548] sm:$0xff]
  %v4947 = vld [vmem:[%s1 + $0x550] sm:$0xff]
  %v4948 = vld [vmem:[%s1 + $0x558] sm:$0xff]
  %v4949 = vld [vmem:[%s1 + $0x560] sm:$0xff]
  %v4950 = vld [vmem:[%s1 + $0x568] sm:$0xff]
  %v4951 = vld [vmem:[%s1 + $0x570] sm:$0xff]
  %v4952 = vld [vmem:[%s1 + $0x578] sm:$0xff]
  %v4953 = vld [vmem:[%s1 + $0x580] sm:$0xff]
  %v4954 = vld [vmem:[%s1 + $0x588] sm:$0xff]
  %v4955 = vld [vmem:[%s1 + $0x590] sm:$0xff]
  %v4956 = vld [vmem:[%s1 + $0x598] sm:$0xff]
  %v4957 = vld [vmem:[%s1 + $0x5a0] sm:$0xff]
  %v4958 = vld [vmem:[%s1 + $0x5a8] sm:$0xff]
  %v4959 = vld [vmem:[%s1 + $0x5b0] sm:$0xff]
  %v4960 = vld [vmem:[%s1 + $0x5b8] sm:$0xff]
  %v4961 = vld [vmem:[%s1 + $0x5c0] sm:$0xff]
  %v4962 = vld [vmem:[%s1 + $0x5c8] sm:$0xff]
  %v4963 = vld [vmem:[%s1 + $0x5d0] sm:$0xff]
  %v4964 = vld [vmem:[%s1 + $0x5d8] sm:$0xff]
  %v4966 = vsel %vm29, %v4937, 0
  %v4969 = vsel %vm29, %v4938, 0
  %v4972 = vsel %vm29, %v4939, 0
  %v4975 = vsel %vm29, %v4940, 0
  %v4978 = vsel %vm29, %v4941, 0
  %v4981 = vsel %vm29, %v4942, 0
  %4983 = vmatpush.xpose.msra.mxu0 0.0
  %4984 = vmatpush.xpose.msra.mxu0 0.0
  %4985 = vmatpush.xpose.msra.mxu0 0.0
  %4986 = vmatpush.xpose.msra.mxu0 0.0
  %4987 = vmatpush.xpose.msra.mxu0 0.0
  %4988 = vmatpush.xpose.msra.mxu0 0.0
  %4989 = vmatpush.xpose.msra.mxu0 0.0
  %4990 = vmatpush.xpose.msra.mxu0 0.0
  %4991 = vmatpush.xpose.msra.mxu0 0.0
  %4992 = vmatpush.xpose.msra.mxu0 0.0
  %4993 = vmatpush.xpose.msra.mxu0 0.0
  %4994 = vmatpush.xpose.msra.mxu0 0.0
  %4995 = vmatpush.xpose.msra.mxu0 %v4981
  %4996 = vmatpush.xpose.msra.mxu0 %v4978
  %4997 = vmatpush.xpose.msra.mxu0 %v4975
  %4998 = vmatpush.xpose.msra.mxu0 %v4972
  %4999 = vmatmul.f32.gmra.mxu0 %v4966
  %v5000 = vpop.f32.mrf.mxu0
  %v5001 = vadd.f32 %v4947, %v5000
  %5002 = vmatmul.f32.gmra.mxu0 %v4969
  %v5003 = vpop.f32.mrf.mxu0
  %v5004 = vadd.f32 %v4948, %v5003
  %5005 = vdwg.mxu0
  %v5006 = vmax.f32 %v5001, 0.0
  %v5007 = vmax.f32 %v5004, 0.0
  %v5009 = vsel %vm29, %v4943, 0
  %v5012 = vsel %vm29, %v4944, 0
  %v5015 = vsel %vm29, %v4945, 0
  %v5018 = vsel %vm29, %v4946, 0
  %5020 = vmatpush.xpose.msra.mxu0 0.0
  %5021 = vmatpush.xpose.msra.mxu0 0.0
  %5022 = vmatpush.xpose.msra.mxu0 0.0
  %5023 = vmatpush.xpose.msra.mxu0 0.0
  %5024 = vmatpush.xpose.msra.mxu0 0.0
  %5025 = vmatpush.xpose.msra.mxu0 0.0
  %5026 = vmatpush.xpose.msra.mxu0 0.0
  %5027 = vmatpush.xpose.msra.mxu0 0.0
  %5028 = vmatpush.xpose.msra.mxu0 0.0
  %5029 = vmatpush.xpose.msra.mxu0 0.0
  %5030 = vmatpush.xpose.msra.mxu0 0.0
  %5031 = vmatpush.xpose.msra.mxu0 0.0
  %5032 = vmatpush.xpose.msra.mxu0 %v5018
  %5033 = vmatpush.xpose.msra.mxu0 %v5015
  %5034 = vmatpush.xpose.msra.mxu0 %v5012
  %5035 = vmatpush.xpose.msra.mxu0 %v5009
  %5036 = vmatmul.f32.gmra.mxu0 %v4966
  %v5037 = vpop.f32.mrf.mxu0
  %v5038 = vadd.f32 %v4949, %v5037
  %5039 = vmatmul.f32.gmra.mxu0 %v4969
  %v5040 = vpop.f32.mrf.mxu0
  %v5041 = vadd.f32 %v4950, %v5040
  %5042 = vdwg.mxu0
  %v5043 = vmax.f32 %v5038, 0.0
  %v5044 = vmax.f32 %v5041, 0.0
  %v5046 = vsel %vm29, %v5043, 0
  %v5049 = vsel %vm29, %v5044, 0
  %v5052 = vsel %vm29, %v4955, 0
  %v5055 = vsel %vm29, %v4956, 0
  %v5058 = vsel %vm29, %v4957, 0
  %v5061 = vsel %vm29, %v4958, 0
  %5063 = vmatpush.xpose.msra.mxu0 0.0
  %5064 = vmatpush.xpose.msra.mxu0 0.0
  %5065 = vmatpush.xpose.msra.mxu0 0.0
  %5066 = vmatpush.xpose.msra.mxu0 0.0
  %5067 = vmatpush.xpose.msra.mxu0 0.0
  %5068 = vmatpush.xpose.msra.mxu0 0.0
  %5069 = vmatpush.xpose.msra.mxu0 0.0
  %5070 = vmatpush.xpose.msra.mxu0 0.0
  %5071 = vmatpush.xpose.msra.mxu0 0.0
  %5072 = vmatpush.xpose.msra.mxu0 0.0
  %5073 = vmatpush.xpose.msra.mxu0 0.0
  %5074 = vmatpush.xpose.msra.mxu0 0.0
  %5075 = vmatpush.xpose.msra.mxu0 %v5061
  %5076 = vmatpush.xpose.msra.mxu0 %v5058
  %5077 = vmatpush.xpose.msra.mxu0 %v5055
  %5078 = vmatpush.xpose.msra.mxu0 %v5052
  %5079 = vmatmul.f32.gmra.mxu0 %v5046
  %v5080 = vpop.f32.mrf.mxu0
  %v5081 = vadd.f32 0.0, %v5080
  %5082 = vmatmul.f32.gmra.mxu0 %v5049
  %v5083 = vpop.f32.mrf.mxu0
  %v5084 = vadd.f32 0.0, %v5083
  %5085 = vdwg.mxu0
  %v5087 = vsel %vm29, %v5006, 0
  %v5090 = vsel %vm29, %v5007, 0
  %v5093 = vsel %vm29, %v4951, 0
  %v5096 = vsel %vm29, %v4952, 0
  %v5099 = vsel %vm29, %v4953, 0
  %v5102 = vsel %vm29, %v4954, 0
  %5104 = vmatpush.xpose.msra.mxu0 0.0
  %5105 = vmatpush.xpose.msra.mxu0 0.0
  %5106 = vmatpush.xpose.msra.mxu0 0.0
  %5107 = vmatpush.xpose.msra.mxu0 0.0
  %5108 = vmatpush.xpose.msra.mxu0 0.0
  %5109 = vmatpush.xpose.msra.mxu0 0.0
  %5110 = vmatpush.xpose.msra.mxu0 0.0
  %5111 = vmatpush.xpose.msra.mxu0 0.0
  %5112 = vmatpush.xpose.msra.mxu0 0.0
  %5113 = vmatpush.xpose.msra.mxu0 0.0
  %5114 = vmatpush.xpose.msra.mxu0 0.0
  %5115 = vmatpush.xpose.msra.mxu0 0.0
  %5116 = vmatpush.xpose.msra.mxu0 %v5102
  %5117 = vmatpush.xpose.msra.mxu0 %v5099
  %5118 = vmatpush.xpose.msra.mxu0 %v5096
  %5119 = vmatpush.xpose.msra.mxu0 %v5093
  %5120 = vmatmul.f32.gmra.mxu0 %v5087
  %v5121 = vpop.f32.mrf.mxu0
  %v5122 = vadd.f32 %v5081, %v5121
  %5123 = vmatmul.f32.gmra.mxu0 %v5090
  %v5124 = vpop.f32.mrf.mxu0
  %v5125 = vadd.f32 %v5084, %v5124
  %5126 = vdwg.mxu0
  %v5127 = vadd.f32 %v5122, %v4959
  %v5128 = vadd.f32 %v5125, %v4960
  %v5129 = vadd.f32 %v5127, %v4937
  %v5130 = vadd.f32 %v5128, %v4938
  %v5131 = vsel %vm29, %v5129, 0.0
  %5132 = vadd.xlane.f32.xlu0 %v5131
  %v5133 = vpop.xlane.xlu0 %5132
  %v5134 = vsel %vm29, %v5130, 0.0
  %5135 = vadd.xlane.f32.xlu0 %v5134
  %v5136 = vpop.xlane.xlu0 %5135
  %v5137 = vmul.f32 %v5133, %v1152
  %v5138 = vmul.f32 %v5136, %v1152
  %v5139 = vsub.f32 %v5129, %v5137
  %v5140 = vsub.f32 %v5130, %v5138
  %v5141 = vmul.f32 %v5139, %v5139
  %v5142 = vmul.f32 %v5140, %v5140
  %v5143 = vsel %vm29, %v5141, 0.0
  %5144 = vadd.xlane.f32.xlu0 %v5143
  %v5145 = vpop.xlane.xlu0 %5144
  %v5146 = vsel %vm29, %v5142, 0.0
  %5147 = vadd.xlane.f32.xlu0 %v5146
  %v5148 = vpop.xlane.xlu0 %5147
  %v5149 = vmul.f32 %v5145, %v1152
  %v5150 = vmul.f32 %v5148, %v1152
  %v5151 = vmul.f32 %v4961, %v5139
  %v5152 = vmul.f32 %v4962, %v5140
  %v5153 = vadd.f32 %v5149, 1e-05
  %v5154 = vadd.f32 %v5150, 1e-05
  %v5155 = vrsqrt.pop %v5153
  %v5156 = vmul.f32 %v5155, %v5153
  %v5157 = vmul.f32 %v5156, %v5155
  %v5158 = vmul.f32 0.5, %v5157
  %v5159 = vsub.f32 1.5, %v5158
  %v5160 = vmul.f32 %v5155, %v5159
  %vm5161 = vweird.f32 %v5153
  %vm5162 = vweird.f32 %v5155
  %vm5163 = vmor %vm5161, %vm5162
  %v5164 = vsel %vm5163, %v5155, %v5160
  %v5165 = vrsqrt.pop %v5154
  %v5166 = vmul.f32 %v5165, %v5154
  %v5167 = vmul.f32 %v5166, %v5165
  %v5168 = vmul.f32 0.5, %v5167
  %v5169 = vsub.f32 1.5, %v5168
  %v5170 = vmul.f32 %v5165, %v5169
  %vm5171 = vweird.f32 %v5154
  %vm5172 = vweird.f32 %v5165
  %vm5173 = vmor %vm5171, %vm5172
  %v5174 = vsel %vm5173, %v5165, %v5170
  %v5175 = vmul.f32 %v5151, %v5164
  %v5176 = vmul.f32 %v5152, %v5174
  %v5177 = vadd.f32 %v5175, %v4963
  %v5178 = vadd.f32 %v5176, %v4964
  %5179 = vst.msk [vmem:[%s2] sm:$0xff] %vm29, %v5177
  %5180 = vst.msk [vmem:[%s2 + $0x8] sm:$0xff] %vm29, %v5178
  // Predicated region
  $region10: #{_decoder_forward.1} parent=0 // pred_check
    _
  $region11: #{_decoder_forward.1} parent=0 // pred_check_branch
    %5182 = sbr.rel (0) target = $region13
  $region12: #{_decoder_forward.1} parent=0 // pred_region
    _
  $region13: #{_decoder_forward.1} parent=0 // pred_fallthru
    _
  // Predicated region
  $region14: #{_decoder_forward.1} parent=0 // pred_check
    _
  $region15: #{_decoder_forward.1} parent=0 // pred_check_branch
    %5184 = sbr.rel (0) target = $region17
  $region16: #{_decoder_forward.1} parent=0 // pred_region
    _
  $region17: #{_decoder_forward.1} parent=0 // pred_fallthru
    _
  // Predicated region
  $region18: #{_decoder_forward.1} parent=0 // pred_check
    _
  $region19: #{_decoder_forward.1} parent=0 // pred_check_branch
    %5186 = sbr.rel (0) target = $region21
  $region20: #{_decoder_forward.1} parent=0 // pred_region
    _
  $region21: #{_decoder_forward.1} parent=0 // pred_fallthru
    _
  // Predicated region
  $region22: #{_decoder_forward.1} parent=0 // pred_check
    _
  $region23: #{_decoder_forward.1} parent=0 // pred_check_branch
    %5188 = sbr.rel (0) target = $region25
  $region24: #{_decoder_forward.1} parent=0 // pred_region
    _
  $region25: #{_decoder_forward.1} parent=0 // pred_fallthru
    _

</llo_original>
